<compile_context>
chip_gen: v7x
topology: tpu7x:2x2x1
jax: 0.10.0
libtpu: 0.0.40
codegen_flags: <defaults>
</compile_context>

<pallas_src>
import functools

import jax
import jax.numpy as jnp
from jax.experimental import pallas as pl
from jax.experimental.pallas import tpu as pltpu

_LANE = 128
_SUBLANE = 8


def _round_up(x, m):
    return ((x + m - 1) // m) * m


def _pad_axis(a, target, axis):
    amount = target - a.shape[axis]
    if amount == 0:
        return a
    pads = [(0, 0)] * a.ndim
    pads[axis] = (0, amount)
    return jnp.pad(a, pads)


# ----------------------------------------------------------------------------
# Fused kernel: one grid step = one batch element.
# ----------------------------------------------------------------------------
def _fused_regressor_kernel(x_ref, w_ref, b_ref, mask_ref, o_ref, buf0, buf1, *,
                            Wp2, Mout, num_layers, base):
    # x_ref    : (Nbuf, Cp)            f32  flattened, halo-padded input
    # w_ref    : (L+1, 9, Cp, Cp)      bf16 per-tap, lane-padded weights
    # b_ref    : (L+1, 1, Cp)          f32  lane-padded biases
    # mask_ref : (Mout, Cp)            f32  1.0 on real pixels, 0.0 on halo
    # o_ref    : (Mout, Cp)            f32  header output (halo rows stripped outside)
    # buf0/1   : (Nbuf, Cp)            f32  ping-pong padded activations
    r0 = base + Wp2 + 1                  # buffer row of output pixel (0, 0); 8-aligned
    mask = mask_ref[...]

    # Halo rows/cols must read as exact zeros in every layer.
    buf0[...] = jnp.zeros_like(buf0)
    buf1[...] = jnp.zeros_like(buf1)
    bufs = (buf0, buf1)

    for layer in range(num_layers + 1):
        src = x_ref if layer == 0 else bufs[(layer - 1) % 2]
        acc = None
        for dy in range(3):
            for dx in range(3):
                s = base + dy * Wp2 + dx                 # static contiguous slice
                patch = src[s:s + Mout, :].astype(jnp.bfloat16)   # (Mout, Cp)
                contrib = jnp.dot(patch, w_ref[layer, 3 * dy + dx],
                                  preferred_element_type=jnp.float32)
                acc = contrib if acc is None else acc + contrib
        acc = acc + b_ref[layer]                          # (1, Cp) sublane-broadcast

        if layer < num_layers:
            # ReLU, re-zero halo positions, keep resident in VMEM for next layer.
            bufs[layer % 2][r0:r0 + Mout, :] = jnp.maximum(acc, 0.0) * mask
        else:
            # Header conv: no ReLU; lane-dense full-block f32 store.
            o_ref[...] = acc


# ----------------------------------------------------------------------------
# Parameters (HWIO conv weights, same semantics as nn.Conv2d(..., padding=1)).
# ----------------------------------------------------------------------------
def init_regressor_params(key, in_channels, num_anchors, num_layers):
    params = {"layers": [], "header": None}
    for _ in range(num_layers):
        key, kw, kb = jax.random.split(key, 3)
        w = 0.05 * jax.random.normal(
            kw, (3, 3, in_channels, in_channels), jnp.float32)
        b = 0.05 * jax.random.normal(kb, (in_channels,), jnp.float32)
        params["layers"].append((w, b))
    key, kw, kb = jax.random.split(key, 3)
    wh = 0.05 * jax.random.normal(
        kw, (3, 3, in_channels, num_anchors * 4), jnp.float32)
    bh = 0.05 * jax.random.normal(kb, (num_anchors * 4,), jnp.float32)
    params["header"] = (wh, bh)
    return params


# ----------------------------------------------------------------------------
# Regressor forward: num_layers x (conv3x3+ReLU) -> header conv3x3
#                    -> permute(0,2,3,1).view(N, -1, 4)
# ----------------------------------------------------------------------------
def regressor_forward(x_nchw, params, num_anchors):
    N, C_in, H, W = x_nchw.shape
    num_layers = len(params["layers"])
    c_head = num_anchors * 4
    Cp = max(_round_up(C_in, _LANE), _round_up(c_head, _LANE))

    Hp2, Wp2 = H + 2, W + 2
    base = (-(Wp2 + 1)) % _SUBLANE                    # makes in-kernel store 8-aligned
    Nbuf = _round_up(base + Hp2 * Wp2 + 2, _SUBLANE)  # covers max tap-slice extent
    Mout = H * Wp2                                    # contiguous rows covering all pixels

    # NCHW -> NHWC, 1-px zero halo, lane-pad channels, flatten rows, row-pad.
    x = jnp.transpose(x_nchw, (0, 2, 3, 1))
    x = jnp.pad(x, ((0, 0), (1, 1), (1, 1), (0, Cp - C_in)))
    x = x.reshape(N, Hp2 * Wp2, Cp)
    x = jnp.pad(x, ((0, 0), (base, Nbuf - base - Hp2 * Wp2), (0, 0)))
    x = x.astype(jnp.float32)

    # Stack lane-padded per-tap weights / biases once for the whole stack.
    w_stack, b_stack = [], []
    for w, b in list(params["layers"]) + [params["header"]]:
        wp = _pad_axis(_pad_axis(w, Cp, 2), Cp, 3)            # (3,3,Cp,Cp)
        w_stack.append(wp.reshape(9, Cp, Cp))
        b_stack.append(_pad_axis(b, Cp, 0))
    w_all = jnp.stack(w_stack).astype(jnp.bfloat16)           # (L+1, 9, Cp, Cp)
    b_all = jnp.stack(b_stack)[:, None, :].astype(jnp.float32)  # (L+1, 1, Cp)

    # Interior mask over the Mout computed rows (zero on halo columns/rows).
    m2 = jnp.zeros((Hp2, Wp2), jnp.float32).at[1:H + 1, 1:W + 1].set(1.0)
    mask_rows = m2.reshape(-1)[Wp2 + 1: Wp2 + 1 + Mout]
    mask = jnp.broadcast_to(mask_rows[:, None], (Mout, Cp)).astype(jnp.float32)

    kernel = functools.partial(_fused_regressor_kernel, Wp2=Wp2, Mout=Mout,
                               num_layers=num_layers, base=base)

    out = pl.pallas_call(
        kernel,
        out_shape=jax.ShapeDtypeStruct((N, Mout, Cp), jnp.float32),
        grid_spec=pltpu.PrefetchScalarGridSpec(
            num_scalar_prefetch=0,
            grid=(N,),
            in_specs=[
                pl.BlockSpec((None, Nbuf, Cp), lambda n: (n, 0, 0)),
                pl.BlockSpec((num_layers + 1, 9, Cp, Cp), lambda n: (0, 0, 0, 0)),
                pl.BlockSpec((num_layers + 1, 1, Cp), lambda n: (0, 0, 0)),
                pl.BlockSpec((Mout, Cp), lambda n: (0, 0)),
            ],
            out_specs=pl.BlockSpec((None, Mout, Cp), lambda n: (n, 0, 0)),
            scratch_shapes=[
                pltpu.VMEM((Nbuf, Cp), jnp.float32),
                pltpu.VMEM((Nbuf, Cp), jnp.float32),
            ],
        ),
        compiler_params=pltpu.CompilerParams(
            dimension_semantics=("parallel",),
        ),
    )(x, w_all, b_all, mask)

    # Row k of `out` is padded position (y, x') with k = y*Wp2 + x'; keep x' < W,
    # strip lane padding -> (N, H, W, 4A) == PyTorch permute(0,2,3,1), then view.
    out = out.reshape(N, H, Wp2, Cp)[:, :, :W, :c_head]
    return out.reshape(N, H * W * num_anchors, 4)


# ----------------------------------------------------------------------------
# Pure-JAX reference with the identical bf16-matmul / f32-accumulate dataflow.
# ----------------------------------------------------------------------------
def _ref_forward(x_nchw, params, num_anchors):
    x = jnp.transpose(x_nchw, (0, 2, 3, 1)).astype(jnp.float32)

    def conv(x, w, b):
        y = jax.lax.conv_general_dilated(
            x.astype(jnp.bfloat16), w.astype(jnp.bfloat16),
            window_strides=(1, 1), padding="SAME",
            dimension_numbers=("NHWC", "HWIO", "NHWC"),
            preferred_element_type=jnp.float32,
        )
        return y + b

    for w, b in params["layers"]:
        x = jnp.maximum(conv(x, w, b), 0.0)
    wh, bh = params["header"]
    x = conv(x, wh, bh)
    N, H, W, _ = x.shape
    return x.reshape(N, H * W * num_anchors, 4)


if __name__ == "__main__":
    # Small config consistent with the module's forward:
    #   in_channels=16, num_anchors=3, num_layers=2, input (N=2, C=16, H=16, W=16)
    in_channels, num_anchors, num_layers = 16, 3, 2
    N, H, W = 2, 16, 16

    key = jax.random.PRNGKey(0)
    key, kx, kp = jax.random.split(key, 3)
    x = jax.random.normal(kx, (N, in_channels, H, W), jnp.float32)
    params = init_regressor_params(kp, in_channels, num_anchors, num_layers)

    fwd = jax.jit(lambda xx, pp: regressor_forward(xx, pp, num_anchors))
    out = jax.block_until_ready(fwd(x, params))
    assert out.shape == (N, H * W * num_anchors, 4), out.shape

    ref = jax.block_until_ready(_ref_forward(x, params, num_anchors))
    assert jnp.allclose(out, ref, atol=2e-2, rtol=2e-2), (
        float(jnp.max(jnp.abs(out - ref))))

    print("KERNEL_OK")
</pallas_src>

<mosaic_0001>
module attributes {stable_mosaic.version = 11 : i64} {
  func.func @_fused_regressor_kernel(%arg0: i32, %arg1: memref<1x336x128xf32, #tpu.memory_space<vmem>>, %arg2: memref<3x9x128x128xbf16, #tpu.memory_space<vmem>>, %arg3: memref<3x1x128xf32, #tpu.memory_space<vmem>>, %arg4: memref<288x128xf32, #tpu.memory_space<vmem>>, %arg5: memref<1x288x128xf32, #tpu.memory_space<vmem>>, %arg6: memref<336x128xf32, #tpu.memory_space<vmem>>, %arg7: memref<336x128xf32, #tpu.memory_space<vmem>>) attributes {dimension_semantics = [#tpu.dimension_semantics<parallel>], iteration_bounds = array<i64: 2>, scalar_prefetch = 0 : i64, scratch_operands = 2 : i64, tpu.core_type = #tpu.core_type<tc>, window_params = [{transform_indices = @transform_0, window_bounds = array<i64: 1, 336, 128>}, {pipeline_mode = #tpu.pipeline_mode<synchronous>, transform_indices = @transform_1, window_bounds = array<i64: 3, 9, 128, 128>}, {pipeline_mode = #tpu.pipeline_mode<synchronous>, transform_indices = @transform_2, window_bounds = array<i64: 3, 1, 128>}, {pipeline_mode = #tpu.pipeline_mode<synchronous>, transform_indices = @transform_3, window_bounds = array<i64: 288, 128>}, {transform_indices = @transform_4, window_bounds = array<i64: 1, 288, 128>}]} {
    %c0 = arith.constant 0 : index
    %c0_0 = arith.constant 0 : index
    %0 = vector.load %arg4[%c0, %c0_0] : memref<288x128xf32, #tpu.memory_space<vmem>>, vector<288x128xf32>
    %cst = arith.constant 0.000000e+00 : f32
    %1 = vector.broadcast %cst : f32 to vector<336x128xf32>
    %c0_1 = arith.constant 0 : index
    %c0_2 = arith.constant 0 : index
    %2 = vector.load %arg6[%c0_1, %c0_2] : memref<336x128xf32, #tpu.memory_space<vmem>>, vector<336x128xf32>
    tpu.vector_store %arg6[%c0_1, %c0_2], %1 {strides = array<i32>} : memref<336x128xf32, #tpu.memory_space<vmem>>, vector<336x128xf32>,
    %cst_3 = arith.constant 0.000000e+00 : f32
    %3 = vector.broadcast %cst_3 : f32 to vector<336x128xf32>
    %c0_4 = arith.constant 0 : index
    %c0_5 = arith.constant 0 : index
    %4 = vector.load %arg7[%c0_4, %c0_5] : memref<336x128xf32, #tpu.memory_space<vmem>>, vector<336x128xf32>
    tpu.vector_store %arg7[%c0_4, %c0_5], %3 {strides = array<i32>} : memref<336x128xf32, #tpu.memory_space<vmem>>, vector<336x128xf32>,
    %c0_6 = arith.constant 0 : index
    %c5 = arith.constant 5 : index
    %c0_7 = arith.constant 0 : index
    %5 = vector.load %arg1[%c0_6, %c5, %c0_7] : memref<1x336x128xf32, #tpu.memory_space<vmem>>, vector<1x288x128xf32>
    %6 = vector.shape_cast %5 : vector<1x288x128xf32> to vector<288x128xf32>
    %7 = arith.truncf %6 : vector<288x128xf32> to vector<288x128xbf16>
    %c0_8 = arith.constant 0 : index
    %c0_9 = arith.constant 0 : index
    %c0_10 = arith.constant 0 : index
    %c0_11 = arith.constant 0 : index
    %8 = vector.load %arg2[%c0_8, %c0_9, %c0_10, %c0_11] : memref<3x9x128x128xbf16, #tpu.memory_space<vmem>>, vector<1x1x128x128xbf16>
    %9 = vector.shape_cast %8 : vector<1x1x128x128xbf16> to vector<128x128xbf16>
    %cst_12 = arith.constant dense<0.000000e+00> : vector<288x128xf32>
    %10 = tpu.matmul %7, %9, %cst_12 {dimension_numbers = #tpu.dot_dimension_numbers<[1], [0], [0], [1], [0, 0, 1, 1], [], []>} : vector<288x128xbf16>, vector<128x128xbf16>, vector<288x128xf32> -> vector<288x128xf32>
    %c0_13 = arith.constant 0 : index
    %c6 = arith.constant 6 : index
    %c0_14 = arith.constant 0 : index
    %11 = vector.load %arg1[%c0_13, %c6, %c0_14] : memref<1x336x128xf32, #tpu.memory_space<vmem>>, vector<1x288x128xf32>
    %12 = vector.shape_cast %11 : vector<1x288x128xf32> to vector<288x128xf32>
    %13 = arith.truncf %12 : vector<288x128xf32> to vector<288x128xbf16>
    %c0_15 = arith.constant 0 : index
    %c1 = arith.constant 1 : index
    %c0_16 = arith.constant 0 : index
    %c0_17 = arith.constant 0 : index
    %14 = vector.load %arg2[%c0_15, %c1, %c0_16, %c0_17] : memref<3x9x128x128xbf16, #tpu.memory_space<vmem>>, vector<1x1x128x128xbf16>
    %15 = vector.shape_cast %14 : vector<1x1x128x128xbf16> to vector<128x128xbf16>
    %cst_18 = arith.constant dense<0.000000e+00> : vector<288x128xf32>
    %16 = tpu.matmul %13, %15, %cst_18 {dimension_numbers = #tpu.dot_dimension_numbers<[1], [0], [0], [1], [0, 0, 1, 1], [], []>} : vector<288x128xbf16>, vector<128x128xbf16>, vector<288x128xf32> -> vector<288x128xf32>
    %17 = arith.addf %10, %16 : vector<288x128xf32>
    %c0_19 = arith.constant 0 : index
    %c7 = arith.constant 7 : index
    %c0_20 = arith.constant 0 : index
    %18 = vector.load %arg1[%c0_19, %c7, %c0_20] : memref<1x336x128xf32, #tpu.memory_space<vmem>>, vector<1x288x128xf32>
    %19 = vector.shape_cast %18 : vector<1x288x128xf32> to vector<288x128xf32>
    %20 = arith.truncf %19 : vector<288x128xf32> to vector<288x128xbf16>
    %c0_21 = arith.constant 0 : index
    %c2 = arith.constant 2 : index
    %c0_22 = arith.constant 0 : index
    %c0_23 = arith.constant 0 : index
    %21 = vector.load %arg2[%c0_21, %c2, %c0_22, %c0_23] : memref<3x9x128x128xbf16, #tpu.memory_space<vmem>>, vector<1x1x128x128xbf16>
    %22 = vector.shape_cast %21 : vector<1x1x128x128xbf16> to vector<128x128xbf16>
    %cst_24 = arith.constant dense<0.000000e+00> : vector<288x128xf32>
    %23 = tpu.matmul %20, %22, %cst_24 {dimension_numbers = #tpu.dot_dimension_numbers<[1], [0], [0], [1], [0, 0, 1, 1], [], []>} : vector<288x128xbf16>, vector<128x128xbf16>, vector<288x128xf32> -> vector<288x128xf32>
    %24 = arith.addf %17, %23 : vector<288x128xf32>
    %c0_25 = arith.constant 0 : index
    %c23 = arith.constant 23 : index
    %c0_26 = arith.constant 0 : index
    %25 = vector.load %arg1[%c0_25, %c23, %c0_26] : memref<1x336x128xf32, #tpu.memory_space<vmem>>, vector<1x288x128xf32>
    %26 = vector.shape_cast %25 : vector<1x288x128xf32> to vector<288x128xf32>
    %27 = arith.truncf %26 : vector<288x128xf32> to vector<288x128xbf16>
    %c0_27 = arith.constant 0 : index
    %c3 = arith.constant 3 : index
    %c0_28 = arith.constant 0 : index
    %c0_29 = arith.constant 0 : index
    %28 = vector.load %arg2[%c0_27, %c3, %c0_28, %c0_29] : memref<3x9x128x128xbf16, #tpu.memory_space<vmem>>, vector<1x1x128x128xbf16>
    %29 = vector.shape_cast %28 : vector<1x1x128x128xbf16> to vector<128x128xbf16>
    %cst_30 = arith.constant dense<0.000000e+00> : vector<288x128xf32>
    %30 = tpu.matmul %27, %29, %cst_30 {dimension_numbers = #tpu.dot_dimension_numbers<[1], [0], [0], [1], [0, 0, 1, 1], [], []>} : vector<288x128xbf16>, vector<128x128xbf16>, vector<288x128xf32> -> vector<288x128xf32>
    %31 = arith.addf %24, %30 : vector<288x128xf32>
    %c0_31 = arith.constant 0 : index
    %c24 = arith.constant 24 : index
    %c0_32 = arith.constant 0 : index
    %32 = vector.load %arg1[%c0_31, %c24, %c0_32] : memref<1x336x128xf32, #tpu.memory_space<vmem>>, vector<1x288x128xf32>
    %33 = vector.shape_cast %32 : vector<1x288x128xf32> to vector<288x128xf32>
    %34 = arith.truncf %33 : vector<288x128xf32> to vector<288x128xbf16>
    %c0_33 = arith.constant 0 : index
    %c4 = arith.constant 4 : index
    %c0_34 = arith.constant 0 : index
    %c0_35 = arith.constant 0 : index
    %35 = vector.load %arg2[%c0_33, %c4, %c0_34, %c0_35] : memref<3x9x128x128xbf16, #tpu.memory_space<vmem>>, vector<1x1x128x128xbf16>
    %36 = vector.shape_cast %35 : vector<1x1x128x128xbf16> to vector<128x128xbf16>
    %cst_36 = arith.constant dense<0.000000e+00> : vector<288x128xf32>
    %37 = tpu.matmul %34, %36, %cst_36 {dimension_numbers = #tpu.dot_dimension_numbers<[1], [0], [0], [1], [0, 0, 1, 1], [], []>} : vector<288x128xbf16>, vector<128x128xbf16>, vector<288x128xf32> -> vector<288x128xf32>
    %38 = arith.addf %31, %37 : vector<288x128xf32>
    %c0_37 = arith.constant 0 : index
    %c25 = arith.constant 25 : index
    %c0_38 = arith.constant 0 : index
    %39 = vector.load %arg1[%c0_37, %c25, %c0_38] : memref<1x336x128xf32, #tpu.memory_space<vmem>>, vector<1x288x128xf32>
    %40 = vector.shape_cast %39 : vector<1x288x128xf32> to vector<288x128xf32>
    %41 = arith.truncf %40 : vector<288x128xf32> to vector<288x128xbf16>
    %c0_39 = arith.constant 0 : index
    %c5_40 = arith.constant 5 : index
    %c0_41 = arith.constant 0 : index
    %c0_42 = arith.constant 0 : index
    %42 = vector.load %arg2[%c0_39, %c5_40, %c0_41, %c0_42] : memref<3x9x128x128xbf16, #tpu.memory_space<vmem>>, vector<1x1x128x128xbf16>
    %43 = vector.shape_cast %42 : vector<1x1x128x128xbf16> to vector<128x128xbf16>
    %cst_43 = arith.constant dense<0.000000e+00> : vector<288x128xf32>
    %44 = tpu.matmul %41, %43, %cst_43 {dimension_numbers = #tpu.dot_dimension_numbers<[1], [0], [0], [1], [0, 0, 1, 1], [], []>} : vector<288x128xbf16>, vector<128x128xbf16>, vector<288x128xf32> -> vector<288x128xf32>
    %45 = arith.addf %38, %44 : vector<288x128xf32>
    %c0_44 = arith.constant 0 : index
    %c41 = arith.constant 41 : index
    %c0_45 = arith.constant 0 : index
    %46 = vector.load %arg1[%c0_44, %c41, %c0_45] : memref<1x336x128xf32, #tpu.memory_space<vmem>>, vector<1x288x128xf32>
    %47 = vector.shape_cast %46 : vector<1x288x128xf32> to vector<288x128xf32>
    %48 = arith.truncf %47 : vector<288x128xf32> to vector<288x128xbf16>
    %c0_46 = arith.constant 0 : index
    %c6_47 = arith.constant 6 : index
    %c0_48 = arith.constant 0 : index
    %c0_49 = arith.constant 0 : index
    %49 = vector.load %arg2[%c0_46, %c6_47, %c0_48, %c0_49] : memref<3x9x128x128xbf16, #tpu.memory_space<vmem>>, vector<1x1x128x128xbf16>
    %50 = vector.shape_cast %49 : vector<1x1x128x128xbf16> to vector<128x128xbf16>
    %cst_50 = arith.constant dense<0.000000e+00> : vector<288x128xf32>
    %51 = tpu.matmul %48, %50, %cst_50 {dimension_numbers = #tpu.dot_dimension_numbers<[1], [0], [0], [1], [0, 0, 1, 1], [], []>} : vector<288x128xbf16>, vector<128x128xbf16>, vector<288x128xf32> -> vector<288x128xf32>
    %52 = arith.addf %45, %51 : vector<288x128xf32>
    %c0_51 = arith.constant 0 : index
    %c42 = arith.constant 42 : index
    %c0_52 = arith.constant 0 : index
    %53 = vector.load %arg1[%c0_51, %c42, %c0_52] : memref<1x336x128xf32, #tpu.memory_space<vmem>>, vector<1x288x128xf32>
    %54 = vector.shape_cast %53 : vector<1x288x128xf32> to vector<288x128xf32>
    %55 = arith.truncf %54 : vector<288x128xf32> to vector<288x128xbf16>
    %c0_53 = arith.constant 0 : index
    %c7_54 = arith.constant 7 : index
    %c0_55 = arith.constant 0 : index
    %c0_56 = arith.constant 0 : index
    %56 = vector.load %arg2[%c0_53, %c7_54, %c0_55, %c0_56] : memref<3x9x128x128xbf16, #tpu.memory_space<vmem>>, vector<1x1x128x128xbf16>
    %57 = vector.shape_cast %56 : vector<1x1x128x128xbf16> to vector<128x128xbf16>
    %cst_57 = arith.constant dense<0.000000e+00> : vector<288x128xf32>
    %58 = tpu.matmul %55, %57, %cst_57 {dimension_numbers = #tpu.dot_dimension_numbers<[1], [0], [0], [1], [0, 0, 1, 1], [], []>} : vector<288x128xbf16>, vector<128x128xbf16>, vector<288x128xf32> -> vector<288x128xf32>
    %59 = arith.addf %52, %58 : vector<288x128xf32>
    %c0_58 = arith.constant 0 : index
    %c43 = arith.constant 43 : index
    %c0_59 = arith.constant 0 : index
    %60 = vector.load %arg1[%c0_58, %c43, %c0_59] : memref<1x336x128xf32, #tpu.memory_space<vmem>>, vector<1x288x128xf32>
    %61 = vector.shape_cast %60 : vector<1x288x128xf32> to vector<288x128xf32>
    %62 = arith.truncf %61 : vector<288x128xf32> to vector<288x128xbf16>
    %c0_60 = arith.constant 0 : index
    %c8 = arith.constant 8 : index
    %c0_61 = arith.constant 0 : index
    %c0_62 = arith.constant 0 : index
    %63 = vector.load %arg2[%c0_60, %c8, %c0_61, %c0_62] : memref<3x9x128x128xbf16, #tpu.memory_space<vmem>>, vector<1x1x128x128xbf16>
    %64 = vector.shape_cast %63 : vector<1x1x128x128xbf16> to vector<128x128xbf16>
    %cst_63 = arith.constant dense<0.000000e+00> : vector<288x128xf32>
    %65 = tpu.matmul %62, %64, %cst_63 {dimension_numbers = #tpu.dot_dimension_numbers<[1], [0], [0], [1], [0, 0, 1, 1], [], []>} : vector<288x128xbf16>, vector<128x128xbf16>, vector<288x128xf32> -> vector<288x128xf32>
    %66 = arith.addf %59, %65 : vector<288x128xf32>
    %c0_64 = arith.constant 0 : index
    %c0_65 = arith.constant 0 : index
    %c0_66 = arith.constant 0 : index
    %67 = vector.load %arg3[%c0_64, %c0_65, %c0_66] : memref<3x1x128xf32, #tpu.memory_space<vmem>>, vector<1x1x128xf32>
    %68 = vector.shape_cast %67 : vector<1x1x128xf32> to vector<1x128xf32>
    %69 = vector.broadcast %68 : vector<1x128xf32> to vector<288x128xf32>
    %70 = arith.addf %66, %69 : vector<288x128xf32>
    %cst_67 = arith.constant 0.000000e+00 : f32
    %71 = vector.broadcast %cst_67 : f32 to vector<288x128xf32>
    %72 = arith.maximumf %70, %71 : vector<288x128xf32>
    %73 = arith.mulf %72, %0 : vector<288x128xf32>
    %c24_68 = arith.constant 24 : index
    %c0_69 = arith.constant 0 : index
    %74 = vector.load %arg6[%c24_68, %c0_69] : memref<336x128xf32, #tpu.memory_space<vmem>>, vector<288x128xf32>
    tpu.vector_store %arg6[%c24_68, %c0_69], %73 {strides = array<i32>} : memref<336x128xf32, #tpu.memory_space<vmem>>, vector<288x128xf32>,
    %c5_70 = arith.constant 5 : index
    %c0_71 = arith.constant 0 : index
    %75 = vector.load %arg6[%c5_70, %c0_71] : memref<336x128xf32, #tpu.memory_space<vmem>>, vector<288x128xf32>
    %76 = arith.truncf %75 : vector<288x128xf32> to vector<288x128xbf16>
    %c1_72 = arith.constant 1 : index
    %c0_73 = arith.constant 0 : index
    %c0_74 = arith.constant 0 : index
    %c0_75 = arith.constant 0 : index
    %77 = vector.load %arg2[%c1_72, %c0_73, %c0_74, %c0_75] : memref<3x9x128x128xbf16, #tpu.memory_space<vmem>>, vector<1x1x128x128xbf16>
    %78 = vector.shape_cast %77 : vector<1x1x128x128xbf16> to vector<128x128xbf16>
    %cst_76 = arith.constant dense<0.000000e+00> : vector<288x128xf32>
    %79 = tpu.matmul %76, %78, %cst_76 {dimension_numbers = #tpu.dot_dimension_numbers<[1], [0], [0], [1], [0, 0, 1, 1], [], []>} : vector<288x128xbf16>, vector<128x128xbf16>, vector<288x128xf32> -> vector<288x128xf32>
    %c6_77 = arith.constant 6 : index
    %c0_78 = arith.constant 0 : index
    %80 = vector.load %arg6[%c6_77, %c0_78] : memref<336x128xf32, #tpu.memory_space<vmem>>, vector<288x128xf32>
    %81 = arith.truncf %80 : vector<288x128xf32> to vector<288x128xbf16>
    %c1_79 = arith.constant 1 : index
    %c1_80 = arith.constant 1 : index
    %c0_81 = arith.constant 0 : index
    %c0_82 = arith.constant 0 : index
    %82 = vector.load %arg2[%c1_79, %c1_80, %c0_81, %c0_82] : memref<3x9x128x128xbf16, #tpu.memory_space<vmem>>, vector<1x1x128x128xbf16>
    %83 = vector.shape_cast %82 : vector<1x1x128x128xbf16> to vector<128x128xbf16>
    %cst_83 = arith.constant dense<0.000000e+00> : vector<288x128xf32>
    %84 = tpu.matmul %81, %83, %cst_83 {dimension_numbers = #tpu.dot_dimension_numbers<[1], [0], [0], [1], [0, 0, 1, 1], [], []>} : vector<288x128xbf16>, vector<128x128xbf16>, vector<288x128xf32> -> vector<288x128xf32>
    %85 = arith.addf %79, %84 : vector<288x128xf32>
    %c7_84 = arith.constant 7 : index
    %c0_85 = arith.constant 0 : index
    %86 = vector.load %arg6[%c7_84, %c0_85] : memref<336x128xf32, #tpu.memory_space<vmem>>, vector<288x128xf32>
    %87 = arith.truncf %86 : vector<288x128xf32> to vector<288x128xbf16>
    %c1_86 = arith.constant 1 : index
    %c2_87 = arith.constant 2 : index
    %c0_88 = arith.constant 0 : index
    %c0_89 = arith.constant 0 : index
    %88 = vector.load %arg2[%c1_86, %c2_87, %c0_88, %c0_89] : memref<3x9x128x128xbf16, #tpu.memory_space<vmem>>, vector<1x1x128x128xbf16>
    %89 = vector.shape_cast %88 : vector<1x1x128x128xbf16> to vector<128x128xbf16>
    %cst_90 = arith.constant dense<0.000000e+00> : vector<288x128xf32>
    %90 = tpu.matmul %87, %89, %cst_90 {dimension_numbers = #tpu.dot_dimension_numbers<[1], [0], [0], [1], [0, 0, 1, 1], [], []>} : vector<288x128xbf16>, vector<128x128xbf16>, vector<288x128xf32> -> vector<288x128xf32>
    %91 = arith.addf %85, %90 : vector<288x128xf32>
    %c23_91 = arith.constant 23 : index
    %c0_92 = arith.constant 0 : index
    %92 = vector.load %arg6[%c23_91, %c0_92] : memref<336x128xf32, #tpu.memory_space<vmem>>, vector<288x128xf32>
    %93 = arith.truncf %92 : vector<288x128xf32> to vector<288x128xbf16>
    %c1_93 = arith.constant 1 : index
    %c3_94 = arith.constant 3 : index
    %c0_95 = arith.constant 0 : index
    %c0_96 = arith.constant 0 : index
    %94 = vector.load %arg2[%c1_93, %c3_94, %c0_95, %c0_96] : memref<3x9x128x128xbf16, #tpu.memory_space<vmem>>, vector<1x1x128x128xbf16>
    %95 = vector.shape_cast %94 : vector<1x1x128x128xbf16> to vector<128x128xbf16>
    %cst_97 = arith.constant dense<0.000000e+00> : vector<288x128xf32>
    %96 = tpu.matmul %93, %95, %cst_97 {dimension_numbers = #tpu.dot_dimension_numbers<[1], [0], [0], [1], [0, 0, 1, 1], [], []>} : vector<288x128xbf16>, vector<128x128xbf16>, vector<288x128xf32> -> vector<288x128xf32>
    %97 = arith.addf %91, %96 : vector<288x128xf32>
    %c24_98 = arith.constant 24 : index
    %c0_99 = arith.constant 0 : index
    %98 = vector.load %arg6[%c24_98, %c0_99] : memref<336x128xf32, #tpu.memory_space<vmem>>, vector<288x128xf32>
    %99 = arith.truncf %98 : vector<288x128xf32> to vector<288x128xbf16>
    %c1_100 = arith.constant 1 : index
    %c4_101 = arith.constant 4 : index
    %c0_102 = arith.constant 0 : index
    %c0_103 = arith.constant 0 : index
    %100 = vector.load %arg2[%c1_100, %c4_101, %c0_102, %c0_103] : memref<3x9x128x128xbf16, #tpu.memory_space<vmem>>, vector<1x1x128x128xbf16>
    %101 = vector.shape_cast %100 : vector<1x1x128x128xbf16> to vector<128x128xbf16>
    %cst_104 = arith.constant dense<0.000000e+00> : vector<288x128xf32>
    %102 = tpu.matmul %99, %101, %cst_104 {dimension_numbers = #tpu.dot_dimension_numbers<[1], [0], [0], [1], [0, 0, 1, 1], [], []>} : vector<288x128xbf16>, vector<128x128xbf16>, vector<288x128xf32> -> vector<288x128xf32>
    %103 = arith.addf %97, %102 : vector<288x128xf32>
    %c25_105 = arith.constant 25 : index
    %c0_106 = arith.constant 0 : index
    %104 = vector.load %arg6[%c25_105, %c0_106] : memref<336x128xf32, #tpu.memory_space<vmem>>, vector<288x128xf32>
    %105 = arith.truncf %104 : vector<288x128xf32> to vector<288x128xbf16>
    %c1_107 = arith.constant 1 : index
    %c5_108 = arith.constant 5 : index
    %c0_109 = arith.constant 0 : index
    %c0_110 = arith.constant 0 : index
    %106 = vector.load %arg2[%c1_107, %c5_108, %c0_109, %c0_110] : memref<3x9x128x128xbf16, #tpu.memory_space<vmem>>, vector<1x1x128x128xbf16>
    %107 = vector.shape_cast %106 : vector<1x1x128x128xbf16> to vector<128x128xbf16>
    %cst_111 = arith.constant dense<0.000000e+00> : vector<288x128xf32>
    %108 = tpu.matmul %105, %107, %cst_111 {dimension_numbers = #tpu.dot_dimension_numbers<[1], [0], [0], [1], [0, 0, 1, 1], [], []>} : vector<288x128xbf16>, vector<128x128xbf16>, vector<288x128xf32> -> vector<288x128xf32>
    %109 = arith.addf %103, %108 : vector<288x128xf32>
    %c41_112 = arith.constant 41 : index
    %c0_113 = arith.constant 0 : index
    %110 = vector.load %arg6[%c41_112, %c0_113] : memref<336x128xf32, #tpu.memory_space<vmem>>, vector<288x128xf32>
    %111 = arith.truncf %110 : vector<288x128xf32> to vector<288x128xbf16>
    %c1_114 = arith.constant 1 : index
    %c6_115 = arith.constant 6 : index
    %c0_116 = arith.constant 0 : index
    %c0_117 = arith.constant 0 : index
    %112 = vector.load %arg2[%c1_114, %c6_115, %c0_116, %c0_117] : memref<3x9x128x128xbf16, #tpu.memory_space<vmem>>, vector<1x1x128x128xbf16>
    %113 = vector.shape_cast %112 : vector<1x1x128x128xbf16> to vector<128x128xbf16>
    %cst_118 = arith.constant dense<0.000000e+00> : vector<288x128xf32>
    %114 = tpu.matmul %111, %113, %cst_118 {dimension_numbers = #tpu.dot_dimension_numbers<[1], [0], [0], [1], [0, 0, 1, 1], [], []>} : vector<288x128xbf16>, vector<128x128xbf16>, vector<288x128xf32> -> vector<288x128xf32>
    %115 = arith.addf %109, %114 : vector<288x128xf32>
    %c42_119 = arith.constant 42 : index
    %c0_120 = arith.constant 0 : index
    %116 = vector.load %arg6[%c42_119, %c0_120] : memref<336x128xf32, #tpu.memory_space<vmem>>, vector<288x128xf32>
    %117 = arith.truncf %116 : vector<288x128xf32> to vector<288x128xbf16>
    %c1_121 = arith.constant 1 : index
    %c7_122 = arith.constant 7 : index
    %c0_123 = arith.constant 0 : index
    %c0_124 = arith.constant 0 : index
    %118 = vector.load %arg2[%c1_121, %c7_122, %c0_123, %c0_124] : memref<3x9x128x128xbf16, #tpu.memory_space<vmem>>, vector<1x1x128x128xbf16>
    %119 = vector.shape_cast %118 : vector<1x1x128x128xbf16> to vector<128x128xbf16>
    %cst_125 = arith.constant dense<0.000000e+00> : vector<288x128xf32>
    %120 = tpu.matmul %117, %119, %cst_125 {dimension_numbers = #tpu.dot_dimension_numbers<[1], [0], [0], [1], [0, 0, 1, 1], [], []>} : vector<288x128xbf16>, vector<128x128xbf16>, vector<288x128xf32> -> vector<288x128xf32>
    %121 = arith.addf %115, %120 : vector<288x128xf32>
    %c43_126 = arith.constant 43 : index
    %c0_127 = arith.constant 0 : index
    %122 = vector.load %arg6[%c43_126, %c0_127] : memref<336x128xf32, #tpu.memory_space<vmem>>, vector<288x128xf32>
    %123 = arith.truncf %122 : vector<288x128xf32> to vector<288x128xbf16>
    %c1_128 = arith.constant 1 : index
    %c8_129 = arith.constant 8 : index
    %c0_130 = arith.constant 0 : index
    %c0_131 = arith.constant 0 : index
    %124 = vector.load %arg2[%c1_128, %c8_129, %c0_130, %c0_131] : memref<3x9x128x128xbf16, #tpu.memory_space<vmem>>, vector<1x1x128x128xbf16>
    %125 = vector.shape_cast %124 : vector<1x1x128x128xbf16> to vector<128x128xbf16>
    %cst_132 = arith.constant dense<0.000000e+00> : vector<288x128xf32>
    %126 = tpu.matmul %123, %125, %cst_132 {dimension_numbers = #tpu.dot_dimension_numbers<[1], [0], [0], [1], [0, 0, 1, 1], [], []>} : vector<288x128xbf16>, vector<128x128xbf16>, vector<288x128xf32> -> vector<288x128xf32>
    %127 = arith.addf %121, %126 : vector<288x128xf32>
    %c1_133 = arith.constant 1 : index
    %c0_134 = arith.constant 0 : index
    %c0_135 = arith.constant 0 : index
    %128 = vector.load %arg3[%c1_133, %c0_134, %c0_135] : memref<3x1x128xf32, #tpu.memory_space<vmem>>, vector<1x1x128xf32>
    %129 = vector.shape_cast %128 : vector<1x1x128xf32> to vector<1x128xf32>
    %130 = vector.broadcast %129 : vector<1x128xf32> to vector<288x128xf32>
    %131 = arith.addf %127, %130 : vector<288x128xf32>
    %cst_136 = arith.constant 0.000000e+00 : f32
    %132 = vector.broadcast %cst_136 : f32 to vector<288x128xf32>
    %133 = arith.maximumf %131, %132 : vector<288x128xf32>
    %134 = arith.mulf %133, %0 : vector<288x128xf32>
    %c24_137 = arith.constant 24 : index
    %c0_138 = arith.constant 0 : index
    %135 = vector.load %arg7[%c24_137, %c0_138] : memref<336x128xf32, #tpu.memory_space<vmem>>, vector<288x128xf32>
    tpu.vector_store %arg7[%c24_137, %c0_138], %134 {strides = array<i32>} : memref<336x128xf32, #tpu.memory_space<vmem>>, vector<288x128xf32>,
    %c5_139 = arith.constant 5 : index
    %c0_140 = arith.constant 0 : index
    %136 = vector.load %arg7[%c5_139, %c0_140] : memref<336x128xf32, #tpu.memory_space<vmem>>, vector<288x128xf32>
    %137 = arith.truncf %136 : vector<288x128xf32> to vector<288x128xbf16>
    %c2_141 = arith.constant 2 : index
    %c0_142 = arith.constant 0 : index
    %c0_143 = arith.constant 0 : index
    %c0_144 = arith.constant 0 : index
    %138 = vector.load %arg2[%c2_141, %c0_142, %c0_143, %c0_144] : memref<3x9x128x128xbf16, #tpu.memory_space<vmem>>, vector<1x1x128x128xbf16>
    %139 = vector.shape_cast %138 : vector<1x1x128x128xbf16> to vector<128x128xbf16>
    %cst_145 = arith.constant dense<0.000000e+00> : vector<288x128xf32>
    %140 = tpu.matmul %137, %139, %cst_145 {dimension_numbers = #tpu.dot_dimension_numbers<[1], [0], [0], [1], [0, 0, 1, 1], [], []>} : vector<288x128xbf16>, vector<128x128xbf16>, vector<288x128xf32> -> vector<288x128xf32>
    %c6_146 = arith.constant 6 : index
    %c0_147 = arith.constant 0 : index
    %141 = vector.load %arg7[%c6_146, %c0_147] : memref<336x128xf32, #tpu.memory_space<vmem>>, vector<288x128xf32>
    %142 = arith.truncf %141 : vector<288x128xf32> to vector<288x128xbf16>
    %c2_148 = arith.constant 2 : index
    %c1_149 = arith.constant 1 : index
    %c0_150 = arith.constant 0 : index
    %c0_151 = arith.constant 0 : index
    %143 = vector.load %arg2[%c2_148, %c1_149, %c0_150, %c0_151] : memref<3x9x128x128xbf16, #tpu.memory_space<vmem>>, vector<1x1x128x128xbf16>
    %144 = vector.shape_cast %143 : vector<1x1x128x128xbf16> to vector<128x128xbf16>
    %cst_152 = arith.constant dense<0.000000e+00> : vector<288x128xf32>
    %145 = tpu.matmul %142, %144, %cst_152 {dimension_numbers = #tpu.dot_dimension_numbers<[1], [0], [0], [1], [0, 0, 1, 1], [], []>} : vector<288x128xbf16>, vector<128x128xbf16>, vector<288x128xf32> -> vector<288x128xf32>
    %146 = arith.addf %140, %145 : vector<288x128xf32>
    %c7_153 = arith.constant 7 : index
    %c0_154 = arith.constant 0 : index
    %147 = vector.load %arg7[%c7_153, %c0_154] : memref<336x128xf32, #tpu.memory_space<vmem>>, vector<288x128xf32>
    %148 = arith.truncf %147 : vector<288x128xf32> to vector<288x128xbf16>
    %c2_155 = arith.constant 2 : index
    %c2_156 = arith.constant 2 : index
    %c0_157 = arith.constant 0 : index
    %c0_158 = arith.constant 0 : index
    %149 = vector.load %arg2[%c2_155, %c2_156, %c0_157, %c0_158] : memref<3x9x128x128xbf16, #tpu.memory_space<vmem>>, vector<1x1x128x128xbf16>
    %150 = vector.shape_cast %149 : vector<1x1x128x128xbf16> to vector<128x128xbf16>
    %cst_159 = arith.constant dense<0.000000e+00> : vector<288x128xf32>
    %151 = tpu.matmul %148, %150, %cst_159 {dimension_numbers = #tpu.dot_dimension_numbers<[1], [0], [0], [1], [0, 0, 1, 1], [], []>} : vector<288x128xbf16>, vector<128x128xbf16>, vector<288x128xf32> -> vector<288x128xf32>
    %152 = arith.addf %146, %151 : vector<288x128xf32>
    %c23_160 = arith.constant 23 : index
    %c0_161 = arith.constant 0 : index
    %153 = vector.load %arg7[%c23_160, %c0_161] : memref<336x128xf32, #tpu.memory_space<vmem>>, vector<288x128xf32>
    %154 = arith.truncf %153 : vector<288x128xf32> to vector<288x128xbf16>
    %c2_162 = arith.constant 2 : index
    %c3_163 = arith.constant 3 : index
    %c0_164 = arith.constant 0 : index
    %c0_165 = arith.constant 0 : index
    %155 = vector.load %arg2[%c2_162, %c3_163, %c0_164, %c0_165] : memref<3x9x128x128xbf16, #tpu.memory_space<vmem>>, vector<1x1x128x128xbf16>
    %156 = vector.shape_cast %155 : vector<1x1x128x128xbf16> to vector<128x128xbf16>
    %cst_166 = arith.constant dense<0.000000e+00> : vector<288x128xf32>
    %157 = tpu.matmul %154, %156, %cst_166 {dimension_numbers = #tpu.dot_dimension_numbers<[1], [0], [0], [1], [0, 0, 1, 1], [], []>} : vector<288x128xbf16>, vector<128x128xbf16>, vector<288x128xf32> -> vector<288x128xf32>
    %158 = arith.addf %152, %157 : vector<288x128xf32>
    %c24_167 = arith.constant 24 : index
    %c0_168 = arith.constant 0 : index
    %159 = vector.load %arg7[%c24_167, %c0_168] : memref<336x128xf32, #tpu.memory_space<vmem>>, vector<288x128xf32>
    %160 = arith.truncf %159 : vector<288x128xf32> to vector<288x128xbf16>
    %c2_169 = arith.constant 2 : index
    %c4_170 = arith.constant 4 : index
    %c0_171 = arith.constant 0 : index
    %c0_172 = arith.constant 0 : index
    %161 = vector.load %arg2[%c2_169, %c4_170, %c0_171, %c0_172] : memref<3x9x128x128xbf16, #tpu.memory_space<vmem>>, vector<1x1x128x128xbf16>
    %162 = vector.shape_cast %161 : vector<1x1x128x128xbf16> to vector<128x128xbf16>
    %cst_173 = arith.constant dense<0.000000e+00> : vector<288x128xf32>
    %163 = tpu.matmul %160, %162, %cst_173 {dimension_numbers = #tpu.dot_dimension_numbers<[1], [0], [0], [1], [0, 0, 1, 1], [], []>} : vector<288x128xbf16>, vector<128x128xbf16>, vector<288x128xf32> -> vector<288x128xf32>
    %164 = arith.addf %158, %163 : vector<288x128xf32>
    %c25_174 = arith.constant 25 : index
    %c0_175 = arith.constant 0 : index
    %165 = vector.load %arg7[%c25_174, %c0_175] : memref<336x128xf32, #tpu.memory_space<vmem>>, vector<288x128xf32>
    %166 = arith.truncf %165 : vector<288x128xf32> to vector<288x128xbf16>
    %c2_176 = arith.constant 2 : index
    %c5_177 = arith.constant 5 : index
    %c0_178 = arith.constant 0 : index
    %c0_179 = arith.constant 0 : index
    %167 = vector.load %arg2[%c2_176, %c5_177, %c0_178, %c0_179] : memref<3x9x128x128xbf16, #tpu.memory_space<vmem>>, vector<1x1x128x128xbf16>
    %168 = vector.shape_cast %167 : vector<1x1x128x128xbf16> to vector<128x128xbf16>
    %cst_180 = arith.constant dense<0.000000e+00> : vector<288x128xf32>
    %169 = tpu.matmul %166, %168, %cst_180 {dimension_numbers = #tpu.dot_dimension_numbers<[1], [0], [0], [1], [0, 0, 1, 1], [], []>} : vector<288x128xbf16>, vector<128x128xbf16>, vector<288x128xf32> -> vector<288x128xf32>
    %170 = arith.addf %164, %169 : vector<288x128xf32>
    %c41_181 = arith.constant 41 : index
    %c0_182 = arith.constant 0 : index
    %171 = vector.load %arg7[%c41_181, %c0_182] : memref<336x128xf32, #tpu.memory_space<vmem>>, vector<288x128xf32>
    %172 = arith.truncf %171 : vector<288x128xf32> to vector<288x128xbf16>
    %c2_183 = arith.constant 2 : index
    %c6_184 = arith.constant 6 : index
    %c0_185 = arith.constant 0 : index
    %c0_186 = arith.constant 0 : index
    %173 = vector.load %arg2[%c2_183, %c6_184, %c0_185, %c0_186] : memref<3x9x128x128xbf16, #tpu.memory_space<vmem>>, vector<1x1x128x128xbf16>
    %174 = vector.shape_cast %173 : vector<1x1x128x128xbf16> to vector<128x128xbf16>
    %cst_187 = arith.constant dense<0.000000e+00> : vector<288x128xf32>
    %175 = tpu.matmul %172, %174, %cst_187 {dimension_numbers = #tpu.dot_dimension_numbers<[1], [0], [0], [1], [0, 0, 1, 1], [], []>} : vector<288x128xbf16>, vector<128x128xbf16>, vector<288x128xf32> -> vector<288x128xf32>
    %176 = arith.addf %170, %175 : vector<288x128xf32>
    %c42_188 = arith.constant 42 : index
    %c0_189 = arith.constant 0 : index
    %177 = vector.load %arg7[%c42_188, %c0_189] : memref<336x128xf32, #tpu.memory_space<vmem>>, vector<288x128xf32>
    %178 = arith.truncf %177 : vector<288x128xf32> to vector<288x128xbf16>
    %c2_190 = arith.constant 2 : index
    %c7_191 = arith.constant 7 : index
    %c0_192 = arith.constant 0 : index
    %c0_193 = arith.constant 0 : index
    %179 = vector.load %arg2[%c2_190, %c7_191, %c0_192, %c0_193] : memref<3x9x128x128xbf16, #tpu.memory_space<vmem>>, vector<1x1x128x128xbf16>
    %180 = vector.shape_cast %179 : vector<1x1x128x128xbf16> to vector<128x128xbf16>
    %cst_194 = arith.constant dense<0.000000e+00> : vector<288x128xf32>
    %181 = tpu.matmul %178, %180, %cst_194 {dimension_numbers = #tpu.dot_dimension_numbers<[1], [0], [0], [1], [0, 0, 1, 1], [], []>} : vector<288x128xbf16>, vector<128x128xbf16>, vector<288x128xf32> -> vector<288x128xf32>
    %182 = arith.addf %176, %181 : vector<288x128xf32>
    %c43_195 = arith.constant 43 : index
    %c0_196 = arith.constant 0 : index
    %183 = vector.load %arg7[%c43_195, %c0_196] : memref<336x128xf32, #tpu.memory_space<vmem>>, vector<288x128xf32>
    %184 = arith.truncf %183 : vector<288x128xf32> to vector<288x128xbf16>
    %c2_197 = arith.constant 2 : index
    %c8_198 = arith.constant 8 : index
    %c0_199 = arith.constant 0 : index
    %c0_200 = arith.constant 0 : index
    %185 = vector.load %arg2[%c2_197, %c8_198, %c0_199, %c0_200] : memref<3x9x128x128xbf16, #tpu.memory_space<vmem>>, vector<1x1x128x128xbf16>
    %186 = vector.shape_cast %185 : vector<1x1x128x128xbf16> to vector<128x128xbf16>
    %cst_201 = arith.constant dense<0.000000e+00> : vector<288x128xf32>
    %187 = tpu.matmul %184, %186, %cst_201 {dimension_numbers = #tpu.dot_dimension_numbers<[1], [0], [0], [1], [0, 0, 1, 1], [], []>} : vector<288x128xbf16>, vector<128x128xbf16>, vector<288x128xf32> -> vector<288x128xf32>
    %188 = arith.addf %182, %187 : vector<288x128xf32>
    %c2_202 = arith.constant 2 : index
    %c0_203 = arith.constant 0 : index
    %c0_204 = arith.constant 0 : index
    %189 = vector.load %arg3[%c2_202, %c0_203, %c0_204] : memref<3x1x128xf32, #tpu.memory_space<vmem>>, vector<1x1x128xf32>
    %190 = vector.shape_cast %189 : vector<1x1x128xf32> to vector<1x128xf32>
    %191 = vector.broadcast %190 : vector<1x128xf32> to vector<288x128xf32>
    %192 = arith.addf %188, %191 : vector<288x128xf32>
    %c0_205 = arith.constant 0 : index
    %c0_206 = arith.constant 0 : index
    %c0_207 = arith.constant 0 : index
    %193 = vector.load %arg5[%c0_205, %c0_206, %c0_207] : memref<1x288x128xf32, #tpu.memory_space<vmem>>, vector<1x288x128xf32>
    %194 = vector.shape_cast %193 : vector<1x288x128xf32> to vector<288x128xf32>
    %195 = vector.shape_cast %192 : vector<288x128xf32> to vector<1x288x128xf32>
    tpu.vector_store %arg5[%c0_205, %c0_206, %c0_207], %195 {strides = array<i32>} : memref<1x288x128xf32, #tpu.memory_space<vmem>>, vector<1x288x128xf32>,
    return
  }
  func.func @transform_0(%arg0: i32) -> (i32, i32, i32) {
    %c0_i32 = arith.constant 0 : i32
    %c0_i32_0 = arith.constant 0 : i32
    %c0_i32_1 = arith.constant 0 : i32
    return %arg0, %c0_i32, %c0_i32_0 : i32, i32, i32
  }
  func.func @transform_1(%arg0: i32) -> (i32, i32, i32, i32) {
    %c0_i32 = arith.constant 0 : i32
    %c0_i32_0 = arith.constant 0 : i32
    %c0_i32_1 = arith.constant 0 : i32
    %c0_i32_2 = arith.constant 0 : i32
    %c0_i32_3 = arith.constant 0 : i32
    return %c0_i32, %c0_i32_0, %c0_i32_1, %c0_i32_2 : i32, i32, i32, i32
  }
  func.func @transform_2(%arg0: i32) -> (i32, i32, i32) {
    %c0_i32 = arith.constant 0 : i32
    %c0_i32_0 = arith.constant 0 : i32
    %c0_i32_1 = arith.constant 0 : i32
    %c0_i32_2 = arith.constant 0 : i32
    return %c0_i32, %c0_i32_0, %c0_i32_1 : i32, i32, i32
  }
  func.func @transform_3(%arg0: i32) -> (i32, i32) {
    %c0_i32 = arith.constant 0 : i32
    %c0_i32_0 = arith.constant 0 : i32
    %c0_i32_1 = arith.constant 0 : i32
    return %c0_i32, %c0_i32_0 : i32, i32
  }
  func.func @transform_4(%arg0: i32) -> (i32, i32, i32) {
    %c0_i32 = arith.constant 0 : i32
    %c0_i32_0 = arith.constant 0 : i32
    %c0_i32_1 = arith.constant 0 : i32
    return %arg0, %c0_i32, %c0_i32_0 : i32, i32, i32
  }
}

</mosaic_0001>

<llo_original>
// kernel: _lambda_.1
$region0: #{_lambda_.1}
  #allocation0 [shape = 'u32[]', space=smem, size = 0x4, offset = 0x4, fixed_abs, tag = 'smem constant byte address 0x4 - core index']
  #allocation1 [shape = 'u32[144,128]{1,0:T(1,128)}', space=vmem, size = 0x12000, scoped, tag = 'internal scratch']
  #allocation2 [shape = 'f32[336,128]{1,0:T(8,128)}', space=vmem, size = 0x2a000, scoped, tag = 'scratch operand']
  #allocation3 [shape = 'f32[336,128]{1,0:T(8,128)}', space=vmem, size = 0x2a000, scoped, tag = 'scratch operand']
  %s0 = inlined_call_operand.vmem [shape: f32[2,336,128], index: 0, kind: input, shape index: {}]
  %s1 = inlined_call_operand.vmem [shape: bf16[3,9,128,128], index: 1, kind: input, shape index: {}]
  %s2 = inlined_call_operand.vmem [shape: f32[3,1,128], index: 2, kind: input, shape index: {}]
  %s3 = inlined_call_operand.vmem [shape: f32[288,128], index: 3, kind: input, shape index: {}]
  %s4 = inlined_call_operand.vmem [shape: f32[2,288,128], index: 4, kind: output, shape index: {}]
  %s5 = sld [smem:[#allocation0]]
  $region49: #{_lambda_.1} parent=0
    _
  %s7 = ssub.s32 1, %s5
  %s8 = scalar_select 0, %s7, %s5
  loop: start=0, step=1, limit=4
  $region2: #{_lambda_.1} parent=0 // loop_pre_header
    _
  $region3: #{_lambda_.1} parent=0 // loop_header
    %s10 = sphi 0, %s14
    %p11 = scmp.ge.s32.totalorder %s10, 4
    %s20 = sphi 0, %s22
    %s23 = sphi 0, %s20
    %s24 = sphi 0, %s23
    %s40 = sphi 0, %s24
    %s44 = sphi 0, %s44
    %s46 = sphi 0, %s44
    %s47 = sphi 0, %s46
    %s61 = sphi 0, %s47
    %s65 = sphi 0, %s65
    %s67 = sphi 0, %s65
    %s68 = sphi 0, %s67
    %s82 = sphi 0, %s68
    %s86 = sphi 0, %s86
    %s88 = sphi 0, %s86
    %s89 = sphi 0, %s88
    %s103 = sphi 0, %s89
    %s109 = sphi 0, %s111
    %s112 = sphi 0, %s109
    %s113 = sphi 0, %s112
    %s129 = sphi 0, %s113
  $region4: #{_lambda_.1} parent=0 // loop_header_branch
    %13 = sbr.rel (%p11) target = $region8
  $region5: #{_lambda_.1} parent=0 // loop_body
    %s15 = ssub.s32 %s10, 1
    %s16 = ssub.s32 %s10, 2
    %s17 = sadd.s32 %s10, 1
    %s18 = ssub.s32 %s10, %s17
    %p19 = scmp.eq.s32.totalorder %s18, 0
    %s21 = sadd.s32 %s20, 1
    %s22 = scalar_select %p19, %s20, %s21
    %p25 = pneg %p19
    %p26 = scmp.eq.s32.totalorder %s10, 1
    %p27 = por %p25, %p26
    %p28 = scmp.ne.s32.totalorder %s20, %s23
    %p29 = scmp.eq.s32.totalorder %s10, 0
    %p30 = por %p28, %p29
    %p31 = scmp.ne.s32.totalorder %s20, %s23
    %p32 = scmp.eq.s32.totalorder %s15, 1
    %p33 = por %p31, %p32
    %p34 = scmp.ne.s32.totalorder %s23, %s24
    %p35 = scmp.eq.s32.totalorder %s15, 0
    %p36 = por %p34, %p35
    %p37 = scmp.ne.s32.totalorder %s23, %s24
    %p38 = scmp.eq.s32.totalorder %s16, 1
    %p39 = por %p37, %p38
    %p41 = scmp.ne.s32.totalorder %s24, %s40
    %p42 = scmp.eq.s32.totalorder %s16, 0
    %p43 = por %p41, %p42
    %s45 = sadd.s32 %s44, 1
    %p48 = scmp.eq.s32.totalorder %s10, 1
    %p49 = scmp.ne.s32.totalorder %s44, %s46
    %p50 = scmp.eq.s32.totalorder %s10, 0
    %p51 = por %p49, %p50
    %p52 = scmp.ne.s32.totalorder %s44, %s46
    %p53 = scmp.eq.s32.totalorder %s15, 1
    %p54 = por %p52, %p53
    %p55 = scmp.ne.s32.totalorder %s46, %s47
    %p56 = scmp.eq.s32.totalorder %s15, 0
    %p57 = por %p55, %p56
    %p58 = scmp.ne.s32.totalorder %s46, %s47
    %p59 = scmp.eq.s32.totalorder %s16, 1
    %p60 = por %p58, %p59
    %p62 = scmp.ne.s32.totalorder %s47, %s61
    %p63 = scmp.eq.s32.totalorder %s16, 0
    %p64 = por %p62, %p63
    %s66 = sadd.s32 %s65, 1
    %p69 = scmp.eq.s32.totalorder %s10, 1
    %p70 = scmp.ne.s32.totalorder %s65, %s67
    %p71 = scmp.eq.s32.totalorder %s10, 0
    %p72 = por %p70, %p71
    %p73 = scmp.ne.s32.totalorder %s65, %s67
    %p74 = scmp.eq.s32.totalorder %s15, 1
    %p75 = por %p73, %p74
    %p76 = scmp.ne.s32.totalorder %s67, %s68
    %p77 = scmp.eq.s32.totalorder %s15, 0
    %p78 = por %p76, %p77
    %p79 = scmp.ne.s32.totalorder %s67, %s68
    %p80 = scmp.eq.s32.totalorder %s16, 1
    %p81 = por %p79, %p80
    %p83 = scmp.ne.s32.totalorder %s68, %s82
    %p84 = scmp.eq.s32.totalorder %s16, 0
    %p85 = por %p83, %p84
    %s87 = sadd.s32 %s86, 1
    %p90 = scmp.eq.s32.totalorder %s10, 1
    %p91 = scmp.ne.s32.totalorder %s86, %s88
    %p92 = scmp.eq.s32.totalorder %s10, 0
    %p93 = por %p91, %p92
    %p94 = scmp.ne.s32.totalorder %s86, %s88
    %p95 = scmp.eq.s32.totalorder %s15, 1
    %p96 = por %p94, %p95
    %p97 = scmp.ne.s32.totalorder %s88, %s89
    %p98 = scmp.eq.s32.totalorder %s15, 0
    %p99 = por %p97, %p98
    %p100 = scmp.ne.s32.totalorder %s88, %s89
    %p101 = scmp.eq.s32.totalorder %s16, 1
    %p102 = por %p100, %p101
    %p104 = scmp.ne.s32.totalorder %s89, %s103
    %p105 = scmp.eq.s32.totalorder %s16, 0
    %p106 = por %p104, %p105
    %s107 = ssub.s32 %s10, %s17
    %p108 = scmp.eq.s32.totalorder %s107, 0
    %s110 = sadd.s32 %s109, 1
    %s111 = scalar_select %p108, %s109, %s110
    %p114 = pneg %p108
    %p115 = scmp.eq.s32.totalorder %s10, 1
    %p116 = por %p114, %p115
    %p117 = scmp.ne.s32.totalorder %s109, %s112
    %p118 = scmp.eq.s32.totalorder %s10, 0
    %p119 = por %p117, %p118
    %p120 = scmp.ne.s32.totalorder %s109, %s112
    %p121 = scmp.eq.s32.totalorder %s15, 1
    %p122 = por %p120, %p121
    %p123 = scmp.ne.s32.totalorder %s112, %s113
    %p124 = scmp.eq.s32.totalorder %s15, 0
    %p125 = por %p123, %p124
    %p126 = scmp.ne.s32.totalorder %s112, %s113
    %p127 = scmp.eq.s32.totalorder %s16, 1
    %p128 = por %p126, %p127
    %p130 = scmp.ne.s32.totalorder %s113, %s129
    %p131 = scmp.eq.s32.totalorder %s16, 0
    %p132 = por %p130, %p131
    %p133 = scmp.le.s32.totalorder 1, %s10
    %p134 = scmp.lt.s32.totalorder %s10, 3
    %p135 = pnand %p133, %p134
    %p136 = pneg %p135
    // Predicated region
    $region9: #{_lambda_.1} parent=5 // pred_check
      _
    $region10: #{_lambda_.1} parent=5 // pred_check_branch
      %138 = sbr.rel (%p135) target = $region12
    $region11: #{_lambda_.1} parent=5 // pred_region
      %s139 = ssub.s32 %s10, 1
      // Predicated region
      $region13: #{_lambda_.1} parent=11 // pred_check
        %p140 = pneg %p57
      $region14: #{_lambda_.1} parent=11 // pred_check_branch
        %142 = sbr.rel (%p140) target = $region16
      $region15: #{_lambda_.1} parent=11 // pred_region
        _
      $region16: #{_lambda_.1} parent=11 // pred_fallthru
        _
      // Predicated region
      $region17: #{_lambda_.1} parent=11 // pred_check
        %p143 = pneg %p78
      $region18: #{_lambda_.1} parent=11 // pred_check_branch
        %145 = sbr.rel (%p143) target = $region20
      $region19: #{_lambda_.1} parent=11 // pred_region
        _
      $region20: #{_lambda_.1} parent=11 // pred_fallthru
        _
      // Predicated region
      $region21: #{_lambda_.1} parent=11 // pred_check
        %p146 = pneg %p99
      $region22: #{_lambda_.1} parent=11 // pred_check_branch
        %148 = sbr.rel (%p146) target = $region24
      $region23: #{_lambda_.1} parent=11 // pred_region
        _
      $region24: #{_lambda_.1} parent=11 // pred_fallthru
        _
    $region12: #{_lambda_.1} parent=5 // pred_fallthru
      _
    %p149 = scmp.lt.s32.totalorder %s10, 2
    // Predicated region
    $region25: #{_lambda_.1} parent=5 // pred_check
      %p150 = pneg %p149
    $region26: #{_lambda_.1} parent=5 // pred_check_branch
      %152 = sbr.rel (%p150) target = $region28
    $region27: #{_lambda_.1} parent=5 // pred_region
      // Predicated region
      $region29: #{_lambda_.1} parent=27 // pred_check
        %p153 = pneg %p30
      $region30: #{_lambda_.1} parent=27 // pred_check_branch
        %155 = sbr.rel (%p153) target = $region32
      $region31: #{_lambda_.1} parent=27 // pred_region
        %p156 = scmp.lt.s32.totalorder %s10, 1
        %s157 = scalar_select %p156, %s10, 1
        %s158 = smul.addr %s157, 42
        %s159 = smul.addr %s158, 8
        %s160 = scalar_lea.vmem %s0, %s159
      $region32: #{_lambda_.1} parent=27 // pred_fallthru
        _
    $region28: #{_lambda_.1} parent=5 // pred_fallthru
      _
    %p161 = scmp.le.s32.totalorder 1, %s10
    %p162 = scmp.lt.s32.totalorder %s10, 3
    %p163 = pnand %p161, %p162
    %p164 = pneg %p163
    // Predicated region
    $region33: #{_lambda_.1} parent=5 // pred_check
      _
    $region34: #{_lambda_.1} parent=5 // pred_check_branch
      %166 = sbr.rel (%p163) target = $region36
    $region35: #{_lambda_.1} parent=5 // pred_region
      %s167 = ssub.s32 %s10, 1
      %p168 = scmp.lt.s32.totalorder %s15, 1
      %s169 = scalar_select %p168, %s15, 1
      %s170 = smul.addr %s169, 42
      %s171 = smul.addr %s170, 8
      %s172 = scalar_lea.vmem %s0, %s171
      %p173 = pneg %p36
      %p174 = pneg %p33
      %p175 = pneg %p57
      %p176 = pneg %p54
      %p177 = pneg %p78
      %p178 = pneg %p75
      %p179 = pneg %p99
      %p180 = pneg %p96
      %p181 = pneg %p125
      %p182 = pneg %p122
      %p183 = scmp.lt.s32.totalorder %s15, 1
      %s184 = scalar_select %p183, %s15, 1
      %s185 = smul.addr %s184, 36
      %s186 = smul.addr %s185, 8
      %s187 = scalar_lea.vmem %s4, %s186
      %p188 = scmp.lt.s32.totalorder %s15, 1
      %s189 = scalar_select %p188, %s15, 1
      %s190 = smul.addr %s189, 42
      %s191 = smul.addr %s190, 8
      %s192 = scalar_lea.vmem %s0, %s191
      %p193 = scmp.lt.s32.totalorder %s15, 1
      %s194 = scalar_select %p193, %s15, 1
      %s195 = smul.addr %s194, 36
      %s196 = smul.addr %s195, 8
      %s197 = scalar_lea.vmem %s4, %s196
      %v199 = vld [vmem:[%s3] sm:$0xff]
      %v200 = vld [vmem:[%s3 + $0x8] sm:$0xff]
      %v201 = vld [vmem:[%s3 + $0x10] sm:$0xff]
      %v202 = vld [vmem:[%s3 + $0x18] sm:$0xff]
      %v203 = vld [vmem:[%s3 + $0x20] sm:$0xff]
      %v204 = vld [vmem:[%s3 + $0x28] sm:$0xff]
      %v205 = vld [vmem:[%s3 + $0x30] sm:$0xff]
      %v206 = vld [vmem:[%s3 + $0x38] sm:$0xff]
      %v207 = vld [vmem:[%s3 + $0x40] sm:$0xff]
      %v208 = vld [vmem:[%s3 + $0x48] sm:$0xff]
      %v209 = vld [vmem:[%s3 + $0x50] sm:$0xff]
      %v210 = vld [vmem:[%s3 + $0x58] sm:$0xff]
      %v211 = vld [vmem:[%s3 + $0x60] sm:$0xff]
      %v212 = vld [vmem:[%s3 + $0x68] sm:$0xff]
      %v213 = vld [vmem:[%s3 + $0x70] sm:$0xff]
      %v214 = vld [vmem:[%s3 + $0x78] sm:$0xff]
      %v215 = vld [vmem:[%s3 + $0x80] sm:$0xff]
      %v216 = vld [vmem:[%s3 + $0x88] sm:$0xff]
      %v217 = vld [vmem:[%s3 + $0x90] sm:$0xff]
      %v218 = vld [vmem:[%s3 + $0x98] sm:$0xff]
      %v219 = vld [vmem:[%s3 + $0xa0] sm:$0xff]
      %v220 = vld [vmem:[%s3 + $0xa8] sm:$0xff]
      %v221 = vld [vmem:[%s3 + $0xb0] sm:$0xff]
      %v222 = vld [vmem:[%s3 + $0xb8] sm:$0xff]
      %v223 = vld [vmem:[%s3 + $0xc0] sm:$0xff]
      %v224 = vld [vmem:[%s3 + $0xc8] sm:$0xff]
      %v225 = vld [vmem:[%s3 + $0xd0] sm:$0xff]
      %v226 = vld [vmem:[%s3 + $0xd8] sm:$0xff]
      %v227 = vld [vmem:[%s3 + $0xe0] sm:$0xff]
      %v228 = vld [vmem:[%s3 + $0xe8] sm:$0xff]
      %v229 = vld [vmem:[%s3 + $0xf0] sm:$0xff]
      %v230 = vld [vmem:[%s3 + $0xf8] sm:$0xff]
      %v231 = vld [vmem:[%s3 + $0x100] sm:$0xff]
      %v232 = vld [vmem:[%s3 + $0x108] sm:$0xff]
      %v233 = vld [vmem:[%s3 + $0x110] sm:$0xff]
      %v234 = vld [vmem:[%s3 + $0x118] sm:$0xff]
      %235 = vst [vmem:[#allocation2] sm:$0xff] 0.0
      %236 = vst [vmem:[#allocation2 + $0x8] sm:$0xff] 0.0
      %237 = vst [vmem:[#allocation2 + $0x10] sm:$0xff] 0.0
      %238 = vst [vmem:[#allocation2 + $0x18] sm:$0xff] 0.0
      %239 = vst [vmem:[#allocation2 + $0x20] sm:$0xff] 0.0
      %240 = vst [vmem:[#allocation2 + $0x28] sm:$0xff] 0.0
      %241 = vst [vmem:[#allocation2 + $0x30] sm:$0xff] 0.0
      %242 = vst [vmem:[#allocation2 + $0x38] sm:$0xff] 0.0
      %243 = vst [vmem:[#allocation2 + $0x40] sm:$0xff] 0.0
      %244 = vst [vmem:[#allocation2 + $0x48] sm:$0xff] 0.0
      %245 = vst [vmem:[#allocation2 + $0x50] sm:$0xff] 0.0
      %246 = vst [vmem:[#allocation2 + $0x58] sm:$0xff] 0.0
      %247 = vst [vmem:[#allocation2 + $0x60] sm:$0xff] 0.0
      %248 = vst [vmem:[#allocation2 + $0x68] sm:$0xff] 0.0
      %249 = vst [vmem:[#allocation2 + $0x70] sm:$0xff] 0.0
      %250 = vst [vmem:[#allocation2 + $0x78] sm:$0xff] 0.0
      %251 = vst [vmem:[#allocation2 + $0x80] sm:$0xff] 0.0
      %252 = vst [vmem:[#allocation2 + $0x88] sm:$0xff] 0.0
      %253 = vst [vmem:[#allocation2 + $0x90] sm:$0xff] 0.0
      %254 = vst [vmem:[#allocation2 + $0x98] sm:$0xff] 0.0
      %255 = vst [vmem:[#allocation2 + $0xa0] sm:$0xff] 0.0
      %256 = vst [vmem:[#allocation2 + $0xa8] sm:$0xff] 0.0
      %257 = vst [vmem:[#allocation2 + $0xb0] sm:$0xff] 0.0
      %258 = vst [vmem:[#allocation2 + $0xb8] sm:$0xff] 0.0
      %259 = vst [vmem:[#allocation2 + $0xc0] sm:$0xff] 0.0
      %260 = vst [vmem:[#allocation2 + $0xc8] sm:$0xff] 0.0
      %261 = vst [vmem:[#allocation2 + $0xd0] sm:$0xff] 0.0
      %262 = vst [vmem:[#allocation2 + $0xd8] sm:$0xff] 0.0
      %263 = vst [vmem:[#allocation2 + $0xe0] sm:$0xff] 0.0
      %264 = vst [vmem:[#allocation2 + $0xe8] sm:$0xff] 0.0
      %265 = vst [vmem:[#allocation2 + $0xf0] sm:$0xff] 0.0
      %266 = vst [vmem:[#allocation2 + $0xf8] sm:$0xff] 0.0
      %267 = vst [vmem:[#allocation2 + $0x100] sm:$0xff] 0.0
      %268 = vst [vmem:[#allocation2 + $0x108] sm:$0xff] 0.0
      %269 = vst [vmem:[#allocation2 + $0x110] sm:$0xff] 0.0
      %270 = vst [vmem:[#allocation2 + $0x118] sm:$0xff] 0.0
      %271 = vst [vmem:[#allocation2 + $0x120] sm:$0xff] 0.0
      %272 = vst [vmem:[#allocation2 + $0x128] sm:$0xff] 0.0
      %273 = vst [vmem:[#allocation2 + $0x130] sm:$0xff] 0.0
      %274 = vst [vmem:[#allocation2 + $0x138] sm:$0xff] 0.0
      %275 = vst [vmem:[#allocation2 + $0x140] sm:$0xff] 0.0
      %276 = vst [vmem:[#allocation2 + $0x148] sm:$0xff] 0.0
      %277 = vst [vmem:[#allocation3] sm:$0xff] 0.0
      %278 = vst [vmem:[#allocation3 + $0x8] sm:$0xff] 0.0
      %279 = vst [vmem:[#allocation3 + $0x10] sm:$0xff] 0.0
      %280 = vst [vmem:[#allocation3 + $0x18] sm:$0xff] 0.0
      %281 = vst [vmem:[#allocation3 + $0x20] sm:$0xff] 0.0
      %282 = vst [vmem:[#allocation3 + $0x28] sm:$0xff] 0.0
      %283 = vst [vmem:[#allocation3 + $0x30] sm:$0xff] 0.0
      %284 = vst [vmem:[#allocation3 + $0x38] sm:$0xff] 0.0
      %285 = vst [vmem:[#allocation3 + $0x40] sm:$0xff] 0.0
      %286 = vst [vmem:[#allocation3 + $0x48] sm:$0xff] 0.0
      %287 = vst [vmem:[#allocation3 + $0x50] sm:$0xff] 0.0
      %288 = vst [vmem:[#allocation3 + $0x58] sm:$0xff] 0.0
      %289 = vst [vmem:[#allocation3 + $0x60] sm:$0xff] 0.0
      %290 = vst [vmem:[#allocation3 + $0x68] sm:$0xff] 0.0
      %291 = vst [vmem:[#allocation3 + $0x70] sm:$0xff] 0.0
      %292 = vst [vmem:[#allocation3 + $0x78] sm:$0xff] 0.0
      %293 = vst [vmem:[#allocation3 + $0x80] sm:$0xff] 0.0
      %294 = vst [vmem:[#allocation3 + $0x88] sm:$0xff] 0.0
      %295 = vst [vmem:[#allocation3 + $0x90] sm:$0xff] 0.0
      %296 = vst [vmem:[#allocation3 + $0x98] sm:$0xff] 0.0
      %297 = vst [vmem:[#allocation3 + $0xa0] sm:$0xff] 0.0
      %298 = vst [vmem:[#allocation3 + $0xa8] sm:$0xff] 0.0
      %299 = vst [vmem:[#allocation3 + $0xb0] sm:$0xff] 0.0
      %300 = vst [vmem:[#allocation3 + $0xb8] sm:$0xff] 0.0
      %301 = vst [vmem:[#allocation3 + $0xc0] sm:$0xff] 0.0
      %302 = vst [vmem:[#allocation3 + $0xc8] sm:$0xff] 0.0
      %303 = vst [vmem:[#allocation3 + $0xd0] sm:$0xff] 0.0
      %304 = vst [vmem:[#allocation3 + $0xd8] sm:$0xff] 0.0
      %305 = vst [vmem:[#allocation3 + $0xe0] sm:$0xff] 0.0
      %306 = vst [vmem:[#allocation3 + $0xe8] sm:$0xff] 0.0
      %307 = vst [vmem:[#allocation3 + $0xf0] sm:$0xff] 0.0
      %308 = vst [vmem:[#allocation3 + $0xf8] sm:$0xff] 0.0
      %309 = vst [vmem:[#allocation3 + $0x100] sm:$0xff] 0.0
      %310 = vst [vmem:[#allocation3 + $0x108] sm:$0xff] 0.0
      %311 = vst [vmem:[#allocation3 + $0x110] sm:$0xff] 0.0
      %312 = vst [vmem:[#allocation3 + $0x118] sm:$0xff] 0.0
      %313 = vst [vmem:[#allocation3 + $0x120] sm:$0xff] 0.0
      %314 = vst [vmem:[#allocation3 + $0x128] sm:$0xff] 0.0
      %315 = vst [vmem:[#allocation3 + $0x130] sm:$0xff] 0.0
      %316 = vst [vmem:[#allocation3 + $0x138] sm:$0xff] 0.0
      %317 = vst [vmem:[#allocation3 + $0x140] sm:$0xff] 0.0
      %318 = vst [vmem:[#allocation3 + $0x148] sm:$0xff] 0.0
      %v319 = vld [vmem:[%s192 + $0x5] sm:$0xff]
      %v320 = vld [vmem:[%s192 + $0xd] sm:$0xff]
      %v321 = vld [vmem:[%s192 + $0x15] sm:$0xff]
      %v322 = vld [vmem:[%s192 + $0x1d] sm:$0xff]
      %v323 = vld [vmem:[%s192 + $0x25] sm:$0xff]
      %v324 = vld [vmem:[%s192 + $0x2d] sm:$0xff]
      %v325 = vld [vmem:[%s192 + $0x35] sm:$0xff]
      %v326 = vld [vmem:[%s192 + $0x3d] sm:$0xff]
      %v327 = vld [vmem:[%s192 + $0x45] sm:$0xff]
      %v328 = vld [vmem:[%s192 + $0x4d] sm:$0xff]
      %v329 = vld [vmem:[%s192 + $0x55] sm:$0xff]
      %v330 = vld [vmem:[%s192 + $0x5d] sm:$0xff]
      %v331 = vld [vmem:[%s192 + $0x65] sm:$0xff]
      %v332 = vld [vmem:[%s192 + $0x6d] sm:$0xff]
      %v333 = vld [vmem:[%s192 + $0x75] sm:$0xff]
      %v334 = vld [vmem:[%s192 + $0x7d] sm:$0xff]
      %v335 = vld [vmem:[%s192 + $0x85] sm:$0xff]
      %v336 = vld [vmem:[%s192 + $0x8d] sm:$0xff]
      %v337 = vld [vmem:[%s192 + $0x95] sm:$0xff]
      %v338 = vld [vmem:[%s192 + $0x9d] sm:$0xff]
      %v339 = vld [vmem:[%s192 + $0xa5] sm:$0xff]
      %v340 = vld [vmem:[%s192 + $0xad] sm:$0xff]
      %v341 = vld [vmem:[%s192 + $0xb5] sm:$0xff]
      %v342 = vld [vmem:[%s192 + $0xbd] sm:$0xff]
      %v343 = vld [vmem:[%s192 + $0xc5] sm:$0xff]
      %v344 = vld [vmem:[%s192 + $0xcd] sm:$0xff]
      %v345 = vld [vmem:[%s192 + $0xd5] sm:$0xff]
      %v346 = vld [vmem:[%s192 + $0xdd] sm:$0xff]
      %v347 = vld [vmem:[%s192 + $0xe5] sm:$0xff]
      %v348 = vld [vmem:[%s192 + $0xed] sm:$0xff]
      %v349 = vld [vmem:[%s192 + $0xf5] sm:$0xff]
      %v350 = vld [vmem:[%s192 + $0xfd] sm:$0xff]
      %v351 = vld [vmem:[%s192 + $0x105] sm:$0xff]
      %v352 = vld [vmem:[%s192 + $0x10d] sm:$0xff]
      %v353 = vld [vmem:[%s192 + $0x115] sm:$0xff]
      %v354 = vld [vmem:[%s192 + $0x11d] sm:$0xff]
      %v355 = vpack.c.bf16 %v320, %v319
      %v356 = vpack.c.bf16 %v322, %v321
      %v357 = vpack.c.bf16 %v324, %v323
      %v358 = vpack.c.bf16 %v326, %v325
      %v359 = vpack.c.bf16 %v328, %v327
      %v360 = vpack.c.bf16 %v330, %v329
      %v361 = vpack.c.bf16 %v332, %v331
      %v362 = vpack.c.bf16 %v334, %v333
      %v363 = vpack.c.bf16 %v336, %v335
      %v364 = vpack.c.bf16 %v338, %v337
      %v365 = vpack.c.bf16 %v340, %v339
      %v366 = vpack.c.bf16 %v342, %v341
      %v367 = vpack.c.bf16 %v344, %v343
      %v368 = vpack.c.bf16 %v346, %v345
      %v369 = vpack.c.bf16 %v348, %v347
      %v370 = vpack.c.bf16 %v350, %v349
      %v371 = vpack.c.bf16 %v352, %v351
      %v372 = vpack.c.bf16 %v354, %v353
      %v373 = vld [vmem:[%s1] sm:$0xf]
      %v374 = vld [vmem:[%s1 + $0x4] sm:$0xf]
      %v375 = vld [vmem:[%s1 + $0x8] sm:$0xf]
      %v376 = vld [vmem:[%s1 + $0xc] sm:$0xf]
      %v377 = vld [vmem:[%s1 + $0x10] sm:$0xf]
      %v378 = vld [vmem:[%s1 + $0x14] sm:$0xf]
      %v379 = vld [vmem:[%s1 + $0x18] sm:$0xf]
      %v380 = vld [vmem:[%s1 + $0x1c] sm:$0xf]
      %v381 = vld [vmem:[%s1 + $0x20] sm:$0xf]
      %v382 = vld [vmem:[%s1 + $0x24] sm:$0xf]
      %v383 = vld [vmem:[%s1 + $0x28] sm:$0xf]
      %v384 = vld [vmem:[%s1 + $0x2c] sm:$0xf]
      %v385 = vld [vmem:[%s1 + $0x30] sm:$0xf]
      %v386 = vld [vmem:[%s1 + $0x34] sm:$0xf]
      %v387 = vld [vmem:[%s1 + $0x38] sm:$0xf]
      %v388 = vld [vmem:[%s1 + $0x3c] sm:$0xf]
      %v389 = vld [vmem:[%s192 + $0x6] sm:$0xff]
      %v390 = vld [vmem:[%s192 + $0xe] sm:$0xff]
      %v391 = vld [vmem:[%s192 + $0x16] sm:$0xff]
      %v392 = vld [vmem:[%s192 + $0x1e] sm:$0xff]
      %v393 = vld [vmem:[%s192 + $0x26] sm:$0xff]
      %v394 = vld [vmem:[%s192 + $0x2e] sm:$0xff]
      %v395 = vld [vmem:[%s192 + $0x36] sm:$0xff]
      %v396 = vld [vmem:[%s192 + $0x3e] sm:$0xff]
      %v397 = vld [vmem:[%s192 + $0x46] sm:$0xff]
      %v398 = vld [vmem:[%s192 + $0x4e] sm:$0xff]
      %v399 = vld [vmem:[%s192 + $0x56] sm:$0xff]
      %v400 = vld [vmem:[%s192 + $0x5e] sm:$0xff]
      %v401 = vld [vmem:[%s192 + $0x66] sm:$0xff]
      %v402 = vld [vmem:[%s192 + $0x6e] sm:$0xff]
      %v403 = vld [vmem:[%s192 + $0x76] sm:$0xff]
      %v404 = vld [vmem:[%s192 + $0x7e] sm:$0xff]
      %v405 = vld [vmem:[%s192 + $0x86] sm:$0xff]
      %v406 = vld [vmem:[%s192 + $0x8e] sm:$0xff]
      %v407 = vld [vmem:[%s192 + $0x96] sm:$0xff]
      %v408 = vld [vmem:[%s192 + $0x9e] sm:$0xff]
      %v409 = vld [vmem:[%s192 + $0xa6] sm:$0xff]
      %v410 = vld [vmem:[%s192 + $0xae] sm:$0xff]
      %v411 = vld [vmem:[%s192 + $0xb6] sm:$0xff]
      %v412 = vld [vmem:[%s192 + $0xbe] sm:$0xff]
      %v413 = vld [vmem:[%s192 + $0xc6] sm:$0xff]
      %v414 = vld [vmem:[%s192 + $0xce] sm:$0xff]
      %v415 = vld [vmem:[%s192 + $0xd6] sm:$0xff]
      %v416 = vld [vmem:[%s192 + $0xde] sm:$0xff]
      %v417 = vld [vmem:[%s192 + $0xe6] sm:$0xff]
      %v418 = vld [vmem:[%s192 + $0xee] sm:$0xff]
      %v419 = vld [vmem:[%s192 + $0xf6] sm:$0xff]
      %v420 = vld [vmem:[%s192 + $0xfe] sm:$0xff]
      %v421 = vld [vmem:[%s192 + $0x106] sm:$0xff]
      %v422 = vld [vmem:[%s192 + $0x10e] sm:$0xff]
      %v423 = vld [vmem:[%s192 + $0x116] sm:$0xff]
      %v424 = vld [vmem:[%s192 + $0x11e] sm:$0xff]
      %v425 = vpack.c.bf16 %v390, %v389
      %v426 = vpack.c.bf16 %v392, %v391
      %v427 = vpack.c.bf16 %v394, %v393
      %v428 = vpack.c.bf16 %v396, %v395
      %v429 = vpack.c.bf16 %v398, %v397
      %v430 = vpack.c.bf16 %v400, %v399
      %v431 = vpack.c.bf16 %v402, %v401
      %v432 = vpack.c.bf16 %v404, %v403
      %v433 = vpack.c.bf16 %v406, %v405
      %v434 = vpack.c.bf16 %v408, %v407
      %v435 = vpack.c.bf16 %v410, %v409
      %v436 = vpack.c.bf16 %v412, %v411
      %v437 = vpack.c.bf16 %v414, %v413
      %v438 = vpack.c.bf16 %v416, %v415
      %v439 = vpack.c.bf16 %v418, %v417
      %v440 = vpack.c.bf16 %v420, %v419
      %v441 = vpack.c.bf16 %v422, %v421
      %v442 = vpack.c.bf16 %v424, %v423
      %s443 = scalar_lea.vmem %s1, 64
      %v444 = vld [vmem:[%s443] sm:$0xf]
      %v445 = vld [vmem:[%s443 + $0x4] sm:$0xf]
      %v446 = vld [vmem:[%s443 + $0x8] sm:$0xf]
      %v447 = vld [vmem:[%s443 + $0xc] sm:$0xf]
      %v448 = vld [vmem:[%s443 + $0x10] sm:$0xf]
      %v449 = vld [vmem:[%s443 + $0x14] sm:$0xf]
      %v450 = vld [vmem:[%s443 + $0x18] sm:$0xf]
      %v451 = vld [vmem:[%s443 + $0x1c] sm:$0xf]
      %v452 = vld [vmem:[%s443 + $0x20] sm:$0xf]
      %v453 = vld [vmem:[%s443 + $0x24] sm:$0xf]
      %v454 = vld [vmem:[%s443 + $0x28] sm:$0xf]
      %v455 = vld [vmem:[%s443 + $0x2c] sm:$0xf]
      %v456 = vld [vmem:[%s443 + $0x30] sm:$0xf]
      %v457 = vld [vmem:[%s443 + $0x34] sm:$0xf]
      %v458 = vld [vmem:[%s443 + $0x38] sm:$0xf]
      %v459 = vld [vmem:[%s443 + $0x3c] sm:$0xf]
      %v476 = vunpack.c.l.b16 %v444
      %v477 = vunpack.c.l.b16 %v445
      %v478 = vunpack.c.l.b16 %v446
      %v479 = vunpack.c.l.b16 %v447
      %v480 = vunpack.c.l.b16 %v448
      %v481 = vunpack.c.l.b16 %v449
      %v482 = vunpack.c.l.b16 %v450
      %v483 = vunpack.c.l.b16 %v451
      %v484 = vunpack.c.l.b16 %v452
      %v485 = vunpack.c.l.b16 %v453
      %v486 = vunpack.c.l.b16 %v454
      %v487 = vunpack.c.l.b16 %v455
      %v488 = vunpack.c.l.b16 %v456
      %v489 = vunpack.c.l.b16 %v457
      %v490 = vunpack.c.l.b16 %v458
      %v491 = vunpack.c.l.b16 %v459
      %v492 = vpack.c.b16 %v477, %v476
      %v493 = vpack.c.b16 %v479, %v478
      %v494 = vpack.c.b16 %v481, %v480
      %v495 = vpack.c.b16 %v483, %v482
      %v496 = vpack.c.b16 %v485, %v484
      %v497 = vpack.c.b16 %v487, %v486
      %v498 = vpack.c.b16 %v489, %v488
      %v499 = vpack.c.b16 %v491, %v490
      %508 = vmatprep.subr.bf16.mxu0 0
      %509 = vmatpush1.bf16.msra.mxu0 %v492
      %510 = vmatprep.subr.bf16.mxu0 0
      %511 = vmatpush1.bf16.msra.mxu0 %v493
      %512 = vmatprep.subr.bf16.mxu0 0
      %513 = vmatpush1.bf16.msra.mxu0 %v494
      %514 = vmatprep.subr.bf16.mxu0 0
      %515 = vmatpush1.bf16.msra.mxu0 %v495
      %516 = vmatprep.subr.bf16.mxu0 0
      %517 = vmatpush1.bf16.msra.mxu0 %v496
      %518 = vmatprep.subr.bf16.mxu0 0
      %519 = vmatpush1.bf16.msra.mxu0 %v497
      %520 = vmatprep.subr.bf16.mxu0 0
      %521 = vmatpush1.bf16.msra.mxu0 %v498
      %522 = vmatprep.subr.bf16.mxu0 0
      %523 = vmatpush1.bf16.msra.mxu0 %v499
      %524 = vmatprep.subr.bf16.mxu0 0
      %525 = vmatpush1.bf16.msra.mxu0 0
      %526 = vmatprep.subr.bf16.mxu0 0
      %527 = vmatpush1.bf16.msra.mxu0 0
      %528 = vmatprep.subr.bf16.mxu0 0
      %529 = vmatpush1.bf16.msra.mxu0 0
      %530 = vmatprep.subr.bf16.mxu0 0
      %531 = vmatpush1.bf16.msra.mxu0 0
      %532 = vmatprep.subr.bf16.mxu0 0
      %533 = vmatpush1.bf16.msra.mxu0 0
      %534 = vmatprep.subr.bf16.mxu0 0
      %535 = vmatpush1.bf16.msra.mxu0 0
      %536 = vmatprep.subr.bf16.mxu0 0
      %537 = vmatpush1.bf16.msra.mxu0 0
      %538 = vmatprep.subr.bf16.mxu0 0
      %539 = vmatpush1.bf16.msra.mxu0 0
      %540 = vmatprep.mubr.bf16.mxu0 0
      %541 = vmatmul.mubr.bf16.gmra.mrb[0].mxu0 %v425
      %v542 = vpop.f32.mrb[0].mxu0
      %v543 = vadd.f32 0.0, %v542
      %v544 = vpop.f32.mrb[0].mxu0
      %v545 = vpop.f32.mrb[0].mxu0
      %v546 = vadd.f32 0.0, %v545
      %v547 = vpop.f32.mrb[0].mxu0
      %548 = vmatprep.mubr.bf16.mxu0 0
      %549 = vmatmul.mubr.bf16.gmra.mrb[0].mxu0 %v426
      %v550 = vpop.f32.mrb[0].mxu0
      %v551 = vadd.f32 0.0, %v550
      %v552 = vpop.f32.mrb[0].mxu0
      %v553 = vpop.f32.mrb[0].mxu0
      %v554 = vadd.f32 0.0, %v553
      %v555 = vpop.f32.mrb[0].mxu0
      %556 = vmatprep.mubr.bf16.mxu0 0
      %557 = vmatmul.mubr.bf16.gmra.mrb[0].mxu0 %v427
      %v558 = vpop.f32.mrb[0].mxu0
      %v559 = vadd.f32 0.0, %v558
      %v560 = vpop.f32.mrb[0].mxu0
      %v561 = vpop.f32.mrb[0].mxu0
      %v562 = vadd.f32 0.0, %v561
      %v563 = vpop.f32.mrb[0].mxu0
      %564 = vmatprep.mubr.bf16.mxu0 0
      %565 = vmatmul.mubr.bf16.gmra.mrb[0].mxu0 %v428
      %v566 = vpop.f32.mrb[0].mxu0
      %v567 = vadd.f32 0.0, %v566
      %v568 = vpop.f32.mrb[0].mxu0
      %v569 = vpop.f32.mrb[0].mxu0
      %v570 = vadd.f32 0.0, %v569
      %v571 = vpop.f32.mrb[0].mxu0
      %572 = vmatprep.mubr.bf16.mxu0 0
      %573 = vmatmul.mubr.bf16.gmra.mrb[0].mxu0 %v429
      %v574 = vpop.f32.mrb[0].mxu0
      %v575 = vadd.f32 0.0, %v574
      %v576 = vpop.f32.mrb[0].mxu0
      %v577 = vpop.f32.mrb[0].mxu0
      %v578 = vadd.f32 0.0, %v577
      %v579 = vpop.f32.mrb[0].mxu0
      %580 = vmatprep.mubr.bf16.mxu0 0
      %581 = vmatmul.mubr.bf16.gmra.mrb[0].mxu0 %v430
      %v582 = vpop.f32.mrb[0].mxu0
      %v583 = vadd.f32 0.0, %v582
      %v584 = vpop.f32.mrb[0].mxu0
      %v585 = vpop.f32.mrb[0].mxu0
      %v586 = vadd.f32 0.0, %v585
      %v587 = vpop.f32.mrb[0].mxu0
      %588 = vmatprep.mubr.bf16.mxu0 0
      %589 = vmatmul.mubr.bf16.gmra.mrb[0].mxu0 %v431
      %v590 = vpop.f32.mrb[0].mxu0
      %v591 = vadd.f32 0.0, %v590
      %v592 = vpop.f32.mrb[0].mxu0
      %v593 = vpop.f32.mrb[0].mxu0
      %v594 = vadd.f32 0.0, %v593
      %v595 = vpop.f32.mrb[0].mxu0
      %596 = vmatprep.mubr.bf16.mxu0 0
      %597 = vmatmul.mubr.bf16.gmra.mrb[0].mxu0 %v432
      %v598 = vpop.f32.mrb[0].mxu0
      %v599 = vadd.f32 0.0, %v598
      %v600 = vpop.f32.mrb[0].mxu0
      %v601 = vpop.f32.mrb[0].mxu0
      %v602 = vadd.f32 0.0, %v601
      %v603 = vpop.f32.mrb[0].mxu0
      %604 = vmatprep.mubr.bf16.mxu0 0
      %605 = vmatmul.mubr.bf16.gmra.mrb[0].mxu0 %v433
      %v606 = vpop.f32.mrb[0].mxu0
      %v607 = vadd.f32 0.0, %v606
      %v608 = vpop.f32.mrb[0].mxu0
      %v609 = vpop.f32.mrb[0].mxu0
      %v610 = vadd.f32 0.0, %v609
      %v611 = vpop.f32.mrb[0].mxu0
      %612 = vmatprep.mubr.bf16.mxu0 0
      %613 = vmatmul.mubr.bf16.gmra.mrb[0].mxu0 %v434
      %v614 = vpop.f32.mrb[0].mxu0
      %v615 = vadd.f32 0.0, %v614
      %v616 = vpop.f32.mrb[0].mxu0
      %v617 = vpop.f32.mrb[0].mxu0
      %v618 = vadd.f32 0.0, %v617
      %v619 = vpop.f32.mrb[0].mxu0
      %620 = vmatprep.mubr.bf16.mxu0 0
      %621 = vmatmul.mubr.bf16.gmra.mrb[0].mxu0 %v435
      %v622 = vpop.f32.mrb[0].mxu0
      %v623 = vadd.f32 0.0, %v622
      %v624 = vpop.f32.mrb[0].mxu0
      %v625 = vpop.f32.mrb[0].mxu0
      %v626 = vadd.f32 0.0, %v625
      %v627 = vpop.f32.mrb[0].mxu0
      %628 = vmatprep.mubr.bf16.mxu0 0
      %629 = vmatmul.mubr.bf16.gmra.mrb[0].mxu0 %v436
      %v630 = vpop.f32.mrb[0].mxu0
      %v631 = vadd.f32 0.0, %v630
      %v632 = vpop.f32.mrb[0].mxu0
      %v633 = vpop.f32.mrb[0].mxu0
      %v634 = vadd.f32 0.0, %v633
      %v635 = vpop.f32.mrb[0].mxu0
      %636 = vmatprep.mubr.bf16.mxu0 0
      %637 = vmatmul.mubr.bf16.gmra.mrb[0].mxu0 %v437
      %v638 = vpop.f32.mrb[0].mxu0
      %v639 = vadd.f32 0.0, %v638
      %v640 = vpop.f32.mrb[0].mxu0
      %v641 = vpop.f32.mrb[0].mxu0
      %v642 = vadd.f32 0.0, %v641
      %v643 = vpop.f32.mrb[0].mxu0
      %644 = vmatprep.mubr.bf16.mxu0 0
      %645 = vmatmul.mubr.bf16.gmra.mrb[0].mxu0 %v438
      %v646 = vpop.f32.mrb[0].mxu0
      %v647 = vadd.f32 0.0, %v646
      %v648 = vpop.f32.mrb[0].mxu0
      %v649 = vpop.f32.mrb[0].mxu0
      %v650 = vadd.f32 0.0, %v649
      %v651 = vpop.f32.mrb[0].mxu0
      %652 = vmatprep.mubr.bf16.mxu0 0
      %653 = vmatmul.mubr.bf16.gmra.mrb[0].mxu0 %v439
      %v654 = vpop.f32.mrb[0].mxu0
      %v655 = vadd.f32 0.0, %v654
      %v656 = vpop.f32.mrb[0].mxu0
      %v657 = vpop.f32.mrb[0].mxu0
      %v658 = vadd.f32 0.0, %v657
      %v659 = vpop.f32.mrb[0].mxu0
      %660 = vmatprep.mubr.bf16.mxu0 0
      %661 = vmatmul.mubr.bf16.gmra.mrb[0].mxu0 %v440
      %v662 = vpop.f32.mrb[0].mxu0
      %v663 = vadd.f32 0.0, %v662
      %v664 = vpop.f32.mrb[0].mxu0
      %v665 = vpop.f32.mrb[0].mxu0
      %v666 = vadd.f32 0.0, %v665
      %v667 = vpop.f32.mrb[0].mxu0
      %668 = vmatprep.mubr.bf16.mxu0 0
      %669 = vmatmul.mubr.bf16.gmra.mrb[0].mxu0 %v441
      %v670 = vpop.f32.mrb[0].mxu0
      %v671 = vadd.f32 0.0, %v670
      %v672 = vpop.f32.mrb[0].mxu0
      %v673 = vpop.f32.mrb[0].mxu0
      %v674 = vadd.f32 0.0, %v673
      %v675 = vpop.f32.mrb[0].mxu0
      %676 = vmatprep.mubr.bf16.mxu0 0
      %677 = vmatmul.mubr.bf16.gmra.mrb[0].mxu0 %v442
      %v678 = vpop.f32.mrb[0].mxu0
      %v679 = vadd.f32 0.0, %v678
      %v680 = vpop.f32.mrb[0].mxu0
      %v681 = vpop.f32.mrb[0].mxu0
      %v682 = vadd.f32 0.0, %v681
      %v683 = vpop.f32.mrb[0].mxu0
      %684 = vdwg.mxu0
      %v701 = vunpack.c.l.b16 %v373
      %v702 = vunpack.c.l.b16 %v374
      %v703 = vunpack.c.l.b16 %v375
      %v704 = vunpack.c.l.b16 %v376
      %v705 = vunpack.c.l.b16 %v377
      %v706 = vunpack.c.l.b16 %v378
      %v707 = vunpack.c.l.b16 %v379
      %v708 = vunpack.c.l.b16 %v380
      %v709 = vunpack.c.l.b16 %v381
      %v710 = vunpack.c.l.b16 %v382
      %v711 = vunpack.c.l.b16 %v383
      %v712 = vunpack.c.l.b16 %v384
      %v713 = vunpack.c.l.b16 %v385
      %v714 = vunpack.c.l.b16 %v386
      %v715 = vunpack.c.l.b16 %v387
      %v716 = vunpack.c.l.b16 %v388
      %v717 = vpack.c.b16 %v702, %v701
      %v718 = vpack.c.b16 %v704, %v703
      %v719 = vpack.c.b16 %v706, %v705
      %v720 = vpack.c.b16 %v708, %v707
      %v721 = vpack.c.b16 %v710, %v709
      %v722 = vpack.c.b16 %v712, %v711
      %v723 = vpack.c.b16 %v714, %v713
      %v724 = vpack.c.b16 %v716, %v715
      %733 = vmatprep.subr.bf16.mxu0 0
      %734 = vmatpush1.bf16.msra.mxu0 %v717
      %735 = vmatprep.subr.bf16.mxu0 0
      %736 = vmatpush1.bf16.msra.mxu0 %v718
      %737 = vmatprep.subr.bf16.mxu0 0
      %738 = vmatpush1.bf16.msra.mxu0 %v719
      %739 = vmatprep.subr.bf16.mxu0 0
      %740 = vmatpush1.bf16.msra.mxu0 %v720
      %741 = vmatprep.subr.bf16.mxu0 0
      %742 = vmatpush1.bf16.msra.mxu0 %v721
      %743 = vmatprep.subr.bf16.mxu0 0
      %744 = vmatpush1.bf16.msra.mxu0 %v722
      %745 = vmatprep.subr.bf16.mxu0 0
      %746 = vmatpush1.bf16.msra.mxu0 %v723
      %747 = vmatprep.subr.bf16.mxu0 0
      %748 = vmatpush1.bf16.msra.mxu0 %v724
      %749 = vmatprep.subr.bf16.mxu0 0
      %750 = vmatpush1.bf16.msra.mxu0 0
      %751 = vmatprep.subr.bf16.mxu0 0
      %752 = vmatpush1.bf16.msra.mxu0 0
      %753 = vmatprep.subr.bf16.mxu0 0
      %754 = vmatpush1.bf16.msra.mxu0 0
      %755 = vmatprep.subr.bf16.mxu0 0
      %756 = vmatpush1.bf16.msra.mxu0 0
      %757 = vmatprep.subr.bf16.mxu0 0
      %758 = vmatpush1.bf16.msra.mxu0 0
      %759 = vmatprep.subr.bf16.mxu0 0
      %760 = vmatpush1.bf16.msra.mxu0 0
      %761 = vmatprep.subr.bf16.mxu0 0
      %762 = vmatpush1.bf16.msra.mxu0 0
      %763 = vmatprep.subr.bf16.mxu0 0
      %764 = vmatpush1.bf16.msra.mxu0 0
      %765 = vmatprep.mubr.bf16.mxu0 0
      %766 = vmatmul.mubr.bf16.gmra.mrb[0].mxu0 %v355
      %v767 = vpop.f32.mrb[0].mxu0
      %v768 = vadd.f32 %v543, %v767
      %v769 = vpop.f32.mrb[0].mxu0
      %v770 = vpop.f32.mrb[0].mxu0
      %v771 = vadd.f32 %v546, %v770
      %v772 = vpop.f32.mrb[0].mxu0
      %773 = vmatprep.mubr.bf16.mxu0 0
      %774 = vmatmul.mubr.bf16.gmra.mrb[0].mxu0 %v356
      %v775 = vpop.f32.mrb[0].mxu0
      %v776 = vadd.f32 %v551, %v775
      %v777 = vpop.f32.mrb[0].mxu0
      %v778 = vpop.f32.mrb[0].mxu0
      %v779 = vadd.f32 %v554, %v778
      %v780 = vpop.f32.mrb[0].mxu0
      %781 = vmatprep.mubr.bf16.mxu0 0
      %782 = vmatmul.mubr.bf16.gmra.mrb[0].mxu0 %v357
      %v783 = vpop.f32.mrb[0].mxu0
      %v784 = vadd.f32 %v559, %v783
      %v785 = vpop.f32.mrb[0].mxu0
      %v786 = vpop.f32.mrb[0].mxu0
      %v787 = vadd.f32 %v562, %v786
      %v788 = vpop.f32.mrb[0].mxu0
      %789 = vmatprep.mubr.bf16.mxu0 0
      %790 = vmatmul.mubr.bf16.gmra.mrb[0].mxu0 %v358
      %v791 = vpop.f32.mrb[0].mxu0
      %v792 = vadd.f32 %v567, %v791
      %v793 = vpop.f32.mrb[0].mxu0
      %v794 = vpop.f32.mrb[0].mxu0
      %v795 = vadd.f32 %v570, %v794
      %v796 = vpop.f32.mrb[0].mxu0
      %797 = vmatprep.mubr.bf16.mxu0 0
      %798 = vmatmul.mubr.bf16.gmra.mrb[0].mxu0 %v359
      %v799 = vpop.f32.mrb[0].mxu0
      %v800 = vadd.f32 %v575, %v799
      %v801 = vpop.f32.mrb[0].mxu0
      %v802 = vpop.f32.mrb[0].mxu0
      %v803 = vadd.f32 %v578, %v802
      %v804 = vpop.f32.mrb[0].mxu0
      %805 = vmatprep.mubr.bf16.mxu0 0
      %806 = vmatmul.mubr.bf16.gmra.mrb[0].mxu0 %v360
      %v807 = vpop.f32.mrb[0].mxu0
      %v808 = vadd.f32 %v583, %v807
      %v809 = vpop.f32.mrb[0].mxu0
      %v810 = vpop.f32.mrb[0].mxu0
      %v811 = vadd.f32 %v586, %v810
      %v812 = vpop.f32.mrb[0].mxu0
      %813 = vmatprep.mubr.bf16.mxu0 0
      %814 = vmatmul.mubr.bf16.gmra.mrb[0].mxu0 %v361
      %v815 = vpop.f32.mrb[0].mxu0
      %v816 = vadd.f32 %v591, %v815
      %v817 = vpop.f32.mrb[0].mxu0
      %v818 = vpop.f32.mrb[0].mxu0
      %v819 = vadd.f32 %v594, %v818
      %v820 = vpop.f32.mrb[0].mxu0
      %821 = vmatprep.mubr.bf16.mxu0 0
      %822 = vmatmul.mubr.bf16.gmra.mrb[0].mxu0 %v362
      %v823 = vpop.f32.mrb[0].mxu0
      %v824 = vadd.f32 %v599, %v823
      %v825 = vpop.f32.mrb[0].mxu0
      %v826 = vpop.f32.mrb[0].mxu0
      %v827 = vadd.f32 %v602, %v826
      %v828 = vpop.f32.mrb[0].mxu0
      %829 = vmatprep.mubr.bf16.mxu0 0
      %830 = vmatmul.mubr.bf16.gmra.mrb[0].mxu0 %v363
      %v831 = vpop.f32.mrb[0].mxu0
      %v832 = vadd.f32 %v607, %v831
      %v833 = vpop.f32.mrb[0].mxu0
      %v834 = vpop.f32.mrb[0].mxu0
      %v835 = vadd.f32 %v610, %v834
      %v836 = vpop.f32.mrb[0].mxu0
      %837 = vmatprep.mubr.bf16.mxu0 0
      %838 = vmatmul.mubr.bf16.gmra.mrb[0].mxu0 %v364
      %v839 = vpop.f32.mrb[0].mxu0
      %v840 = vadd.f32 %v615, %v839
      %v841 = vpop.f32.mrb[0].mxu0
      %v842 = vpop.f32.mrb[0].mxu0
      %v843 = vadd.f32 %v618, %v842
      %v844 = vpop.f32.mrb[0].mxu0
      %845 = vmatprep.mubr.bf16.mxu0 0
      %846 = vmatmul.mubr.bf16.gmra.mrb[0].mxu0 %v365
      %v847 = vpop.f32.mrb[0].mxu0
      %v848 = vadd.f32 %v623, %v847
      %v849 = vpop.f32.mrb[0].mxu0
      %v850 = vpop.f32.mrb[0].mxu0
      %v851 = vadd.f32 %v626, %v850
      %v852 = vpop.f32.mrb[0].mxu0
      %853 = vmatprep.mubr.bf16.mxu0 0
      %854 = vmatmul.mubr.bf16.gmra.mrb[0].mxu0 %v366
      %v855 = vpop.f32.mrb[0].mxu0
      %v856 = vadd.f32 %v631, %v855
      %v857 = vpop.f32.mrb[0].mxu0
      %v858 = vpop.f32.mrb[0].mxu0
      %v859 = vadd.f32 %v634, %v858
      %v860 = vpop.f32.mrb[0].mxu0
      %861 = vmatprep.mubr.bf16.mxu0 0
      %862 = vmatmul.mubr.bf16.gmra.mrb[0].mxu0 %v367
      %v863 = vpop.f32.mrb[0].mxu0
      %v864 = vadd.f32 %v639, %v863
      %v865 = vpop.f32.mrb[0].mxu0
      %v866 = vpop.f32.mrb[0].mxu0
      %v867 = vadd.f32 %v642, %v866
      %v868 = vpop.f32.mrb[0].mxu0
      %869 = vmatprep.mubr.bf16.mxu0 0
      %870 = vmatmul.mubr.bf16.gmra.mrb[0].mxu0 %v368
      %v871 = vpop.f32.mrb[0].mxu0
      %v872 = vadd.f32 %v647, %v871
      %v873 = vpop.f32.mrb[0].mxu0
      %v874 = vpop.f32.mrb[0].mxu0
      %v875 = vadd.f32 %v650, %v874
      %v876 = vpop.f32.mrb[0].mxu0
      %877 = vmatprep.mubr.bf16.mxu0 0
      %878 = vmatmul.mubr.bf16.gmra.mrb[0].mxu0 %v369
      %v879 = vpop.f32.mrb[0].mxu0
      %v880 = vadd.f32 %v655, %v879
      %v881 = vpop.f32.mrb[0].mxu0
      %v882 = vpop.f32.mrb[0].mxu0
      %v883 = vadd.f32 %v658, %v882
      %v884 = vpop.f32.mrb[0].mxu0
      %885 = vmatprep.mubr.bf16.mxu0 0
      %886 = vmatmul.mubr.bf16.gmra.mrb[0].mxu0 %v370
      %v887 = vpop.f32.mrb[0].mxu0
      %v888 = vadd.f32 %v663, %v887
      %v889 = vpop.f32.mrb[0].mxu0
      %v890 = vpop.f32.mrb[0].mxu0
      %v891 = vadd.f32 %v666, %v890
      %v892 = vpop.f32.mrb[0].mxu0
      %893 = vmatprep.mubr.bf16.mxu0 0
      %894 = vmatmul.mubr.bf16.gmra.mrb[0].mxu0 %v371
      %v895 = vpop.f32.mrb[0].mxu0
      %v896 = vadd.f32 %v671, %v895
      %v897 = vpop.f32.mrb[0].mxu0
      %v898 = vpop.f32.mrb[0].mxu0
      %v899 = vadd.f32 %v674, %v898
      %v900 = vpop.f32.mrb[0].mxu0
      %901 = vmatprep.mubr.bf16.mxu0 0
      %902 = vmatmul.mubr.bf16.gmra.mrb[0].mxu0 %v372
      %v903 = vpop.f32.mrb[0].mxu0
      %v904 = vadd.f32 %v679, %v903
      %v905 = vpop.f32.mrb[0].mxu0
      %v906 = vpop.f32.mrb[0].mxu0
      %v907 = vadd.f32 %v682, %v906
      %v908 = vpop.f32.mrb[0].mxu0
      %909 = vdwg.mxu0
      %v910 = vld [vmem:[%s192 + $0x7] sm:$0xff]
      %v911 = vld [vmem:[%s192 + $0xf] sm:$0xff]
      %v912 = vld [vmem:[%s192 + $0x17] sm:$0xff]
      %v913 = vld [vmem:[%s192 + $0x1f] sm:$0xff]
      %v914 = vld [vmem:[%s192 + $0x27] sm:$0xff]
      %v915 = vld [vmem:[%s192 + $0x2f] sm:$0xff]
      %v916 = vld [vmem:[%s192 + $0x37] sm:$0xff]
      %v917 = vld [vmem:[%s192 + $0x3f] sm:$0xff]
      %v918 = vld [vmem:[%s192 + $0x47] sm:$0xff]
      %v919 = vld [vmem:[%s192 + $0x4f] sm:$0xff]
      %v920 = vld [vmem:[%s192 + $0x57] sm:$0xff]
      %v921 = vld [vmem:[%s192 + $0x5f] sm:$0xff]
      %v922 = vld [vmem:[%s192 + $0x67] sm:$0xff]
      %v923 = vld [vmem:[%s192 + $0x6f] sm:$0xff]
      %v924 = vld [vmem:[%s192 + $0x77] sm:$0xff]
      %v925 = vld [vmem:[%s192 + $0x7f] sm:$0xff]
      %v926 = vld [vmem:[%s192 + $0x87] sm:$0xff]
      %v927 = vld [vmem:[%s192 + $0x8f] sm:$0xff]
      %v928 = vld [vmem:[%s192 + $0x97] sm:$0xff]
      %v929 = vld [vmem:[%s192 + $0x9f] sm:$0xff]
      %v930 = vld [vmem:[%s192 + $0xa7] sm:$0xff]
      %v931 = vld [vmem:[%s192 + $0xaf] sm:$0xff]
      %v932 = vld [vmem:[%s192 + $0xb7] sm:$0xff]
      %v933 = vld [vmem:[%s192 + $0xbf] sm:$0xff]
      %v934 = vld [vmem:[%s192 + $0xc7] sm:$0xff]
      %v935 = vld [vmem:[%s192 + $0xcf] sm:$0xff]
      %v936 = vld [vmem:[%s192 + $0xd7] sm:$0xff]
      %v937 = vld [vmem:[%s192 + $0xdf] sm:$0xff]
      %v938 = vld [vmem:[%s192 + $0xe7] sm:$0xff]
      %v939 = vld [vmem:[%s192 + $0xef] sm:$0xff]
      %v940 = vld [vmem:[%s192 + $0xf7] sm:$0xff]
      %v941 = vld [vmem:[%s192 + $0xff] sm:$0xff]
      %v942 = vld [vmem:[%s192 + $0x107] sm:$0xff]
      %v943 = vld [vmem:[%s192 + $0x10f] sm:$0xff]
      %v944 = vld [vmem:[%s192 + $0x117] sm:$0xff]
      %v945 = vld [vmem:[%s192 + $0x11f] sm:$0xff]
      %v946 = vpack.c.bf16 %v911, %v910
      %v947 = vpack.c.bf16 %v913, %v912
      %v948 = vpack.c.bf16 %v915, %v914
      %v949 = vpack.c.bf16 %v917, %v916
      %v950 = vpack.c.bf16 %v919, %v918
      %v951 = vpack.c.bf16 %v921, %v920
      %v952 = vpack.c.bf16 %v923, %v922
      %v953 = vpack.c.bf16 %v925, %v924
      %v954 = vpack.c.bf16 %v927, %v926
      %v955 = vpack.c.bf16 %v929, %v928
      %v956 = vpack.c.bf16 %v931, %v930
      %v957 = vpack.c.bf16 %v933, %v932
      %v958 = vpack.c.bf16 %v935, %v934
      %v959 = vpack.c.bf16 %v937, %v936
      %v960 = vpack.c.bf16 %v939, %v938
      %v961 = vpack.c.bf16 %v941, %v940
      %v962 = vpack.c.bf16 %v943, %v942
      %v963 = vpack.c.bf16 %v945, %v944
      %s964 = scalar_lea.vmem %s1, 128
      %v965 = vld [vmem:[%s964] sm:$0xf]
      %v966 = vld [vmem:[%s964 + $0x4] sm:$0xf]
      %v967 = vld [vmem:[%s964 + $0x8] sm:$0xf]
      %v968 = vld [vmem:[%s964 + $0xc] sm:$0xf]
      %v969 = vld [vmem:[%s964 + $0x10] sm:$0xf]
      %v970 = vld [vmem:[%s964 + $0x14] sm:$0xf]
      %v971 = vld [vmem:[%s964 + $0x18] sm:$0xf]
      %v972 = vld [vmem:[%s964 + $0x1c] sm:$0xf]
      %v973 = vld [vmem:[%s964 + $0x20] sm:$0xf]
      %v974 = vld [vmem:[%s964 + $0x24] sm:$0xf]
      %v975 = vld [vmem:[%s964 + $0x28] sm:$0xf]
      %v976 = vld [vmem:[%s964 + $0x2c] sm:$0xf]
      %v977 = vld [vmem:[%s964 + $0x30] sm:$0xf]
      %v978 = vld [vmem:[%s964 + $0x34] sm:$0xf]
      %v979 = vld [vmem:[%s964 + $0x38] sm:$0xf]
      %v980 = vld [vmem:[%s964 + $0x3c] sm:$0xf]
      %v997 = vunpack.c.l.b16 %v965
      %v998 = vunpack.c.l.b16 %v966
      %v999 = vunpack.c.l.b16 %v967
      %v1000 = vunpack.c.l.b16 %v968
      %v1001 = vunpack.c.l.b16 %v969
      %v1002 = vunpack.c.l.b16 %v970
      %v1003 = vunpack.c.l.b16 %v971
      %v1004 = vunpack.c.l.b16 %v972
      %v1005 = vunpack.c.l.b16 %v973
      %v1006 = vunpack.c.l.b16 %v974
      %v1007 = vunpack.c.l.b16 %v975
      %v1008 = vunpack.c.l.b16 %v976
      %v1009 = vunpack.c.l.b16 %v977
      %v1010 = vunpack.c.l.b16 %v978
      %v1011 = vunpack.c.l.b16 %v979
      %v1012 = vunpack.c.l.b16 %v980
      %v1013 = vpack.c.b16 %v998, %v997
      %v1014 = vpack.c.b16 %v1000, %v999
      %v1015 = vpack.c.b16 %v1002, %v1001
      %v1016 = vpack.c.b16 %v1004, %v1003
      %v1017 = vpack.c.b16 %v1006, %v1005
      %v1018 = vpack.c.b16 %v1008, %v1007
      %v1019 = vpack.c.b16 %v1010, %v1009
      %v1020 = vpack.c.b16 %v1012, %v1011
      %1029 = vmatprep.subr.bf16.mxu0 0
      %1030 = vmatpush1.bf16.msra.mxu0 %v1013
      %1031 = vmatprep.subr.bf16.mxu0 0
      %1032 = vmatpush1.bf16.msra.mxu0 %v1014
      %1033 = vmatprep.subr.bf16.mxu0 0
      %1034 = vmatpush1.bf16.msra.mxu0 %v1015
      %1035 = vmatprep.subr.bf16.mxu0 0
      %1036 = vmatpush1.bf16.msra.mxu0 %v1016
      %1037 = vmatprep.subr.bf16.mxu0 0
      %1038 = vmatpush1.bf16.msra.mxu0 %v1017
      %1039 = vmatprep.subr.bf16.mxu0 0
      %1040 = vmatpush1.bf16.msra.mxu0 %v1018
      %1041 = vmatprep.subr.bf16.mxu0 0
      %1042 = vmatpush1.bf16.msra.mxu0 %v1019
      %1043 = vmatprep.subr.bf16.mxu0 0
      %1044 = vmatpush1.bf16.msra.mxu0 %v1020
      %1045 = vmatprep.subr.bf16.mxu0 0
      %1046 = vmatpush1.bf16.msra.mxu0 0
      %1047 = vmatprep.subr.bf16.mxu0 0
      %1048 = vmatpush1.bf16.msra.mxu0 0
      %1049 = vmatprep.subr.bf16.mxu0 0
      %1050 = vmatpush1.bf16.msra.mxu0 0
      %1051 = vmatprep.subr.bf16.mxu0 0
      %1052 = vmatpush1.bf16.msra.mxu0 0
      %1053 = vmatprep.subr.bf16.mxu0 0
      %1054 = vmatpush1.bf16.msra.mxu0 0
      %1055 = vmatprep.subr.bf16.mxu0 0
      %1056 = vmatpush1.bf16.msra.mxu0 0
      %1057 = vmatprep.subr.bf16.mxu0 0
      %1058 = vmatpush1.bf16.msra.mxu0 0
      %1059 = vmatprep.subr.bf16.mxu0 0
      %1060 = vmatpush1.bf16.msra.mxu0 0
      %1061 = vmatprep.mubr.bf16.mxu0 0
      %1062 = vmatmul.mubr.bf16.gmra.mrb[0].mxu0 %v946
      %v1063 = vpop.f32.mrb[0].mxu0
      %v1064 = vadd.f32 0.0, %v1063
      %v1065 = vpop.f32.mrb[0].mxu0
      %v1066 = vpop.f32.mrb[0].mxu0
      %v1067 = vadd.f32 0.0, %v1066
      %v1068 = vpop.f32.mrb[0].mxu0
      %1069 = vmatprep.mubr.bf16.mxu0 0
      %1070 = vmatmul.mubr.bf16.gmra.mrb[0].mxu0 %v947
      %v1071 = vpop.f32.mrb[0].mxu0
      %v1072 = vadd.f32 0.0, %v1071
      %v1073 = vpop.f32.mrb[0].mxu0
      %v1074 = vpop.f32.mrb[0].mxu0
      %v1075 = vadd.f32 0.0, %v1074
      %v1076 = vpop.f32.mrb[0].mxu0
      %1077 = vmatprep.mubr.bf16.mxu0 0
      %1078 = vmatmul.mubr.bf16.gmra.mrb[0].mxu0 %v948
      %v1079 = vpop.f32.mrb[0].mxu0
      %v1080 = vadd.f32 0.0, %v1079
      %v1081 = vpop.f32.mrb[0].mxu0
      %v1082 = vpop.f32.mrb[0].mxu0
      %v1083 = vadd.f32 0.0, %v1082
      %v1084 = vpop.f32.mrb[0].mxu0
      %1085 = vmatprep.mubr.bf16.mxu0 0
      %1086 = vmatmul.mubr.bf16.gmra.mrb[0].mxu0 %v949
      %v1087 = vpop.f32.mrb[0].mxu0
      %v1088 = vadd.f32 0.0, %v1087
      %v1089 = vpop.f32.mrb[0].mxu0
      %v1090 = vpop.f32.mrb[0].mxu0
      %v1091 = vadd.f32 0.0, %v1090
      %v1092 = vpop.f32.mrb[0].mxu0
      %1093 = vmatprep.mubr.bf16.mxu0 0
      %1094 = vmatmul.mubr.bf16.gmra.mrb[0].mxu0 %v950
      %v1095 = vpop.f32.mrb[0].mxu0
      %v1096 = vadd.f32 0.0, %v1095
      %v1097 = vpop.f32.mrb[0].mxu0
      %v1098 = vpop.f32.mrb[0].mxu0
      %v1099 = vadd.f32 0.0, %v1098
      %v1100 = vpop.f32.mrb[0].mxu0
      %1101 = vmatprep.mubr.bf16.mxu0 0
      %1102 = vmatmul.mubr.bf16.gmra.mrb[0].mxu0 %v951
      %v1103 = vpop.f32.mrb[0].mxu0
      %v1104 = vadd.f32 0.0, %v1103
      %v1105 = vpop.f32.mrb[0].mxu0
      %v1106 = vpop.f32.mrb[0].mxu0
      %v1107 = vadd.f32 0.0, %v1106
      %v1108 = vpop.f32.mrb[0].mxu0
      %1109 = vmatprep.mubr.bf16.mxu0 0
      %1110 = vmatmul.mubr.bf16.gmra.mrb[0].mxu0 %v952
      %v1111 = vpop.f32.mrb[0].mxu0
      %v1112 = vadd.f32 0.0, %v1111
      %v1113 = vpop.f32.mrb[0].mxu0
      %v1114 = vpop.f32.mrb[0].mxu0
      %v1115 = vadd.f32 0.0, %v1114
      %v1116 = vpop.f32.mrb[0].mxu0
      %1117 = vmatprep.mubr.bf16.mxu0 0
      %1118 = vmatmul.mubr.bf16.gmra.mrb[0].mxu0 %v953
      %v1119 = vpop.f32.mrb[0].mxu0
      %v1120 = vadd.f32 0.0, %v1119
      %v1121 = vpop.f32.mrb[0].mxu0
      %v1122 = vpop.f32.mrb[0].mxu0
      %v1123 = vadd.f32 0.0, %v1122
      %v1124 = vpop.f32.mrb[0].mxu0
      %1125 = vmatprep.mubr.bf16.mxu0 0
      %1126 = vmatmul.mubr.bf16.gmra.mrb[0].mxu0 %v954
      %v1127 = vpop.f32.mrb[0].mxu0
      %v1128 = vadd.f32 0.0, %v1127
      %v1129 = vpop.f32.mrb[0].mxu0
      %v1130 = vpop.f32.mrb[0].mxu0
      %v1131 = vadd.f32 0.0, %v1130
      %v1132 = vpop.f32.mrb[0].mxu0
      %1133 = vmatprep.mubr.bf16.mxu0 0
      %1134 = vmatmul.mubr.bf16.gmra.mrb[0].mxu0 %v955
      %v1135 = vpop.f32.mrb[0].mxu0
      %v1136 = vadd.f32 0.0, %v1135
      %v1137 = vpop.f32.mrb[0].mxu0
      %v1138 = vpop.f32.mrb[0].mxu0
      %v1139 = vadd.f32 0.0, %v1138
      %v1140 = vpop.f32.mrb[0].mxu0
      %1141 = vmatprep.mubr.bf16.mxu0 0
      %1142 = vmatmul.mubr.bf16.gmra.mrb[0].mxu0 %v956
      %v1143 = vpop.f32.mrb[0].mxu0
      %v1144 = vadd.f32 0.0, %v1143
      %v1145 = vpop.f32.mrb[0].mxu0
      %v1146 = vpop.f32.mrb[0].mxu0
      %v1147 = vadd.f32 0.0, %v1146
      %v1148 = vpop.f32.mrb[0].mxu0
      %1149 = vmatprep.mubr.bf16.mxu0 0
      %1150 = vmatmul.mubr.bf16.gmra.mrb[0].mxu0 %v957
      %v1151 = vpop.f32.mrb[0].mxu0
      %v1152 = vadd.f32 0.0, %v1151
      %v1153 = vpop.f32.mrb[0].mxu0
      %v1154 = vpop.f32.mrb[0].mxu0
      %v1155 = vadd.f32 0.0, %v1154
      %v1156 = vpop.f32.mrb[0].mxu0
      %1157 = vmatprep.mubr.bf16.mxu0 0
      %1158 = vmatmul.mubr.bf16.gmra.mrb[0].mxu0 %v958
      %v1159 = vpop.f32.mrb[0].mxu0
      %v1160 = vadd.f32 0.0, %v1159
      %v1161 = vpop.f32.mrb[0].mxu0
      %v1162 = vpop.f32.mrb[0].mxu0
      %v1163 = vadd.f32 0.0, %v1162
      %v1164 = vpop.f32.mrb[0].mxu0
      %1165 = vmatprep.mubr.bf16.mxu0 0
      %1166 = vmatmul.mubr.bf16.gmra.mrb[0].mxu0 %v959
      %v1167 = vpop.f32.mrb[0].mxu0
      %v1168 = vadd.f32 0.0, %v1167
      %v1169 = vpop.f32.mrb[0].mxu0
      %v1170 = vpop.f32.mrb[0].mxu0
      %v1171 = vadd.f32 0.0, %v1170
      %v1172 = vpop.f32.mrb[0].mxu0
      %1173 = vmatprep.mubr.bf16.mxu0 0
      %1174 = vmatmul.mubr.bf16.gmra.mrb[0].mxu0 %v960
      %v1175 = vpop.f32.mrb[0].mxu0
      %v1176 = vadd.f32 0.0, %v1175
      %v1177 = vpop.f32.mrb[0].mxu0
      %v1178 = vpop.f32.mrb[0].mxu0
      %v1179 = vadd.f32 0.0, %v1178
      %v1180 = vpop.f32.mrb[0].mxu0
      %1181 = vmatprep.mubr.bf16.mxu0 0
      %1182 = vmatmul.mubr.bf16.gmra.mrb[0].mxu0 %v961
      %v1183 = vpop.f32.mrb[0].mxu0
      %v1184 = vadd.f32 0.0, %v1183
      %v1185 = vpop.f32.mrb[0].mxu0
      %v1186 = vpop.f32.mrb[0].mxu0
      %v1187 = vadd.f32 0.0, %v1186
      %v1188 = vpop.f32.mrb[0].mxu0
      %1189 = vmatprep.mubr.bf16.mxu0 0
      %1190 = vmatmul.mubr.bf16.gmra.mrb[0].mxu0 %v962
      %v1191 = vpop.f32.mrb[0].mxu0
      %v1192 = vadd.f32 0.0, %v1191
      %v1193 = vpop.f32.mrb[0].mxu0
      %v1194 = vpop.f32.mrb[0].mxu0
      %v1195 = vadd.f32 0.0, %v1194
      %v1196 = vpop.f32.mrb[0].mxu0
      %1197 = vmatprep.mubr.bf16.mxu0 0
      %1198 = vmatmul.mubr.bf16.gmra.mrb[0].mxu0 %v963
      %v1199 = vpop.f32.mrb[0].mxu0
      %v1200 = vadd.f32 0.0, %v1199
      %v1201 = vpop.f32.mrb[0].mxu0
      %v1202 = vpop.f32.mrb[0].mxu0
      %v1203 = vadd.f32 0.0, %v1202
      %v1204 = vpop.f32.mrb[0].mxu0
      %1205 = vdwg.mxu0
      %v1206 = vadd.f32 %v768, %v1064
      %v1207 = vadd.f32 %v771, %v1067
      %v1208 = vadd.f32 %v776, %v1072
      %v1209 = vadd.f32 %v779, %v1075
      %v1210 = vadd.f32 %v784, %v1080
      %v1211 = vadd.f32 %v787, %v1083
      %v1212 = vadd.f32 %v792, %v1088
      %v1213 = vadd.f32 %v795, %v1091
      %v1214 = vadd.f32 %v800, %v1096
      %v1215 = vadd.f32 %v803, %v1099
      %v1216 = vadd.f32 %v808, %v1104
      %v1217 = vadd.f32 %v811, %v1107
      %v1218 = vadd.f32 %v816, %v1112
      %v1219 = vadd.f32 %v819, %v1115
      %v1220 = vadd.f32 %v824, %v1120
      %v1221 = vadd.f32 %v827, %v1123
      %v1222 = vadd.f32 %v832, %v1128
      %v1223 = vadd.f32 %v835, %v1131
      %v1224 = vadd.f32 %v840, %v1136
      %v1225 = vadd.f32 %v843, %v1139
      %v1226 = vadd.f32 %v848, %v1144
      %v1227 = vadd.f32 %v851, %v1147
      %v1228 = vadd.f32 %v856, %v1152
      %v1229 = vadd.f32 %v859, %v1155
      %v1230 = vadd.f32 %v864, %v1160
      %v1231 = vadd.f32 %v867, %v1163
      %v1232 = vadd.f32 %v872, %v1168
      %v1233 = vadd.f32 %v875, %v1171
      %v1234 = vadd.f32 %v880, %v1176
      %v1235 = vadd.f32 %v883, %v1179
      %v1236 = vadd.f32 %v888, %v1184
      %v1237 = vadd.f32 %v891, %v1187
      %v1238 = vadd.f32 %v896, %v1192
      %v1239 = vadd.f32 %v899, %v1195
      %v1240 = vadd.f32 %v904, %v1200
      %v1241 = vadd.f32 %v907, %v1203
      %v1242 = vld [vmem:[%s192 + $0x17] sm:$0xff]
      %v1243 = vld [vmem:[%s192 + $0x1f] sm:$0xff]
      %v1244 = vld [vmem:[%s192 + $0x27] sm:$0xff]
      %v1245 = vld [vmem:[%s192 + $0x2f] sm:$0xff]
      %v1246 = vld [vmem:[%s192 + $0x37] sm:$0xff]
      %v1247 = vld [vmem:[%s192 + $0x3f] sm:$0xff]
      %v1248 = vld [vmem:[%s192 + $0x47] sm:$0xff]
      %v1249 = vld [vmem:[%s192 + $0x4f] sm:$0xff]
      %v1250 = vld [vmem:[%s192 + $0x57] sm:$0xff]
      %v1251 = vld [vmem:[%s192 + $0x5f] sm:$0xff]
      %v1252 = vld [vmem:[%s192 + $0x67] sm:$0xff]
      %v1253 = vld [vmem:[%s192 + $0x6f] sm:$0xff]
      %v1254 = vld [vmem:[%s192 + $0x77] sm:$0xff]
      %v1255 = vld [vmem:[%s192 + $0x7f] sm:$0xff]
      %v1256 = vld [vmem:[%s192 + $0x87] sm:$0xff]
      %v1257 = vld [vmem:[%s192 + $0x8f] sm:$0xff]
      %v1258 = vld [vmem:[%s192 + $0x97] sm:$0xff]
      %v1259 = vld [vmem:[%s192 + $0x9f] sm:$0xff]
      %v1260 = vld [vmem:[%s192 + $0xa7] sm:$0xff]
      %v1261 = vld [vmem:[%s192 + $0xaf] sm:$0xff]
      %v1262 = vld [vmem:[%s192 + $0xb7] sm:$0xff]
      %v1263 = vld [vmem:[%s192 + $0xbf] sm:$0xff]
      %v1264 = vld [vmem:[%s192 + $0xc7] sm:$0xff]
      %v1265 = vld [vmem:[%s192 + $0xcf] sm:$0xff]
      %v1266 = vld [vmem:[%s192 + $0xd7] sm:$0xff]
      %v1267 = vld [vmem:[%s192 + $0xdf] sm:$0xff]
      %v1268 = vld [vmem:[%s192 + $0xe7] sm:$0xff]
      %v1269 = vld [vmem:[%s192 + $0xef] sm:$0xff]
      %v1270 = vld [vmem:[%s192 + $0xf7] sm:$0xff]
      %v1271 = vld [vmem:[%s192 + $0xff] sm:$0xff]
      %v1272 = vld [vmem:[%s192 + $0x107] sm:$0xff]
      %v1273 = vld [vmem:[%s192 + $0x10f] sm:$0xff]
      %v1274 = vld [vmem:[%s192 + $0x117] sm:$0xff]
      %v1275 = vld [vmem:[%s192 + $0x11f] sm:$0xff]
      %v1276 = vld [vmem:[%s192 + $0x127] sm:$0xff]
      %v1277 = vld [vmem:[%s192 + $0x12f] sm:$0xff]
      %v1278 = vpack.c.bf16 %v1243, %v1242
      %v1279 = vpack.c.bf16 %v1245, %v1244
      %v1280 = vpack.c.bf16 %v1247, %v1246
      %v1281 = vpack.c.bf16 %v1249, %v1248
      %v1282 = vpack.c.bf16 %v1251, %v1250
      %v1283 = vpack.c.bf16 %v1253, %v1252
      %v1284 = vpack.c.bf16 %v1255, %v1254
      %v1285 = vpack.c.bf16 %v1257, %v1256
      %v1286 = vpack.c.bf16 %v1259, %v1258
      %v1287 = vpack.c.bf16 %v1261, %v1260
      %v1288 = vpack.c.bf16 %v1263, %v1262
      %v1289 = vpack.c.bf16 %v1265, %v1264
      %v1290 = vpack.c.bf16 %v1267, %v1266
      %v1291 = vpack.c.bf16 %v1269, %v1268
      %v1292 = vpack.c.bf16 %v1271, %v1270
      %v1293 = vpack.c.bf16 %v1273, %v1272
      %v1294 = vpack.c.bf16 %v1275, %v1274
      %v1295 = vpack.c.bf16 %v1277, %v1276
      %s1296 = scalar_lea.vmem %s1, 192
      %v1297 = vld [vmem:[%s1296] sm:$0xf]
      %v1298 = vld [vmem:[%s1296 + $0x4] sm:$0xf]
      %v1299 = vld [vmem:[%s1296 + $0x8] sm:$0xf]
      %v1300 = vld [vmem:[%s1296 + $0xc] sm:$0xf]
      %v1301 = vld [vmem:[%s1296 + $0x10] sm:$0xf]
      %v1302 = vld [vmem:[%s1296 + $0x14] sm:$0xf]
      %v1303 = vld [vmem:[%s1296 + $0x18] sm:$0xf]
      %v1304 = vld [vmem:[%s1296 + $0x1c] sm:$0xf]
      %v1305 = vld [vmem:[%s1296 + $0x20] sm:$0xf]
      %v1306 = vld [vmem:[%s1296 + $0x24] sm:$0xf]
      %v1307 = vld [vmem:[%s1296 + $0x28] sm:$0xf]
      %v1308 = vld [vmem:[%s1296 + $0x2c] sm:$0xf]
      %v1309 = vld [vmem:[%s1296 + $0x30] sm:$0xf]
      %v1310 = vld [vmem:[%s1296 + $0x34] sm:$0xf]
      %v1311 = vld [vmem:[%s1296 + $0x38] sm:$0xf]
      %v1312 = vld [vmem:[%s1296 + $0x3c] sm:$0xf]
      %v1329 = vunpack.c.l.b16 %v1297
      %v1330 = vunpack.c.l.b16 %v1298
      %v1331 = vunpack.c.l.b16 %v1299
      %v1332 = vunpack.c.l.b16 %v1300
      %v1333 = vunpack.c.l.b16 %v1301
      %v1334 = vunpack.c.l.b16 %v1302
      %v1335 = vunpack.c.l.b16 %v1303
      %v1336 = vunpack.c.l.b16 %v1304
      %v1337 = vunpack.c.l.b16 %v1305
      %v1338 = vunpack.c.l.b16 %v1306
      %v1339 = vunpack.c.l.b16 %v1307
      %v1340 = vunpack.c.l.b16 %v1308
      %v1341 = vunpack.c.l.b16 %v1309
      %v1342 = vunpack.c.l.b16 %v1310
      %v1343 = vunpack.c.l.b16 %v1311
      %v1344 = vunpack.c.l.b16 %v1312
      %v1345 = vpack.c.b16 %v1330, %v1329
      %v1346 = vpack.c.b16 %v1332, %v1331
      %v1347 = vpack.c.b16 %v1334, %v1333
      %v1348 = vpack.c.b16 %v1336, %v1335
      %v1349 = vpack.c.b16 %v1338, %v1337
      %v1350 = vpack.c.b16 %v1340, %v1339
      %v1351 = vpack.c.b16 %v1342, %v1341
      %v1352 = vpack.c.b16 %v1344, %v1343
      %1361 = vmatprep.subr.bf16.mxu0 0
      %1362 = vmatpush1.bf16.msra.mxu0 %v1345
      %1363 = vmatprep.subr.bf16.mxu0 0
      %1364 = vmatpush1.bf16.msra.mxu0 %v1346
      %1365 = vmatprep.subr.bf16.mxu0 0
      %1366 = vmatpush1.bf16.msra.mxu0 %v1347
      %1367 = vmatprep.subr.bf16.mxu0 0
      %1368 = vmatpush1.bf16.msra.mxu0 %v1348
      %1369 = vmatprep.subr.bf16.mxu0 0
      %1370 = vmatpush1.bf16.msra.mxu0 %v1349
      %1371 = vmatprep.subr.bf16.mxu0 0
      %1372 = vmatpush1.bf16.msra.mxu0 %v1350
      %1373 = vmatprep.subr.bf16.mxu0 0
      %1374 = vmatpush1.bf16.msra.mxu0 %v1351
      %1375 = vmatprep.subr.bf16.mxu0 0
      %1376 = vmatpush1.bf16.msra.mxu0 %v1352
      %1377 = vmatprep.subr.bf16.mxu0 0
      %1378 = vmatpush1.bf16.msra.mxu0 0
      %1379 = vmatprep.subr.bf16.mxu0 0
      %1380 = vmatpush1.bf16.msra.mxu0 0
      %1381 = vmatprep.subr.bf16.mxu0 0
      %1382 = vmatpush1.bf16.msra.mxu0 0
      %1383 = vmatprep.subr.bf16.mxu0 0
      %1384 = vmatpush1.bf16.msra.mxu0 0
      %1385 = vmatprep.subr.bf16.mxu0 0
      %1386 = vmatpush1.bf16.msra.mxu0 0
      %1387 = vmatprep.subr.bf16.mxu0 0
      %1388 = vmatpush1.bf16.msra.mxu0 0
      %1389 = vmatprep.subr.bf16.mxu0 0
      %1390 = vmatpush1.bf16.msra.mxu0 0
      %1391 = vmatprep.subr.bf16.mxu0 0
      %1392 = vmatpush1.bf16.msra.mxu0 0
      %1393 = vmatprep.mubr.bf16.mxu0 0
      %1394 = vmatmul.mubr.bf16.gmra.mrb[0].mxu0 %v1278
      %v1395 = vpop.f32.mrb[0].mxu0
      %v1396 = vadd.f32 0.0, %v1395
      %v1397 = vpop.f32.mrb[0].mxu0
      %v1398 = vpop.f32.mrb[0].mxu0
      %v1399 = vadd.f32 0.0, %v1398
      %v1400 = vpop.f32.mrb[0].mxu0
      %1401 = vmatprep.mubr.bf16.mxu0 0
      %1402 = vmatmul.mubr.bf16.gmra.mrb[0].mxu0 %v1279
      %v1403 = vpop.f32.mrb[0].mxu0
      %v1404 = vadd.f32 0.0, %v1403
      %v1405 = vpop.f32.mrb[0].mxu0
      %v1406 = vpop.f32.mrb[0].mxu0
      %v1407 = vadd.f32 0.0, %v1406
      %v1408 = vpop.f32.mrb[0].mxu0
      %1409 = vmatprep.mubr.bf16.mxu0 0
      %1410 = vmatmul.mubr.bf16.gmra.mrb[0].mxu0 %v1280
      %v1411 = vpop.f32.mrb[0].mxu0
      %v1412 = vadd.f32 0.0, %v1411
      %v1413 = vpop.f32.mrb[0].mxu0
      %v1414 = vpop.f32.mrb[0].mxu0
      %v1415 = vadd.f32 0.0, %v1414
      %v1416 = vpop.f32.mrb[0].mxu0
      %1417 = vmatprep.mubr.bf16.mxu0 0
      %1418 = vmatmul.mubr.bf16.gmra.mrb[0].mxu0 %v1281
      %v1419 = vpop.f32.mrb[0].mxu0
      %v1420 = vadd.f32 0.0, %v1419
      %v1421 = vpop.f32.mrb[0].mxu0
      %v1422 = vpop.f32.mrb[0].mxu0
      %v1423 = vadd.f32 0.0, %v1422
      %v1424 = vpop.f32.mrb[0].mxu0
      %1425 = vmatprep.mubr.bf16.mxu0 0
      %1426 = vmatmul.mubr.bf16.gmra.mrb[0].mxu0 %v1282
      %v1427 = vpop.f32.mrb[0].mxu0
      %v1428 = vadd.f32 0.0, %v1427
      %v1429 = vpop.f32.mrb[0].mxu0
      %v1430 = vpop.f32.mrb[0].mxu0
      %v1431 = vadd.f32 0.0, %v1430
      %v1432 = vpop.f32.mrb[0].mxu0
      %1433 = vmatprep.mubr.bf16.mxu0 0
      %1434 = vmatmul.mubr.bf16.gmra.mrb[0].mxu0 %v1283
      %v1435 = vpop.f32.mrb[0].mxu0
      %v1436 = vadd.f32 0.0, %v1435
      %v1437 = vpop.f32.mrb[0].mxu0
      %v1438 = vpop.f32.mrb[0].mxu0
      %v1439 = vadd.f32 0.0, %v1438
      %v1440 = vpop.f32.mrb[0].mxu0
      %1441 = vmatprep.mubr.bf16.mxu0 0
      %1442 = vmatmul.mubr.bf16.gmra.mrb[0].mxu0 %v1284
      %v1443 = vpop.f32.mrb[0].mxu0
      %v1444 = vadd.f32 0.0, %v1443
      %v1445 = vpop.f32.mrb[0].mxu0
      %v1446 = vpop.f32.mrb[0].mxu0
      %v1447 = vadd.f32 0.0, %v1446
      %v1448 = vpop.f32.mrb[0].mxu0
      %1449 = vmatprep.mubr.bf16.mxu0 0
      %1450 = vmatmul.mubr.bf16.gmra.mrb[0].mxu0 %v1285
      %v1451 = vpop.f32.mrb[0].mxu0
      %v1452 = vadd.f32 0.0, %v1451
      %v1453 = vpop.f32.mrb[0].mxu0
      %v1454 = vpop.f32.mrb[0].mxu0
      %v1455 = vadd.f32 0.0, %v1454
      %v1456 = vpop.f32.mrb[0].mxu0
      %1457 = vmatprep.mubr.bf16.mxu0 0
      %1458 = vmatmul.mubr.bf16.gmra.mrb[0].mxu0 %v1286
      %v1459 = vpop.f32.mrb[0].mxu0
      %v1460 = vadd.f32 0.0, %v1459
      %v1461 = vpop.f32.mrb[0].mxu0
      %v1462 = vpop.f32.mrb[0].mxu0
      %v1463 = vadd.f32 0.0, %v1462
      %v1464 = vpop.f32.mrb[0].mxu0
      %1465 = vmatprep.mubr.bf16.mxu0 0
      %1466 = vmatmul.mubr.bf16.gmra.mrb[0].mxu0 %v1287
      %v1467 = vpop.f32.mrb[0].mxu0
      %v1468 = vadd.f32 0.0, %v1467
      %v1469 = vpop.f32.mrb[0].mxu0
      %v1470 = vpop.f32.mrb[0].mxu0
      %v1471 = vadd.f32 0.0, %v1470
      %v1472 = vpop.f32.mrb[0].mxu0
      %1473 = vmatprep.mubr.bf16.mxu0 0
      %1474 = vmatmul.mubr.bf16.gmra.mrb[0].mxu0 %v1288
      %v1475 = vpop.f32.mrb[0].mxu0
      %v1476 = vadd.f32 0.0, %v1475
      %v1477 = vpop.f32.mrb[0].mxu0
      %v1478 = vpop.f32.mrb[0].mxu0
      %v1479 = vadd.f32 0.0, %v1478
      %v1480 = vpop.f32.mrb[0].mxu0
      %1481 = vmatprep.mubr.bf16.mxu0 0
      %1482 = vmatmul.mubr.bf16.gmra.mrb[0].mxu0 %v1289
      %v1483 = vpop.f32.mrb[0].mxu0
      %v1484 = vadd.f32 0.0, %v1483
      %v1485 = vpop.f32.mrb[0].mxu0
      %v1486 = vpop.f32.mrb[0].mxu0
      %v1487 = vadd.f32 0.0, %v1486
      %v1488 = vpop.f32.mrb[0].mxu0
      %1489 = vmatprep.mubr.bf16.mxu0 0
      %1490 = vmatmul.mubr.bf16.gmra.mrb[0].mxu0 %v1290
      %v1491 = vpop.f32.mrb[0].mxu0
      %v1492 = vadd.f32 0.0, %v1491
      %v1493 = vpop.f32.mrb[0].mxu0
      %v1494 = vpop.f32.mrb[0].mxu0
      %v1495 = vadd.f32 0.0, %v1494
      %v1496 = vpop.f32.mrb[0].mxu0
      %1497 = vmatprep.mubr.bf16.mxu0 0
      %1498 = vmatmul.mubr.bf16.gmra.mrb[0].mxu0 %v1291
      %v1499 = vpop.f32.mrb[0].mxu0
      %v1500 = vadd.f32 0.0, %v1499
      %v1501 = vpop.f32.mrb[0].mxu0
      %v1502 = vpop.f32.mrb[0].mxu0
      %v1503 = vadd.f32 0.0, %v1502
      %v1504 = vpop.f32.mrb[0].mxu0
      %1505 = vmatprep.mubr.bf16.mxu0 0
      %1506 = vmatmul.mubr.bf16.gmra.mrb[0].mxu0 %v1292
      %v1507 = vpop.f32.mrb[0].mxu0
      %v1508 = vadd.f32 0.0, %v1507
      %v1509 = vpop.f32.mrb[0].mxu0
      %v1510 = vpop.f32.mrb[0].mxu0
      %v1511 = vadd.f32 0.0, %v1510
      %v1512 = vpop.f32.mrb[0].mxu0
      %1513 = vmatprep.mubr.bf16.mxu0 0
      %1514 = vmatmul.mubr.bf16.gmra.mrb[0].mxu0 %v1293
      %v1515 = vpop.f32.mrb[0].mxu0
      %v1516 = vadd.f32 0.0, %v1515
      %v1517 = vpop.f32.mrb[0].mxu0
      %v1518 = vpop.f32.mrb[0].mxu0
      %v1519 = vadd.f32 0.0, %v1518
      %v1520 = vpop.f32.mrb[0].mxu0
      %1521 = vmatprep.mubr.bf16.mxu0 0
      %1522 = vmatmul.mubr.bf16.gmra.mrb[0].mxu0 %v1294
      %v1523 = vpop.f32.mrb[0].mxu0
      %v1524 = vadd.f32 0.0, %v1523
      %v1525 = vpop.f32.mrb[0].mxu0
      %v1526 = vpop.f32.mrb[0].mxu0
      %v1527 = vadd.f32 0.0, %v1526
      %v1528 = vpop.f32.mrb[0].mxu0
      %1529 = vmatprep.mubr.bf16.mxu0 0
      %1530 = vmatmul.mubr.bf16.gmra.mrb[0].mxu0 %v1295
      %v1531 = vpop.f32.mrb[0].mxu0
      %v1532 = vadd.f32 0.0, %v1531
      %v1533 = vpop.f32.mrb[0].mxu0
      %v1534 = vpop.f32.mrb[0].mxu0
      %v1535 = vadd.f32 0.0, %v1534
      %v1536 = vpop.f32.mrb[0].mxu0
      %1537 = vdwg.mxu0
      %v1538 = vadd.f32 %v1206, %v1396
      %v1539 = vadd.f32 %v1207, %v1399
      %v1540 = vadd.f32 %v1208, %v1404
      %v1541 = vadd.f32 %v1209, %v1407
      %v1542 = vadd.f32 %v1210, %v1412
      %v1543 = vadd.f32 %v1211, %v1415
      %v1544 = vadd.f32 %v1212, %v1420
      %v1545 = vadd.f32 %v1213, %v1423
      %v1546 = vadd.f32 %v1214, %v1428
      %v1547 = vadd.f32 %v1215, %v1431
      %v1548 = vadd.f32 %v1216, %v1436
      %v1549 = vadd.f32 %v1217, %v1439
      %v1550 = vadd.f32 %v1218, %v1444
      %v1551 = vadd.f32 %v1219, %v1447
      %v1552 = vadd.f32 %v1220, %v1452
      %v1553 = vadd.f32 %v1221, %v1455
      %v1554 = vadd.f32 %v1222, %v1460
      %v1555 = vadd.f32 %v1223, %v1463
      %v1556 = vadd.f32 %v1224, %v1468
      %v1557 = vadd.f32 %v1225, %v1471
      %v1558 = vadd.f32 %v1226, %v1476
      %v1559 = vadd.f32 %v1227, %v1479
      %v1560 = vadd.f32 %v1228, %v1484
      %v1561 = vadd.f32 %v1229, %v1487
      %v1562 = vadd.f32 %v1230, %v1492
      %v1563 = vadd.f32 %v1231, %v1495
      %v1564 = vadd.f32 %v1232, %v1500
      %v1565 = vadd.f32 %v1233, %v1503
      %v1566 = vadd.f32 %v1234, %v1508
      %v1567 = vadd.f32 %v1235, %v1511
      %v1568 = vadd.f32 %v1236, %v1516
      %v1569 = vadd.f32 %v1237, %v1519
      %v1570 = vadd.f32 %v1238, %v1524
      %v1571 = vadd.f32 %v1239, %v1527
      %v1572 = vadd.f32 %v1240, %v1532
      %v1573 = vadd.f32 %v1241, %v1535
      %v1574 = vld [vmem:[%s192 + $0x18] sm:$0xff]
      %v1575 = vld [vmem:[%s192 + $0x20] sm:$0xff]
      %v1576 = vld [vmem:[%s192 + $0x28] sm:$0xff]
      %v1577 = vld [vmem:[%s192 + $0x30] sm:$0xff]
      %v1578 = vld [vmem:[%s192 + $0x38] sm:$0xff]
      %v1579 = vld [vmem:[%s192 + $0x40] sm:$0xff]
      %v1580 = vld [vmem:[%s192 + $0x48] sm:$0xff]
      %v1581 = vld [vmem:[%s192 + $0x50] sm:$0xff]
      %v1582 = vld [vmem:[%s192 + $0x58] sm:$0xff]
      %v1583 = vld [vmem:[%s192 + $0x60] sm:$0xff]
      %v1584 = vld [vmem:[%s192 + $0x68] sm:$0xff]
      %v1585 = vld [vmem:[%s192 + $0x70] sm:$0xff]
      %v1586 = vld [vmem:[%s192 + $0x78] sm:$0xff]
      %v1587 = vld [vmem:[%s192 + $0x80] sm:$0xff]
      %v1588 = vld [vmem:[%s192 + $0x88] sm:$0xff]
      %v1589 = vld [vmem:[%s192 + $0x90] sm:$0xff]
      %v1590 = vld [vmem:[%s192 + $0x98] sm:$0xff]
      %v1591 = vld [vmem:[%s192 + $0xa0] sm:$0xff]
      %v1592 = vld [vmem:[%s192 + $0xa8] sm:$0xff]
      %v1593 = vld [vmem:[%s192 + $0xb0] sm:$0xff]
      %v1594 = vld [vmem:[%s192 + $0xb8] sm:$0xff]
      %v1595 = vld [vmem:[%s192 + $0xc0] sm:$0xff]
      %v1596 = vld [vmem:[%s192 + $0xc8] sm:$0xff]
      %v1597 = vld [vmem:[%s192 + $0xd0] sm:$0xff]
      %v1598 = vld [vmem:[%s192 + $0xd8] sm:$0xff]
      %v1599 = vld [vmem:[%s192 + $0xe0] sm:$0xff]
      %v1600 = vld [vmem:[%s192 + $0xe8] sm:$0xff]
      %v1601 = vld [vmem:[%s192 + $0xf0] sm:$0xff]
      %v1602 = vld [vmem:[%s192 + $0xf8] sm:$0xff]
      %v1603 = vld [vmem:[%s192 + $0x100] sm:$0xff]
      %v1604 = vld [vmem:[%s192 + $0x108] sm:$0xff]
      %v1605 = vld [vmem:[%s192 + $0x110] sm:$0xff]
      %v1606 = vld [vmem:[%s192 + $0x118] sm:$0xff]
      %v1607 = vld [vmem:[%s192 + $0x120] sm:$0xff]
      %v1608 = vld [vmem:[%s192 + $0x128] sm:$0xff]
      %v1609 = vld [vmem:[%s192 + $0x130] sm:$0xff]
      %v1610 = vpack.c.bf16 %v1575, %v1574
      %v1611 = vpack.c.bf16 %v1577, %v1576
      %v1612 = vpack.c.bf16 %v1579, %v1578
      %v1613 = vpack.c.bf16 %v1581, %v1580
      %v1614 = vpack.c.bf16 %v1583, %v1582
      %v1615 = vpack.c.bf16 %v1585, %v1584
      %v1616 = vpack.c.bf16 %v1587, %v1586
      %v1617 = vpack.c.bf16 %v1589, %v1588
      %v1618 = vpack.c.bf16 %v1591, %v1590
      %v1619 = vpack.c.bf16 %v1593, %v1592
      %v1620 = vpack.c.bf16 %v1595, %v1594
      %v1621 = vpack.c.bf16 %v1597, %v1596
      %v1622 = vpack.c.bf16 %v1599, %v1598
      %v1623 = vpack.c.bf16 %v1601, %v1600
      %v1624 = vpack.c.bf16 %v1603, %v1602
      %v1625 = vpack.c.bf16 %v1605, %v1604
      %v1626 = vpack.c.bf16 %v1607, %v1606
      %v1627 = vpack.c.bf16 %v1609, %v1608
      %s1628 = scalar_lea.vmem %s1, 256
      %v1629 = vld [vmem:[%s1628] sm:$0xf]
      %v1630 = vld [vmem:[%s1628 + $0x4] sm:$0xf]
      %v1631 = vld [vmem:[%s1628 + $0x8] sm:$0xf]
      %v1632 = vld [vmem:[%s1628 + $0xc] sm:$0xf]
      %v1633 = vld [vmem:[%s1628 + $0x10] sm:$0xf]
      %v1634 = vld [vmem:[%s1628 + $0x14] sm:$0xf]
      %v1635 = vld [vmem:[%s1628 + $0x18] sm:$0xf]
      %v1636 = vld [vmem:[%s1628 + $0x1c] sm:$0xf]
      %v1637 = vld [vmem:[%s1628 + $0x20] sm:$0xf]
      %v1638 = vld [vmem:[%s1628 + $0x24] sm:$0xf]
      %v1639 = vld [vmem:[%s1628 + $0x28] sm:$0xf]
      %v1640 = vld [vmem:[%s1628 + $0x2c] sm:$0xf]
      %v1641 = vld [vmem:[%s1628 + $0x30] sm:$0xf]
      %v1642 = vld [vmem:[%s1628 + $0x34] sm:$0xf]
      %v1643 = vld [vmem:[%s1628 + $0x38] sm:$0xf]
      %v1644 = vld [vmem:[%s1628 + $0x3c] sm:$0xf]
      %v1661 = vunpack.c.l.b16 %v1629
      %v1662 = vunpack.c.l.b16 %v1630
      %v1663 = vunpack.c.l.b16 %v1631
      %v1664 = vunpack.c.l.b16 %v1632
      %v1665 = vunpack.c.l.b16 %v1633
      %v1666 = vunpack.c.l.b16 %v1634
      %v1667 = vunpack.c.l.b16 %v1635
      %v1668 = vunpack.c.l.b16 %v1636
      %v1669 = vunpack.c.l.b16 %v1637
      %v1670 = vunpack.c.l.b16 %v1638
      %v1671 = vunpack.c.l.b16 %v1639
      %v1672 = vunpack.c.l.b16 %v1640
      %v1673 = vunpack.c.l.b16 %v1641
      %v1674 = vunpack.c.l.b16 %v1642
      %v1675 = vunpack.c.l.b16 %v1643
      %v1676 = vunpack.c.l.b16 %v1644
      %v1677 = vpack.c.b16 %v1662, %v1661
      %v1678 = vpack.c.b16 %v1664, %v1663
      %v1679 = vpack.c.b16 %v1666, %v1665
      %v1680 = vpack.c.b16 %v1668, %v1667
      %v1681 = vpack.c.b16 %v1670, %v1669
      %v1682 = vpack.c.b16 %v1672, %v1671
      %v1683 = vpack.c.b16 %v1674, %v1673
      %v1684 = vpack.c.b16 %v1676, %v1675
      %1693 = vmatprep.subr.bf16.mxu0 0
      %1694 = vmatpush1.bf16.msra.mxu0 %v1677
      %1695 = vmatprep.subr.bf16.mxu0 0
      %1696 = vmatpush1.bf16.msra.mxu0 %v1678
      %1697 = vmatprep.subr.bf16.mxu0 0
      %1698 = vmatpush1.bf16.msra.mxu0 %v1679
      %1699 = vmatprep.subr.bf16.mxu0 0
      %1700 = vmatpush1.bf16.msra.mxu0 %v1680
      %1701 = vmatprep.subr.bf16.mxu0 0
      %1702 = vmatpush1.bf16.msra.mxu0 %v1681
      %1703 = vmatprep.subr.bf16.mxu0 0
      %1704 = vmatpush1.bf16.msra.mxu0 %v1682
      %1705 = vmatprep.subr.bf16.mxu0 0
      %1706 = vmatpush1.bf16.msra.mxu0 %v1683
      %1707 = vmatprep.subr.bf16.mxu0 0
      %1708 = vmatpush1.bf16.msra.mxu0 %v1684
      %1709 = vmatprep.subr.bf16.mxu0 0
      %1710 = vmatpush1.bf16.msra.mxu0 0
      %1711 = vmatprep.subr.bf16.mxu0 0
      %1712 = vmatpush1.bf16.msra.mxu0 0
      %1713 = vmatprep.subr.bf16.mxu0 0
      %1714 = vmatpush1.bf16.msra.mxu0 0
      %1715 = vmatprep.subr.bf16.mxu0 0
      %1716 = vmatpush1.bf16.msra.mxu0 0
      %1717 = vmatprep.subr.bf16.mxu0 0
      %1718 = vmatpush1.bf16.msra.mxu0 0
      %1719 = vmatprep.subr.bf16.mxu0 0
      %1720 = vmatpush1.bf16.msra.mxu0 0
      %1721 = vmatprep.subr.bf16.mxu0 0
      %1722 = vmatpush1.bf16.msra.mxu0 0
      %1723 = vmatprep.subr.bf16.mxu0 0
      %1724 = vmatpush1.bf16.msra.mxu0 0
      %1725 = vmatprep.mubr.bf16.mxu0 0
      %1726 = vmatmul.mubr.bf16.gmra.mrb[0].mxu0 %v1610
      %v1727 = vpop.f32.mrb[0].mxu0
      %v1728 = vadd.f32 0.0, %v1727
      %v1729 = vpop.f32.mrb[0].mxu0
      %v1730 = vpop.f32.mrb[0].mxu0
      %v1731 = vadd.f32 0.0, %v1730
      %v1732 = vpop.f32.mrb[0].mxu0
      %1733 = vmatprep.mubr.bf16.mxu0 0
      %1734 = vmatmul.mubr.bf16.gmra.mrb[0].mxu0 %v1611
      %v1735 = vpop.f32.mrb[0].mxu0
      %v1736 = vadd.f32 0.0, %v1735
      %v1737 = vpop.f32.mrb[0].mxu0
      %v1738 = vpop.f32.mrb[0].mxu0
      %v1739 = vadd.f32 0.0, %v1738
      %v1740 = vpop.f32.mrb[0].mxu0
      %1741 = vmatprep.mubr.bf16.mxu0 0
      %1742 = vmatmul.mubr.bf16.gmra.mrb[0].mxu0 %v1612
      %v1743 = vpop.f32.mrb[0].mxu0
      %v1744 = vadd.f32 0.0, %v1743
      %v1745 = vpop.f32.mrb[0].mxu0
      %v1746 = vpop.f32.mrb[0].mxu0
      %v1747 = vadd.f32 0.0, %v1746
      %v1748 = vpop.f32.mrb[0].mxu0
      %1749 = vmatprep.mubr.bf16.mxu0 0
      %1750 = vmatmul.mubr.bf16.gmra.mrb[0].mxu0 %v1613
      %v1751 = vpop.f32.mrb[0].mxu0
      %v1752 = vadd.f32 0.0, %v1751
      %v1753 = vpop.f32.mrb[0].mxu0
      %v1754 = vpop.f32.mrb[0].mxu0
      %v1755 = vadd.f32 0.0, %v1754
      %v1756 = vpop.f32.mrb[0].mxu0
      %1757 = vmatprep.mubr.bf16.mxu0 0
      %1758 = vmatmul.mubr.bf16.gmra.mrb[0].mxu0 %v1614
      %v1759 = vpop.f32.mrb[0].mxu0
      %v1760 = vadd.f32 0.0, %v1759
      %v1761 = vpop.f32.mrb[0].mxu0
      %v1762 = vpop.f32.mrb[0].mxu0
      %v1763 = vadd.f32 0.0, %v1762
      %v1764 = vpop.f32.mrb[0].mxu0
      %1765 = vmatprep.mubr.bf16.mxu0 0
      %1766 = vmatmul.mubr.bf16.gmra.mrb[0].mxu0 %v1615
      %v1767 = vpop.f32.mrb[0].mxu0
      %v1768 = vadd.f32 0.0, %v1767
      %v1769 = vpop.f32.mrb[0].mxu0
      %v1770 = vpop.f32.mrb[0].mxu0
      %v1771 = vadd.f32 0.0, %v1770
      %v1772 = vpop.f32.mrb[0].mxu0
      %1773 = vmatprep.mubr.bf16.mxu0 0
      %1774 = vmatmul.mubr.bf16.gmra.mrb[0].mxu0 %v1616
      %v1775 = vpop.f32.mrb[0].mxu0
      %v1776 = vadd.f32 0.0, %v1775
      %v1777 = vpop.f32.mrb[0].mxu0
      %v1778 = vpop.f32.mrb[0].mxu0
      %v1779 = vadd.f32 0.0, %v1778
      %v1780 = vpop.f32.mrb[0].mxu0
      %1781 = vmatprep.mubr.bf16.mxu0 0
      %1782 = vmatmul.mubr.bf16.gmra.mrb[0].mxu0 %v1617
      %v1783 = vpop.f32.mrb[0].mxu0
      %v1784 = vadd.f32 0.0, %v1783
      %v1785 = vpop.f32.mrb[0].mxu0
      %v1786 = vpop.f32.mrb[0].mxu0
      %v1787 = vadd.f32 0.0, %v1786
      %v1788 = vpop.f32.mrb[0].mxu0
      %1789 = vmatprep.mubr.bf16.mxu0 0
      %1790 = vmatmul.mubr.bf16.gmra.mrb[0].mxu0 %v1618
      %v1791 = vpop.f32.mrb[0].mxu0
      %v1792 = vadd.f32 0.0, %v1791
      %v1793 = vpop.f32.mrb[0].mxu0
      %v1794 = vpop.f32.mrb[0].mxu0
      %v1795 = vadd.f32 0.0, %v1794
      %v1796 = vpop.f32.mrb[0].mxu0
      %1797 = vmatprep.mubr.bf16.mxu0 0
      %1798 = vmatmul.mubr.bf16.gmra.mrb[0].mxu0 %v1619
      %v1799 = vpop.f32.mrb[0].mxu0
      %v1800 = vadd.f32 0.0, %v1799
      %v1801 = vpop.f32.mrb[0].mxu0
      %v1802 = vpop.f32.mrb[0].mxu0
      %v1803 = vadd.f32 0.0, %v1802
      %v1804 = vpop.f32.mrb[0].mxu0
      %1805 = vmatprep.mubr.bf16.mxu0 0
      %1806 = vmatmul.mubr.bf16.gmra.mrb[0].mxu0 %v1620
      %v1807 = vpop.f32.mrb[0].mxu0
      %v1808 = vadd.f32 0.0, %v1807
      %v1809 = vpop.f32.mrb[0].mxu0
      %v1810 = vpop.f32.mrb[0].mxu0
      %v1811 = vadd.f32 0.0, %v1810
      %v1812 = vpop.f32.mrb[0].mxu0
      %1813 = vmatprep.mubr.bf16.mxu0 0
      %1814 = vmatmul.mubr.bf16.gmra.mrb[0].mxu0 %v1621
      %v1815 = vpop.f32.mrb[0].mxu0
      %v1816 = vadd.f32 0.0, %v1815
      %v1817 = vpop.f32.mrb[0].mxu0
      %v1818 = vpop.f32.mrb[0].mxu0
      %v1819 = vadd.f32 0.0, %v1818
      %v1820 = vpop.f32.mrb[0].mxu0
      %1821 = vmatprep.mubr.bf16.mxu0 0
      %1822 = vmatmul.mubr.bf16.gmra.mrb[0].mxu0 %v1622
      %v1823 = vpop.f32.mrb[0].mxu0
      %v1824 = vadd.f32 0.0, %v1823
      %v1825 = vpop.f32.mrb[0].mxu0
      %v1826 = vpop.f32.mrb[0].mxu0
      %v1827 = vadd.f32 0.0, %v1826
      %v1828 = vpop.f32.mrb[0].mxu0
      %1829 = vmatprep.mubr.bf16.mxu0 0
      %1830 = vmatmul.mubr.bf16.gmra.mrb[0].mxu0 %v1623
      %v1831 = vpop.f32.mrb[0].mxu0
      %v1832 = vadd.f32 0.0, %v1831
      %v1833 = vpop.f32.mrb[0].mxu0
      %v1834 = vpop.f32.mrb[0].mxu0
      %v1835 = vadd.f32 0.0, %v1834
      %v1836 = vpop.f32.mrb[0].mxu0
      %1837 = vmatprep.mubr.bf16.mxu0 0
      %1838 = vmatmul.mubr.bf16.gmra.mrb[0].mxu0 %v1624
      %v1839 = vpop.f32.mrb[0].mxu0
      %v1840 = vadd.f32 0.0, %v1839
      %v1841 = vpop.f32.mrb[0].mxu0
      %v1842 = vpop.f32.mrb[0].mxu0
      %v1843 = vadd.f32 0.0, %v1842
      %v1844 = vpop.f32.mrb[0].mxu0
      %1845 = vmatprep.mubr.bf16.mxu0 0
      %1846 = vmatmul.mubr.bf16.gmra.mrb[0].mxu0 %v1625
      %v1847 = vpop.f32.mrb[0].mxu0
      %v1848 = vadd.f32 0.0, %v1847
      %v1849 = vpop.f32.mrb[0].mxu0
      %v1850 = vpop.f32.mrb[0].mxu0
      %v1851 = vadd.f32 0.0, %v1850
      %v1852 = vpop.f32.mrb[0].mxu0
      %1853 = vmatprep.mubr.bf16.mxu0 0
      %1854 = vmatmul.mubr.bf16.gmra.mrb[0].mxu0 %v1626
      %v1855 = vpop.f32.mrb[0].mxu0
      %v1856 = vadd.f32 0.0, %v1855
      %v1857 = vpop.f32.mrb[0].mxu0
      %v1858 = vpop.f32.mrb[0].mxu0
      %v1859 = vadd.f32 0.0, %v1858
      %v1860 = vpop.f32.mrb[0].mxu0
      %1861 = vmatprep.mubr.bf16.mxu0 0
      %1862 = vmatmul.mubr.bf16.gmra.mrb[0].mxu0 %v1627
      %v1863 = vpop.f32.mrb[0].mxu0
      %v1864 = vadd.f32 0.0, %v1863
      %v1865 = vpop.f32.mrb[0].mxu0
      %v1866 = vpop.f32.mrb[0].mxu0
      %v1867 = vadd.f32 0.0, %v1866
      %v1868 = vpop.f32.mrb[0].mxu0
      %1869 = vdwg.mxu0
      %v1870 = vadd.f32 %v1538, %v1728
      %v1871 = vadd.f32 %v1539, %v1731
      %v1872 = vadd.f32 %v1540, %v1736
      %v1873 = vadd.f32 %v1541, %v1739
      %v1874 = vadd.f32 %v1542, %v1744
      %v1875 = vadd.f32 %v1543, %v1747
      %v1876 = vadd.f32 %v1544, %v1752
      %v1877 = vadd.f32 %v1545, %v1755
      %v1878 = vadd.f32 %v1546, %v1760
      %v1879 = vadd.f32 %v1547, %v1763
      %v1880 = vadd.f32 %v1548, %v1768
      %v1881 = vadd.f32 %v1549, %v1771
      %v1882 = vadd.f32 %v1550, %v1776
      %v1883 = vadd.f32 %v1551, %v1779
      %v1884 = vadd.f32 %v1552, %v1784
      %v1885 = vadd.f32 %v1553, %v1787
      %v1886 = vadd.f32 %v1554, %v1792
      %v1887 = vadd.f32 %v1555, %v1795
      %v1888 = vadd.f32 %v1556, %v1800
      %v1889 = vadd.f32 %v1557, %v1803
      %v1890 = vadd.f32 %v1558, %v1808
      %v1891 = vadd.f32 %v1559, %v1811
      %v1892 = vadd.f32 %v1560, %v1816
      %v1893 = vadd.f32 %v1561, %v1819
      %v1894 = vadd.f32 %v1562, %v1824
      %v1895 = vadd.f32 %v1563, %v1827
      %v1896 = vadd.f32 %v1564, %v1832
      %v1897 = vadd.f32 %v1565, %v1835
      %v1898 = vadd.f32 %v1566, %v1840
      %v1899 = vadd.f32 %v1567, %v1843
      %v1900 = vadd.f32 %v1568, %v1848
      %v1901 = vadd.f32 %v1569, %v1851
      %v1902 = vadd.f32 %v1570, %v1856
      %v1903 = vadd.f32 %v1571, %v1859
      %v1904 = vadd.f32 %v1572, %v1864
      %v1905 = vadd.f32 %v1573, %v1867
      %v1906 = vld [vmem:[%s192 + $0x19] sm:$0xff]
      %v1907 = vld [vmem:[%s192 + $0x21] sm:$0xff]
      %v1908 = vld [vmem:[%s192 + $0x29] sm:$0xff]
      %v1909 = vld [vmem:[%s192 + $0x31] sm:$0xff]
      %v1910 = vld [vmem:[%s192 + $0x39] sm:$0xff]
      %v1911 = vld [vmem:[%s192 + $0x41] sm:$0xff]
      %v1912 = vld [vmem:[%s192 + $0x49] sm:$0xff]
      %v1913 = vld [vmem:[%s192 + $0x51] sm:$0xff]
      %v1914 = vld [vmem:[%s192 + $0x59] sm:$0xff]
      %v1915 = vld [vmem:[%s192 + $0x61] sm:$0xff]
      %v1916 = vld [vmem:[%s192 + $0x69] sm:$0xff]
      %v1917 = vld [vmem:[%s192 + $0x71] sm:$0xff]
      %v1918 = vld [vmem:[%s192 + $0x79] sm:$0xff]
      %v1919 = vld [vmem:[%s192 + $0x81] sm:$0xff]
      %v1920 = vld [vmem:[%s192 + $0x89] sm:$0xff]
      %v1921 = vld [vmem:[%s192 + $0x91] sm:$0xff]
      %v1922 = vld [vmem:[%s192 + $0x99] sm:$0xff]
      %v1923 = vld [vmem:[%s192 + $0xa1] sm:$0xff]
      %v1924 = vld [vmem:[%s192 + $0xa9] sm:$0xff]
      %v1925 = vld [vmem:[%s192 + $0xb1] sm:$0xff]
      %v1926 = vld [vmem:[%s192 + $0xb9] sm:$0xff]
      %v1927 = vld [vmem:[%s192 + $0xc1] sm:$0xff]
      %v1928 = vld [vmem:[%s192 + $0xc9] sm:$0xff]
      %v1929 = vld [vmem:[%s192 + $0xd1] sm:$0xff]
      %v1930 = vld [vmem:[%s192 + $0xd9] sm:$0xff]
      %v1931 = vld [vmem:[%s192 + $0xe1] sm:$0xff]
      %v1932 = vld [vmem:[%s192 + $0xe9] sm:$0xff]
      %v1933 = vld [vmem:[%s192 + $0xf1] sm:$0xff]
      %v1934 = vld [vmem:[%s192 + $0xf9] sm:$0xff]
      %v1935 = vld [vmem:[%s192 + $0x101] sm:$0xff]
      %v1936 = vld [vmem:[%s192 + $0x109] sm:$0xff]
      %v1937 = vld [vmem:[%s192 + $0x111] sm:$0xff]
      %v1938 = vld [vmem:[%s192 + $0x119] sm:$0xff]
      %v1939 = vld [vmem:[%s192 + $0x121] sm:$0xff]
      %v1940 = vld [vmem:[%s192 + $0x129] sm:$0xff]
      %v1941 = vld [vmem:[%s192 + $0x131] sm:$0xff]
      %v1942 = vpack.c.bf16 %v1907, %v1906
      %v1943 = vpack.c.bf16 %v1909, %v1908
      %v1944 = vpack.c.bf16 %v1911, %v1910
      %v1945 = vpack.c.bf16 %v1913, %v1912
      %v1946 = vpack.c.bf16 %v1915, %v1914
      %v1947 = vpack.c.bf16 %v1917, %v1916
      %v1948 = vpack.c.bf16 %v1919, %v1918
      %v1949 = vpack.c.bf16 %v1921, %v1920
      %v1950 = vpack.c.bf16 %v1923, %v1922
      %v1951 = vpack.c.bf16 %v1925, %v1924
      %v1952 = vpack.c.bf16 %v1927, %v1926
      %v1953 = vpack.c.bf16 %v1929, %v1928
      %v1954 = vpack.c.bf16 %v1931, %v1930
      %v1955 = vpack.c.bf16 %v1933, %v1932
      %v1956 = vpack.c.bf16 %v1935, %v1934
      %v1957 = vpack.c.bf16 %v1937, %v1936
      %v1958 = vpack.c.bf16 %v1939, %v1938
      %v1959 = vpack.c.bf16 %v1941, %v1940
      %s1960 = scalar_lea.vmem %s1, 320
      %v1961 = vld [vmem:[%s1960] sm:$0xf]
      %v1962 = vld [vmem:[%s1960 + $0x4] sm:$0xf]
      %v1963 = vld [vmem:[%s1960 + $0x8] sm:$0xf]
      %v1964 = vld [vmem:[%s1960 + $0xc] sm:$0xf]
      %v1965 = vld [vmem:[%s1960 + $0x10] sm:$0xf]
      %v1966 = vld [vmem:[%s1960 + $0x14] sm:$0xf]
      %v1967 = vld [vmem:[%s1960 + $0x18] sm:$0xf]
      %v1968 = vld [vmem:[%s1960 + $0x1c] sm:$0xf]
      %v1969 = vld [vmem:[%s1960 + $0x20] sm:$0xf]
      %v1970 = vld [vmem:[%s1960 + $0x24] sm:$0xf]
      %v1971 = vld [vmem:[%s1960 + $0x28] sm:$0xf]
      %v1972 = vld [vmem:[%s1960 + $0x2c] sm:$0xf]
      %v1973 = vld [vmem:[%s1960 + $0x30] sm:$0xf]
      %v1974 = vld [vmem:[%s1960 + $0x34] sm:$0xf]
      %v1975 = vld [vmem:[%s1960 + $0x38] sm:$0xf]
      %v1976 = vld [vmem:[%s1960 + $0x3c] sm:$0xf]
      %v1993 = vunpack.c.l.b16 %v1961
      %v1994 = vunpack.c.l.b16 %v1962
      %v1995 = vunpack.c.l.b16 %v1963
      %v1996 = vunpack.c.l.b16 %v1964
      %v1997 = vunpack.c.l.b16 %v1965
      %v1998 = vunpack.c.l.b16 %v1966
      %v1999 = vunpack.c.l.b16 %v1967
      %v2000 = vunpack.c.l.b16 %v1968
      %v2001 = vunpack.c.l.b16 %v1969
      %v2002 = vunpack.c.l.b16 %v1970
      %v2003 = vunpack.c.l.b16 %v1971
      %v2004 = vunpack.c.l.b16 %v1972
      %v2005 = vunpack.c.l.b16 %v1973
      %v2006 = vunpack.c.l.b16 %v1974
      %v2007 = vunpack.c.l.b16 %v1975
      %v2008 = vunpack.c.l.b16 %v1976
      %v2009 = vpack.c.b16 %v1994, %v1993
      %v2010 = vpack.c.b16 %v1996, %v1995
      %v2011 = vpack.c.b16 %v1998, %v1997
      %v2012 = vpack.c.b16 %v2000, %v1999
      %v2013 = vpack.c.b16 %v2002, %v2001
      %v2014 = vpack.c.b16 %v2004, %v2003
      %v2015 = vpack.c.b16 %v2006, %v2005
      %v2016 = vpack.c.b16 %v2008, %v2007
      %2025 = vmatprep.subr.bf16.mxu0 0
      %2026 = vmatpush1.bf16.msra.mxu0 %v2009
      %2027 = vmatprep.subr.bf16.mxu0 0
      %2028 = vmatpush1.bf16.msra.mxu0 %v2010
      %2029 = vmatprep.subr.bf16.mxu0 0
      %2030 = vmatpush1.bf16.msra.mxu0 %v2011
      %2031 = vmatprep.subr.bf16.mxu0 0
      %2032 = vmatpush1.bf16.msra.mxu0 %v2012
      %2033 = vmatprep.subr.bf16.mxu0 0
      %2034 = vmatpush1.bf16.msra.mxu0 %v2013
      %2035 = vmatprep.subr.bf16.mxu0 0
      %2036 = vmatpush1.bf16.msra.mxu0 %v2014
      %2037 = vmatprep.subr.bf16.mxu0 0
      %2038 = vmatpush1.bf16.msra.mxu0 %v2015
      %2039 = vmatprep.subr.bf16.mxu0 0
      %2040 = vmatpush1.bf16.msra.mxu0 %v2016
      %2041 = vmatprep.subr.bf16.mxu0 0
      %2042 = vmatpush1.bf16.msra.mxu0 0
      %2043 = vmatprep.subr.bf16.mxu0 0
      %2044 = vmatpush1.bf16.msra.mxu0 0
      %2045 = vmatprep.subr.bf16.mxu0 0
      %2046 = vmatpush1.bf16.msra.mxu0 0
      %2047 = vmatprep.subr.bf16.mxu0 0
      %2048 = vmatpush1.bf16.msra.mxu0 0
      %2049 = vmatprep.subr.bf16.mxu0 0
      %2050 = vmatpush1.bf16.msra.mxu0 0
      %2051 = vmatprep.subr.bf16.mxu0 0
      %2052 = vmatpush1.bf16.msra.mxu0 0
      %2053 = vmatprep.subr.bf16.mxu0 0
      %2054 = vmatpush1.bf16.msra.mxu0 0
      %2055 = vmatprep.subr.bf16.mxu0 0
      %2056 = vmatpush1.bf16.msra.mxu0 0
      %2057 = vmatprep.mubr.bf16.mxu0 0
      %2058 = vmatmul.mubr.bf16.gmra.mrb[0].mxu0 %v1942
      %v2059 = vpop.f32.mrb[0].mxu0
      %v2060 = vadd.f32 0.0, %v2059
      %v2061 = vpop.f32.mrb[0].mxu0
      %v2062 = vpop.f32.mrb[0].mxu0
      %v2063 = vadd.f32 0.0, %v2062
      %v2064 = vpop.f32.mrb[0].mxu0
      %2065 = vmatprep.mubr.bf16.mxu0 0
      %2066 = vmatmul.mubr.bf16.gmra.mrb[0].mxu0 %v1943
      %v2067 = vpop.f32.mrb[0].mxu0
      %v2068 = vadd.f32 0.0, %v2067
      %v2069 = vpop.f32.mrb[0].mxu0
      %v2070 = vpop.f32.mrb[0].mxu0
      %v2071 = vadd.f32 0.0, %v2070
      %v2072 = vpop.f32.mrb[0].mxu0
      %2073 = vmatprep.mubr.bf16.mxu0 0
      %2074 = vmatmul.mubr.bf16.gmra.mrb[0].mxu0 %v1944
      %v2075 = vpop.f32.mrb[0].mxu0
      %v2076 = vadd.f32 0.0, %v2075
      %v2077 = vpop.f32.mrb[0].mxu0
      %v2078 = vpop.f32.mrb[0].mxu0
      %v2079 = vadd.f32 0.0, %v2078
      %v2080 = vpop.f32.mrb[0].mxu0
      %2081 = vmatprep.mubr.bf16.mxu0 0
      %2082 = vmatmul.mubr.bf16.gmra.mrb[0].mxu0 %v1945
      %v2083 = vpop.f32.mrb[0].mxu0
      %v2084 = vadd.f32 0.0, %v2083
      %v2085 = vpop.f32.mrb[0].mxu0
      %v2086 = vpop.f32.mrb[0].mxu0
      %v2087 = vadd.f32 0.0, %v2086
      %v2088 = vpop.f32.mrb[0].mxu0
      %2089 = vmatprep.mubr.bf16.mxu0 0
      %2090 = vmatmul.mubr.bf16.gmra.mrb[0].mxu0 %v1946
      %v2091 = vpop.f32.mrb[0].mxu0
      %v2092 = vadd.f32 0.0, %v2091
      %v2093 = vpop.f32.mrb[0].mxu0
      %v2094 = vpop.f32.mrb[0].mxu0
      %v2095 = vadd.f32 0.0, %v2094
      %v2096 = vpop.f32.mrb[0].mxu0
      %2097 = vmatprep.mubr.bf16.mxu0 0
      %2098 = vmatmul.mubr.bf16.gmra.mrb[0].mxu0 %v1947
      %v2099 = vpop.f32.mrb[0].mxu0
      %v2100 = vadd.f32 0.0, %v2099
      %v2101 = vpop.f32.mrb[0].mxu0
      %v2102 = vpop.f32.mrb[0].mxu0
      %v2103 = vadd.f32 0.0, %v2102
      %v2104 = vpop.f32.mrb[0].mxu0
      %2105 = vmatprep.mubr.bf16.mxu0 0
      %2106 = vmatmul.mubr.bf16.gmra.mrb[0].mxu0 %v1948
      %v2107 = vpop.f32.mrb[0].mxu0
      %v2108 = vadd.f32 0.0, %v2107
      %v2109 = vpop.f32.mrb[0].mxu0
      %v2110 = vpop.f32.mrb[0].mxu0
      %v2111 = vadd.f32 0.0, %v2110
      %v2112 = vpop.f32.mrb[0].mxu0
      %2113 = vmatprep.mubr.bf16.mxu0 0
      %2114 = vmatmul.mubr.bf16.gmra.mrb[0].mxu0 %v1949
      %v2115 = vpop.f32.mrb[0].mxu0
      %v2116 = vadd.f32 0.0, %v2115
      %v2117 = vpop.f32.mrb[0].mxu0
      %v2118 = vpop.f32.mrb[0].mxu0
      %v2119 = vadd.f32 0.0, %v2118
      %v2120 = vpop.f32.mrb[0].mxu0
      %2121 = vmatprep.mubr.bf16.mxu0 0
      %2122 = vmatmul.mubr.bf16.gmra.mrb[0].mxu0 %v1950
      %v2123 = vpop.f32.mrb[0].mxu0
      %v2124 = vadd.f32 0.0, %v2123
      %v2125 = vpop.f32.mrb[0].mxu0
      %v2126 = vpop.f32.mrb[0].mxu0
      %v2127 = vadd.f32 0.0, %v2126
      %v2128 = vpop.f32.mrb[0].mxu0
      %2129 = vmatprep.mubr.bf16.mxu0 0
      %2130 = vmatmul.mubr.bf16.gmra.mrb[0].mxu0 %v1951
      %v2131 = vpop.f32.mrb[0].mxu0
      %v2132 = vadd.f32 0.0, %v2131
      %v2133 = vpop.f32.mrb[0].mxu0
      %v2134 = vpop.f32.mrb[0].mxu0
      %v2135 = vadd.f32 0.0, %v2134
      %v2136 = vpop.f32.mrb[0].mxu0
      %2137 = vmatprep.mubr.bf16.mxu0 0
      %2138 = vmatmul.mubr.bf16.gmra.mrb[0].mxu0 %v1952
      %v2139 = vpop.f32.mrb[0].mxu0
      %v2140 = vadd.f32 0.0, %v2139
      %v2141 = vpop.f32.mrb[0].mxu0
      %v2142 = vpop.f32.mrb[0].mxu0
      %v2143 = vadd.f32 0.0, %v2142
      %v2144 = vpop.f32.mrb[0].mxu0
      %2145 = vmatprep.mubr.bf16.mxu0 0
      %2146 = vmatmul.mubr.bf16.gmra.mrb[0].mxu0 %v1953
      %v2147 = vpop.f32.mrb[0].mxu0
      %v2148 = vadd.f32 0.0, %v2147
      %v2149 = vpop.f32.mrb[0].mxu0
      %v2150 = vpop.f32.mrb[0].mxu0
      %v2151 = vadd.f32 0.0, %v2150
      %v2152 = vpop.f32.mrb[0].mxu0
      %2153 = vmatprep.mubr.bf16.mxu0 0
      %2154 = vmatmul.mubr.bf16.gmra.mrb[0].mxu0 %v1954
      %v2155 = vpop.f32.mrb[0].mxu0
      %v2156 = vadd.f32 0.0, %v2155
      %v2157 = vpop.f32.mrb[0].mxu0
      %v2158 = vpop.f32.mrb[0].mxu0
      %v2159 = vadd.f32 0.0, %v2158
      %v2160 = vpop.f32.mrb[0].mxu0
      %2161 = vmatprep.mubr.bf16.mxu0 0
      %2162 = vmatmul.mubr.bf16.gmra.mrb[0].mxu0 %v1955
      %v2163 = vpop.f32.mrb[0].mxu0
      %v2164 = vadd.f32 0.0, %v2163
      %v2165 = vpop.f32.mrb[0].mxu0
      %v2166 = vpop.f32.mrb[0].mxu0
      %v2167 = vadd.f32 0.0, %v2166
      %v2168 = vpop.f32.mrb[0].mxu0
      %2169 = vmatprep.mubr.bf16.mxu0 0
      %2170 = vmatmul.mubr.bf16.gmra.mrb[0].mxu0 %v1956
      %v2171 = vpop.f32.mrb[0].mxu0
      %v2172 = vadd.f32 0.0, %v2171
      %v2173 = vpop.f32.mrb[0].mxu0
      %v2174 = vpop.f32.mrb[0].mxu0
      %v2175 = vadd.f32 0.0, %v2174
      %v2176 = vpop.f32.mrb[0].mxu0
      %2177 = vmatprep.mubr.bf16.mxu0 0
      %2178 = vmatmul.mubr.bf16.gmra.mrb[0].mxu0 %v1957
      %v2179 = vpop.f32.mrb[0].mxu0
      %v2180 = vadd.f32 0.0, %v2179
      %v2181 = vpop.f32.mrb[0].mxu0
      %v2182 = vpop.f32.mrb[0].mxu0
      %v2183 = vadd.f32 0.0, %v2182
      %v2184 = vpop.f32.mrb[0].mxu0
      %2185 = vmatprep.mubr.bf16.mxu0 0
      %2186 = vmatmul.mubr.bf16.gmra.mrb[0].mxu0 %v1958
      %v2187 = vpop.f32.mrb[0].mxu0
      %v2188 = vadd.f32 0.0, %v2187
      %v2189 = vpop.f32.mrb[0].mxu0
      %v2190 = vpop.f32.mrb[0].mxu0
      %v2191 = vadd.f32 0.0, %v2190
      %v2192 = vpop.f32.mrb[0].mxu0
      %2193 = vmatprep.mubr.bf16.mxu0 0
      %2194 = vmatmul.mubr.bf16.gmra.mrb[0].mxu0 %v1959
      %v2195 = vpop.f32.mrb[0].mxu0
      %v2196 = vadd.f32 0.0, %v2195
      %v2197 = vpop.f32.mrb[0].mxu0
      %v2198 = vpop.f32.mrb[0].mxu0
      %v2199 = vadd.f32 0.0, %v2198
      %v2200 = vpop.f32.mrb[0].mxu0
      %2201 = vdwg.mxu0
      %v2202 = vadd.f32 %v1870, %v2060
      %v2203 = vadd.f32 %v1871, %v2063
      %v2204 = vadd.f32 %v1872, %v2068
      %v2205 = vadd.f32 %v1873, %v2071
      %v2206 = vadd.f32 %v1874, %v2076
      %v2207 = vadd.f32 %v1875, %v2079
      %v2208 = vadd.f32 %v1876, %v2084
      %v2209 = vadd.f32 %v1877, %v2087
      %v2210 = vadd.f32 %v1878, %v2092
      %v2211 = vadd.f32 %v1879, %v2095
      %v2212 = vadd.f32 %v1880, %v2100
      %v2213 = vadd.f32 %v1881, %v2103
      %v2214 = vadd.f32 %v1882, %v2108
      %v2215 = vadd.f32 %v1883, %v2111
      %v2216 = vadd.f32 %v1884, %v2116
      %v2217 = vadd.f32 %v1885, %v2119
      %v2218 = vadd.f32 %v1886, %v2124
      %v2219 = vadd.f32 %v1887, %v2127
      %v2220 = vadd.f32 %v1888, %v2132
      %v2221 = vadd.f32 %v1889, %v2135
      %v2222 = vadd.f32 %v1890, %v2140
      %v2223 = vadd.f32 %v1891, %v2143
      %v2224 = vadd.f32 %v1892, %v2148
      %v2225 = vadd.f32 %v1893, %v2151
      %v2226 = vadd.f32 %v1894, %v2156
      %v2227 = vadd.f32 %v1895, %v2159
      %v2228 = vadd.f32 %v1896, %v2164
      %v2229 = vadd.f32 %v1897, %v2167
      %v2230 = vadd.f32 %v1898, %v2172
      %v2231 = vadd.f32 %v1899, %v2175
      %v2232 = vadd.f32 %v1900, %v2180
      %v2233 = vadd.f32 %v1901, %v2183
      %v2234 = vadd.f32 %v1902, %v2188
      %v2235 = vadd.f32 %v1903, %v2191
      %v2236 = vadd.f32 %v1904, %v2196
      %v2237 = vadd.f32 %v1905, %v2199
      %v2238 = vld [vmem:[%s192 + $0x29] sm:$0xff]
      %v2239 = vld [vmem:[%s192 + $0x31] sm:$0xff]
      %v2240 = vld [vmem:[%s192 + $0x39] sm:$0xff]
      %v2241 = vld [vmem:[%s192 + $0x41] sm:$0xff]
      %v2242 = vld [vmem:[%s192 + $0x49] sm:$0xff]
      %v2243 = vld [vmem:[%s192 + $0x51] sm:$0xff]
      %v2244 = vld [vmem:[%s192 + $0x59] sm:$0xff]
      %v2245 = vld [vmem:[%s192 + $0x61] sm:$0xff]
      %v2246 = vld [vmem:[%s192 + $0x69] sm:$0xff]
      %v2247 = vld [vmem:[%s192 + $0x71] sm:$0xff]
      %v2248 = vld [vmem:[%s192 + $0x79] sm:$0xff]
      %v2249 = vld [vmem:[%s192 + $0x81] sm:$0xff]
      %v2250 = vld [vmem:[%s192 + $0x89] sm:$0xff]
      %v2251 = vld [vmem:[%s192 + $0x91] sm:$0xff]
      %v2252 = vld [vmem:[%s192 + $0x99] sm:$0xff]
      %v2253 = vld [vmem:[%s192 + $0xa1] sm:$0xff]
      %v2254 = vld [vmem:[%s192 + $0xa9] sm:$0xff]
      %v2255 = vld [vmem:[%s192 + $0xb1] sm:$0xff]
      %v2256 = vld [vmem:[%s192 + $0xb9] sm:$0xff]
      %v2257 = vld [vmem:[%s192 + $0xc1] sm:$0xff]
      %v2258 = vld [vmem:[%s192 + $0xc9] sm:$0xff]
      %v2259 = vld [vmem:[%s192 + $0xd1] sm:$0xff]
      %v2260 = vld [vmem:[%s192 + $0xd9] sm:$0xff]
      %v2261 = vld [vmem:[%s192 + $0xe1] sm:$0xff]
      %v2262 = vld [vmem:[%s192 + $0xe9] sm:$0xff]
      %v2263 = vld [vmem:[%s192 + $0xf1] sm:$0xff]
      %v2264 = vld [vmem:[%s192 + $0xf9] sm:$0xff]
      %v2265 = vld [vmem:[%s192 + $0x101] sm:$0xff]
      %v2266 = vld [vmem:[%s192 + $0x109] sm:$0xff]
      %v2267 = vld [vmem:[%s192 + $0x111] sm:$0xff]
      %v2268 = vld [vmem:[%s192 + $0x119] sm:$0xff]
      %v2269 = vld [vmem:[%s192 + $0x121] sm:$0xff]
      %v2270 = vld [vmem:[%s192 + $0x129] sm:$0xff]
      %v2271 = vld [vmem:[%s192 + $0x131] sm:$0xff]
      %v2272 = vld [vmem:[%s192 + $0x139] sm:$0xff]
      %v2273 = vld [vmem:[%s192 + $0x141] sm:$0xff]
      %v2274 = vpack.c.bf16 %v2239, %v2238
      %v2275 = vpack.c.bf16 %v2241, %v2240
      %v2276 = vpack.c.bf16 %v2243, %v2242
      %v2277 = vpack.c.bf16 %v2245, %v2244
      %v2278 = vpack.c.bf16 %v2247, %v2246
      %v2279 = vpack.c.bf16 %v2249, %v2248
      %v2280 = vpack.c.bf16 %v2251, %v2250
      %v2281 = vpack.c.bf16 %v2253, %v2252
      %v2282 = vpack.c.bf16 %v2255, %v2254
      %v2283 = vpack.c.bf16 %v2257, %v2256
      %v2284 = vpack.c.bf16 %v2259, %v2258
      %v2285 = vpack.c.bf16 %v2261, %v2260
      %v2286 = vpack.c.bf16 %v2263, %v2262
      %v2287 = vpack.c.bf16 %v2265, %v2264
      %v2288 = vpack.c.bf16 %v2267, %v2266
      %v2289 = vpack.c.bf16 %v2269, %v2268
      %v2290 = vpack.c.bf16 %v2271, %v2270
      %v2291 = vpack.c.bf16 %v2273, %v2272
      %s2292 = scalar_lea.vmem %s1, 384
      %v2293 = vld [vmem:[%s2292] sm:$0xf]
      %v2294 = vld [vmem:[%s2292 + $0x4] sm:$0xf]
      %v2295 = vld [vmem:[%s2292 + $0x8] sm:$0xf]
      %v2296 = vld [vmem:[%s2292 + $0xc] sm:$0xf]
      %v2297 = vld [vmem:[%s2292 + $0x10] sm:$0xf]
      %v2298 = vld [vmem:[%s2292 + $0x14] sm:$0xf]
      %v2299 = vld [vmem:[%s2292 + $0x18] sm:$0xf]
      %v2300 = vld [vmem:[%s2292 + $0x1c] sm:$0xf]
      %v2301 = vld [vmem:[%s2292 + $0x20] sm:$0xf]
      %v2302 = vld [vmem:[%s2292 + $0x24] sm:$0xf]
      %v2303 = vld [vmem:[%s2292 + $0x28] sm:$0xf]
      %v2304 = vld [vmem:[%s2292 + $0x2c] sm:$0xf]
      %v2305 = vld [vmem:[%s2292 + $0x30] sm:$0xf]
      %v2306 = vld [vmem:[%s2292 + $0x34] sm:$0xf]
      %v2307 = vld [vmem:[%s2292 + $0x38] sm:$0xf]
      %v2308 = vld [vmem:[%s2292 + $0x3c] sm:$0xf]
      %v2325 = vunpack.c.l.b16 %v2293
      %v2326 = vunpack.c.l.b16 %v2294
      %v2327 = vunpack.c.l.b16 %v2295
      %v2328 = vunpack.c.l.b16 %v2296
      %v2329 = vunpack.c.l.b16 %v2297
      %v2330 = vunpack.c.l.b16 %v2298
      %v2331 = vunpack.c.l.b16 %v2299
      %v2332 = vunpack.c.l.b16 %v2300
      %v2333 = vunpack.c.l.b16 %v2301
      %v2334 = vunpack.c.l.b16 %v2302
      %v2335 = vunpack.c.l.b16 %v2303
      %v2336 = vunpack.c.l.b16 %v2304
      %v2337 = vunpack.c.l.b16 %v2305
      %v2338 = vunpack.c.l.b16 %v2306
      %v2339 = vunpack.c.l.b16 %v2307
      %v2340 = vunpack.c.l.b16 %v2308
      %v2341 = vpack.c.b16 %v2326, %v2325
      %v2342 = vpack.c.b16 %v2328, %v2327
      %v2343 = vpack.c.b16 %v2330, %v2329
      %v2344 = vpack.c.b16 %v2332, %v2331
      %v2345 = vpack.c.b16 %v2334, %v2333
      %v2346 = vpack.c.b16 %v2336, %v2335
      %v2347 = vpack.c.b16 %v2338, %v2337
      %v2348 = vpack.c.b16 %v2340, %v2339
      %2357 = vmatprep.subr.bf16.mxu0 0
      %2358 = vmatpush1.bf16.msra.mxu0 %v2341
      %2359 = vmatprep.subr.bf16.mxu0 0
      %2360 = vmatpush1.bf16.msra.mxu0 %v2342
      %2361 = vmatprep.subr.bf16.mxu0 0
      %2362 = vmatpush1.bf16.msra.mxu0 %v2343
      %2363 = vmatprep.subr.bf16.mxu0 0
      %2364 = vmatpush1.bf16.msra.mxu0 %v2344
      %2365 = vmatprep.subr.bf16.mxu0 0
      %2366 = vmatpush1.bf16.msra.mxu0 %v2345
      %2367 = vmatprep.subr.bf16.mxu0 0
      %2368 = vmatpush1.bf16.msra.mxu0 %v2346
      %2369 = vmatprep.subr.bf16.mxu0 0
      %2370 = vmatpush1.bf16.msra.mxu0 %v2347
      %2371 = vmatprep.subr.bf16.mxu0 0
      %2372 = vmatpush1.bf16.msra.mxu0 %v2348
      %2373 = vmatprep.subr.bf16.mxu0 0
      %2374 = vmatpush1.bf16.msra.mxu0 0
      %2375 = vmatprep.subr.bf16.mxu0 0
      %2376 = vmatpush1.bf16.msra.mxu0 0
      %2377 = vmatprep.subr.bf16.mxu0 0
      %2378 = vmatpush1.bf16.msra.mxu0 0
      %2379 = vmatprep.subr.bf16.mxu0 0
      %2380 = vmatpush1.bf16.msra.mxu0 0
      %2381 = vmatprep.subr.bf16.mxu0 0
      %2382 = vmatpush1.bf16.msra.mxu0 0
      %2383 = vmatprep.subr.bf16.mxu0 0
      %2384 = vmatpush1.bf16.msra.mxu0 0
      %2385 = vmatprep.subr.bf16.mxu0 0
      %2386 = vmatpush1.bf16.msra.mxu0 0
      %2387 = vmatprep.subr.bf16.mxu0 0
      %2388 = vmatpush1.bf16.msra.mxu0 0
      %2389 = vmatprep.mubr.bf16.mxu0 0
      %2390 = vmatmul.mubr.bf16.gmra.mrb[0].mxu0 %v2274
      %v2391 = vpop.f32.mrb[0].mxu0
      %v2392 = vadd.f32 0.0, %v2391
      %v2393 = vpop.f32.mrb[0].mxu0
      %v2394 = vpop.f32.mrb[0].mxu0
      %v2395 = vadd.f32 0.0, %v2394
      %v2396 = vpop.f32.mrb[0].mxu0
      %2397 = vmatprep.mubr.bf16.mxu0 0
      %2398 = vmatmul.mubr.bf16.gmra.mrb[0].mxu0 %v2275
      %v2399 = vpop.f32.mrb[0].mxu0
      %v2400 = vadd.f32 0.0, %v2399
      %v2401 = vpop.f32.mrb[0].mxu0
      %v2402 = vpop.f32.mrb[0].mxu0
      %v2403 = vadd.f32 0.0, %v2402
      %v2404 = vpop.f32.mrb[0].mxu0
      %2405 = vmatprep.mubr.bf16.mxu0 0
      %2406 = vmatmul.mubr.bf16.gmra.mrb[0].mxu0 %v2276
      %v2407 = vpop.f32.mrb[0].mxu0
      %v2408 = vadd.f32 0.0, %v2407
      %v2409 = vpop.f32.mrb[0].mxu0
      %v2410 = vpop.f32.mrb[0].mxu0
      %v2411 = vadd.f32 0.0, %v2410
      %v2412 = vpop.f32.mrb[0].mxu0
      %2413 = vmatprep.mubr.bf16.mxu0 0
      %2414 = vmatmul.mubr.bf16.gmra.mrb[0].mxu0 %v2277
      %v2415 = vpop.f32.mrb[0].mxu0
      %v2416 = vadd.f32 0.0, %v2415
      %v2417 = vpop.f32.mrb[0].mxu0
      %v2418 = vpop.f32.mrb[0].mxu0
      %v2419 = vadd.f32 0.0, %v2418
      %v2420 = vpop.f32.mrb[0].mxu0
      %2421 = vmatprep.mubr.bf16.mxu0 0
      %2422 = vmatmul.mubr.bf16.gmra.mrb[0].mxu0 %v2278
      %v2423 = vpop.f32.mrb[0].mxu0
      %v2424 = vadd.f32 0.0, %v2423
      %v2425 = vpop.f32.mrb[0].mxu0
      %v2426 = vpop.f32.mrb[0].mxu0
      %v2427 = vadd.f32 0.0, %v2426
      %v2428 = vpop.f32.mrb[0].mxu0
      %2429 = vmatprep.mubr.bf16.mxu0 0
      %2430 = vmatmul.mubr.bf16.gmra.mrb[0].mxu0 %v2279
      %v2431 = vpop.f32.mrb[0].mxu0
      %v2432 = vadd.f32 0.0, %v2431
      %v2433 = vpop.f32.mrb[0].mxu0
      %v2434 = vpop.f32.mrb[0].mxu0
      %v2435 = vadd.f32 0.0, %v2434
      %v2436 = vpop.f32.mrb[0].mxu0
      %2437 = vmatprep.mubr.bf16.mxu0 0
      %2438 = vmatmul.mubr.bf16.gmra.mrb[0].mxu0 %v2280
      %v2439 = vpop.f32.mrb[0].mxu0
      %v2440 = vadd.f32 0.0, %v2439
      %v2441 = vpop.f32.mrb[0].mxu0
      %v2442 = vpop.f32.mrb[0].mxu0
      %v2443 = vadd.f32 0.0, %v2442
      %v2444 = vpop.f32.mrb[0].mxu0
      %2445 = vmatprep.mubr.bf16.mxu0 0
      %2446 = vmatmul.mubr.bf16.gmra.mrb[0].mxu0 %v2281
      %v2447 = vpop.f32.mrb[0].mxu0
      %v2448 = vadd.f32 0.0, %v2447
      %v2449 = vpop.f32.mrb[0].mxu0
      %v2450 = vpop.f32.mrb[0].mxu0
      %v2451 = vadd.f32 0.0, %v2450
      %v2452 = vpop.f32.mrb[0].mxu0
      %2453 = vmatprep.mubr.bf16.mxu0 0
      %2454 = vmatmul.mubr.bf16.gmra.mrb[0].mxu0 %v2282
      %v2455 = vpop.f32.mrb[0].mxu0
      %v2456 = vadd.f32 0.0, %v2455
      %v2457 = vpop.f32.mrb[0].mxu0
      %v2458 = vpop.f32.mrb[0].mxu0
      %v2459 = vadd.f32 0.0, %v2458
      %v2460 = vpop.f32.mrb[0].mxu0
      %2461 = vmatprep.mubr.bf16.mxu0 0
      %2462 = vmatmul.mubr.bf16.gmra.mrb[0].mxu0 %v2283
      %v2463 = vpop.f32.mrb[0].mxu0
      %v2464 = vadd.f32 0.0, %v2463
      %v2465 = vpop.f32.mrb[0].mxu0
      %v2466 = vpop.f32.mrb[0].mxu0
      %v2467 = vadd.f32 0.0, %v2466
      %v2468 = vpop.f32.mrb[0].mxu0
      %2469 = vmatprep.mubr.bf16.mxu0 0
      %2470 = vmatmul.mubr.bf16.gmra.mrb[0].mxu0 %v2284
      %v2471 = vpop.f32.mrb[0].mxu0
      %v2472 = vadd.f32 0.0, %v2471
      %v2473 = vpop.f32.mrb[0].mxu0
      %v2474 = vpop.f32.mrb[0].mxu0
      %v2475 = vadd.f32 0.0, %v2474
      %v2476 = vpop.f32.mrb[0].mxu0
      %2477 = vmatprep.mubr.bf16.mxu0 0
      %2478 = vmatmul.mubr.bf16.gmra.mrb[0].mxu0 %v2285
      %v2479 = vpop.f32.mrb[0].mxu0
      %v2480 = vadd.f32 0.0, %v2479
      %v2481 = vpop.f32.mrb[0].mxu0
      %v2482 = vpop.f32.mrb[0].mxu0
      %v2483 = vadd.f32 0.0, %v2482
      %v2484 = vpop.f32.mrb[0].mxu0
      %2485 = vmatprep.mubr.bf16.mxu0 0
      %2486 = vmatmul.mubr.bf16.gmra.mrb[0].mxu0 %v2286
      %v2487 = vpop.f32.mrb[0].mxu0
      %v2488 = vadd.f32 0.0, %v2487
      %v2489 = vpop.f32.mrb[0].mxu0
      %v2490 = vpop.f32.mrb[0].mxu0
      %v2491 = vadd.f32 0.0, %v2490
      %v2492 = vpop.f32.mrb[0].mxu0
      %2493 = vmatprep.mubr.bf16.mxu0 0
      %2494 = vmatmul.mubr.bf16.gmra.mrb[0].mxu0 %v2287
      %v2495 = vpop.f32.mrb[0].mxu0
      %v2496 = vadd.f32 0.0, %v2495
      %v2497 = vpop.f32.mrb[0].mxu0
      %v2498 = vpop.f32.mrb[0].mxu0
      %v2499 = vadd.f32 0.0, %v2498
      %v2500 = vpop.f32.mrb[0].mxu0
      %2501 = vmatprep.mubr.bf16.mxu0 0
      %2502 = vmatmul.mubr.bf16.gmra.mrb[0].mxu0 %v2288
      %v2503 = vpop.f32.mrb[0].mxu0
      %v2504 = vadd.f32 0.0, %v2503
      %v2505 = vpop.f32.mrb[0].mxu0
      %v2506 = vpop.f32.mrb[0].mxu0
      %v2507 = vadd.f32 0.0, %v2506
      %v2508 = vpop.f32.mrb[0].mxu0
      %2509 = vmatprep.mubr.bf16.mxu0 0
      %2510 = vmatmul.mubr.bf16.gmra.mrb[0].mxu0 %v2289
      %v2511 = vpop.f32.mrb[0].mxu0
      %v2512 = vadd.f32 0.0, %v2511
      %v2513 = vpop.f32.mrb[0].mxu0
      %v2514 = vpop.f32.mrb[0].mxu0
      %v2515 = vadd.f32 0.0, %v2514
      %v2516 = vpop.f32.mrb[0].mxu0
      %2517 = vmatprep.mubr.bf16.mxu0 0
      %2518 = vmatmul.mubr.bf16.gmra.mrb[0].mxu0 %v2290
      %v2519 = vpop.f32.mrb[0].mxu0
      %v2520 = vadd.f32 0.0, %v2519
      %v2521 = vpop.f32.mrb[0].mxu0
      %v2522 = vpop.f32.mrb[0].mxu0
      %v2523 = vadd.f32 0.0, %v2522
      %v2524 = vpop.f32.mrb[0].mxu0
      %2525 = vmatprep.mubr.bf16.mxu0 0
      %2526 = vmatmul.mubr.bf16.gmra.mrb[0].mxu0 %v2291
      %v2527 = vpop.f32.mrb[0].mxu0
      %v2528 = vadd.f32 0.0, %v2527
      %v2529 = vpop.f32.mrb[0].mxu0
      %v2530 = vpop.f32.mrb[0].mxu0
      %v2531 = vadd.f32 0.0, %v2530
      %v2532 = vpop.f32.mrb[0].mxu0
      %2533 = vdwg.mxu0
      %v2534 = vadd.f32 %v2202, %v2392
      %v2535 = vadd.f32 %v2203, %v2395
      %v2536 = vadd.f32 %v2204, %v2400
      %v2537 = vadd.f32 %v2205, %v2403
      %v2538 = vadd.f32 %v2206, %v2408
      %v2539 = vadd.f32 %v2207, %v2411
      %v2540 = vadd.f32 %v2208, %v2416
      %v2541 = vadd.f32 %v2209, %v2419
      %v2542 = vadd.f32 %v2210, %v2424
      %v2543 = vadd.f32 %v2211, %v2427
      %v2544 = vadd.f32 %v2212, %v2432
      %v2545 = vadd.f32 %v2213, %v2435
      %v2546 = vadd.f32 %v2214, %v2440
      %v2547 = vadd.f32 %v2215, %v2443
      %v2548 = vadd.f32 %v2216, %v2448
      %v2549 = vadd.f32 %v2217, %v2451
      %v2550 = vadd.f32 %v2218, %v2456
      %v2551 = vadd.f32 %v2219, %v2459
      %v2552 = vadd.f32 %v2220, %v2464
      %v2553 = vadd.f32 %v2221, %v2467
      %v2554 = vadd.f32 %v2222, %v2472
      %v2555 = vadd.f32 %v2223, %v2475
      %v2556 = vadd.f32 %v2224, %v2480
      %v2557 = vadd.f32 %v2225, %v2483
      %v2558 = vadd.f32 %v2226, %v2488
      %v2559 = vadd.f32 %v2227, %v2491
      %v2560 = vadd.f32 %v2228, %v2496
      %v2561 = vadd.f32 %v2229, %v2499
      %v2562 = vadd.f32 %v2230, %v2504
      %v2563 = vadd.f32 %v2231, %v2507
      %v2564 = vadd.f32 %v2232, %v2512
      %v2565 = vadd.f32 %v2233, %v2515
      %v2566 = vadd.f32 %v2234, %v2520
      %v2567 = vadd.f32 %v2235, %v2523
      %v2568 = vadd.f32 %v2236, %v2528
      %v2569 = vadd.f32 %v2237, %v2531
      %v2570 = vld [vmem:[%s192 + $0x2a] sm:$0xff]
      %v2571 = vld [vmem:[%s192 + $0x32] sm:$0xff]
      %v2572 = vld [vmem:[%s192 + $0x3a] sm:$0xff]
      %v2573 = vld [vmem:[%s192 + $0x42] sm:$0xff]
      %v2574 = vld [vmem:[%s192 + $0x4a] sm:$0xff]
      %v2575 = vld [vmem:[%s192 + $0x52] sm:$0xff]
      %v2576 = vld [vmem:[%s192 + $0x5a] sm:$0xff]
      %v2577 = vld [vmem:[%s192 + $0x62] sm:$0xff]
      %v2578 = vld [vmem:[%s192 + $0x6a] sm:$0xff]
      %v2579 = vld [vmem:[%s192 + $0x72] sm:$0xff]
      %v2580 = vld [vmem:[%s192 + $0x7a] sm:$0xff]
      %v2581 = vld [vmem:[%s192 + $0x82] sm:$0xff]
      %v2582 = vld [vmem:[%s192 + $0x8a] sm:$0xff]
      %v2583 = vld [vmem:[%s192 + $0x92] sm:$0xff]
      %v2584 = vld [vmem:[%s192 + $0x9a] sm:$0xff]
      %v2585 = vld [vmem:[%s192 + $0xa2] sm:$0xff]
      %v2586 = vld [vmem:[%s192 + $0xaa] sm:$0xff]
      %v2587 = vld [vmem:[%s192 + $0xb2] sm:$0xff]
      %v2588 = vld [vmem:[%s192 + $0xba] sm:$0xff]
      %v2589 = vld [vmem:[%s192 + $0xc2] sm:$0xff]
      %v2590 = vld [vmem:[%s192 + $0xca] sm:$0xff]
      %v2591 = vld [vmem:[%s192 + $0xd2] sm:$0xff]
      %v2592 = vld [vmem:[%s192 + $0xda] sm:$0xff]
      %v2593 = vld [vmem:[%s192 + $0xe2] sm:$0xff]
      %v2594 = vld [vmem:[%s192 + $0xea] sm:$0xff]
      %v2595 = vld [vmem:[%s192 + $0xf2] sm:$0xff]
      %v2596 = vld [vmem:[%s192 + $0xfa] sm:$0xff]
      %v2597 = vld [vmem:[%s192 + $0x102] sm:$0xff]
      %v2598 = vld [vmem:[%s192 + $0x10a] sm:$0xff]
      %v2599 = vld [vmem:[%s192 + $0x112] sm:$0xff]
      %v2600 = vld [vmem:[%s192 + $0x11a] sm:$0xff]
      %v2601 = vld [vmem:[%s192 + $0x122] sm:$0xff]
      %v2602 = vld [vmem:[%s192 + $0x12a] sm:$0xff]
      %v2603 = vld [vmem:[%s192 + $0x132] sm:$0xff]
      %v2604 = vld [vmem:[%s192 + $0x13a] sm:$0xff]
      %v2605 = vld [vmem:[%s192 + $0x142] sm:$0xff]
      %v2606 = vpack.c.bf16 %v2571, %v2570
      %v2607 = vpack.c.bf16 %v2573, %v2572
      %v2608 = vpack.c.bf16 %v2575, %v2574
      %v2609 = vpack.c.bf16 %v2577, %v2576
      %v2610 = vpack.c.bf16 %v2579, %v2578
      %v2611 = vpack.c.bf16 %v2581, %v2580
      %v2612 = vpack.c.bf16 %v2583, %v2582
      %v2613 = vpack.c.bf16 %v2585, %v2584
      %v2614 = vpack.c.bf16 %v2587, %v2586
      %v2615 = vpack.c.bf16 %v2589, %v2588
      %v2616 = vpack.c.bf16 %v2591, %v2590
      %v2617 = vpack.c.bf16 %v2593, %v2592
      %v2618 = vpack.c.bf16 %v2595, %v2594
      %v2619 = vpack.c.bf16 %v2597, %v2596
      %v2620 = vpack.c.bf16 %v2599, %v2598
      %v2621 = vpack.c.bf16 %v2601, %v2600
      %v2622 = vpack.c.bf16 %v2603, %v2602
      %v2623 = vpack.c.bf16 %v2605, %v2604
      %s2624 = scalar_lea.vmem %s1, 448
      %v2625 = vld [vmem:[%s2624] sm:$0xf]
      %v2626 = vld [vmem:[%s2624 + $0x4] sm:$0xf]
      %v2627 = vld [vmem:[%s2624 + $0x8] sm:$0xf]
      %v2628 = vld [vmem:[%s2624 + $0xc] sm:$0xf]
      %v2629 = vld [vmem:[%s2624 + $0x10] sm:$0xf]
      %v2630 = vld [vmem:[%s2624 + $0x14] sm:$0xf]
      %v2631 = vld [vmem:[%s2624 + $0x18] sm:$0xf]
      %v2632 = vld [vmem:[%s2624 + $0x1c] sm:$0xf]
      %v2633 = vld [vmem:[%s2624 + $0x20] sm:$0xf]
      %v2634 = vld [vmem:[%s2624 + $0x24] sm:$0xf]
      %v2635 = vld [vmem:[%s2624 + $0x28] sm:$0xf]
      %v2636 = vld [vmem:[%s2624 + $0x2c] sm:$0xf]
      %v2637 = vld [vmem:[%s2624 + $0x30] sm:$0xf]
      %v2638 = vld [vmem:[%s2624 + $0x34] sm:$0xf]
      %v2639 = vld [vmem:[%s2624 + $0x38] sm:$0xf]
      %v2640 = vld [vmem:[%s2624 + $0x3c] sm:$0xf]
      %v2657 = vunpack.c.l.b16 %v2625
      %v2658 = vunpack.c.l.b16 %v2626
      %v2659 = vunpack.c.l.b16 %v2627
      %v2660 = vunpack.c.l.b16 %v2628
      %v2661 = vunpack.c.l.b16 %v2629
      %v2662 = vunpack.c.l.b16 %v2630
      %v2663 = vunpack.c.l.b16 %v2631
      %v2664 = vunpack.c.l.b16 %v2632
      %v2665 = vunpack.c.l.b16 %v2633
      %v2666 = vunpack.c.l.b16 %v2634
      %v2667 = vunpack.c.l.b16 %v2635
      %v2668 = vunpack.c.l.b16 %v2636
      %v2669 = vunpack.c.l.b16 %v2637
      %v2670 = vunpack.c.l.b16 %v2638
      %v2671 = vunpack.c.l.b16 %v2639
      %v2672 = vunpack.c.l.b16 %v2640
      %v2673 = vpack.c.b16 %v2658, %v2657
      %v2674 = vpack.c.b16 %v2660, %v2659
      %v2675 = vpack.c.b16 %v2662, %v2661
      %v2676 = vpack.c.b16 %v2664, %v2663
      %v2677 = vpack.c.b16 %v2666, %v2665
      %v2678 = vpack.c.b16 %v2668, %v2667
      %v2679 = vpack.c.b16 %v2670, %v2669
      %v2680 = vpack.c.b16 %v2672, %v2671
      %2689 = vmatprep.subr.bf16.mxu0 0
      %2690 = vmatpush1.bf16.msra.mxu0 %v2673
      %2691 = vmatprep.subr.bf16.mxu0 0
      %2692 = vmatpush1.bf16.msra.mxu0 %v2674
      %2693 = vmatprep.subr.bf16.mxu0 0
      %2694 = vmatpush1.bf16.msra.mxu0 %v2675
      %2695 = vmatprep.subr.bf16.mxu0 0
      %2696 = vmatpush1.bf16.msra.mxu0 %v2676
      %2697 = vmatprep.subr.bf16.mxu0 0
      %2698 = vmatpush1.bf16.msra.mxu0 %v2677
      %2699 = vmatprep.subr.bf16.mxu0 0
      %2700 = vmatpush1.bf16.msra.mxu0 %v2678
      %2701 = vmatprep.subr.bf16.mxu0 0
      %2702 = vmatpush1.bf16.msra.mxu0 %v2679
      %2703 = vmatprep.subr.bf16.mxu0 0
      %2704 = vmatpush1.bf16.msra.mxu0 %v2680
      %2705 = vmatprep.subr.bf16.mxu0 0
      %2706 = vmatpush1.bf16.msra.mxu0 0
      %2707 = vmatprep.subr.bf16.mxu0 0
      %2708 = vmatpush1.bf16.msra.mxu0 0
      %2709 = vmatprep.subr.bf16.mxu0 0
      %2710 = vmatpush1.bf16.msra.mxu0 0
      %2711 = vmatprep.subr.bf16.mxu0 0
      %2712 = vmatpush1.bf16.msra.mxu0 0
      %2713 = vmatprep.subr.bf16.mxu0 0
      %2714 = vmatpush1.bf16.msra.mxu0 0
      %2715 = vmatprep.subr.bf16.mxu0 0
      %2716 = vmatpush1.bf16.msra.mxu0 0
      %2717 = vmatprep.subr.bf16.mxu0 0
      %2718 = vmatpush1.bf16.msra.mxu0 0
      %2719 = vmatprep.subr.bf16.mxu0 0
      %2720 = vmatpush1.bf16.msra.mxu0 0
      %2721 = vmatprep.mubr.bf16.mxu0 0
      %2722 = vmatmul.mubr.bf16.gmra.mrb[0].mxu0 %v2606
      %v2723 = vpop.f32.mrb[0].mxu0
      %v2724 = vadd.f32 0.0, %v2723
      %v2725 = vpop.f32.mrb[0].mxu0
      %v2726 = vpop.f32.mrb[0].mxu0
      %v2727 = vadd.f32 0.0, %v2726
      %v2728 = vpop.f32.mrb[0].mxu0
      %2729 = vmatprep.mubr.bf16.mxu0 0
      %2730 = vmatmul.mubr.bf16.gmra.mrb[0].mxu0 %v2607
      %v2731 = vpop.f32.mrb[0].mxu0
      %v2732 = vadd.f32 0.0, %v2731
      %v2733 = vpop.f32.mrb[0].mxu0
      %v2734 = vpop.f32.mrb[0].mxu0
      %v2735 = vadd.f32 0.0, %v2734
      %v2736 = vpop.f32.mrb[0].mxu0
      %2737 = vmatprep.mubr.bf16.mxu0 0
      %2738 = vmatmul.mubr.bf16.gmra.mrb[0].mxu0 %v2608
      %v2739 = vpop.f32.mrb[0].mxu0
      %v2740 = vadd.f32 0.0, %v2739
      %v2741 = vpop.f32.mrb[0].mxu0
      %v2742 = vpop.f32.mrb[0].mxu0
      %v2743 = vadd.f32 0.0, %v2742
      %v2744 = vpop.f32.mrb[0].mxu0
      %2745 = vmatprep.mubr.bf16.mxu0 0
      %2746 = vmatmul.mubr.bf16.gmra.mrb[0].mxu0 %v2609
      %v2747 = vpop.f32.mrb[0].mxu0
      %v2748 = vadd.f32 0.0, %v2747
      %v2749 = vpop.f32.mrb[0].mxu0
      %v2750 = vpop.f32.mrb[0].mxu0
      %v2751 = vadd.f32 0.0, %v2750
      %v2752 = vpop.f32.mrb[0].mxu0
      %2753 = vmatprep.mubr.bf16.mxu0 0
      %2754 = vmatmul.mubr.bf16.gmra.mrb[0].mxu0 %v2610
      %v2755 = vpop.f32.mrb[0].mxu0
      %v2756 = vadd.f32 0.0, %v2755
      %v2757 = vpop.f32.mrb[0].mxu0
      %v2758 = vpop.f32.mrb[0].mxu0
      %v2759 = vadd.f32 0.0, %v2758
      %v2760 = vpop.f32.mrb[0].mxu0
      %2761 = vmatprep.mubr.bf16.mxu0 0
      %2762 = vmatmul.mubr.bf16.gmra.mrb[0].mxu0 %v2611
      %v2763 = vpop.f32.mrb[0].mxu0
      %v2764 = vadd.f32 0.0, %v2763
      %v2765 = vpop.f32.mrb[0].mxu0
      %v2766 = vpop.f32.mrb[0].mxu0
      %v2767 = vadd.f32 0.0, %v2766
      %v2768 = vpop.f32.mrb[0].mxu0
      %2769 = vmatprep.mubr.bf16.mxu0 0
      %2770 = vmatmul.mubr.bf16.gmra.mrb[0].mxu0 %v2612
      %v2771 = vpop.f32.mrb[0].mxu0
      %v2772 = vadd.f32 0.0, %v2771
      %v2773 = vpop.f32.mrb[0].mxu0
      %v2774 = vpop.f32.mrb[0].mxu0
      %v2775 = vadd.f32 0.0, %v2774
      %v2776 = vpop.f32.mrb[0].mxu0
      %2777 = vmatprep.mubr.bf16.mxu0 0
      %2778 = vmatmul.mubr.bf16.gmra.mrb[0].mxu0 %v2613
      %v2779 = vpop.f32.mrb[0].mxu0
      %v2780 = vadd.f32 0.0, %v2779
      %v2781 = vpop.f32.mrb[0].mxu0
      %v2782 = vpop.f32.mrb[0].mxu0
      %v2783 = vadd.f32 0.0, %v2782
      %v2784 = vpop.f32.mrb[0].mxu0
      %2785 = vmatprep.mubr.bf16.mxu0 0
      %2786 = vmatmul.mubr.bf16.gmra.mrb[0].mxu0 %v2614
      %v2787 = vpop.f32.mrb[0].mxu0
      %v2788 = vadd.f32 0.0, %v2787
      %v2789 = vpop.f32.mrb[0].mxu0
      %v2790 = vpop.f32.mrb[0].mxu0
      %v2791 = vadd.f32 0.0, %v2790
      %v2792 = vpop.f32.mrb[0].mxu0
      %2793 = vmatprep.mubr.bf16.mxu0 0
      %2794 = vmatmul.mubr.bf16.gmra.mrb[0].mxu0 %v2615
      %v2795 = vpop.f32.mrb[0].mxu0
      %v2796 = vadd.f32 0.0, %v2795
      %v2797 = vpop.f32.mrb[0].mxu0
      %v2798 = vpop.f32.mrb[0].mxu0
      %v2799 = vadd.f32 0.0, %v2798
      %v2800 = vpop.f32.mrb[0].mxu0
      %2801 = vmatprep.mubr.bf16.mxu0 0
      %2802 = vmatmul.mubr.bf16.gmra.mrb[0].mxu0 %v2616
      %v2803 = vpop.f32.mrb[0].mxu0
      %v2804 = vadd.f32 0.0, %v2803
      %v2805 = vpop.f32.mrb[0].mxu0
      %v2806 = vpop.f32.mrb[0].mxu0
      %v2807 = vadd.f32 0.0, %v2806
      %v2808 = vpop.f32.mrb[0].mxu0
      %2809 = vmatprep.mubr.bf16.mxu0 0
      %2810 = vmatmul.mubr.bf16.gmra.mrb[0].mxu0 %v2617
      %v2811 = vpop.f32.mrb[0].mxu0
      %v2812 = vadd.f32 0.0, %v2811
      %v2813 = vpop.f32.mrb[0].mxu0
      %v2814 = vpop.f32.mrb[0].mxu0
      %v2815 = vadd.f32 0.0, %v2814
      %v2816 = vpop.f32.mrb[0].mxu0
      %2817 = vmatprep.mubr.bf16.mxu0 0
      %2818 = vmatmul.mubr.bf16.gmra.mrb[0].mxu0 %v2618
      %v2819 = vpop.f32.mrb[0].mxu0
      %v2820 = vadd.f32 0.0, %v2819
      %v2821 = vpop.f32.mrb[0].mxu0
      %v2822 = vpop.f32.mrb[0].mxu0
      %v2823 = vadd.f32 0.0, %v2822
      %v2824 = vpop.f32.mrb[0].mxu0
      %2825 = vmatprep.mubr.bf16.mxu0 0
      %2826 = vmatmul.mubr.bf16.gmra.mrb[0].mxu0 %v2619
      %v2827 = vpop.f32.mrb[0].mxu0
      %v2828 = vadd.f32 0.0, %v2827
      %v2829 = vpop.f32.mrb[0].mxu0
      %v2830 = vpop.f32.mrb[0].mxu0
      %v2831 = vadd.f32 0.0, %v2830
      %v2832 = vpop.f32.mrb[0].mxu0
      %2833 = vmatprep.mubr.bf16.mxu0 0
      %2834 = vmatmul.mubr.bf16.gmra.mrb[0].mxu0 %v2620
      %v2835 = vpop.f32.mrb[0].mxu0
      %v2836 = vadd.f32 0.0, %v2835
      %v2837 = vpop.f32.mrb[0].mxu0
      %v2838 = vpop.f32.mrb[0].mxu0
      %v2839 = vadd.f32 0.0, %v2838
      %v2840 = vpop.f32.mrb[0].mxu0
      %2841 = vmatprep.mubr.bf16.mxu0 0
      %2842 = vmatmul.mubr.bf16.gmra.mrb[0].mxu0 %v2621
      %v2843 = vpop.f32.mrb[0].mxu0
      %v2844 = vadd.f32 0.0, %v2843
      %v2845 = vpop.f32.mrb[0].mxu0
      %v2846 = vpop.f32.mrb[0].mxu0
      %v2847 = vadd.f32 0.0, %v2846
      %v2848 = vpop.f32.mrb[0].mxu0
      %2849 = vmatprep.mubr.bf16.mxu0 0
      %2850 = vmatmul.mubr.bf16.gmra.mrb[0].mxu0 %v2622
      %v2851 = vpop.f32.mrb[0].mxu0
      %v2852 = vadd.f32 0.0, %v2851
      %v2853 = vpop.f32.mrb[0].mxu0
      %v2854 = vpop.f32.mrb[0].mxu0
      %v2855 = vadd.f32 0.0, %v2854
      %v2856 = vpop.f32.mrb[0].mxu0
      %2857 = vmatprep.mubr.bf16.mxu0 0
      %2858 = vmatmul.mubr.bf16.gmra.mrb[0].mxu0 %v2623
      %v2859 = vpop.f32.mrb[0].mxu0
      %v2860 = vadd.f32 0.0, %v2859
      %v2861 = vpop.f32.mrb[0].mxu0
      %v2862 = vpop.f32.mrb[0].mxu0
      %v2863 = vadd.f32 0.0, %v2862
      %v2864 = vpop.f32.mrb[0].mxu0
      %2865 = vdwg.mxu0
      %v2866 = vadd.f32 %v2534, %v2724
      %v2867 = vadd.f32 %v2535, %v2727
      %v2868 = vadd.f32 %v2536, %v2732
      %v2869 = vadd.f32 %v2537, %v2735
      %v2870 = vadd.f32 %v2538, %v2740
      %v2871 = vadd.f32 %v2539, %v2743
      %v2872 = vadd.f32 %v2540, %v2748
      %v2873 = vadd.f32 %v2541, %v2751
      %v2874 = vadd.f32 %v2542, %v2756
      %v2875 = vadd.f32 %v2543, %v2759
      %v2876 = vadd.f32 %v2544, %v2764
      %v2877 = vadd.f32 %v2545, %v2767
      %v2878 = vadd.f32 %v2546, %v2772
      %v2879 = vadd.f32 %v2547, %v2775
      %v2880 = vadd.f32 %v2548, %v2780
      %v2881 = vadd.f32 %v2549, %v2783
      %v2882 = vadd.f32 %v2550, %v2788
      %v2883 = vadd.f32 %v2551, %v2791
      %v2884 = vadd.f32 %v2552, %v2796
      %v2885 = vadd.f32 %v2553, %v2799
      %v2886 = vadd.f32 %v2554, %v2804
      %v2887 = vadd.f32 %v2555, %v2807
      %v2888 = vadd.f32 %v2556, %v2812
      %v2889 = vadd.f32 %v2557, %v2815
      %v2890 = vadd.f32 %v2558, %v2820
      %v2891 = vadd.f32 %v2559, %v2823
      %v2892 = vadd.f32 %v2560, %v2828
      %v2893 = vadd.f32 %v2561, %v2831
      %v2894 = vadd.f32 %v2562, %v2836
      %v2895 = vadd.f32 %v2563, %v2839
      %v2896 = vadd.f32 %v2564, %v2844
      %v2897 = vadd.f32 %v2565, %v2847
      %v2898 = vadd.f32 %v2566, %v2852
      %v2899 = vadd.f32 %v2567, %v2855
      %v2900 = vadd.f32 %v2568, %v2860
      %v2901 = vadd.f32 %v2569, %v2863
      %v2902 = vld [vmem:[%s192 + $0x2b] sm:$0xff]
      %v2903 = vld [vmem:[%s192 + $0x33] sm:$0xff]
      %v2904 = vld [vmem:[%s192 + $0x3b] sm:$0xff]
      %v2905 = vld [vmem:[%s192 + $0x43] sm:$0xff]
      %v2906 = vld [vmem:[%s192 + $0x4b] sm:$0xff]
      %v2907 = vld [vmem:[%s192 + $0x53] sm:$0xff]
      %v2908 = vld [vmem:[%s192 + $0x5b] sm:$0xff]
      %v2909 = vld [vmem:[%s192 + $0x63] sm:$0xff]
      %v2910 = vld [vmem:[%s192 + $0x6b] sm:$0xff]
      %v2911 = vld [vmem:[%s192 + $0x73] sm:$0xff]
      %v2912 = vld [vmem:[%s192 + $0x7b] sm:$0xff]
      %v2913 = vld [vmem:[%s192 + $0x83] sm:$0xff]
      %v2914 = vld [vmem:[%s192 + $0x8b] sm:$0xff]
      %v2915 = vld [vmem:[%s192 + $0x93] sm:$0xff]
      %v2916 = vld [vmem:[%s192 + $0x9b] sm:$0xff]
      %v2917 = vld [vmem:[%s192 + $0xa3] sm:$0xff]
      %v2918 = vld [vmem:[%s192 + $0xab] sm:$0xff]
      %v2919 = vld [vmem:[%s192 + $0xb3] sm:$0xff]
      %v2920 = vld [vmem:[%s192 + $0xbb] sm:$0xff]
      %v2921 = vld [vmem:[%s192 + $0xc3] sm:$0xff]
      %v2922 = vld [vmem:[%s192 + $0xcb] sm:$0xff]
      %v2923 = vld [vmem:[%s192 + $0xd3] sm:$0xff]
      %v2924 = vld [vmem:[%s192 + $0xdb] sm:$0xff]
      %v2925 = vld [vmem:[%s192 + $0xe3] sm:$0xff]
      %v2926 = vld [vmem:[%s192 + $0xeb] sm:$0xff]
      %v2927 = vld [vmem:[%s192 + $0xf3] sm:$0xff]
      %v2928 = vld [vmem:[%s192 + $0xfb] sm:$0xff]
      %v2929 = vld [vmem:[%s192 + $0x103] sm:$0xff]
      %v2930 = vld [vmem:[%s192 + $0x10b] sm:$0xff]
      %v2931 = vld [vmem:[%s192 + $0x113] sm:$0xff]
      %v2932 = vld [vmem:[%s192 + $0x11b] sm:$0xff]
      %v2933 = vld [vmem:[%s192 + $0x123] sm:$0xff]
      %v2934 = vld [vmem:[%s192 + $0x12b] sm:$0xff]
      %v2935 = vld [vmem:[%s192 + $0x133] sm:$0xff]
      %v2936 = vld [vmem:[%s192 + $0x13b] sm:$0xff]
      %v2937 = vld [vmem:[%s192 + $0x143] sm:$0xff]
      %v2938 = vpack.c.bf16 %v2903, %v2902
      %v2939 = vpack.c.bf16 %v2905, %v2904
      %v2940 = vpack.c.bf16 %v2907, %v2906
      %v2941 = vpack.c.bf16 %v2909, %v2908
      %v2942 = vpack.c.bf16 %v2911, %v2910
      %v2943 = vpack.c.bf16 %v2913, %v2912
      %v2944 = vpack.c.bf16 %v2915, %v2914
      %v2945 = vpack.c.bf16 %v2917, %v2916
      %v2946 = vpack.c.bf16 %v2919, %v2918
      %v2947 = vpack.c.bf16 %v2921, %v2920
      %v2948 = vpack.c.bf16 %v2923, %v2922
      %v2949 = vpack.c.bf16 %v2925, %v2924
      %v2950 = vpack.c.bf16 %v2927, %v2926
      %v2951 = vpack.c.bf16 %v2929, %v2928
      %v2952 = vpack.c.bf16 %v2931, %v2930
      %v2953 = vpack.c.bf16 %v2933, %v2932
      %v2954 = vpack.c.bf16 %v2935, %v2934
      %v2955 = vpack.c.bf16 %v2937, %v2936
      %s2956 = scalar_lea.vmem %s1, 512
      %v2957 = vld [vmem:[%s2956] sm:$0xf]
      %v2958 = vld [vmem:[%s2956 + $0x4] sm:$0xf]
      %v2959 = vld [vmem:[%s2956 + $0x8] sm:$0xf]
      %v2960 = vld [vmem:[%s2956 + $0xc] sm:$0xf]
      %v2961 = vld [vmem:[%s2956 + $0x10] sm:$0xf]
      %v2962 = vld [vmem:[%s2956 + $0x14] sm:$0xf]
      %v2963 = vld [vmem:[%s2956 + $0x18] sm:$0xf]
      %v2964 = vld [vmem:[%s2956 + $0x1c] sm:$0xf]
      %v2965 = vld [vmem:[%s2956 + $0x20] sm:$0xf]
      %v2966 = vld [vmem:[%s2956 + $0x24] sm:$0xf]
      %v2967 = vld [vmem:[%s2956 + $0x28] sm:$0xf]
      %v2968 = vld [vmem:[%s2956 + $0x2c] sm:$0xf]
      %v2969 = vld [vmem:[%s2956 + $0x30] sm:$0xf]
      %v2970 = vld [vmem:[%s2956 + $0x34] sm:$0xf]
      %v2971 = vld [vmem:[%s2956 + $0x38] sm:$0xf]
      %v2972 = vld [vmem:[%s2956 + $0x3c] sm:$0xf]
      %v2989 = vunpack.c.l.b16 %v2957
      %v2990 = vunpack.c.l.b16 %v2958
      %v2991 = vunpack.c.l.b16 %v2959
      %v2992 = vunpack.c.l.b16 %v2960
      %v2993 = vunpack.c.l.b16 %v2961
      %v2994 = vunpack.c.l.b16 %v2962
      %v2995 = vunpack.c.l.b16 %v2963
      %v2996 = vunpack.c.l.b16 %v2964
      %v2997 = vunpack.c.l.b16 %v2965
      %v2998 = vunpack.c.l.b16 %v2966
      %v2999 = vunpack.c.l.b16 %v2967
      %v3000 = vunpack.c.l.b16 %v2968
      %v3001 = vunpack.c.l.b16 %v2969
      %v3002 = vunpack.c.l.b16 %v2970
      %v3003 = vunpack.c.l.b16 %v2971
      %v3004 = vunpack.c.l.b16 %v2972
      %v3005 = vpack.c.b16 %v2990, %v2989
      %v3006 = vpack.c.b16 %v2992, %v2991
      %v3007 = vpack.c.b16 %v2994, %v2993
      %v3008 = vpack.c.b16 %v2996, %v2995
      %v3009 = vpack.c.b16 %v2998, %v2997
      %v3010 = vpack.c.b16 %v3000, %v2999
      %v3011 = vpack.c.b16 %v3002, %v3001
      %v3012 = vpack.c.b16 %v3004, %v3003
      %3021 = vmatprep.subr.bf16.mxu0 0
      %3022 = vmatpush1.bf16.msra.mxu0 %v3005
      %3023 = vmatprep.subr.bf16.mxu0 0
      %3024 = vmatpush1.bf16.msra.mxu0 %v3006
      %3025 = vmatprep.subr.bf16.mxu0 0
      %3026 = vmatpush1.bf16.msra.mxu0 %v3007
      %3027 = vmatprep.subr.bf16.mxu0 0
      %3028 = vmatpush1.bf16.msra.mxu0 %v3008
      %3029 = vmatprep.subr.bf16.mxu0 0
      %3030 = vmatpush1.bf16.msra.mxu0 %v3009
      %3031 = vmatprep.subr.bf16.mxu0 0
      %3032 = vmatpush1.bf16.msra.mxu0 %v3010
      %3033 = vmatprep.subr.bf16.mxu0 0
      %3034 = vmatpush1.bf16.msra.mxu0 %v3011
      %3035 = vmatprep.subr.bf16.mxu0 0
      %3036 = vmatpush1.bf16.msra.mxu0 %v3012
      %3037 = vmatprep.subr.bf16.mxu0 0
      %3038 = vmatpush1.bf16.msra.mxu0 0
      %3039 = vmatprep.subr.bf16.mxu0 0
      %3040 = vmatpush1.bf16.msra.mxu0 0
      %3041 = vmatprep.subr.bf16.mxu0 0
      %3042 = vmatpush1.bf16.msra.mxu0 0
      %3043 = vmatprep.subr.bf16.mxu0 0
      %3044 = vmatpush1.bf16.msra.mxu0 0
      %3045 = vmatprep.subr.bf16.mxu0 0
      %3046 = vmatpush1.bf16.msra.mxu0 0
      %3047 = vmatprep.subr.bf16.mxu0 0
      %3048 = vmatpush1.bf16.msra.mxu0 0
      %3049 = vmatprep.subr.bf16.mxu0 0
      %3050 = vmatpush1.bf16.msra.mxu0 0
      %3051 = vmatprep.subr.bf16.mxu0 0
      %3052 = vmatpush1.bf16.msra.mxu0 0
      %3053 = vmatprep.mubr.bf16.mxu0 0
      %3054 = vmatmul.mubr.bf16.gmra.mrb[0].mxu0 %v2938
      %v3055 = vpop.f32.mrb[0].mxu0
      %v3056 = vadd.f32 0.0, %v3055
      %v3057 = vpop.f32.mrb[0].mxu0
      %v3058 = vpop.f32.mrb[0].mxu0
      %v3059 = vadd.f32 0.0, %v3058
      %v3060 = vpop.f32.mrb[0].mxu0
      %3061 = vmatprep.mubr.bf16.mxu0 0
      %3062 = vmatmul.mubr.bf16.gmra.mrb[0].mxu0 %v2939
      %v3063 = vpop.f32.mrb[0].mxu0
      %v3064 = vadd.f32 0.0, %v3063
      %v3065 = vpop.f32.mrb[0].mxu0
      %v3066 = vpop.f32.mrb[0].mxu0
      %v3067 = vadd.f32 0.0, %v3066
      %v3068 = vpop.f32.mrb[0].mxu0
      %3069 = vmatprep.mubr.bf16.mxu0 0
      %3070 = vmatmul.mubr.bf16.gmra.mrb[0].mxu0 %v2940
      %v3071 = vpop.f32.mrb[0].mxu0
      %v3072 = vadd.f32 0.0, %v3071
      %v3073 = vpop.f32.mrb[0].mxu0
      %v3074 = vpop.f32.mrb[0].mxu0
      %v3075 = vadd.f32 0.0, %v3074
      %v3076 = vpop.f32.mrb[0].mxu0
      %3077 = vmatprep.mubr.bf16.mxu0 0
      %3078 = vmatmul.mubr.bf16.gmra.mrb[0].mxu0 %v2941
      %v3079 = vpop.f32.mrb[0].mxu0
      %v3080 = vadd.f32 0.0, %v3079
      %v3081 = vpop.f32.mrb[0].mxu0
      %v3082 = vpop.f32.mrb[0].mxu0
      %v3083 = vadd.f32 0.0, %v3082
      %v3084 = vpop.f32.mrb[0].mxu0
      %3085 = vmatprep.mubr.bf16.mxu0 0
      %3086 = vmatmul.mubr.bf16.gmra.mrb[0].mxu0 %v2942
      %v3087 = vpop.f32.mrb[0].mxu0
      %v3088 = vadd.f32 0.0, %v3087
      %v3089 = vpop.f32.mrb[0].mxu0
      %v3090 = vpop.f32.mrb[0].mxu0
      %v3091 = vadd.f32 0.0, %v3090
      %v3092 = vpop.f32.mrb[0].mxu0
      %3093 = vmatprep.mubr.bf16.mxu0 0
      %3094 = vmatmul.mubr.bf16.gmra.mrb[0].mxu0 %v2943
      %v3095 = vpop.f32.mrb[0].mxu0
      %v3096 = vadd.f32 0.0, %v3095
      %v3097 = vpop.f32.mrb[0].mxu0
      %v3098 = vpop.f32.mrb[0].mxu0
      %v3099 = vadd.f32 0.0, %v3098
      %v3100 = vpop.f32.mrb[0].mxu0
      %3101 = vmatprep.mubr.bf16.mxu0 0
      %3102 = vmatmul.mubr.bf16.gmra.mrb[0].mxu0 %v2944
      %v3103 = vpop.f32.mrb[0].mxu0
      %v3104 = vadd.f32 0.0, %v3103
      %v3105 = vpop.f32.mrb[0].mxu0
      %v3106 = vpop.f32.mrb[0].mxu0
      %v3107 = vadd.f32 0.0, %v3106
      %v3108 = vpop.f32.mrb[0].mxu0
      %3109 = vmatprep.mubr.bf16.mxu0 0
      %3110 = vmatmul.mubr.bf16.gmra.mrb[0].mxu0 %v2945
      %v3111 = vpop.f32.mrb[0].mxu0
      %v3112 = vadd.f32 0.0, %v3111
      %v3113 = vpop.f32.mrb[0].mxu0
      %v3114 = vpop.f32.mrb[0].mxu0
      %v3115 = vadd.f32 0.0, %v3114
      %v3116 = vpop.f32.mrb[0].mxu0
      %3117 = vmatprep.mubr.bf16.mxu0 0
      %3118 = vmatmul.mubr.bf16.gmra.mrb[0].mxu0 %v2946
      %v3119 = vpop.f32.mrb[0].mxu0
      %v3120 = vadd.f32 0.0, %v3119
      %v3121 = vpop.f32.mrb[0].mxu0
      %v3122 = vpop.f32.mrb[0].mxu0
      %v3123 = vadd.f32 0.0, %v3122
      %v3124 = vpop.f32.mrb[0].mxu0
      %3125 = vmatprep.mubr.bf16.mxu0 0
      %3126 = vmatmul.mubr.bf16.gmra.mrb[0].mxu0 %v2947
      %v3127 = vpop.f32.mrb[0].mxu0
      %v3128 = vadd.f32 0.0, %v3127
      %v3129 = vpop.f32.mrb[0].mxu0
      %v3130 = vpop.f32.mrb[0].mxu0
      %v3131 = vadd.f32 0.0, %v3130
      %v3132 = vpop.f32.mrb[0].mxu0
      %3133 = vmatprep.mubr.bf16.mxu0 0
      %3134 = vmatmul.mubr.bf16.gmra.mrb[0].mxu0 %v2948
      %v3135 = vpop.f32.mrb[0].mxu0
      %v3136 = vadd.f32 0.0, %v3135
      %v3137 = vpop.f32.mrb[0].mxu0
      %v3138 = vpop.f32.mrb[0].mxu0
      %v3139 = vadd.f32 0.0, %v3138
      %v3140 = vpop.f32.mrb[0].mxu0
      %3141 = vmatprep.mubr.bf16.mxu0 0
      %3142 = vmatmul.mubr.bf16.gmra.mrb[0].mxu0 %v2949
      %v3143 = vpop.f32.mrb[0].mxu0
      %v3144 = vadd.f32 0.0, %v3143
      %v3145 = vpop.f32.mrb[0].mxu0
      %v3146 = vpop.f32.mrb[0].mxu0
      %v3147 = vadd.f32 0.0, %v3146
      %v3148 = vpop.f32.mrb[0].mxu0
      %3149 = vmatprep.mubr.bf16.mxu0 0
      %3150 = vmatmul.mubr.bf16.gmra.mrb[0].mxu0 %v2950
      %v3151 = vpop.f32.mrb[0].mxu0
      %v3152 = vadd.f32 0.0, %v3151
      %v3153 = vpop.f32.mrb[0].mxu0
      %v3154 = vpop.f32.mrb[0].mxu0
      %v3155 = vadd.f32 0.0, %v3154
      %v3156 = vpop.f32.mrb[0].mxu0
      %3157 = vmatprep.mubr.bf16.mxu0 0
      %3158 = vmatmul.mubr.bf16.gmra.mrb[0].mxu0 %v2951
      %v3159 = vpop.f32.mrb[0].mxu0
      %v3160 = vadd.f32 0.0, %v3159
      %v3161 = vpop.f32.mrb[0].mxu0
      %v3162 = vpop.f32.mrb[0].mxu0
      %v3163 = vadd.f32 0.0, %v3162
      %v3164 = vpop.f32.mrb[0].mxu0
      %3165 = vmatprep.mubr.bf16.mxu0 0
      %3166 = vmatmul.mubr.bf16.gmra.mrb[0].mxu0 %v2952
      %v3167 = vpop.f32.mrb[0].mxu0
      %v3168 = vadd.f32 0.0, %v3167
      %v3169 = vpop.f32.mrb[0].mxu0
      %v3170 = vpop.f32.mrb[0].mxu0
      %v3171 = vadd.f32 0.0, %v3170
      %v3172 = vpop.f32.mrb[0].mxu0
      %3173 = vmatprep.mubr.bf16.mxu0 0
      %3174 = vmatmul.mubr.bf16.gmra.mrb[0].mxu0 %v2953
      %v3175 = vpop.f32.mrb[0].mxu0
      %v3176 = vadd.f32 0.0, %v3175
      %v3177 = vpop.f32.mrb[0].mxu0
      %v3178 = vpop.f32.mrb[0].mxu0
      %v3179 = vadd.f32 0.0, %v3178
      %v3180 = vpop.f32.mrb[0].mxu0
      %3181 = vmatprep.mubr.bf16.mxu0 0
      %3182 = vmatmul.mubr.bf16.gmra.mrb[0].mxu0 %v2954
      %v3183 = vpop.f32.mrb[0].mxu0
      %v3184 = vadd.f32 0.0, %v3183
      %v3185 = vpop.f32.mrb[0].mxu0
      %v3186 = vpop.f32.mrb[0].mxu0
      %v3187 = vadd.f32 0.0, %v3186
      %v3188 = vpop.f32.mrb[0].mxu0
      %3189 = vmatprep.mubr.bf16.mxu0 0
      %3190 = vmatmul.mubr.bf16.gmra.mrb[0].mxu0 %v2955
      %v3191 = vpop.f32.mrb[0].mxu0
      %v3192 = vadd.f32 0.0, %v3191
      %v3193 = vpop.f32.mrb[0].mxu0
      %v3194 = vpop.f32.mrb[0].mxu0
      %v3195 = vadd.f32 0.0, %v3194
      %v3196 = vpop.f32.mrb[0].mxu0
      %3197 = vdwg.mxu0
      %v3198 = vadd.f32 %v2866, %v3056
      %v3199 = vadd.f32 %v2867, %v3059
      %v3200 = vadd.f32 %v2868, %v3064
      %v3201 = vadd.f32 %v2869, %v3067
      %v3202 = vadd.f32 %v2870, %v3072
      %v3203 = vadd.f32 %v2871, %v3075
      %v3204 = vadd.f32 %v2872, %v3080
      %v3205 = vadd.f32 %v2873, %v3083
      %v3206 = vadd.f32 %v2874, %v3088
      %v3207 = vadd.f32 %v2875, %v3091
      %v3208 = vadd.f32 %v2876, %v3096
      %v3209 = vadd.f32 %v2877, %v3099
      %v3210 = vadd.f32 %v2878, %v3104
      %v3211 = vadd.f32 %v2879, %v3107
      %v3212 = vadd.f32 %v2880, %v3112
      %v3213 = vadd.f32 %v2881, %v3115
      %v3214 = vadd.f32 %v2882, %v3120
      %v3215 = vadd.f32 %v2883, %v3123
      %v3216 = vadd.f32 %v2884, %v3128
      %v3217 = vadd.f32 %v2885, %v3131
      %v3218 = vadd.f32 %v2886, %v3136
      %v3219 = vadd.f32 %v2887, %v3139
      %v3220 = vadd.f32 %v2888, %v3144
      %v3221 = vadd.f32 %v2889, %v3147
      %v3222 = vadd.f32 %v2890, %v3152
      %v3223 = vadd.f32 %v2891, %v3155
      %v3224 = vadd.f32 %v2892, %v3160
      %v3225 = vadd.f32 %v2893, %v3163
      %v3226 = vadd.f32 %v2894, %v3168
      %v3227 = vadd.f32 %v2895, %v3171
      %v3228 = vadd.f32 %v2896, %v3176
      %v3229 = vadd.f32 %v2897, %v3179
      %v3230 = vadd.f32 %v2898, %v3184
      %v3231 = vadd.f32 %v2899, %v3187
      %v3232 = vadd.f32 %v2900, %v3192
      %v3233 = vadd.f32 %v2901, %v3195
      %v3234 = vld [vmem:[%s2] sm:$0x1]
      %v3236 = vlaneseq
      %v3237 = vshrl.u32 %v3236, 7
      %v3238 = vsub.s32 0, %v3237
      %v3239 = vrot.slane %v3234, %v3238
      %v3241 = vadd.f32 %v3198, %v3239
      %v3242 = vadd.f32 %v3199, %v3239
      %v3243 = vadd.f32 %v3200, %v3239
      %v3244 = vadd.f32 %v3201, %v3239
      %v3245 = vadd.f32 %v3202, %v3239
      %v3246 = vadd.f32 %v3203, %v3239
      %v3247 = vadd.f32 %v3204, %v3239
      %v3248 = vadd.f32 %v3205, %v3239
      %v3249 = vadd.f32 %v3206, %v3239
      %v3250 = vadd.f32 %v3207, %v3239
      %v3251 = vadd.f32 %v3208, %v3239
      %v3252 = vadd.f32 %v3209, %v3239
      %v3253 = vadd.f32 %v3210, %v3239
      %v3254 = vadd.f32 %v3211, %v3239
      %v3255 = vadd.f32 %v3212, %v3239
      %v3256 = vadd.f32 %v3213, %v3239
      %v3257 = vadd.f32 %v3214, %v3239
      %v3258 = vadd.f32 %v3215, %v3239
      %v3259 = vadd.f32 %v3216, %v3239
      %v3260 = vadd.f32 %v3217, %v3239
      %v3261 = vadd.f32 %v3218, %v3239
      %v3262 = vadd.f32 %v3219, %v3239
      %v3263 = vadd.f32 %v3220, %v3239
      %v3264 = vadd.f32 %v3221, %v3239
      %v3265 = vadd.f32 %v3222, %v3239
      %v3266 = vadd.f32 %v3223, %v3239
      %v3267 = vadd.f32 %v3224, %v3239
      %v3268 = vadd.f32 %v3225, %v3239
      %v3269 = vadd.f32 %v3226, %v3239
      %v3270 = vadd.f32 %v3227, %v3239
      %v3271 = vadd.f32 %v3228, %v3239
      %v3272 = vadd.f32 %v3229, %v3239
      %v3273 = vadd.f32 %v3230, %v3239
      %v3274 = vadd.f32 %v3231, %v3239
      %v3275 = vadd.f32 %v3232, %v3239
      %v3276 = vadd.f32 %v3233, %v3239
      %v3277 = vmax.f32 %v3241, 0.0
      %v3278 = vmax.f32 %v3242, 0.0
      %v3279 = vmax.f32 %v3243, 0.0
      %v3280 = vmax.f32 %v3244, 0.0
      %v3281 = vmax.f32 %v3245, 0.0
      %v3282 = vmax.f32 %v3246, 0.0
      %v3283 = vmax.f32 %v3247, 0.0
      %v3284 = vmax.f32 %v3248, 0.0
      %v3285 = vmax.f32 %v3249, 0.0
      %v3286 = vmax.f32 %v3250, 0.0
      %v3287 = vmax.f32 %v3251, 0.0
      %v3288 = vmax.f32 %v3252, 0.0
      %v3289 = vmax.f32 %v3253, 0.0
      %v3290 = vmax.f32 %v3254, 0.0
      %v3291 = vmax.f32 %v3255, 0.0
      %v3292 = vmax.f32 %v3256, 0.0
      %v3293 = vmax.f32 %v3257, 0.0
      %v3294 = vmax.f32 %v3258, 0.0
      %v3295 = vmax.f32 %v3259, 0.0
      %v3296 = vmax.f32 %v3260, 0.0
      %v3297 = vmax.f32 %v3261, 0.0
      %v3298 = vmax.f32 %v3262, 0.0
      %v3299 = vmax.f32 %v3263, 0.0
      %v3300 = vmax.f32 %v3264, 0.0
      %v3301 = vmax.f32 %v3265, 0.0
      %v3302 = vmax.f32 %v3266, 0.0
      %v3303 = vmax.f32 %v3267, 0.0
      %v3304 = vmax.f32 %v3268, 0.0
      %v3305 = vmax.f32 %v3269, 0.0
      %v3306 = vmax.f32 %v3270, 0.0
      %v3307 = vmax.f32 %v3271, 0.0
      %v3308 = vmax.f32 %v3272, 0.0
      %v3309 = vmax.f32 %v3273, 0.0
      %v3310 = vmax.f32 %v3274, 0.0
      %v3311 = vmax.f32 %v3275, 0.0
      %v3312 = vmax.f32 %v3276, 0.0
      %v3313 = vmul.f32 %v3277, %v199
      %v3314 = vmul.f32 %v3278, %v200
      %v3315 = vmul.f32 %v3279, %v201
      %v3316 = vmul.f32 %v3280, %v202
      %v3317 = vmul.f32 %v3281, %v203
      %v3318 = vmul.f32 %v3282, %v204
      %v3319 = vmul.f32 %v3283, %v205
      %v3320 = vmul.f32 %v3284, %v206
      %v3321 = vmul.f32 %v3285, %v207
      %v3322 = vmul.f32 %v3286, %v208
      %v3323 = vmul.f32 %v3287, %v209
      %v3324 = vmul.f32 %v3288, %v210
      %v3325 = vmul.f32 %v3289, %v211
      %v3326 = vmul.f32 %v3290, %v212
      %v3327 = vmul.f32 %v3291, %v213
      %v3328 = vmul.f32 %v3292, %v214
      %v3329 = vmul.f32 %v3293, %v215
      %v3330 = vmul.f32 %v3294, %v216
      %v3331 = vmul.f32 %v3295, %v217
      %v3332 = vmul.f32 %v3296, %v218
      %v3333 = vmul.f32 %v3297, %v219
      %v3334 = vmul.f32 %v3298, %v220
      %v3335 = vmul.f32 %v3299, %v221
      %v3336 = vmul.f32 %v3300, %v222
      %v3337 = vmul.f32 %v3301, %v223
      %v3338 = vmul.f32 %v3302, %v224
      %v3339 = vmul.f32 %v3303, %v225
      %v3340 = vmul.f32 %v3304, %v226
      %v3341 = vmul.f32 %v3305, %v227
      %v3342 = vmul.f32 %v3306, %v228
      %v3343 = vmul.f32 %v3307, %v229
      %v3344 = vmul.f32 %v3308, %v230
      %v3345 = vmul.f32 %v3309, %v231
      %v3346 = vmul.f32 %v3310, %v232
      %v3347 = vmul.f32 %v3311, %v233
      %v3348 = vmul.f32 %v3312, %v234
      %3349 = vst [vmem:[#allocation2 + $0x18] sm:$0xff] %v3313
      %3350 = vst [vmem:[#allocation2 + $0x20] sm:$0xff] %v3314
      %3351 = vst [vmem:[#allocation2 + $0x28] sm:$0xff] %v3315
      %3352 = vst [vmem:[#allocation2 + $0x30] sm:$0xff] %v3316
      %3353 = vst [vmem:[#allocation2 + $0x38] sm:$0xff] %v3317
      %3354 = vst [vmem:[#allocation2 + $0x40] sm:$0xff] %v3318
      %3355 = vst [vmem:[#allocation2 + $0x48] sm:$0xff] %v3319
      %3356 = vst [vmem:[#allocation2 + $0x50] sm:$0xff] %v3320
      %3357 = vst [vmem:[#allocation2 + $0x58] sm:$0xff] %v3321
      %3358 = vst [vmem:[#allocation2 + $0x60] sm:$0xff] %v3322
      %3359 = vst [vmem:[#allocation2 + $0x68] sm:$0xff] %v3323
      %3360 = vst [vmem:[#allocation2 + $0x70] sm:$0xff] %v3324
      %3361 = vst [vmem:[#allocation2 + $0x78] sm:$0xff] %v3325
      %3362 = vst [vmem:[#allocation2 + $0x80] sm:$0xff] %v3326
      %3363 = vst [vmem:[#allocation2 + $0x88] sm:$0xff] %v3327
      %3364 = vst [vmem:[#allocation2 + $0x90] sm:$0xff] %v3328
      %3365 = vst [vmem:[#allocation2 + $0x98] sm:$0xff] %v3329
      %3366 = vst [vmem:[#allocation2 + $0xa0] sm:$0xff] %v3330
      %3367 = vst [vmem:[#allocation2 + $0xa8] sm:$0xff] %v3331
      %3368 = vst [vmem:[#allocation2 + $0xb0] sm:$0xff] %v3332
      %3369 = vst [vmem:[#allocation2 + $0xb8] sm:$0xff] %v3333
      %3370 = vst [vmem:[#allocation2 + $0xc0] sm:$0xff] %v3334
      %3371 = vst [vmem:[#allocation2 + $0xc8] sm:$0xff] %v3335
      %3372 = vst [vmem:[#allocation2 + $0xd0] sm:$0xff] %v3336
      %3373 = vst [vmem:[#allocation2 + $0xd8] sm:$0xff] %v3337
      %3374 = vst [vmem:[#allocation2 + $0xe0] sm:$0xff] %v3338
      %3375 = vst [vmem:[#allocation2 + $0xe8] sm:$0xff] %v3339
      %3376 = vst [vmem:[#allocation2 + $0xf0] sm:$0xff] %v3340
      %3377 = vst [vmem:[#allocation2 + $0xf8] sm:$0xff] %v3341
      %3378 = vst [vmem:[#allocation2 + $0x100] sm:$0xff] %v3342
      %3379 = vst [vmem:[#allocation2 + $0x108] sm:$0xff] %v3343
      %3380 = vst [vmem:[#allocation2 + $0x110] sm:$0xff] %v3344
      %3381 = vst [vmem:[#allocation2 + $0x118] sm:$0xff] %v3345
      %3382 = vst [vmem:[#allocation2 + $0x120] sm:$0xff] %v3346
      %3383 = vst [vmem:[#allocation2 + $0x128] sm:$0xff] %v3347
      %3384 = vst [vmem:[#allocation2 + $0x130] sm:$0xff] %v3348
      %v3385 = vld [vmem:[#allocation2 + $0x5] sm:$0xff]
      %v3386 = vld [vmem:[#allocation2 + $0xd] sm:$0xff]
      %v3387 = vld [vmem:[#allocation2 + $0x15] sm:$0xff]
      %v3388 = vld [vmem:[#allocation2 + $0x1d] sm:$0xff]
      %v3389 = vld [vmem:[#allocation2 + $0x25] sm:$0xff]
      %v3390 = vld [vmem:[#allocation2 + $0x2d] sm:$0xff]
      %v3391 = vld [vmem:[#allocation2 + $0x35] sm:$0xff]
      %v3392 = vld [vmem:[#allocation2 + $0x3d] sm:$0xff]
      %v3393 = vld [vmem:[#allocation2 + $0x45] sm:$0xff]
      %v3394 = vld [vmem:[#allocation2 + $0x4d] sm:$0xff]
      %v3395 = vld [vmem:[#allocation2 + $0x55] sm:$0xff]
      %v3396 = vld [vmem:[#allocation2 + $0x5d] sm:$0xff]
      %v3397 = vld [vmem:[#allocation2 + $0x65] sm:$0xff]
      %v3398 = vld [vmem:[#allocation2 + $0x6d] sm:$0xff]
      %v3399 = vld [vmem:[#allocation2 + $0x75] sm:$0xff]
      %v3400 = vld [vmem:[#allocation2 + $0x7d] sm:$0xff]
      %v3401 = vld [vmem:[#allocation2 + $0x85] sm:$0xff]
      %v3402 = vld [vmem:[#allocation2 + $0x8d] sm:$0xff]
      %v3403 = vld [vmem:[#allocation2 + $0x95] sm:$0xff]
      %v3404 = vld [vmem:[#allocation2 + $0x9d] sm:$0xff]
      %v3405 = vld [vmem:[#allocation2 + $0xa5] sm:$0xff]
      %v3406 = vld [vmem:[#allocation2 + $0xad] sm:$0xff]
      %v3407 = vld [vmem:[#allocation2 + $0xb5] sm:$0xff]
      %v3408 = vld [vmem:[#allocation2 + $0xbd] sm:$0xff]
      %v3409 = vld [vmem:[#allocation2 + $0xc5] sm:$0xff]
      %v3410 = vld [vmem:[#allocation2 + $0xcd] sm:$0xff]
      %v3411 = vld [vmem:[#allocation2 + $0xd5] sm:$0xff]
      %v3412 = vld [vmem:[#allocation2 + $0xdd] sm:$0xff]
      %v3413 = vld [vmem:[#allocation2 + $0xe5] sm:$0xff]
      %v3414 = vld [vmem:[#allocation2 + $0xed] sm:$0xff]
      %v3415 = vld [vmem:[#allocation2 + $0xf5] sm:$0xff]
      %v3416 = vld [vmem:[#allocation2 + $0xfd] sm:$0xff]
      %v3417 = vld [vmem:[#allocation2 + $0x105] sm:$0xff]
      %v3418 = vld [vmem:[#allocation2 + $0x10d] sm:$0xff]
      %v3419 = vld [vmem:[#allocation2 + $0x115] sm:$0xff]
      %v3420 = vld [vmem:[#allocation2 + $0x11d] sm:$0xff]
      %v3421 = vpack.c.bf16 %v3386, %v3385
      %v3422 = vpack.c.bf16 %v3388, %v3387
      %v3423 = vpack.c.bf16 %v3390, %v3389
      %v3424 = vpack.c.bf16 %v3392, %v3391
      %v3425 = vpack.c.bf16 %v3394, %v3393
      %v3426 = vpack.c.bf16 %v3396, %v3395
      %v3427 = vpack.c.bf16 %v3398, %v3397
      %v3428 = vpack.c.bf16 %v3400, %v3399
      %v3429 = vpack.c.bf16 %v3402, %v3401
      %v3430 = vpack.c.bf16 %v3404, %v3403
      %v3431 = vpack.c.bf16 %v3406, %v3405
      %v3432 = vpack.c.bf16 %v3408, %v3407
      %v3433 = vpack.c.bf16 %v3410, %v3409
      %v3434 = vpack.c.bf16 %v3412, %v3411
      %v3435 = vpack.c.bf16 %v3414, %v3413
      %v3436 = vpack.c.bf16 %v3416, %v3415
      %v3437 = vpack.c.bf16 %v3418, %v3417
      %v3438 = vpack.c.bf16 %v3420, %v3419
      %s3439 = scalar_lea.vmem %s1, 576
      %v3440 = vld [vmem:[%s3439] sm:$0xf]
      %v3441 = vld [vmem:[%s3439 + $0x4] sm:$0xf]
      %v3442 = vld [vmem:[%s3439 + $0x8] sm:$0xf]
      %v3443 = vld [vmem:[%s3439 + $0xc] sm:$0xf]
      %v3444 = vld [vmem:[%s3439 + $0x10] sm:$0xf]
      %v3445 = vld [vmem:[%s3439 + $0x14] sm:$0xf]
      %v3446 = vld [vmem:[%s3439 + $0x18] sm:$0xf]
      %v3447 = vld [vmem:[%s3439 + $0x1c] sm:$0xf]
      %v3448 = vld [vmem:[%s3439 + $0x20] sm:$0xf]
      %v3449 = vld [vmem:[%s3439 + $0x24] sm:$0xf]
      %v3450 = vld [vmem:[%s3439 + $0x28] sm:$0xf]
      %v3451 = vld [vmem:[%s3439 + $0x2c] sm:$0xf]
      %v3452 = vld [vmem:[%s3439 + $0x30] sm:$0xf]
      %v3453 = vld [vmem:[%s3439 + $0x34] sm:$0xf]
      %v3454 = vld [vmem:[%s3439 + $0x38] sm:$0xf]
      %v3455 = vld [vmem:[%s3439 + $0x3c] sm:$0xf]
      %v3456 = vld [vmem:[#allocation2 + $0x6] sm:$0xff]
      %v3457 = vld [vmem:[#allocation2 + $0xe] sm:$0xff]
      %v3458 = vld [vmem:[#allocation2 + $0x16] sm:$0xff]
      %v3459 = vld [vmem:[#allocation2 + $0x1e] sm:$0xff]
      %v3460 = vld [vmem:[#allocation2 + $0x26] sm:$0xff]
      %v3461 = vld [vmem:[#allocation2 + $0x2e] sm:$0xff]
      %v3462 = vld [vmem:[#allocation2 + $0x36] sm:$0xff]
      %v3463 = vld [vmem:[#allocation2 + $0x3e] sm:$0xff]
      %v3464 = vld [vmem:[#allocation2 + $0x46] sm:$0xff]
      %v3465 = vld [vmem:[#allocation2 + $0x4e] sm:$0xff]
      %v3466 = vld [vmem:[#allocation2 + $0x56] sm:$0xff]
      %v3467 = vld [vmem:[#allocation2 + $0x5e] sm:$0xff]
      %v3468 = vld [vmem:[#allocation2 + $0x66] sm:$0xff]
      %v3469 = vld [vmem:[#allocation2 + $0x6e] sm:$0xff]
      %v3470 = vld [vmem:[#allocation2 + $0x76] sm:$0xff]
      %v3471 = vld [vmem:[#allocation2 + $0x7e] sm:$0xff]
      %v3472 = vld [vmem:[#allocation2 + $0x86] sm:$0xff]
      %v3473 = vld [vmem:[#allocation2 + $0x8e] sm:$0xff]
      %v3474 = vld [vmem:[#allocation2 + $0x96] sm:$0xff]
      %v3475 = vld [vmem:[#allocation2 + $0x9e] sm:$0xff]
      %v3476 = vld [vmem:[#allocation2 + $0xa6] sm:$0xff]
      %v3477 = vld [vmem:[#allocation2 + $0xae] sm:$0xff]
      %v3478 = vld [vmem:[#allocation2 + $0xb6] sm:$0xff]
      %v3479 = vld [vmem:[#allocation2 + $0xbe] sm:$0xff]
      %v3480 = vld [vmem:[#allocation2 + $0xc6] sm:$0xff]
      %v3481 = vld [vmem:[#allocation2 + $0xce] sm:$0xff]
      %v3482 = vld [vmem:[#allocation2 + $0xd6] sm:$0xff]
      %v3483 = vld [vmem:[#allocation2 + $0xde] sm:$0xff]
      %v3484 = vld [vmem:[#allocation2 + $0xe6] sm:$0xff]
      %v3485 = vld [vmem:[#allocation2 + $0xee] sm:$0xff]
      %v3486 = vld [vmem:[#allocation2 + $0xf6] sm:$0xff]
      %v3487 = vld [vmem:[#allocation2 + $0xfe] sm:$0xff]
      %v3488 = vld [vmem:[#allocation2 + $0x106] sm:$0xff]
      %v3489 = vld [vmem:[#allocation2 + $0x10e] sm:$0xff]
      %v3490 = vld [vmem:[#allocation2 + $0x116] sm:$0xff]
      %v3491 = vld [vmem:[#allocation2 + $0x11e] sm:$0xff]
      %v3492 = vpack.c.bf16 %v3457, %v3456
      %v3493 = vpack.c.bf16 %v3459, %v3458
      %v3494 = vpack.c.bf16 %v3461, %v3460
      %v3495 = vpack.c.bf16 %v3463, %v3462
      %v3496 = vpack.c.bf16 %v3465, %v3464
      %v3497 = vpack.c.bf16 %v3467, %v3466
      %v3498 = vpack.c.bf16 %v3469, %v3468
      %v3499 = vpack.c.bf16 %v3471, %v3470
      %v3500 = vpack.c.bf16 %v3473, %v3472
      %v3501 = vpack.c.bf16 %v3475, %v3474
      %v3502 = vpack.c.bf16 %v3477, %v3476
      %v3503 = vpack.c.bf16 %v3479, %v3478
      %v3504 = vpack.c.bf16 %v3481, %v3480
      %v3505 = vpack.c.bf16 %v3483, %v3482
      %v3506 = vpack.c.bf16 %v3485, %v3484
      %v3507 = vpack.c.bf16 %v3487, %v3486
      %v3508 = vpack.c.bf16 %v3489, %v3488
      %v3509 = vpack.c.bf16 %v3491, %v3490
      %s3510 = scalar_lea.vmem %s1, 640
      %v3511 = vld [vmem:[%s3510] sm:$0xf]
      %v3512 = vld [vmem:[%s3510 + $0x4] sm:$0xf]
      %v3513 = vld [vmem:[%s3510 + $0x8] sm:$0xf]
      %v3514 = vld [vmem:[%s3510 + $0xc] sm:$0xf]
      %v3515 = vld [vmem:[%s3510 + $0x10] sm:$0xf]
      %v3516 = vld [vmem:[%s3510 + $0x14] sm:$0xf]
      %v3517 = vld [vmem:[%s3510 + $0x18] sm:$0xf]
      %v3518 = vld [vmem:[%s3510 + $0x1c] sm:$0xf]
      %v3519 = vld [vmem:[%s3510 + $0x20] sm:$0xf]
      %v3520 = vld [vmem:[%s3510 + $0x24] sm:$0xf]
      %v3521 = vld [vmem:[%s3510 + $0x28] sm:$0xf]
      %v3522 = vld [vmem:[%s3510 + $0x2c] sm:$0xf]
      %v3523 = vld [vmem:[%s3510 + $0x30] sm:$0xf]
      %v3524 = vld [vmem:[%s3510 + $0x34] sm:$0xf]
      %v3525 = vld [vmem:[%s3510 + $0x38] sm:$0xf]
      %v3526 = vld [vmem:[%s3510 + $0x3c] sm:$0xf]
      %v3543 = vunpack.c.l.b16 %v3511
      %v3544 = vunpack.c.l.b16 %v3512
      %v3545 = vunpack.c.l.b16 %v3513
      %v3546 = vunpack.c.l.b16 %v3514
      %v3547 = vunpack.c.l.b16 %v3515
      %v3548 = vunpack.c.l.b16 %v3516
      %v3549 = vunpack.c.l.b16 %v3517
      %v3550 = vunpack.c.l.b16 %v3518
      %v3551 = vunpack.c.l.b16 %v3519
      %v3552 = vunpack.c.l.b16 %v3520
      %v3553 = vunpack.c.l.b16 %v3521
      %v3554 = vunpack.c.l.b16 %v3522
      %v3555 = vunpack.c.l.b16 %v3523
      %v3556 = vunpack.c.l.b16 %v3524
      %v3557 = vunpack.c.l.b16 %v3525
      %v3558 = vunpack.c.l.b16 %v3526
      %v3559 = vpack.c.b16 %v3544, %v3543
      %v3560 = vpack.c.b16 %v3546, %v3545
      %v3561 = vpack.c.b16 %v3548, %v3547
      %v3562 = vpack.c.b16 %v3550, %v3549
      %v3563 = vpack.c.b16 %v3552, %v3551
      %v3564 = vpack.c.b16 %v3554, %v3553
      %v3565 = vpack.c.b16 %v3556, %v3555
      %v3566 = vpack.c.b16 %v3558, %v3557
      %3575 = vmatprep.subr.bf16.mxu0 0
      %3576 = vmatpush1.bf16.msra.mxu0 %v3559
      %3577 = vmatprep.subr.bf16.mxu0 0
      %3578 = vmatpush1.bf16.msra.mxu0 %v3560
      %3579 = vmatprep.subr.bf16.mxu0 0
      %3580 = vmatpush1.bf16.msra.mxu0 %v3561
      %3581 = vmatprep.subr.bf16.mxu0 0
      %3582 = vmatpush1.bf16.msra.mxu0 %v3562
      %3583 = vmatprep.subr.bf16.mxu0 0
      %3584 = vmatpush1.bf16.msra.mxu0 %v3563
      %3585 = vmatprep.subr.bf16.mxu0 0
      %3586 = vmatpush1.bf16.msra.mxu0 %v3564
      %3587 = vmatprep.subr.bf16.mxu0 0
      %3588 = vmatpush1.bf16.msra.mxu0 %v3565
      %3589 = vmatprep.subr.bf16.mxu0 0
      %3590 = vmatpush1.bf16.msra.mxu0 %v3566
      %3591 = vmatprep.subr.bf16.mxu0 0
      %3592 = vmatpush1.bf16.msra.mxu0 0
      %3593 = vmatprep.subr.bf16.mxu0 0
      %3594 = vmatpush1.bf16.msra.mxu0 0
      %3595 = vmatprep.subr.bf16.mxu0 0
      %3596 = vmatpush1.bf16.msra.mxu0 0
      %3597 = vmatprep.subr.bf16.mxu0 0
      %3598 = vmatpush1.bf16.msra.mxu0 0
      %3599 = vmatprep.subr.bf16.mxu0 0
      %3600 = vmatpush1.bf16.msra.mxu0 0
      %3601 = vmatprep.subr.bf16.mxu0 0
      %3602 = vmatpush1.bf16.msra.mxu0 0
      %3603 = vmatprep.subr.bf16.mxu0 0
      %3604 = vmatpush1.bf16.msra.mxu0 0
      %3605 = vmatprep.subr.bf16.mxu0 0
      %3606 = vmatpush1.bf16.msra.mxu0 0
      %3607 = vmatprep.mubr.bf16.mxu0 0
      %3608 = vmatmul.mubr.bf16.gmra.mrb[0].mxu0 %v3492
      %v3609 = vpop.f32.mrb[0].mxu0
      %v3610 = vadd.f32 0.0, %v3609
      %v3611 = vpop.f32.mrb[0].mxu0
      %v3612 = vpop.f32.mrb[0].mxu0
      %v3613 = vadd.f32 0.0, %v3612
      %v3614 = vpop.f32.mrb[0].mxu0
      %3615 = vmatprep.mubr.bf16.mxu0 0
      %3616 = vmatmul.mubr.bf16.gmra.mrb[0].mxu0 %v3493
      %v3617 = vpop.f32.mrb[0].mxu0
      %v3618 = vadd.f32 0.0, %v3617
      %v3619 = vpop.f32.mrb[0].mxu0
      %v3620 = vpop.f32.mrb[0].mxu0
      %v3621 = vadd.f32 0.0, %v3620
      %v3622 = vpop.f32.mrb[0].mxu0
      %3623 = vmatprep.mubr.bf16.mxu0 0
      %3624 = vmatmul.mubr.bf16.gmra.mrb[0].mxu0 %v3494
      %v3625 = vpop.f32.mrb[0].mxu0
      %v3626 = vadd.f32 0.0, %v3625
      %v3627 = vpop.f32.mrb[0].mxu0
      %v3628 = vpop.f32.mrb[0].mxu0
      %v3629 = vadd.f32 0.0, %v3628
      %v3630 = vpop.f32.mrb[0].mxu0
      %3631 = vmatprep.mubr.bf16.mxu0 0
      %3632 = vmatmul.mubr.bf16.gmra.mrb[0].mxu0 %v3495
      %v3633 = vpop.f32.mrb[0].mxu0
      %v3634 = vadd.f32 0.0, %v3633
      %v3635 = vpop.f32.mrb[0].mxu0
      %v3636 = vpop.f32.mrb[0].mxu0
      %v3637 = vadd.f32 0.0, %v3636
      %v3638 = vpop.f32.mrb[0].mxu0
      %3639 = vmatprep.mubr.bf16.mxu0 0
      %3640 = vmatmul.mubr.bf16.gmra.mrb[0].mxu0 %v3496
      %v3641 = vpop.f32.mrb[0].mxu0
      %v3642 = vadd.f32 0.0, %v3641
      %v3643 = vpop.f32.mrb[0].mxu0
      %v3644 = vpop.f32.mrb[0].mxu0
      %v3645 = vadd.f32 0.0, %v3644
      %v3646 = vpop.f32.mrb[0].mxu0
      %3647 = vmatprep.mubr.bf16.mxu0 0
      %3648 = vmatmul.mubr.bf16.gmra.mrb[0].mxu0 %v3497
      %v3649 = vpop.f32.mrb[0].mxu0
      %v3650 = vadd.f32 0.0, %v3649
      %v3651 = vpop.f32.mrb[0].mxu0
      %v3652 = vpop.f32.mrb[0].mxu0
      %v3653 = vadd.f32 0.0, %v3652
      %v3654 = vpop.f32.mrb[0].mxu0
      %3655 = vmatprep.mubr.bf16.mxu0 0
      %3656 = vmatmul.mubr.bf16.gmra.mrb[0].mxu0 %v3498
      %v3657 = vpop.f32.mrb[0].mxu0
      %v3658 = vadd.f32 0.0, %v3657
      %v3659 = vpop.f32.mrb[0].mxu0
      %v3660 = vpop.f32.mrb[0].mxu0
      %v3661 = vadd.f32 0.0, %v3660
      %v3662 = vpop.f32.mrb[0].mxu0
      %3663 = vmatprep.mubr.bf16.mxu0 0
      %3664 = vmatmul.mubr.bf16.gmra.mrb[0].mxu0 %v3499
      %v3665 = vpop.f32.mrb[0].mxu0
      %v3666 = vadd.f32 0.0, %v3665
      %v3667 = vpop.f32.mrb[0].mxu0
      %v3668 = vpop.f32.mrb[0].mxu0
      %v3669 = vadd.f32 0.0, %v3668
      %v3670 = vpop.f32.mrb[0].mxu0
      %3671 = vmatprep.mubr.bf16.mxu0 0
      %3672 = vmatmul.mubr.bf16.gmra.mrb[0].mxu0 %v3500
      %v3673 = vpop.f32.mrb[0].mxu0
      %v3674 = vadd.f32 0.0, %v3673
      %v3675 = vpop.f32.mrb[0].mxu0
      %v3676 = vpop.f32.mrb[0].mxu0
      %v3677 = vadd.f32 0.0, %v3676
      %v3678 = vpop.f32.mrb[0].mxu0
      %3679 = vmatprep.mubr.bf16.mxu0 0
      %3680 = vmatmul.mubr.bf16.gmra.mrb[0].mxu0 %v3501
      %v3681 = vpop.f32.mrb[0].mxu0
      %v3682 = vadd.f32 0.0, %v3681
      %v3683 = vpop.f32.mrb[0].mxu0
      %v3684 = vpop.f32.mrb[0].mxu0
      %v3685 = vadd.f32 0.0, %v3684
      %v3686 = vpop.f32.mrb[0].mxu0
      %3687 = vmatprep.mubr.bf16.mxu0 0
      %3688 = vmatmul.mubr.bf16.gmra.mrb[0].mxu0 %v3502
      %v3689 = vpop.f32.mrb[0].mxu0
      %v3690 = vadd.f32 0.0, %v3689
      %v3691 = vpop.f32.mrb[0].mxu0
      %v3692 = vpop.f32.mrb[0].mxu0
      %v3693 = vadd.f32 0.0, %v3692
      %v3694 = vpop.f32.mrb[0].mxu0
      %3695 = vmatprep.mubr.bf16.mxu0 0
      %3696 = vmatmul.mubr.bf16.gmra.mrb[0].mxu0 %v3503
      %v3697 = vpop.f32.mrb[0].mxu0
      %v3698 = vadd.f32 0.0, %v3697
      %v3699 = vpop.f32.mrb[0].mxu0
      %v3700 = vpop.f32.mrb[0].mxu0
      %v3701 = vadd.f32 0.0, %v3700
      %v3702 = vpop.f32.mrb[0].mxu0
      %3703 = vmatprep.mubr.bf16.mxu0 0
      %3704 = vmatmul.mubr.bf16.gmra.mrb[0].mxu0 %v3504
      %v3705 = vpop.f32.mrb[0].mxu0
      %v3706 = vadd.f32 0.0, %v3705
      %v3707 = vpop.f32.mrb[0].mxu0
      %v3708 = vpop.f32.mrb[0].mxu0
      %v3709 = vadd.f32 0.0, %v3708
      %v3710 = vpop.f32.mrb[0].mxu0
      %3711 = vmatprep.mubr.bf16.mxu0 0
      %3712 = vmatmul.mubr.bf16.gmra.mrb[0].mxu0 %v3505
      %v3713 = vpop.f32.mrb[0].mxu0
      %v3714 = vadd.f32 0.0, %v3713
      %v3715 = vpop.f32.mrb[0].mxu0
      %v3716 = vpop.f32.mrb[0].mxu0
      %v3717 = vadd.f32 0.0, %v3716
      %v3718 = vpop.f32.mrb[0].mxu0
      %3719 = vmatprep.mubr.bf16.mxu0 0
      %3720 = vmatmul.mubr.bf16.gmra.mrb[0].mxu0 %v3506
      %v3721 = vpop.f32.mrb[0].mxu0
      %v3722 = vadd.f32 0.0, %v3721
      %v3723 = vpop.f32.mrb[0].mxu0
      %v3724 = vpop.f32.mrb[0].mxu0
      %v3725 = vadd.f32 0.0, %v3724
      %v3726 = vpop.f32.mrb[0].mxu0
      %3727 = vmatprep.mubr.bf16.mxu0 0
      %3728 = vmatmul.mubr.bf16.gmra.mrb[0].mxu0 %v3507
      %v3729 = vpop.f32.mrb[0].mxu0
      %v3730 = vadd.f32 0.0, %v3729
      %v3731 = vpop.f32.mrb[0].mxu0
      %v3732 = vpop.f32.mrb[0].mxu0
      %v3733 = vadd.f32 0.0, %v3732
      %v3734 = vpop.f32.mrb[0].mxu0
      %3735 = vmatprep.mubr.bf16.mxu0 0
      %3736 = vmatmul.mubr.bf16.gmra.mrb[0].mxu0 %v3508
      %v3737 = vpop.f32.mrb[0].mxu0
      %v3738 = vadd.f32 0.0, %v3737
      %v3739 = vpop.f32.mrb[0].mxu0
      %v3740 = vpop.f32.mrb[0].mxu0
      %v3741 = vadd.f32 0.0, %v3740
      %v3742 = vpop.f32.mrb[0].mxu0
      %3743 = vmatprep.mubr.bf16.mxu0 0
      %3744 = vmatmul.mubr.bf16.gmra.mrb[0].mxu0 %v3509
      %v3745 = vpop.f32.mrb[0].mxu0
      %v3746 = vadd.f32 0.0, %v3745
      %v3747 = vpop.f32.mrb[0].mxu0
      %v3748 = vpop.f32.mrb[0].mxu0
      %v3749 = vadd.f32 0.0, %v3748
      %v3750 = vpop.f32.mrb[0].mxu0
      %3751 = vdwg.mxu0
      %v3768 = vunpack.c.l.b16 %v3440
      %v3769 = vunpack.c.l.b16 %v3441
      %v3770 = vunpack.c.l.b16 %v3442
      %v3771 = vunpack.c.l.b16 %v3443
      %v3772 = vunpack.c.l.b16 %v3444
      %v3773 = vunpack.c.l.b16 %v3445
      %v3774 = vunpack.c.l.b16 %v3446
      %v3775 = vunpack.c.l.b16 %v3447
      %v3776 = vunpack.c.l.b16 %v3448
      %v3777 = vunpack.c.l.b16 %v3449
      %v3778 = vunpack.c.l.b16 %v3450
      %v3779 = vunpack.c.l.b16 %v3451
      %v3780 = vunpack.c.l.b16 %v3452
      %v3781 = vunpack.c.l.b16 %v3453
      %v3782 = vunpack.c.l.b16 %v3454
      %v3783 = vunpack.c.l.b16 %v3455
      %v3784 = vpack.c.b16 %v3769, %v3768
      %v3785 = vpack.c.b16 %v3771, %v3770
      %v3786 = vpack.c.b16 %v3773, %v3772
      %v3787 = vpack.c.b16 %v3775, %v3774
      %v3788 = vpack.c.b16 %v3777, %v3776
      %v3789 = vpack.c.b16 %v3779, %v3778
      %v3790 = vpack.c.b16 %v3781, %v3780
      %v3791 = vpack.c.b16 %v3783, %v3782
      %3800 = vmatprep.subr.bf16.mxu0 0
      %3801 = vmatpush1.bf16.msra.mxu0 %v3784
      %3802 = vmatprep.subr.bf16.mxu0 0
      %3803 = vmatpush1.bf16.msra.mxu0 %v3785
      %3804 = vmatprep.subr.bf16.mxu0 0
      %3805 = vmatpush1.bf16.msra.mxu0 %v3786
      %3806 = vmatprep.subr.bf16.mxu0 0
      %3807 = vmatpush1.bf16.msra.mxu0 %v3787
      %3808 = vmatprep.subr.bf16.mxu0 0
      %3809 = vmatpush1.bf16.msra.mxu0 %v3788
      %3810 = vmatprep.subr.bf16.mxu0 0
      %3811 = vmatpush1.bf16.msra.mxu0 %v3789
      %3812 = vmatprep.subr.bf16.mxu0 0
      %3813 = vmatpush1.bf16.msra.mxu0 %v3790
      %3814 = vmatprep.subr.bf16.mxu0 0
      %3815 = vmatpush1.bf16.msra.mxu0 %v3791
      %3816 = vmatprep.subr.bf16.mxu0 0
      %3817 = vmatpush1.bf16.msra.mxu0 0
      %3818 = vmatprep.subr.bf16.mxu0 0
      %3819 = vmatpush1.bf16.msra.mxu0 0
      %3820 = vmatprep.subr.bf16.mxu0 0
      %3821 = vmatpush1.bf16.msra.mxu0 0
      %3822 = vmatprep.subr.bf16.mxu0 0
      %3823 = vmatpush1.bf16.msra.mxu0 0
      %3824 = vmatprep.subr.bf16.mxu0 0
      %3825 = vmatpush1.bf16.msra.mxu0 0
      %3826 = vmatprep.subr.bf16.mxu0 0
      %3827 = vmatpush1.bf16.msra.mxu0 0
      %3828 = vmatprep.subr.bf16.mxu0 0
      %3829 = vmatpush1.bf16.msra.mxu0 0
      %3830 = vmatprep.subr.bf16.mxu0 0
      %3831 = vmatpush1.bf16.msra.mxu0 0
      %3832 = vmatprep.mubr.bf16.mxu0 0
      %3833 = vmatmul.mubr.bf16.gmra.mrb[0].mxu0 %v3421
      %v3834 = vpop.f32.mrb[0].mxu0
      %v3835 = vadd.f32 %v3610, %v3834
      %v3836 = vpop.f32.mrb[0].mxu0
      %v3837 = vpop.f32.mrb[0].mxu0
      %v3838 = vadd.f32 %v3613, %v3837
      %v3839 = vpop.f32.mrb[0].mxu0
      %3840 = vmatprep.mubr.bf16.mxu0 0
      %3841 = vmatmul.mubr.bf16.gmra.mrb[0].mxu0 %v3422
      %v3842 = vpop.f32.mrb[0].mxu0
      %v3843 = vadd.f32 %v3618, %v3842
      %v3844 = vpop.f32.mrb[0].mxu0
      %v3845 = vpop.f32.mrb[0].mxu0
      %v3846 = vadd.f32 %v3621, %v3845
      %v3847 = vpop.f32.mrb[0].mxu0
      %3848 = vmatprep.mubr.bf16.mxu0 0
      %3849 = vmatmul.mubr.bf16.gmra.mrb[0].mxu0 %v3423
      %v3850 = vpop.f32.mrb[0].mxu0
      %v3851 = vadd.f32 %v3626, %v3850
      %v3852 = vpop.f32.mrb[0].mxu0
      %v3853 = vpop.f32.mrb[0].mxu0
      %v3854 = vadd.f32 %v3629, %v3853
      %v3855 = vpop.f32.mrb[0].mxu0
      %3856 = vmatprep.mubr.bf16.mxu0 0
      %3857 = vmatmul.mubr.bf16.gmra.mrb[0].mxu0 %v3424
      %v3858 = vpop.f32.mrb[0].mxu0
      %v3859 = vadd.f32 %v3634, %v3858
      %v3860 = vpop.f32.mrb[0].mxu0
      %v3861 = vpop.f32.mrb[0].mxu0
      %v3862 = vadd.f32 %v3637, %v3861
      %v3863 = vpop.f32.mrb[0].mxu0
      %3864 = vmatprep.mubr.bf16.mxu0 0
      %3865 = vmatmul.mubr.bf16.gmra.mrb[0].mxu0 %v3425
      %v3866 = vpop.f32.mrb[0].mxu0
      %v3867 = vadd.f32 %v3642, %v3866
      %v3868 = vpop.f32.mrb[0].mxu0
      %v3869 = vpop.f32.mrb[0].mxu0
      %v3870 = vadd.f32 %v3645, %v3869
      %v3871 = vpop.f32.mrb[0].mxu0
      %3872 = vmatprep.mubr.bf16.mxu0 0
      %3873 = vmatmul.mubr.bf16.gmra.mrb[0].mxu0 %v3426
      %v3874 = vpop.f32.mrb[0].mxu0
      %v3875 = vadd.f32 %v3650, %v3874
      %v3876 = vpop.f32.mrb[0].mxu0
      %v3877 = vpop.f32.mrb[0].mxu0
      %v3878 = vadd.f32 %v3653, %v3877
      %v3879 = vpop.f32.mrb[0].mxu0
      %3880 = vmatprep.mubr.bf16.mxu0 0
      %3881 = vmatmul.mubr.bf16.gmra.mrb[0].mxu0 %v3427
      %v3882 = vpop.f32.mrb[0].mxu0
      %v3883 = vadd.f32 %v3658, %v3882
      %v3884 = vpop.f32.mrb[0].mxu0
      %v3885 = vpop.f32.mrb[0].mxu0
      %v3886 = vadd.f32 %v3661, %v3885
      %v3887 = vpop.f32.mrb[0].mxu0
      %3888 = vmatprep.mubr.bf16.mxu0 0
      %3889 = vmatmul.mubr.bf16.gmra.mrb[0].mxu0 %v3428
      %v3890 = vpop.f32.mrb[0].mxu0
      %v3891 = vadd.f32 %v3666, %v3890
      %v3892 = vpop.f32.mrb[0].mxu0
      %v3893 = vpop.f32.mrb[0].mxu0
      %v3894 = vadd.f32 %v3669, %v3893
      %v3895 = vpop.f32.mrb[0].mxu0
      %3896 = vmatprep.mubr.bf16.mxu0 0
      %3897 = vmatmul.mubr.bf16.gmra.mrb[0].mxu0 %v3429
      %v3898 = vpop.f32.mrb[0].mxu0
      %v3899 = vadd.f32 %v3674, %v3898
      %v3900 = vpop.f32.mrb[0].mxu0
      %v3901 = vpop.f32.mrb[0].mxu0
      %v3902 = vadd.f32 %v3677, %v3901
      %v3903 = vpop.f32.mrb[0].mxu0
      %3904 = vmatprep.mubr.bf16.mxu0 0
      %3905 = vmatmul.mubr.bf16.gmra.mrb[0].mxu0 %v3430
      %v3906 = vpop.f32.mrb[0].mxu0
      %v3907 = vadd.f32 %v3682, %v3906
      %v3908 = vpop.f32.mrb[0].mxu0
      %v3909 = vpop.f32.mrb[0].mxu0
      %v3910 = vadd.f32 %v3685, %v3909
      %v3911 = vpop.f32.mrb[0].mxu0
      %3912 = vmatprep.mubr.bf16.mxu0 0
      %3913 = vmatmul.mubr.bf16.gmra.mrb[0].mxu0 %v3431
      %v3914 = vpop.f32.mrb[0].mxu0
      %v3915 = vadd.f32 %v3690, %v3914
      %v3916 = vpop.f32.mrb[0].mxu0
      %v3917 = vpop.f32.mrb[0].mxu0
      %v3918 = vadd.f32 %v3693, %v3917
      %v3919 = vpop.f32.mrb[0].mxu0
      %3920 = vmatprep.mubr.bf16.mxu0 0
      %3921 = vmatmul.mubr.bf16.gmra.mrb[0].mxu0 %v3432
      %v3922 = vpop.f32.mrb[0].mxu0
      %v3923 = vadd.f32 %v3698, %v3922
      %v3924 = vpop.f32.mrb[0].mxu0
      %v3925 = vpop.f32.mrb[0].mxu0
      %v3926 = vadd.f32 %v3701, %v3925
      %v3927 = vpop.f32.mrb[0].mxu0
      %3928 = vmatprep.mubr.bf16.mxu0 0
      %3929 = vmatmul.mubr.bf16.gmra.mrb[0].mxu0 %v3433
      %v3930 = vpop.f32.mrb[0].mxu0
      %v3931 = vadd.f32 %v3706, %v3930
      %v3932 = vpop.f32.mrb[0].mxu0
      %v3933 = vpop.f32.mrb[0].mxu0
      %v3934 = vadd.f32 %v3709, %v3933
      %v3935 = vpop.f32.mrb[0].mxu0
      %3936 = vmatprep.mubr.bf16.mxu0 0
      %3937 = vmatmul.mubr.bf16.gmra.mrb[0].mxu0 %v3434
      %v3938 = vpop.f32.mrb[0].mxu0
      %v3939 = vadd.f32 %v3714, %v3938
      %v3940 = vpop.f32.mrb[0].mxu0
      %v3941 = vpop.f32.mrb[0].mxu0
      %v3942 = vadd.f32 %v3717, %v3941
      %v3943 = vpop.f32.mrb[0].mxu0
      %3944 = vmatprep.mubr.bf16.mxu0 0
      %3945 = vmatmul.mubr.bf16.gmra.mrb[0].mxu0 %v3435
      %v3946 = vpop.f32.mrb[0].mxu0
      %v3947 = vadd.f32 %v3722, %v3946
      %v3948 = vpop.f32.mrb[0].mxu0
      %v3949 = vpop.f32.mrb[0].mxu0
      %v3950 = vadd.f32 %v3725, %v3949
      %v3951 = vpop.f32.mrb[0].mxu0
      %3952 = vmatprep.mubr.bf16.mxu0 0
      %3953 = vmatmul.mubr.bf16.gmra.mrb[0].mxu0 %v3436
      %v3954 = vpop.f32.mrb[0].mxu0
      %v3955 = vadd.f32 %v3730, %v3954
      %v3956 = vpop.f32.mrb[0].mxu0
      %v3957 = vpop.f32.mrb[0].mxu0
      %v3958 = vadd.f32 %v3733, %v3957
      %v3959 = vpop.f32.mrb[0].mxu0
      %3960 = vmatprep.mubr.bf16.mxu0 0
      %3961 = vmatmul.mubr.bf16.gmra.mrb[0].mxu0 %v3437
      %v3962 = vpop.f32.mrb[0].mxu0
      %v3963 = vadd.f32 %v3738, %v3962
      %v3964 = vpop.f32.mrb[0].mxu0
      %v3965 = vpop.f32.mrb[0].mxu0
      %v3966 = vadd.f32 %v3741, %v3965
      %v3967 = vpop.f32.mrb[0].mxu0
      %3968 = vmatprep.mubr.bf16.mxu0 0
      %3969 = vmatmul.mubr.bf16.gmra.mrb[0].mxu0 %v3438
      %v3970 = vpop.f32.mrb[0].mxu0
      %v3971 = vadd.f32 %v3746, %v3970
      %v3972 = vpop.f32.mrb[0].mxu0
      %v3973 = vpop.f32.mrb[0].mxu0
      %v3974 = vadd.f32 %v3749, %v3973
      %v3975 = vpop.f32.mrb[0].mxu0
      %3976 = vdwg.mxu0
      %v3977 = vld [vmem:[#allocation2 + $0x7] sm:$0xff]
      %v3978 = vld [vmem:[#allocation2 + $0xf] sm:$0xff]
      %v3979 = vld [vmem:[#allocation2 + $0x17] sm:$0xff]
      %v3980 = vld [vmem:[#allocation2 + $0x1f] sm:$0xff]
      %v3981 = vld [vmem:[#allocation2 + $0x27] sm:$0xff]
      %v3982 = vld [vmem:[#allocation2 + $0x2f] sm:$0xff]
      %v3983 = vld [vmem:[#allocation2 + $0x37] sm:$0xff]
      %v3984 = vld [vmem:[#allocation2 + $0x3f] sm:$0xff]
      %v3985 = vld [vmem:[#allocation2 + $0x47] sm:$0xff]
      %v3986 = vld [vmem:[#allocation2 + $0x4f] sm:$0xff]
      %v3987 = vld [vmem:[#allocation2 + $0x57] sm:$0xff]
      %v3988 = vld [vmem:[#allocation2 + $0x5f] sm:$0xff]
      %v3989 = vld [vmem:[#allocation2 + $0x67] sm:$0xff]
      %v3990 = vld [vmem:[#allocation2 + $0x6f] sm:$0xff]
      %v3991 = vld [vmem:[#allocation2 + $0x77] sm:$0xff]
      %v3992 = vld [vmem:[#allocation2 + $0x7f] sm:$0xff]
      %v3993 = vld [vmem:[#allocation2 + $0x87] sm:$0xff]
      %v3994 = vld [vmem:[#allocation2 + $0x8f] sm:$0xff]
      %v3995 = vld [vmem:[#allocation2 + $0x97] sm:$0xff]
      %v3996 = vld [vmem:[#allocation2 + $0x9f] sm:$0xff]
      %v3997 = vld [vmem:[#allocation2 + $0xa7] sm:$0xff]
      %v3998 = vld [vmem:[#allocation2 + $0xaf] sm:$0xff]
      %v3999 = vld [vmem:[#allocation2 + $0xb7] sm:$0xff]
      %v4000 = vld [vmem:[#allocation2 + $0xbf] sm:$0xff]
      %v4001 = vld [vmem:[#allocation2 + $0xc7] sm:$0xff]
      %v4002 = vld [vmem:[#allocation2 + $0xcf] sm:$0xff]
      %v4003 = vld [vmem:[#allocation2 + $0xd7] sm:$0xff]
      %v4004 = vld [vmem:[#allocation2 + $0xdf] sm:$0xff]
      %v4005 = vld [vmem:[#allocation2 + $0xe7] sm:$0xff]
      %v4006 = vld [vmem:[#allocation2 + $0xef] sm:$0xff]
      %v4007 = vld [vmem:[#allocation2 + $0xf7] sm:$0xff]
      %v4008 = vld [vmem:[#allocation2 + $0xff] sm:$0xff]
      %v4009 = vld [vmem:[#allocation2 + $0x107] sm:$0xff]
      %v4010 = vld [vmem:[#allocation2 + $0x10f] sm:$0xff]
      %v4011 = vld [vmem:[#allocation2 + $0x117] sm:$0xff]
      %v4012 = vld [vmem:[#allocation2 + $0x11f] sm:$0xff]
      %v4013 = vpack.c.bf16 %v3978, %v3977
      %v4014 = vpack.c.bf16 %v3980, %v3979
      %v4015 = vpack.c.bf16 %v3982, %v3981
      %v4016 = vpack.c.bf16 %v3984, %v3983
      %v4017 = vpack.c.bf16 %v3986, %v3985
      %v4018 = vpack.c.bf16 %v3988, %v3987
      %v4019 = vpack.c.bf16 %v3990, %v3989
      %v4020 = vpack.c.bf16 %v3992, %v3991
      %v4021 = vpack.c.bf16 %v3994, %v3993
      %v4022 = vpack.c.bf16 %v3996, %v3995
      %v4023 = vpack.c.bf16 %v3998, %v3997
      %v4024 = vpack.c.bf16 %v4000, %v3999
      %v4025 = vpack.c.bf16 %v4002, %v4001
      %v4026 = vpack.c.bf16 %v4004, %v4003
      %v4027 = vpack.c.bf16 %v4006, %v4005
      %v4028 = vpack.c.bf16 %v4008, %v4007
      %v4029 = vpack.c.bf16 %v4010, %v4009
      %v4030 = vpack.c.bf16 %v4012, %v4011
      %s4031 = scalar_lea.vmem %s1, 704
      %v4032 = vld [vmem:[%s4031] sm:$0xf]
      %v4033 = vld [vmem:[%s4031 + $0x4] sm:$0xf]
      %v4034 = vld [vmem:[%s4031 + $0x8] sm:$0xf]
      %v4035 = vld [vmem:[%s4031 + $0xc] sm:$0xf]
      %v4036 = vld [vmem:[%s4031 + $0x10] sm:$0xf]
      %v4037 = vld [vmem:[%s4031 + $0x14] sm:$0xf]
      %v4038 = vld [vmem:[%s4031 + $0x18] sm:$0xf]
      %v4039 = vld [vmem:[%s4031 + $0x1c] sm:$0xf]
      %v4040 = vld [vmem:[%s4031 + $0x20] sm:$0xf]
      %v4041 = vld [vmem:[%s4031 + $0x24] sm:$0xf]
      %v4042 = vld [vmem:[%s4031 + $0x28] sm:$0xf]
      %v4043 = vld [vmem:[%s4031 + $0x2c] sm:$0xf]
      %v4044 = vld [vmem:[%s4031 + $0x30] sm:$0xf]
      %v4045 = vld [vmem:[%s4031 + $0x34] sm:$0xf]
      %v4046 = vld [vmem:[%s4031 + $0x38] sm:$0xf]
      %v4047 = vld [vmem:[%s4031 + $0x3c] sm:$0xf]
      %v4064 = vunpack.c.l.b16 %v4032
      %v4065 = vunpack.c.l.b16 %v4033
      %v4066 = vunpack.c.l.b16 %v4034
      %v4067 = vunpack.c.l.b16 %v4035
      %v4068 = vunpack.c.l.b16 %v4036
      %v4069 = vunpack.c.l.b16 %v4037
      %v4070 = vunpack.c.l.b16 %v4038
      %v4071 = vunpack.c.l.b16 %v4039
      %v4072 = vunpack.c.l.b16 %v4040
      %v4073 = vunpack.c.l.b16 %v4041
      %v4074 = vunpack.c.l.b16 %v4042
      %v4075 = vunpack.c.l.b16 %v4043
      %v4076 = vunpack.c.l.b16 %v4044
      %v4077 = vunpack.c.l.b16 %v4045
      %v4078 = vunpack.c.l.b16 %v4046
      %v4079 = vunpack.c.l.b16 %v4047
      %v4080 = vpack.c.b16 %v4065, %v4064
      %v4081 = vpack.c.b16 %v4067, %v4066
      %v4082 = vpack.c.b16 %v4069, %v4068
      %v4083 = vpack.c.b16 %v4071, %v4070
      %v4084 = vpack.c.b16 %v4073, %v4072
      %v4085 = vpack.c.b16 %v4075, %v4074
      %v4086 = vpack.c.b16 %v4077, %v4076
      %v4087 = vpack.c.b16 %v4079, %v4078
      %4096 = vmatprep.subr.bf16.mxu0 0
      %4097 = vmatpush1.bf16.msra.mxu0 %v4080
      %4098 = vmatprep.subr.bf16.mxu0 0
      %4099 = vmatpush1.bf16.msra.mxu0 %v4081
      %4100 = vmatprep.subr.bf16.mxu0 0
      %4101 = vmatpush1.bf16.msra.mxu0 %v4082
      %4102 = vmatprep.subr.bf16.mxu0 0
      %4103 = vmatpush1.bf16.msra.mxu0 %v4083
      %4104 = vmatprep.subr.bf16.mxu0 0
      %4105 = vmatpush1.bf16.msra.mxu0 %v4084
      %4106 = vmatprep.subr.bf16.mxu0 0
      %4107 = vmatpush1.bf16.msra.mxu0 %v4085
      %4108 = vmatprep.subr.bf16.mxu0 0
      %4109 = vmatpush1.bf16.msra.mxu0 %v4086
      %4110 = vmatprep.subr.bf16.mxu0 0
      %4111 = vmatpush1.bf16.msra.mxu0 %v4087
      %4112 = vmatprep.subr.bf16.mxu0 0
      %4113 = vmatpush1.bf16.msra.mxu0 0
      %4114 = vmatprep.subr.bf16.mxu0 0
      %4115 = vmatpush1.bf16.msra.mxu0 0
      %4116 = vmatprep.subr.bf16.mxu0 0
      %4117 = vmatpush1.bf16.msra.mxu0 0
      %4118 = vmatprep.subr.bf16.mxu0 0
      %4119 = vmatpush1.bf16.msra.mxu0 0
      %4120 = vmatprep.subr.bf16.mxu0 0
      %4121 = vmatpush1.bf16.msra.mxu0 0
      %4122 = vmatprep.subr.bf16.mxu0 0
      %4123 = vmatpush1.bf16.msra.mxu0 0
      %4124 = vmatprep.subr.bf16.mxu0 0
      %4125 = vmatpush1.bf16.msra.mxu0 0
      %4126 = vmatprep.subr.bf16.mxu0 0
      %4127 = vmatpush1.bf16.msra.mxu0 0
      %4128 = vmatprep.mubr.bf16.mxu0 0
      %4129 = vmatmul.mubr.bf16.gmra.mrb[0].mxu0 %v4013
      %v4130 = vpop.f32.mrb[0].mxu0
      %v4131 = vadd.f32 0.0, %v4130
      %v4132 = vpop.f32.mrb[0].mxu0
      %v4133 = vpop.f32.mrb[0].mxu0
      %v4134 = vadd.f32 0.0, %v4133
      %v4135 = vpop.f32.mrb[0].mxu0
      %4136 = vmatprep.mubr.bf16.mxu0 0
      %4137 = vmatmul.mubr.bf16.gmra.mrb[0].mxu0 %v4014
      %v4138 = vpop.f32.mrb[0].mxu0
      %v4139 = vadd.f32 0.0, %v4138
      %v4140 = vpop.f32.mrb[0].mxu0
      %v4141 = vpop.f32.mrb[0].mxu0
      %v4142 = vadd.f32 0.0, %v4141
      %v4143 = vpop.f32.mrb[0].mxu0
      %4144 = vmatprep.mubr.bf16.mxu0 0
      %4145 = vmatmul.mubr.bf16.gmra.mrb[0].mxu0 %v4015
      %v4146 = vpop.f32.mrb[0].mxu0
      %v4147 = vadd.f32 0.0, %v4146
      %v4148 = vpop.f32.mrb[0].mxu0
      %v4149 = vpop.f32.mrb[0].mxu0
      %v4150 = vadd.f32 0.0, %v4149
      %v4151 = vpop.f32.mrb[0].mxu0
      %4152 = vmatprep.mubr.bf16.mxu0 0
      %4153 = vmatmul.mubr.bf16.gmra.mrb[0].mxu0 %v4016
      %v4154 = vpop.f32.mrb[0].mxu0
      %v4155 = vadd.f32 0.0, %v4154
      %v4156 = vpop.f32.mrb[0].mxu0
      %v4157 = vpop.f32.mrb[0].mxu0
      %v4158 = vadd.f32 0.0, %v4157
      %v4159 = vpop.f32.mrb[0].mxu0
      %4160 = vmatprep.mubr.bf16.mxu0 0
      %4161 = vmatmul.mubr.bf16.gmra.mrb[0].mxu0 %v4017
      %v4162 = vpop.f32.mrb[0].mxu0
      %v4163 = vadd.f32 0.0, %v4162
      %v4164 = vpop.f32.mrb[0].mxu0
      %v4165 = vpop.f32.mrb[0].mxu0
      %v4166 = vadd.f32 0.0, %v4165
      %v4167 = vpop.f32.mrb[0].mxu0
      %4168 = vmatprep.mubr.bf16.mxu0 0
      %4169 = vmatmul.mubr.bf16.gmra.mrb[0].mxu0 %v4018
      %v4170 = vpop.f32.mrb[0].mxu0
      %v4171 = vadd.f32 0.0, %v4170
      %v4172 = vpop.f32.mrb[0].mxu0
      %v4173 = vpop.f32.mrb[0].mxu0
      %v4174 = vadd.f32 0.0, %v4173
      %v4175 = vpop.f32.mrb[0].mxu0
      %4176 = vmatprep.mubr.bf16.mxu0 0
      %4177 = vmatmul.mubr.bf16.gmra.mrb[0].mxu0 %v4019
      %v4178 = vpop.f32.mrb[0].mxu0
      %v4179 = vadd.f32 0.0, %v4178
      %v4180 = vpop.f32.mrb[0].mxu0
      %v4181 = vpop.f32.mrb[0].mxu0
      %v4182 = vadd.f32 0.0, %v4181
      %v4183 = vpop.f32.mrb[0].mxu0
      %4184 = vmatprep.mubr.bf16.mxu0 0
      %4185 = vmatmul.mubr.bf16.gmra.mrb[0].mxu0 %v4020
      %v4186 = vpop.f32.mrb[0].mxu0
      %v4187 = vadd.f32 0.0, %v4186
      %v4188 = vpop.f32.mrb[0].mxu0
      %v4189 = vpop.f32.mrb[0].mxu0
      %v4190 = vadd.f32 0.0, %v4189
      %v4191 = vpop.f32.mrb[0].mxu0
      %4192 = vmatprep.mubr.bf16.mxu0 0
      %4193 = vmatmul.mubr.bf16.gmra.mrb[0].mxu0 %v4021
      %v4194 = vpop.f32.mrb[0].mxu0
      %v4195 = vadd.f32 0.0, %v4194
      %v4196 = vpop.f32.mrb[0].mxu0
      %v4197 = vpop.f32.mrb[0].mxu0
      %v4198 = vadd.f32 0.0, %v4197
      %v4199 = vpop.f32.mrb[0].mxu0
      %4200 = vmatprep.mubr.bf16.mxu0 0
      %4201 = vmatmul.mubr.bf16.gmra.mrb[0].mxu0 %v4022
      %v4202 = vpop.f32.mrb[0].mxu0
      %v4203 = vadd.f32 0.0, %v4202
      %v4204 = vpop.f32.mrb[0].mxu0
      %v4205 = vpop.f32.mrb[0].mxu0
      %v4206 = vadd.f32 0.0, %v4205
      %v4207 = vpop.f32.mrb[0].mxu0
      %4208 = vmatprep.mubr.bf16.mxu0 0
      %4209 = vmatmul.mubr.bf16.gmra.mrb[0].mxu0 %v4023
      %v4210 = vpop.f32.mrb[0].mxu0
      %v4211 = vadd.f32 0.0, %v4210
      %v4212 = vpop.f32.mrb[0].mxu0
      %v4213 = vpop.f32.mrb[0].mxu0
      %v4214 = vadd.f32 0.0, %v4213
      %v4215 = vpop.f32.mrb[0].mxu0
      %4216 = vmatprep.mubr.bf16.mxu0 0
      %4217 = vmatmul.mubr.bf16.gmra.mrb[0].mxu0 %v4024
      %v4218 = vpop.f32.mrb[0].mxu0
      %v4219 = vadd.f32 0.0, %v4218
      %v4220 = vpop.f32.mrb[0].mxu0
      %v4221 = vpop.f32.mrb[0].mxu0
      %v4222 = vadd.f32 0.0, %v4221
      %v4223 = vpop.f32.mrb[0].mxu0
      %4224 = vmatprep.mubr.bf16.mxu0 0
      %4225 = vmatmul.mubr.bf16.gmra.mrb[0].mxu0 %v4025
      %v4226 = vpop.f32.mrb[0].mxu0
      %v4227 = vadd.f32 0.0, %v4226
      %v4228 = vpop.f32.mrb[0].mxu0
      %v4229 = vpop.f32.mrb[0].mxu0
      %v4230 = vadd.f32 0.0, %v4229
      %v4231 = vpop.f32.mrb[0].mxu0
      %4232 = vmatprep.mubr.bf16.mxu0 0
      %4233 = vmatmul.mubr.bf16.gmra.mrb[0].mxu0 %v4026
      %v4234 = vpop.f32.mrb[0].mxu0
      %v4235 = vadd.f32 0.0, %v4234
      %v4236 = vpop.f32.mrb[0].mxu0
      %v4237 = vpop.f32.mrb[0].mxu0
      %v4238 = vadd.f32 0.0, %v4237
      %v4239 = vpop.f32.mrb[0].mxu0
      %4240 = vmatprep.mubr.bf16.mxu0 0
      %4241 = vmatmul.mubr.bf16.gmra.mrb[0].mxu0 %v4027
      %v4242 = vpop.f32.mrb[0].mxu0
      %v4243 = vadd.f32 0.0, %v4242
      %v4244 = vpop.f32.mrb[0].mxu0
      %v4245 = vpop.f32.mrb[0].mxu0
      %v4246 = vadd.f32 0.0, %v4245
      %v4247 = vpop.f32.mrb[0].mxu0
      %4248 = vmatprep.mubr.bf16.mxu0 0
      %4249 = vmatmul.mubr.bf16.gmra.mrb[0].mxu0 %v4028
      %v4250 = vpop.f32.mrb[0].mxu0
      %v4251 = vadd.f32 0.0, %v4250
      %v4252 = vpop.f32.mrb[0].mxu0
      %v4253 = vpop.f32.mrb[0].mxu0
      %v4254 = vadd.f32 0.0, %v4253
      %v4255 = vpop.f32.mrb[0].mxu0
      %4256 = vmatprep.mubr.bf16.mxu0 0
      %4257 = vmatmul.mubr.bf16.gmra.mrb[0].mxu0 %v4029
      %v4258 = vpop.f32.mrb[0].mxu0
      %v4259 = vadd.f32 0.0, %v4258
      %v4260 = vpop.f32.mrb[0].mxu0
      %v4261 = vpop.f32.mrb[0].mxu0
      %v4262 = vadd.f32 0.0, %v4261
      %v4263 = vpop.f32.mrb[0].mxu0
      %4264 = vmatprep.mubr.bf16.mxu0 0
      %4265 = vmatmul.mubr.bf16.gmra.mrb[0].mxu0 %v4030
      %v4266 = vpop.f32.mrb[0].mxu0
      %v4267 = vadd.f32 0.0, %v4266
      %v4268 = vpop.f32.mrb[0].mxu0
      %v4269 = vpop.f32.mrb[0].mxu0
      %v4270 = vadd.f32 0.0, %v4269
      %v4271 = vpop.f32.mrb[0].mxu0
      %4272 = vdwg.mxu0
      %v4273 = vadd.f32 %v3835, %v4131
      %v4274 = vadd.f32 %v3838, %v4134
      %v4275 = vadd.f32 %v3843, %v4139
      %v4276 = vadd.f32 %v3846, %v4142
      %v4277 = vadd.f32 %v3851, %v4147
      %v4278 = vadd.f32 %v3854, %v4150
      %v4279 = vadd.f32 %v3859, %v4155
      %v4280 = vadd.f32 %v3862, %v4158
      %v4281 = vadd.f32 %v3867, %v4163
      %v4282 = vadd.f32 %v3870, %v4166
      %v4283 = vadd.f32 %v3875, %v4171
      %v4284 = vadd.f32 %v3878, %v4174
      %v4285 = vadd.f32 %v3883, %v4179
      %v4286 = vadd.f32 %v3886, %v4182
      %v4287 = vadd.f32 %v3891, %v4187
      %v4288 = vadd.f32 %v3894, %v4190
      %v4289 = vadd.f32 %v3899, %v4195
      %v4290 = vadd.f32 %v3902, %v4198
      %v4291 = vadd.f32 %v3907, %v4203
      %v4292 = vadd.f32 %v3910, %v4206
      %v4293 = vadd.f32 %v3915, %v4211
      %v4294 = vadd.f32 %v3918, %v4214
      %v4295 = vadd.f32 %v3923, %v4219
      %v4296 = vadd.f32 %v3926, %v4222
      %v4297 = vadd.f32 %v3931, %v4227
      %v4298 = vadd.f32 %v3934, %v4230
      %v4299 = vadd.f32 %v3939, %v4235
      %v4300 = vadd.f32 %v3942, %v4238
      %v4301 = vadd.f32 %v3947, %v4243
      %v4302 = vadd.f32 %v3950, %v4246
      %v4303 = vadd.f32 %v3955, %v4251
      %v4304 = vadd.f32 %v3958, %v4254
      %v4305 = vadd.f32 %v3963, %v4259
      %v4306 = vadd.f32 %v3966, %v4262
      %v4307 = vadd.f32 %v3971, %v4267
      %v4308 = vadd.f32 %v3974, %v4270
      %v4309 = vld [vmem:[#allocation2 + $0x17] sm:$0xff]
      %v4310 = vld [vmem:[#allocation2 + $0x1f] sm:$0xff]
      %v4311 = vld [vmem:[#allocation2 + $0x27] sm:$0xff]
      %v4312 = vld [vmem:[#allocation2 + $0x2f] sm:$0xff]
      %v4313 = vld [vmem:[#allocation2 + $0x37] sm:$0xff]
      %v4314 = vld [vmem:[#allocation2 + $0x3f] sm:$0xff]
      %v4315 = vld [vmem:[#allocation2 + $0x47] sm:$0xff]
      %v4316 = vld [vmem:[#allocation2 + $0x4f] sm:$0xff]
      %v4317 = vld [vmem:[#allocation2 + $0x57] sm:$0xff]
      %v4318 = vld [vmem:[#allocation2 + $0x5f] sm:$0xff]
      %v4319 = vld [vmem:[#allocation2 + $0x67] sm:$0xff]
      %v4320 = vld [vmem:[#allocation2 + $0x6f] sm:$0xff]
      %v4321 = vld [vmem:[#allocation2 + $0x77] sm:$0xff]
      %v4322 = vld [vmem:[#allocation2 + $0x7f] sm:$0xff]
      %v4323 = vld [vmem:[#allocation2 + $0x87] sm:$0xff]
      %v4324 = vld [vmem:[#allocation2 + $0x8f] sm:$0xff]
      %v4325 = vld [vmem:[#allocation2 + $0x97] sm:$0xff]
      %v4326 = vld [vmem:[#allocation2 + $0x9f] sm:$0xff]
      %v4327 = vld [vmem:[#allocation2 + $0xa7] sm:$0xff]
      %v4328 = vld [vmem:[#allocation2 + $0xaf] sm:$0xff]
      %v4329 = vld [vmem:[#allocation2 + $0xb7] sm:$0xff]
      %v4330 = vld [vmem:[#allocation2 + $0xbf] sm:$0xff]
      %v4331 = vld [vmem:[#allocation2 + $0xc7] sm:$0xff]
      %v4332 = vld [vmem:[#allocation2 + $0xcf] sm:$0xff]
      %v4333 = vld [vmem:[#allocation2 + $0xd7] sm:$0xff]
      %v4334 = vld [vmem:[#allocation2 + $0xdf] sm:$0xff]
      %v4335 = vld [vmem:[#allocation2 + $0xe7] sm:$0xff]
      %v4336 = vld [vmem:[#allocation2 + $0xef] sm:$0xff]
      %v4337 = vld [vmem:[#allocation2 + $0xf7] sm:$0xff]
      %v4338 = vld [vmem:[#allocation2 + $0xff] sm:$0xff]
      %v4339 = vld [vmem:[#allocation2 + $0x107] sm:$0xff]
      %v4340 = vld [vmem:[#allocation2 + $0x10f] sm:$0xff]
      %v4341 = vld [vmem:[#allocation2 + $0x117] sm:$0xff]
      %v4342 = vld [vmem:[#allocation2 + $0x11f] sm:$0xff]
      %v4343 = vld [vmem:[#allocation2 + $0x127] sm:$0xff]
      %v4344 = vld [vmem:[#allocation2 + $0x12f] sm:$0xff]
      %v4345 = vpack.c.bf16 %v4310, %v4309
      %v4346 = vpack.c.bf16 %v4312, %v4311
      %v4347 = vpack.c.bf16 %v4314, %v4313
      %v4348 = vpack.c.bf16 %v4316, %v4315
      %v4349 = vpack.c.bf16 %v4318, %v4317
      %v4350 = vpack.c.bf16 %v4320, %v4319
      %v4351 = vpack.c.bf16 %v4322, %v4321
      %v4352 = vpack.c.bf16 %v4324, %v4323
      %v4353 = vpack.c.bf16 %v4326, %v4325
      %v4354 = vpack.c.bf16 %v4328, %v4327
      %v4355 = vpack.c.bf16 %v4330, %v4329
      %v4356 = vpack.c.bf16 %v4332, %v4331
      %v4357 = vpack.c.bf16 %v4334, %v4333
      %v4358 = vpack.c.bf16 %v4336, %v4335
      %v4359 = vpack.c.bf16 %v4338, %v4337
      %v4360 = vpack.c.bf16 %v4340, %v4339
      %v4361 = vpack.c.bf16 %v4342, %v4341
      %v4362 = vpack.c.bf16 %v4344, %v4343
      %s4363 = scalar_lea.vmem %s1, 768
      %v4364 = vld [vmem:[%s4363] sm:$0xf]
      %v4365 = vld [vmem:[%s4363 + $0x4] sm:$0xf]
      %v4366 = vld [vmem:[%s4363 + $0x8] sm:$0xf]
      %v4367 = vld [vmem:[%s4363 + $0xc] sm:$0xf]
      %v4368 = vld [vmem:[%s4363 + $0x10] sm:$0xf]
      %v4369 = vld [vmem:[%s4363 + $0x14] sm:$0xf]
      %v4370 = vld [vmem:[%s4363 + $0x18] sm:$0xf]
      %v4371 = vld [vmem:[%s4363 + $0x1c] sm:$0xf]
      %v4372 = vld [vmem:[%s4363 + $0x20] sm:$0xf]
      %v4373 = vld [vmem:[%s4363 + $0x24] sm:$0xf]
      %v4374 = vld [vmem:[%s4363 + $0x28] sm:$0xf]
      %v4375 = vld [vmem:[%s4363 + $0x2c] sm:$0xf]
      %v4376 = vld [vmem:[%s4363 + $0x30] sm:$0xf]
      %v4377 = vld [vmem:[%s4363 + $0x34] sm:$0xf]
      %v4378 = vld [vmem:[%s4363 + $0x38] sm:$0xf]
      %v4379 = vld [vmem:[%s4363 + $0x3c] sm:$0xf]
      %v4396 = vunpack.c.l.b16 %v4364
      %v4397 = vunpack.c.l.b16 %v4365
      %v4398 = vunpack.c.l.b16 %v4366
      %v4399 = vunpack.c.l.b16 %v4367
      %v4400 = vunpack.c.l.b16 %v4368
      %v4401 = vunpack.c.l.b16 %v4369
      %v4402 = vunpack.c.l.b16 %v4370
      %v4403 = vunpack.c.l.b16 %v4371
      %v4404 = vunpack.c.l.b16 %v4372
      %v4405 = vunpack.c.l.b16 %v4373
      %v4406 = vunpack.c.l.b16 %v4374
      %v4407 = vunpack.c.l.b16 %v4375
      %v4408 = vunpack.c.l.b16 %v4376
      %v4409 = vunpack.c.l.b16 %v4377
      %v4410 = vunpack.c.l.b16 %v4378
      %v4411 = vunpack.c.l.b16 %v4379
      %v4412 = vpack.c.b16 %v4397, %v4396
      %v4413 = vpack.c.b16 %v4399, %v4398
      %v4414 = vpack.c.b16 %v4401, %v4400
      %v4415 = vpack.c.b16 %v4403, %v4402
      %v4416 = vpack.c.b16 %v4405, %v4404
      %v4417 = vpack.c.b16 %v4407, %v4406
      %v4418 = vpack.c.b16 %v4409, %v4408
      %v4419 = vpack.c.b16 %v4411, %v4410
      %4428 = vmatprep.subr.bf16.mxu0 0
      %4429 = vmatpush1.bf16.msra.mxu0 %v4412
      %4430 = vmatprep.subr.bf16.mxu0 0
      %4431 = vmatpush1.bf16.msra.mxu0 %v4413
      %4432 = vmatprep.subr.bf16.mxu0 0
      %4433 = vmatpush1.bf16.msra.mxu0 %v4414
      %4434 = vmatprep.subr.bf16.mxu0 0
      %4435 = vmatpush1.bf16.msra.mxu0 %v4415
      %4436 = vmatprep.subr.bf16.mxu0 0
      %4437 = vmatpush1.bf16.msra.mxu0 %v4416
      %4438 = vmatprep.subr.bf16.mxu0 0
      %4439 = vmatpush1.bf16.msra.mxu0 %v4417
      %4440 = vmatprep.subr.bf16.mxu0 0
      %4441 = vmatpush1.bf16.msra.mxu0 %v4418
      %4442 = vmatprep.subr.bf16.mxu0 0
      %4443 = vmatpush1.bf16.msra.mxu0 %v4419
      %4444 = vmatprep.subr.bf16.mxu0 0
      %4445 = vmatpush1.bf16.msra.mxu0 0
      %4446 = vmatprep.subr.bf16.mxu0 0
      %4447 = vmatpush1.bf16.msra.mxu0 0
      %4448 = vmatprep.subr.bf16.mxu0 0
      %4449 = vmatpush1.bf16.msra.mxu0 0
      %4450 = vmatprep.subr.bf16.mxu0 0
      %4451 = vmatpush1.bf16.msra.mxu0 0
      %4452 = vmatprep.subr.bf16.mxu0 0
      %4453 = vmatpush1.bf16.msra.mxu0 0
      %4454 = vmatprep.subr.bf16.mxu0 0
      %4455 = vmatpush1.bf16.msra.mxu0 0
      %4456 = vmatprep.subr.bf16.mxu0 0
      %4457 = vmatpush1.bf16.msra.mxu0 0
      %4458 = vmatprep.subr.bf16.mxu0 0
      %4459 = vmatpush1.bf16.msra.mxu0 0
      %4460 = vmatprep.mubr.bf16.mxu0 0
      %4461 = vmatmul.mubr.bf16.gmra.mrb[0].mxu0 %v4345
      %v4462 = vpop.f32.mrb[0].mxu0
      %v4463 = vadd.f32 0.0, %v4462
      %v4464 = vpop.f32.mrb[0].mxu0
      %v4465 = vpop.f32.mrb[0].mxu0
      %v4466 = vadd.f32 0.0, %v4465
      %v4467 = vpop.f32.mrb[0].mxu0
      %4468 = vmatprep.mubr.bf16.mxu0 0
      %4469 = vmatmul.mubr.bf16.gmra.mrb[0].mxu0 %v4346
      %v4470 = vpop.f32.mrb[0].mxu0
      %v4471 = vadd.f32 0.0, %v4470
      %v4472 = vpop.f32.mrb[0].mxu0
      %v4473 = vpop.f32.mrb[0].mxu0
      %v4474 = vadd.f32 0.0, %v4473
      %v4475 = vpop.f32.mrb[0].mxu0
      %4476 = vmatprep.mubr.bf16.mxu0 0
      %4477 = vmatmul.mubr.bf16.gmra.mrb[0].mxu0 %v4347
      %v4478 = vpop.f32.mrb[0].mxu0
      %v4479 = vadd.f32 0.0, %v4478
      %v4480 = vpop.f32.mrb[0].mxu0
      %v4481 = vpop.f32.mrb[0].mxu0
      %v4482 = vadd.f32 0.0, %v4481
      %v4483 = vpop.f32.mrb[0].mxu0
      %4484 = vmatprep.mubr.bf16.mxu0 0
      %4485 = vmatmul.mubr.bf16.gmra.mrb[0].mxu0 %v4348
      %v4486 = vpop.f32.mrb[0].mxu0
      %v4487 = vadd.f32 0.0, %v4486
      %v4488 = vpop.f32.mrb[0].mxu0
      %v4489 = vpop.f32.mrb[0].mxu0
      %v4490 = vadd.f32 0.0, %v4489
      %v4491 = vpop.f32.mrb[0].mxu0
      %4492 = vmatprep.mubr.bf16.mxu0 0
      %4493 = vmatmul.mubr.bf16.gmra.mrb[0].mxu0 %v4349
      %v4494 = vpop.f32.mrb[0].mxu0
      %v4495 = vadd.f32 0.0, %v4494
      %v4496 = vpop.f32.mrb[0].mxu0
      %v4497 = vpop.f32.mrb[0].mxu0
      %v4498 = vadd.f32 0.0, %v4497
      %v4499 = vpop.f32.mrb[0].mxu0
      %4500 = vmatprep.mubr.bf16.mxu0 0
      %4501 = vmatmul.mubr.bf16.gmra.mrb[0].mxu0 %v4350
      %v4502 = vpop.f32.mrb[0].mxu0
      %v4503 = vadd.f32 0.0, %v4502
      %v4504 = vpop.f32.mrb[0].mxu0
      %v4505 = vpop.f32.mrb[0].mxu0
      %v4506 = vadd.f32 0.0, %v4505
      %v4507 = vpop.f32.mrb[0].mxu0
      %4508 = vmatprep.mubr.bf16.mxu0 0
      %4509 = vmatmul.mubr.bf16.gmra.mrb[0].mxu0 %v4351
      %v4510 = vpop.f32.mrb[0].mxu0
      %v4511 = vadd.f32 0.0, %v4510
      %v4512 = vpop.f32.mrb[0].mxu0
      %v4513 = vpop.f32.mrb[0].mxu0
      %v4514 = vadd.f32 0.0, %v4513
      %v4515 = vpop.f32.mrb[0].mxu0
      %4516 = vmatprep.mubr.bf16.mxu0 0
      %4517 = vmatmul.mubr.bf16.gmra.mrb[0].mxu0 %v4352
      %v4518 = vpop.f32.mrb[0].mxu0
      %v4519 = vadd.f32 0.0, %v4518
      %v4520 = vpop.f32.mrb[0].mxu0
      %v4521 = vpop.f32.mrb[0].mxu0
      %v4522 = vadd.f32 0.0, %v4521
      %v4523 = vpop.f32.mrb[0].mxu0
      %4524 = vmatprep.mubr.bf16.mxu0 0
      %4525 = vmatmul.mubr.bf16.gmra.mrb[0].mxu0 %v4353
      %v4526 = vpop.f32.mrb[0].mxu0
      %v4527 = vadd.f32 0.0, %v4526
      %v4528 = vpop.f32.mrb[0].mxu0
      %v4529 = vpop.f32.mrb[0].mxu0
      %v4530 = vadd.f32 0.0, %v4529
      %v4531 = vpop.f32.mrb[0].mxu0
      %4532 = vmatprep.mubr.bf16.mxu0 0
      %4533 = vmatmul.mubr.bf16.gmra.mrb[0].mxu0 %v4354
      %v4534 = vpop.f32.mrb[0].mxu0
      %v4535 = vadd.f32 0.0, %v4534
      %v4536 = vpop.f32.mrb[0].mxu0
      %v4537 = vpop.f32.mrb[0].mxu0
      %v4538 = vadd.f32 0.0, %v4537
      %v4539 = vpop.f32.mrb[0].mxu0
      %4540 = vmatprep.mubr.bf16.mxu0 0
      %4541 = vmatmul.mubr.bf16.gmra.mrb[0].mxu0 %v4355
      %v4542 = vpop.f32.mrb[0].mxu0
      %v4543 = vadd.f32 0.0, %v4542
      %v4544 = vpop.f32.mrb[0].mxu0
      %v4545 = vpop.f32.mrb[0].mxu0
      %v4546 = vadd.f32 0.0, %v4545
      %v4547 = vpop.f32.mrb[0].mxu0
      %4548 = vmatprep.mubr.bf16.mxu0 0
      %4549 = vmatmul.mubr.bf16.gmra.mrb[0].mxu0 %v4356
      %v4550 = vpop.f32.mrb[0].mxu0
      %v4551 = vadd.f32 0.0, %v4550
      %v4552 = vpop.f32.mrb[0].mxu0
      %v4553 = vpop.f32.mrb[0].mxu0
      %v4554 = vadd.f32 0.0, %v4553
      %v4555 = vpop.f32.mrb[0].mxu0
      %4556 = vmatprep.mubr.bf16.mxu0 0
      %4557 = vmatmul.mubr.bf16.gmra.mrb[0].mxu0 %v4357
      %v4558 = vpop.f32.mrb[0].mxu0
      %v4559 = vadd.f32 0.0, %v4558
      %v4560 = vpop.f32.mrb[0].mxu0
      %v4561 = vpop.f32.mrb[0].mxu0
      %v4562 = vadd.f32 0.0, %v4561
      %v4563 = vpop.f32.mrb[0].mxu0
      %4564 = vmatprep.mubr.bf16.mxu0 0
      %4565 = vmatmul.mubr.bf16.gmra.mrb[0].mxu0 %v4358
      %v4566 = vpop.f32.mrb[0].mxu0
      %v4567 = vadd.f32 0.0, %v4566
      %v4568 = vpop.f32.mrb[0].mxu0
      %v4569 = vpop.f32.mrb[0].mxu0
      %v4570 = vadd.f32 0.0, %v4569
      %v4571 = vpop.f32.mrb[0].mxu0
      %4572 = vmatprep.mubr.bf16.mxu0 0
      %4573 = vmatmul.mubr.bf16.gmra.mrb[0].mxu0 %v4359
      %v4574 = vpop.f32.mrb[0].mxu0
      %v4575 = vadd.f32 0.0, %v4574
      %v4576 = vpop.f32.mrb[0].mxu0
      %v4577 = vpop.f32.mrb[0].mxu0
      %v4578 = vadd.f32 0.0, %v4577
      %v4579 = vpop.f32.mrb[0].mxu0
      %4580 = vmatprep.mubr.bf16.mxu0 0
      %4581 = vmatmul.mubr.bf16.gmra.mrb[0].mxu0 %v4360
      %v4582 = vpop.f32.mrb[0].mxu0
      %v4583 = vadd.f32 0.0, %v4582
      %v4584 = vpop.f32.mrb[0].mxu0
      %v4585 = vpop.f32.mrb[0].mxu0
      %v4586 = vadd.f32 0.0, %v4585
      %v4587 = vpop.f32.mrb[0].mxu0
      %4588 = vmatprep.mubr.bf16.mxu0 0
      %4589 = vmatmul.mubr.bf16.gmra.mrb[0].mxu0 %v4361
      %v4590 = vpop.f32.mrb[0].mxu0
      %v4591 = vadd.f32 0.0, %v4590
      %v4592 = vpop.f32.mrb[0].mxu0
      %v4593 = vpop.f32.mrb[0].mxu0
      %v4594 = vadd.f32 0.0, %v4593
      %v4595 = vpop.f32.mrb[0].mxu0
      %4596 = vmatprep.mubr.bf16.mxu0 0
      %4597 = vmatmul.mubr.bf16.gmra.mrb[0].mxu0 %v4362
      %v4598 = vpop.f32.mrb[0].mxu0
      %v4599 = vadd.f32 0.0, %v4598
      %v4600 = vpop.f32.mrb[0].mxu0
      %v4601 = vpop.f32.mrb[0].mxu0
      %v4602 = vadd.f32 0.0, %v4601
      %v4603 = vpop.f32.mrb[0].mxu0
      %4604 = vdwg.mxu0
      %v4605 = vadd.f32 %v4273, %v4463
      %v4606 = vadd.f32 %v4274, %v4466
      %v4607 = vadd.f32 %v4275, %v4471
      %v4608 = vadd.f32 %v4276, %v4474
      %v4609 = vadd.f32 %v4277, %v4479
      %v4610 = vadd.f32 %v4278, %v4482
      %v4611 = vadd.f32 %v4279, %v4487
      %v4612 = vadd.f32 %v4280, %v4490
      %v4613 = vadd.f32 %v4281, %v4495
      %v4614 = vadd.f32 %v4282, %v4498
      %v4615 = vadd.f32 %v4283, %v4503
      %v4616 = vadd.f32 %v4284, %v4506
      %v4617 = vadd.f32 %v4285, %v4511
      %v4618 = vadd.f32 %v4286, %v4514
      %v4619 = vadd.f32 %v4287, %v4519
      %v4620 = vadd.f32 %v4288, %v4522
      %v4621 = vadd.f32 %v4289, %v4527
      %v4622 = vadd.f32 %v4290, %v4530
      %v4623 = vadd.f32 %v4291, %v4535
      %v4624 = vadd.f32 %v4292, %v4538
      %v4625 = vadd.f32 %v4293, %v4543
      %v4626 = vadd.f32 %v4294, %v4546
      %v4627 = vadd.f32 %v4295, %v4551
      %v4628 = vadd.f32 %v4296, %v4554
      %v4629 = vadd.f32 %v4297, %v4559
      %v4630 = vadd.f32 %v4298, %v4562
      %v4631 = vadd.f32 %v4299, %v4567
      %v4632 = vadd.f32 %v4300, %v4570
      %v4633 = vadd.f32 %v4301, %v4575
      %v4634 = vadd.f32 %v4302, %v4578
      %v4635 = vadd.f32 %v4303, %v4583
      %v4636 = vadd.f32 %v4304, %v4586
      %v4637 = vadd.f32 %v4305, %v4591
      %v4638 = vadd.f32 %v4306, %v4594
      %v4639 = vadd.f32 %v4307, %v4599
      %v4640 = vadd.f32 %v4308, %v4602
      %v4641 = vld [vmem:[#allocation2 + $0x18] sm:$0xff]
      %v4642 = vld [vmem:[#allocation2 + $0x20] sm:$0xff]
      %v4643 = vld [vmem:[#allocation2 + $0x28] sm:$0xff]
      %v4644 = vld [vmem:[#allocation2 + $0x30] sm:$0xff]
      %v4645 = vld [vmem:[#allocation2 + $0x38] sm:$0xff]
      %v4646 = vld [vmem:[#allocation2 + $0x40] sm:$0xff]
      %v4647 = vld [vmem:[#allocation2 + $0x48] sm:$0xff]
      %v4648 = vld [vmem:[#allocation2 + $0x50] sm:$0xff]
      %v4649 = vld [vmem:[#allocation2 + $0x58] sm:$0xff]
      %v4650 = vld [vmem:[#allocation2 + $0x60] sm:$0xff]
      %v4651 = vld [vmem:[#allocation2 + $0x68] sm:$0xff]
      %v4652 = vld [vmem:[#allocation2 + $0x70] sm:$0xff]
      %v4653 = vld [vmem:[#allocation2 + $0x78] sm:$0xff]
      %v4654 = vld [vmem:[#allocation2 + $0x80] sm:$0xff]
      %v4655 = vld [vmem:[#allocation2 + $0x88] sm:$0xff]
      %v4656 = vld [vmem:[#allocation2 + $0x90] sm:$0xff]
      %v4657 = vld [vmem:[#allocation2 + $0x98] sm:$0xff]
      %v4658 = vld [vmem:[#allocation2 + $0xa0] sm:$0xff]
      %v4659 = vld [vmem:[#allocation2 + $0xa8] sm:$0xff]
      %v4660 = vld [vmem:[#allocation2 + $0xb0] sm:$0xff]
      %v4661 = vld [vmem:[#allocation2 + $0xb8] sm:$0xff]
      %v4662 = vld [vmem:[#allocation2 + $0xc0] sm:$0xff]
      %v4663 = vld [vmem:[#allocation2 + $0xc8] sm:$0xff]
      %v4664 = vld [vmem:[#allocation2 + $0xd0] sm:$0xff]
      %v4665 = vld [vmem:[#allocation2 + $0xd8] sm:$0xff]
      %v4666 = vld [vmem:[#allocation2 + $0xe0] sm:$0xff]
      %v4667 = vld [vmem:[#allocation2 + $0xe8] sm:$0xff]
      %v4668 = vld [vmem:[#allocation2 + $0xf0] sm:$0xff]
      %v4669 = vld [vmem:[#allocation2 + $0xf8] sm:$0xff]
      %v4670 = vld [vmem:[#allocation2 + $0x100] sm:$0xff]
      %v4671 = vld [vmem:[#allocation2 + $0x108] sm:$0xff]
      %v4672 = vld [vmem:[#allocation2 + $0x110] sm:$0xff]
      %v4673 = vld [vmem:[#allocation2 + $0x118] sm:$0xff]
      %v4674 = vld [vmem:[#allocation2 + $0x120] sm:$0xff]
      %v4675 = vld [vmem:[#allocation2 + $0x128] sm:$0xff]
      %v4676 = vld [vmem:[#allocation2 + $0x130] sm:$0xff]
      %v4677 = vpack.c.bf16 %v4642, %v4641
      %v4678 = vpack.c.bf16 %v4644, %v4643
      %v4679 = vpack.c.bf16 %v4646, %v4645
      %v4680 = vpack.c.bf16 %v4648, %v4647
      %v4681 = vpack.c.bf16 %v4650, %v4649
      %v4682 = vpack.c.bf16 %v4652, %v4651
      %v4683 = vpack.c.bf16 %v4654, %v4653
      %v4684 = vpack.c.bf16 %v4656, %v4655
      %v4685 = vpack.c.bf16 %v4658, %v4657
      %v4686 = vpack.c.bf16 %v4660, %v4659
      %v4687 = vpack.c.bf16 %v4662, %v4661
      %v4688 = vpack.c.bf16 %v4664, %v4663
      %v4689 = vpack.c.bf16 %v4666, %v4665
      %v4690 = vpack.c.bf16 %v4668, %v4667
      %v4691 = vpack.c.bf16 %v4670, %v4669
      %v4692 = vpack.c.bf16 %v4672, %v4671
      %v4693 = vpack.c.bf16 %v4674, %v4673
      %v4694 = vpack.c.bf16 %v4676, %v4675
      %s4695 = scalar_lea.vmem %s1, 832
      %v4696 = vld [vmem:[%s4695] sm:$0xf]
      %v4697 = vld [vmem:[%s4695 + $0x4] sm:$0xf]
      %v4698 = vld [vmem:[%s4695 + $0x8] sm:$0xf]
      %v4699 = vld [vmem:[%s4695 + $0xc] sm:$0xf]
      %v4700 = vld [vmem:[%s4695 + $0x10] sm:$0xf]
      %v4701 = vld [vmem:[%s4695 + $0x14] sm:$0xf]
      %v4702 = vld [vmem:[%s4695 + $0x18] sm:$0xf]
      %v4703 = vld [vmem:[%s4695 + $0x1c] sm:$0xf]
      %v4704 = vld [vmem:[%s4695 + $0x20] sm:$0xf]
      %v4705 = vld [vmem:[%s4695 + $0x24] sm:$0xf]
      %v4706 = vld [vmem:[%s4695 + $0x28] sm:$0xf]
      %v4707 = vld [vmem:[%s4695 + $0x2c] sm:$0xf]
      %v4708 = vld [vmem:[%s4695 + $0x30] sm:$0xf]
      %v4709 = vld [vmem:[%s4695 + $0x34] sm:$0xf]
      %v4710 = vld [vmem:[%s4695 + $0x38] sm:$0xf]
      %v4711 = vld [vmem:[%s4695 + $0x3c] sm:$0xf]
      %v4728 = vunpack.c.l.b16 %v4696
      %v4729 = vunpack.c.l.b16 %v4697
      %v4730 = vunpack.c.l.b16 %v4698
      %v4731 = vunpack.c.l.b16 %v4699
      %v4732 = vunpack.c.l.b16 %v4700
      %v4733 = vunpack.c.l.b16 %v4701
      %v4734 = vunpack.c.l.b16 %v4702
      %v4735 = vunpack.c.l.b16 %v4703
      %v4736 = vunpack.c.l.b16 %v4704
      %v4737 = vunpack.c.l.b16 %v4705
      %v4738 = vunpack.c.l.b16 %v4706
      %v4739 = vunpack.c.l.b16 %v4707
      %v4740 = vunpack.c.l.b16 %v4708
      %v4741 = vunpack.c.l.b16 %v4709
      %v4742 = vunpack.c.l.b16 %v4710
      %v4743 = vunpack.c.l.b16 %v4711
      %v4744 = vpack.c.b16 %v4729, %v4728
      %v4745 = vpack.c.b16 %v4731, %v4730
      %v4746 = vpack.c.b16 %v4733, %v4732
      %v4747 = vpack.c.b16 %v4735, %v4734
      %v4748 = vpack.c.b16 %v4737, %v4736
      %v4749 = vpack.c.b16 %v4739, %v4738
      %v4750 = vpack.c.b16 %v4741, %v4740
      %v4751 = vpack.c.b16 %v4743, %v4742
      %4760 = vmatprep.subr.bf16.mxu0 0
      %4761 = vmatpush1.bf16.msra.mxu0 %v4744
      %4762 = vmatprep.subr.bf16.mxu0 0
      %4763 = vmatpush1.bf16.msra.mxu0 %v4745
      %4764 = vmatprep.subr.bf16.mxu0 0
      %4765 = vmatpush1.bf16.msra.mxu0 %v4746
      %4766 = vmatprep.subr.bf16.mxu0 0
      %4767 = vmatpush1.bf16.msra.mxu0 %v4747
      %4768 = vmatprep.subr.bf16.mxu0 0
      %4769 = vmatpush1.bf16.msra.mxu0 %v4748
      %4770 = vmatprep.subr.bf16.mxu0 0
      %4771 = vmatpush1.bf16.msra.mxu0 %v4749
      %4772 = vmatprep.subr.bf16.mxu0 0
      %4773 = vmatpush1.bf16.msra.mxu0 %v4750
      %4774 = vmatprep.subr.bf16.mxu0 0
      %4775 = vmatpush1.bf16.msra.mxu0 %v4751
      %4776 = vmatprep.subr.bf16.mxu0 0
      %4777 = vmatpush1.bf16.msra.mxu0 0
      %4778 = vmatprep.subr.bf16.mxu0 0
      %4779 = vmatpush1.bf16.msra.mxu0 0
      %4780 = vmatprep.subr.bf16.mxu0 0
      %4781 = vmatpush1.bf16.msra.mxu0 0
      %4782 = vmatprep.subr.bf16.mxu0 0
      %4783 = vmatpush1.bf16.msra.mxu0 0
      %4784 = vmatprep.subr.bf16.mxu0 0
      %4785 = vmatpush1.bf16.msra.mxu0 0
      %4786 = vmatprep.subr.bf16.mxu0 0
      %4787 = vmatpush1.bf16.msra.mxu0 0
      %4788 = vmatprep.subr.bf16.mxu0 0
      %4789 = vmatpush1.bf16.msra.mxu0 0
      %4790 = vmatprep.subr.bf16.mxu0 0
      %4791 = vmatpush1.bf16.msra.mxu0 0
      %4792 = vmatprep.mubr.bf16.mxu0 0
      %4793 = vmatmul.mubr.bf16.gmra.mrb[0].mxu0 %v4677
      %v4794 = vpop.f32.mrb[0].mxu0
      %v4795 = vadd.f32 0.0, %v4794
      %v4796 = vpop.f32.mrb[0].mxu0
      %v4797 = vpop.f32.mrb[0].mxu0
      %v4798 = vadd.f32 0.0, %v4797
      %v4799 = vpop.f32.mrb[0].mxu0
      %4800 = vmatprep.mubr.bf16.mxu0 0
      %4801 = vmatmul.mubr.bf16.gmra.mrb[0].mxu0 %v4678
      %v4802 = vpop.f32.mrb[0].mxu0
      %v4803 = vadd.f32 0.0, %v4802
      %v4804 = vpop.f32.mrb[0].mxu0
      %v4805 = vpop.f32.mrb[0].mxu0
      %v4806 = vadd.f32 0.0, %v4805
      %v4807 = vpop.f32.mrb[0].mxu0
      %4808 = vmatprep.mubr.bf16.mxu0 0
      %4809 = vmatmul.mubr.bf16.gmra.mrb[0].mxu0 %v4679
      %v4810 = vpop.f32.mrb[0].mxu0
      %v4811 = vadd.f32 0.0, %v4810
      %v4812 = vpop.f32.mrb[0].mxu0
      %v4813 = vpop.f32.mrb[0].mxu0
      %v4814 = vadd.f32 0.0, %v4813
      %v4815 = vpop.f32.mrb[0].mxu0
      %4816 = vmatprep.mubr.bf16.mxu0 0
      %4817 = vmatmul.mubr.bf16.gmra.mrb[0].mxu0 %v4680
      %v4818 = vpop.f32.mrb[0].mxu0
      %v4819 = vadd.f32 0.0, %v4818
      %v4820 = vpop.f32.mrb[0].mxu0
      %v4821 = vpop.f32.mrb[0].mxu0
      %v4822 = vadd.f32 0.0, %v4821
      %v4823 = vpop.f32.mrb[0].mxu0
      %4824 = vmatprep.mubr.bf16.mxu0 0
      %4825 = vmatmul.mubr.bf16.gmra.mrb[0].mxu0 %v4681
      %v4826 = vpop.f32.mrb[0].mxu0
      %v4827 = vadd.f32 0.0, %v4826
      %v4828 = vpop.f32.mrb[0].mxu0
      %v4829 = vpop.f32.mrb[0].mxu0
      %v4830 = vadd.f32 0.0, %v4829
      %v4831 = vpop.f32.mrb[0].mxu0
      %4832 = vmatprep.mubr.bf16.mxu0 0
      %4833 = vmatmul.mubr.bf16.gmra.mrb[0].mxu0 %v4682
      %v4834 = vpop.f32.mrb[0].mxu0
      %v4835 = vadd.f32 0.0, %v4834
      %v4836 = vpop.f32.mrb[0].mxu0
      %v4837 = vpop.f32.mrb[0].mxu0
      %v4838 = vadd.f32 0.0, %v4837
      %v4839 = vpop.f32.mrb[0].mxu0
      %4840 = vmatprep.mubr.bf16.mxu0 0
      %4841 = vmatmul.mubr.bf16.gmra.mrb[0].mxu0 %v4683
      %v4842 = vpop.f32.mrb[0].mxu0
      %v4843 = vadd.f32 0.0, %v4842
      %v4844 = vpop.f32.mrb[0].mxu0
      %v4845 = vpop.f32.mrb[0].mxu0
      %v4846 = vadd.f32 0.0, %v4845
      %v4847 = vpop.f32.mrb[0].mxu0
      %4848 = vmatprep.mubr.bf16.mxu0 0
      %4849 = vmatmul.mubr.bf16.gmra.mrb[0].mxu0 %v4684
      %v4850 = vpop.f32.mrb[0].mxu0
      %v4851 = vadd.f32 0.0, %v4850
      %v4852 = vpop.f32.mrb[0].mxu0
      %v4853 = vpop.f32.mrb[0].mxu0
      %v4854 = vadd.f32 0.0, %v4853
      %v4855 = vpop.f32.mrb[0].mxu0
      %4856 = vmatprep.mubr.bf16.mxu0 0
      %4857 = vmatmul.mubr.bf16.gmra.mrb[0].mxu0 %v4685
      %v4858 = vpop.f32.mrb[0].mxu0
      %v4859 = vadd.f32 0.0, %v4858
      %v4860 = vpop.f32.mrb[0].mxu0
      %v4861 = vpop.f32.mrb[0].mxu0
      %v4862 = vadd.f32 0.0, %v4861
      %v4863 = vpop.f32.mrb[0].mxu0
      %4864 = vmatprep.mubr.bf16.mxu0 0
      %4865 = vmatmul.mubr.bf16.gmra.mrb[0].mxu0 %v4686
      %v4866 = vpop.f32.mrb[0].mxu0
      %v4867 = vadd.f32 0.0, %v4866
      %v4868 = vpop.f32.mrb[0].mxu0
      %v4869 = vpop.f32.mrb[0].mxu0
      %v4870 = vadd.f32 0.0, %v4869
      %v4871 = vpop.f32.mrb[0].mxu0
      %4872 = vmatprep.mubr.bf16.mxu0 0
      %4873 = vmatmul.mubr.bf16.gmra.mrb[0].mxu0 %v4687
      %v4874 = vpop.f32.mrb[0].mxu0
      %v4875 = vadd.f32 0.0, %v4874
      %v4876 = vpop.f32.mrb[0].mxu0
      %v4877 = vpop.f32.mrb[0].mxu0
      %v4878 = vadd.f32 0.0, %v4877
      %v4879 = vpop.f32.mrb[0].mxu0
      %4880 = vmatprep.mubr.bf16.mxu0 0
      %4881 = vmatmul.mubr.bf16.gmra.mrb[0].mxu0 %v4688
      %v4882 = vpop.f32.mrb[0].mxu0
      %v4883 = vadd.f32 0.0, %v4882
      %v4884 = vpop.f32.mrb[0].mxu0
      %v4885 = vpop.f32.mrb[0].mxu0
      %v4886 = vadd.f32 0.0, %v4885
      %v4887 = vpop.f32.mrb[0].mxu0
      %4888 = vmatprep.mubr.bf16.mxu0 0
      %4889 = vmatmul.mubr.bf16.gmra.mrb[0].mxu0 %v4689
      %v4890 = vpop.f32.mrb[0].mxu0
      %v4891 = vadd.f32 0.0, %v4890
      %v4892 = vpop.f32.mrb[0].mxu0
      %v4893 = vpop.f32.mrb[0].mxu0
      %v4894 = vadd.f32 0.0, %v4893
      %v4895 = vpop.f32.mrb[0].mxu0
      %4896 = vmatprep.mubr.bf16.mxu0 0
      %4897 = vmatmul.mubr.bf16.gmra.mrb[0].mxu0 %v4690
      %v4898 = vpop.f32.mrb[0].mxu0
      %v4899 = vadd.f32 0.0, %v4898
      %v4900 = vpop.f32.mrb[0].mxu0
      %v4901 = vpop.f32.mrb[0].mxu0
      %v4902 = vadd.f32 0.0, %v4901
      %v4903 = vpop.f32.mrb[0].mxu0
      %4904 = vmatprep.mubr.bf16.mxu0 0
      %4905 = vmatmul.mubr.bf16.gmra.mrb[0].mxu0 %v4691
      %v4906 = vpop.f32.mrb[0].mxu0
      %v4907 = vadd.f32 0.0, %v4906
      %v4908 = vpop.f32.mrb[0].mxu0
      %v4909 = vpop.f32.mrb[0].mxu0
      %v4910 = vadd.f32 0.0, %v4909
      %v4911 = vpop.f32.mrb[0].mxu0
      %4912 = vmatprep.mubr.bf16.mxu0 0
      %4913 = vmatmul.mubr.bf16.gmra.mrb[0].mxu0 %v4692
      %v4914 = vpop.f32.mrb[0].mxu0
      %v4915 = vadd.f32 0.0, %v4914
      %v4916 = vpop.f32.mrb[0].mxu0
      %v4917 = vpop.f32.mrb[0].mxu0
      %v4918 = vadd.f32 0.0, %v4917
      %v4919 = vpop.f32.mrb[0].mxu0
      %4920 = vmatprep.mubr.bf16.mxu0 0
      %4921 = vmatmul.mubr.bf16.gmra.mrb[0].mxu0 %v4693
      %v4922 = vpop.f32.mrb[0].mxu0
      %v4923 = vadd.f32 0.0, %v4922
      %v4924 = vpop.f32.mrb[0].mxu0
      %v4925 = vpop.f32.mrb[0].mxu0
      %v4926 = vadd.f32 0.0, %v4925
      %v4927 = vpop.f32.mrb[0].mxu0
      %4928 = vmatprep.mubr.bf16.mxu0 0
      %4929 = vmatmul.mubr.bf16.gmra.mrb[0].mxu0 %v4694
      %v4930 = vpop.f32.mrb[0].mxu0
      %v4931 = vadd.f32 0.0, %v4930
      %v4932 = vpop.f32.mrb[0].mxu0
      %v4933 = vpop.f32.mrb[0].mxu0
      %v4934 = vadd.f32 0.0, %v4933
      %v4935 = vpop.f32.mrb[0].mxu0
      %4936 = vdwg.mxu0
      %v4937 = vadd.f32 %v4605, %v4795
      %v4938 = vadd.f32 %v4606, %v4798
      %v4939 = vadd.f32 %v4607, %v4803
      %v4940 = vadd.f32 %v4608, %v4806
      %v4941 = vadd.f32 %v4609, %v4811
      %v4942 = vadd.f32 %v4610, %v4814
      %v4943 = vadd.f32 %v4611, %v4819
      %v4944 = vadd.f32 %v4612, %v4822
      %v4945 = vadd.f32 %v4613, %v4827
      %v4946 = vadd.f32 %v4614, %v4830
      %v4947 = vadd.f32 %v4615, %v4835
      %v4948 = vadd.f32 %v4616, %v4838
      %v4949 = vadd.f32 %v4617, %v4843
      %v4950 = vadd.f32 %v4618, %v4846
      %v4951 = vadd.f32 %v4619, %v4851
      %v4952 = vadd.f32 %v4620, %v4854
      %v4953 = vadd.f32 %v4621, %v4859
      %v4954 = vadd.f32 %v4622, %v4862
      %v4955 = vadd.f32 %v4623, %v4867
      %v4956 = vadd.f32 %v4624, %v4870
      %v4957 = vadd.f32 %v4625, %v4875
      %v4958 = vadd.f32 %v4626, %v4878
      %v4959 = vadd.f32 %v4627, %v4883
      %v4960 = vadd.f32 %v4628, %v4886
      %v4961 = vadd.f32 %v4629, %v4891
      %v4962 = vadd.f32 %v4630, %v4894
      %v4963 = vadd.f32 %v4631, %v4899
      %v4964 = vadd.f32 %v4632, %v4902
      %v4965 = vadd.f32 %v4633, %v4907
      %v4966 = vadd.f32 %v4634, %v4910
      %v4967 = vadd.f32 %v4635, %v4915
      %v4968 = vadd.f32 %v4636, %v4918
      %v4969 = vadd.f32 %v4637, %v4923
      %v4970 = vadd.f32 %v4638, %v4926
      %v4971 = vadd.f32 %v4639, %v4931
      %v4972 = vadd.f32 %v4640, %v4934
      %v4973 = vld [vmem:[#allocation2 + $0x19] sm:$0xff]
      %v4974 = vld [vmem:[#allocation2 + $0x21] sm:$0xff]
      %v4975 = vld [vmem:[#allocation2 + $0x29] sm:$0xff]
      %v4976 = vld [vmem:[#allocation2 + $0x31] sm:$0xff]
      %v4977 = vld [vmem:[#allocation2 + $0x39] sm:$0xff]
      %v4978 = vld [vmem:[#allocation2 + $0x41] sm:$0xff]
      %v4979 = vld [vmem:[#allocation2 + $0x49] sm:$0xff]
      %v4980 = vld [vmem:[#allocation2 + $0x51] sm:$0xff]
      %v4981 = vld [vmem:[#allocation2 + $0x59] sm:$0xff]
      %v4982 = vld [vmem:[#allocation2 + $0x61] sm:$0xff]
      %v4983 = vld [vmem:[#allocation2 + $0x69] sm:$0xff]
      %v4984 = vld [vmem:[#allocation2 + $0x71] sm:$0xff]
      %v4985 = vld [vmem:[#allocation2 + $0x79] sm:$0xff]
      %v4986 = vld [vmem:[#allocation2 + $0x81] sm:$0xff]
      %v4987 = vld [vmem:[#allocation2 + $0x89] sm:$0xff]
      %v4988 = vld [vmem:[#allocation2 + $0x91] sm:$0xff]
      %v4989 = vld [vmem:[#allocation2 + $0x99] sm:$0xff]
      %v4990 = vld [vmem:[#allocation2 + $0xa1] sm:$0xff]
      %v4991 = vld [vmem:[#allocation2 + $0xa9] sm:$0xff]
      %v4992 = vld [vmem:[#allocation2 + $0xb1] sm:$0xff]
      %v4993 = vld [vmem:[#allocation2 + $0xb9] sm:$0xff]
      %v4994 = vld [vmem:[#allocation2 + $0xc1] sm:$0xff]
      %v4995 = vld [vmem:[#allocation2 + $0xc9] sm:$0xff]
      %v4996 = vld [vmem:[#allocation2 + $0xd1] sm:$0xff]
      %v4997 = vld [vmem:[#allocation2 + $0xd9] sm:$0xff]
      %v4998 = vld [vmem:[#allocation2 + $0xe1] sm:$0xff]
      %v4999 = vld [vmem:[#allocation2 + $0xe9] sm:$0xff]
      %v5000 = vld [vmem:[#allocation2 + $0xf1] sm:$0xff]
      %v5001 = vld [vmem:[#allocation2 + $0xf9] sm:$0xff]
      %v5002 = vld [vmem:[#allocation2 + $0x101] sm:$0xff]
      %v5003 = vld [vmem:[#allocation2 + $0x109] sm:$0xff]
      %v5004 = vld [vmem:[#allocation2 + $0x111] sm:$0xff]
      %v5005 = vld [vmem:[#allocation2 + $0x119] sm:$0xff]
      %v5006 = vld [vmem:[#allocation2 + $0x121] sm:$0xff]
      %v5007 = vld [vmem:[#allocation2 + $0x129] sm:$0xff]
      %v5008 = vld [vmem:[#allocation2 + $0x131] sm:$0xff]
      %v5009 = vpack.c.bf16 %v4974, %v4973
      %v5010 = vpack.c.bf16 %v4976, %v4975
      %v5011 = vpack.c.bf16 %v4978, %v4977
      %v5012 = vpack.c.bf16 %v4980, %v4979
      %v5013 = vpack.c.bf16 %v4982, %v4981
      %v5014 = vpack.c.bf16 %v4984, %v4983
      %v5015 = vpack.c.bf16 %v4986, %v4985
      %v5016 = vpack.c.bf16 %v4988, %v4987
      %v5017 = vpack.c.bf16 %v4990, %v4989
      %v5018 = vpack.c.bf16 %v4992, %v4991
      %v5019 = vpack.c.bf16 %v4994, %v4993
      %v5020 = vpack.c.bf16 %v4996, %v4995
      %v5021 = vpack.c.bf16 %v4998, %v4997
      %v5022 = vpack.c.bf16 %v5000, %v4999
      %v5023 = vpack.c.bf16 %v5002, %v5001
      %v5024 = vpack.c.bf16 %v5004, %v5003
      %v5025 = vpack.c.bf16 %v5006, %v5005
      %v5026 = vpack.c.bf16 %v5008, %v5007
      %s5027 = scalar_lea.vmem %s1, 896
      %v5028 = vld [vmem:[%s5027] sm:$0xf]
      %v5029 = vld [vmem:[%s5027 + $0x4] sm:$0xf]
      %v5030 = vld [vmem:[%s5027 + $0x8] sm:$0xf]
      %v5031 = vld [vmem:[%s5027 + $0xc] sm:$0xf]
      %v5032 = vld [vmem:[%s5027 + $0x10] sm:$0xf]
      %v5033 = vld [vmem:[%s5027 + $0x14] sm:$0xf]
      %v5034 = vld [vmem:[%s5027 + $0x18] sm:$0xf]
      %v5035 = vld [vmem:[%s5027 + $0x1c] sm:$0xf]
      %v5036 = vld [vmem:[%s5027 + $0x20] sm:$0xf]
      %v5037 = vld [vmem:[%s5027 + $0x24] sm:$0xf]
      %v5038 = vld [vmem:[%s5027 + $0x28] sm:$0xf]
      %v5039 = vld [vmem:[%s5027 + $0x2c] sm:$0xf]
      %v5040 = vld [vmem:[%s5027 + $0x30] sm:$0xf]
      %v5041 = vld [vmem:[%s5027 + $0x34] sm:$0xf]
      %v5042 = vld [vmem:[%s5027 + $0x38] sm:$0xf]
      %v5043 = vld [vmem:[%s5027 + $0x3c] sm:$0xf]
      %v5060 = vunpack.c.l.b16 %v5028
      %v5061 = vunpack.c.l.b16 %v5029
      %v5062 = vunpack.c.l.b16 %v5030
      %v5063 = vunpack.c.l.b16 %v5031
      %v5064 = vunpack.c.l.b16 %v5032
      %v5065 = vunpack.c.l.b16 %v5033
      %v5066 = vunpack.c.l.b16 %v5034
      %v5067 = vunpack.c.l.b16 %v5035
      %v5068 = vunpack.c.l.b16 %v5036
      %v5069 = vunpack.c.l.b16 %v5037
      %v5070 = vunpack.c.l.b16 %v5038
      %v5071 = vunpack.c.l.b16 %v5039
      %v5072 = vunpack.c.l.b16 %v5040
      %v5073 = vunpack.c.l.b16 %v5041
      %v5074 = vunpack.c.l.b16 %v5042
      %v5075 = vunpack.c.l.b16 %v5043
      %v5076 = vpack.c.b16 %v5061, %v5060
      %v5077 = vpack.c.b16 %v5063, %v5062
      %v5078 = vpack.c.b16 %v5065, %v5064
      %v5079 = vpack.c.b16 %v5067, %v5066
      %v5080 = vpack.c.b16 %v5069, %v5068
      %v5081 = vpack.c.b16 %v5071, %v5070
      %v5082 = vpack.c.b16 %v5073, %v5072
      %v5083 = vpack.c.b16 %v5075, %v5074
      %5092 = vmatprep.subr.bf16.mxu0 0
      %5093 = vmatpush1.bf16.msra.mxu0 %v5076
      %5094 = vmatprep.subr.bf16.mxu0 0
      %5095 = vmatpush1.bf16.msra.mxu0 %v5077
      %5096 = vmatprep.subr.bf16.mxu0 0
      %5097 = vmatpush1.bf16.msra.mxu0 %v5078
      %5098 = vmatprep.subr.bf16.mxu0 0
      %5099 = vmatpush1.bf16.msra.mxu0 %v5079
      %5100 = vmatprep.subr.bf16.mxu0 0
      %5101 = vmatpush1.bf16.msra.mxu0 %v5080
      %5102 = vmatprep.subr.bf16.mxu0 0
      %5103 = vmatpush1.bf16.msra.mxu0 %v5081
      %5104 = vmatprep.subr.bf16.mxu0 0
      %5105 = vmatpush1.bf16.msra.mxu0 %v5082
      %5106 = vmatprep.subr.bf16.mxu0 0
      %5107 = vmatpush1.bf16.msra.mxu0 %v5083
      %5108 = vmatprep.subr.bf16.mxu0 0
      %5109 = vmatpush1.bf16.msra.mxu0 0
      %5110 = vmatprep.subr.bf16.mxu0 0
      %5111 = vmatpush1.bf16.msra.mxu0 0
      %5112 = vmatprep.subr.bf16.mxu0 0
      %5113 = vmatpush1.bf16.msra.mxu0 0
      %5114 = vmatprep.subr.bf16.mxu0 0
      %5115 = vmatpush1.bf16.msra.mxu0 0
      %5116 = vmatprep.subr.bf16.mxu0 0
      %5117 = vmatpush1.bf16.msra.mxu0 0
      %5118 = vmatprep.subr.bf16.mxu0 0
      %5119 = vmatpush1.bf16.msra.mxu0 0
      %5120 = vmatprep.subr.bf16.mxu0 0
      %5121 = vmatpush1.bf16.msra.mxu0 0
      %5122 = vmatprep.subr.bf16.mxu0 0
      %5123 = vmatpush1.bf16.msra.mxu0 0
      %5124 = vmatprep.mubr.bf16.mxu0 0
      %5125 = vmatmul.mubr.bf16.gmra.mrb[0].mxu0 %v5009
      %v5126 = vpop.f32.mrb[0].mxu0
      %v5127 = vadd.f32 0.0, %v5126
      %v5128 = vpop.f32.mrb[0].mxu0
      %v5129 = vpop.f32.mrb[0].mxu0
      %v5130 = vadd.f32 0.0, %v5129
      %v5131 = vpop.f32.mrb[0].mxu0
      %5132 = vmatprep.mubr.bf16.mxu0 0
      %5133 = vmatmul.mubr.bf16.gmra.mrb[0].mxu0 %v5010
      %v5134 = vpop.f32.mrb[0].mxu0
      %v5135 = vadd.f32 0.0, %v5134
      %v5136 = vpop.f32.mrb[0].mxu0
      %v5137 = vpop.f32.mrb[0].mxu0
      %v5138 = vadd.f32 0.0, %v5137
      %v5139 = vpop.f32.mrb[0].mxu0
      %5140 = vmatprep.mubr.bf16.mxu0 0
      %5141 = vmatmul.mubr.bf16.gmra.mrb[0].mxu0 %v5011
      %v5142 = vpop.f32.mrb[0].mxu0
      %v5143 = vadd.f32 0.0, %v5142
      %v5144 = vpop.f32.mrb[0].mxu0
      %v5145 = vpop.f32.mrb[0].mxu0
      %v5146 = vadd.f32 0.0, %v5145
      %v5147 = vpop.f32.mrb[0].mxu0
      %5148 = vmatprep.mubr.bf16.mxu0 0
      %5149 = vmatmul.mubr.bf16.gmra.mrb[0].mxu0 %v5012
      %v5150 = vpop.f32.mrb[0].mxu0
      %v5151 = vadd.f32 0.0, %v5150
      %v5152 = vpop.f32.mrb[0].mxu0
      %v5153 = vpop.f32.mrb[0].mxu0
      %v5154 = vadd.f32 0.0, %v5153
      %v5155 = vpop.f32.mrb[0].mxu0
      %5156 = vmatprep.mubr.bf16.mxu0 0
      %5157 = vmatmul.mubr.bf16.gmra.mrb[0].mxu0 %v5013
      %v5158 = vpop.f32.mrb[0].mxu0
      %v5159 = vadd.f32 0.0, %v5158
      %v5160 = vpop.f32.mrb[0].mxu0
      %v5161 = vpop.f32.mrb[0].mxu0
      %v5162 = vadd.f32 0.0, %v5161
      %v5163 = vpop.f32.mrb[0].mxu0
      %5164 = vmatprep.mubr.bf16.mxu0 0
      %5165 = vmatmul.mubr.bf16.gmra.mrb[0].mxu0 %v5014
      %v5166 = vpop.f32.mrb[0].mxu0
      %v5167 = vadd.f32 0.0, %v5166
      %v5168 = vpop.f32.mrb[0].mxu0
      %v5169 = vpop.f32.mrb[0].mxu0
      %v5170 = vadd.f32 0.0, %v5169
      %v5171 = vpop.f32.mrb[0].mxu0
      %5172 = vmatprep.mubr.bf16.mxu0 0
      %5173 = vmatmul.mubr.bf16.gmra.mrb[0].mxu0 %v5015
      %v5174 = vpop.f32.mrb[0].mxu0
      %v5175 = vadd.f32 0.0, %v5174
      %v5176 = vpop.f32.mrb[0].mxu0
      %v5177 = vpop.f32.mrb[0].mxu0
      %v5178 = vadd.f32 0.0, %v5177
      %v5179 = vpop.f32.mrb[0].mxu0
      %5180 = vmatprep.mubr.bf16.mxu0 0
      %5181 = vmatmul.mubr.bf16.gmra.mrb[0].mxu0 %v5016
      %v5182 = vpop.f32.mrb[0].mxu0
      %v5183 = vadd.f32 0.0, %v5182
      %v5184 = vpop.f32.mrb[0].mxu0
      %v5185 = vpop.f32.mrb[0].mxu0
      %v5186 = vadd.f32 0.0, %v5185
      %v5187 = vpop.f32.mrb[0].mxu0
      %5188 = vmatprep.mubr.bf16.mxu0 0
      %5189 = vmatmul.mubr.bf16.gmra.mrb[0].mxu0 %v5017
      %v5190 = vpop.f32.mrb[0].mxu0
      %v5191 = vadd.f32 0.0, %v5190
      %v5192 = vpop.f32.mrb[0].mxu0
      %v5193 = vpop.f32.mrb[0].mxu0
      %v5194 = vadd.f32 0.0, %v5193
      %v5195 = vpop.f32.mrb[0].mxu0
      %5196 = vmatprep.mubr.bf16.mxu0 0
      %5197 = vmatmul.mubr.bf16.gmra.mrb[0].mxu0 %v5018
      %v5198 = vpop.f32.mrb[0].mxu0
      %v5199 = vadd.f32 0.0, %v5198
      %v5200 = vpop.f32.mrb[0].mxu0
      %v5201 = vpop.f32.mrb[0].mxu0
      %v5202 = vadd.f32 0.0, %v5201
      %v5203 = vpop.f32.mrb[0].mxu0
      %5204 = vmatprep.mubr.bf16.mxu0 0
      %5205 = vmatmul.mubr.bf16.gmra.mrb[0].mxu0 %v5019
      %v5206 = vpop.f32.mrb[0].mxu0
      %v5207 = vadd.f32 0.0, %v5206
      %v5208 = vpop.f32.mrb[0].mxu0
      %v5209 = vpop.f32.mrb[0].mxu0
      %v5210 = vadd.f32 0.0, %v5209
      %v5211 = vpop.f32.mrb[0].mxu0
      %5212 = vmatprep.mubr.bf16.mxu0 0
      %5213 = vmatmul.mubr.bf16.gmra.mrb[0].mxu0 %v5020
      %v5214 = vpop.f32.mrb[0].mxu0
      %v5215 = vadd.f32 0.0, %v5214
      %v5216 = vpop.f32.mrb[0].mxu0
      %v5217 = vpop.f32.mrb[0].mxu0
      %v5218 = vadd.f32 0.0, %v5217
      %v5219 = vpop.f32.mrb[0].mxu0
      %5220 = vmatprep.mubr.bf16.mxu0 0
      %5221 = vmatmul.mubr.bf16.gmra.mrb[0].mxu0 %v5021
      %v5222 = vpop.f32.mrb[0].mxu0
      %v5223 = vadd.f32 0.0, %v5222
      %v5224 = vpop.f32.mrb[0].mxu0
      %v5225 = vpop.f32.mrb[0].mxu0
      %v5226 = vadd.f32 0.0, %v5225
      %v5227 = vpop.f32.mrb[0].mxu0
      %5228 = vmatprep.mubr.bf16.mxu0 0
      %5229 = vmatmul.mubr.bf16.gmra.mrb[0].mxu0 %v5022
      %v5230 = vpop.f32.mrb[0].mxu0
      %v5231 = vadd.f32 0.0, %v5230
      %v5232 = vpop.f32.mrb[0].mxu0
      %v5233 = vpop.f32.mrb[0].mxu0
      %v5234 = vadd.f32 0.0, %v5233
      %v5235 = vpop.f32.mrb[0].mxu0
      %5236 = vmatprep.mubr.bf16.mxu0 0
      %5237 = vmatmul.mubr.bf16.gmra.mrb[0].mxu0 %v5023
      %v5238 = vpop.f32.mrb[0].mxu0
      %v5239 = vadd.f32 0.0, %v5238
      %v5240 = vpop.f32.mrb[0].mxu0
      %v5241 = vpop.f32.mrb[0].mxu0
      %v5242 = vadd.f32 0.0, %v5241
      %v5243 = vpop.f32.mrb[0].mxu0
      %5244 = vmatprep.mubr.bf16.mxu0 0
      %5245 = vmatmul.mubr.bf16.gmra.mrb[0].mxu0 %v5024
      %v5246 = vpop.f32.mrb[0].mxu0
      %v5247 = vadd.f32 0.0, %v5246
      %v5248 = vpop.f32.mrb[0].mxu0
      %v5249 = vpop.f32.mrb[0].mxu0
      %v5250 = vadd.f32 0.0, %v5249
      %v5251 = vpop.f32.mrb[0].mxu0
      %5252 = vmatprep.mubr.bf16.mxu0 0
      %5253 = vmatmul.mubr.bf16.gmra.mrb[0].mxu0 %v5025
      %v5254 = vpop.f32.mrb[0].mxu0
      %v5255 = vadd.f32 0.0, %v5254
      %v5256 = vpop.f32.mrb[0].mxu0
      %v5257 = vpop.f32.mrb[0].mxu0
      %v5258 = vadd.f32 0.0, %v5257
      %v5259 = vpop.f32.mrb[0].mxu0
      %5260 = vmatprep.mubr.bf16.mxu0 0
      %5261 = vmatmul.mubr.bf16.gmra.mrb[0].mxu0 %v5026
      %v5262 = vpop.f32.mrb[0].mxu0
      %v5263 = vadd.f32 0.0, %v5262
      %v5264 = vpop.f32.mrb[0].mxu0
      %v5265 = vpop.f32.mrb[0].mxu0
      %v5266 = vadd.f32 0.0, %v5265
      %v5267 = vpop.f32.mrb[0].mxu0
      %5268 = vdwg.mxu0
      %v5269 = vadd.f32 %v4937, %v5127
      %v5270 = vadd.f32 %v4938, %v5130
      %v5271 = vadd.f32 %v4939, %v5135
      %v5272 = vadd.f32 %v4940, %v5138
      %v5273 = vadd.f32 %v4941, %v5143
      %v5274 = vadd.f32 %v4942, %v5146
      %v5275 = vadd.f32 %v4943, %v5151
      %v5276 = vadd.f32 %v4944, %v5154
      %v5277 = vadd.f32 %v4945, %v5159
      %v5278 = vadd.f32 %v4946, %v5162
      %v5279 = vadd.f32 %v4947, %v5167
      %v5280 = vadd.f32 %v4948, %v5170
      %v5281 = vadd.f32 %v4949, %v5175
      %v5282 = vadd.f32 %v4950, %v5178
      %v5283 = vadd.f32 %v4951, %v5183
      %v5284 = vadd.f32 %v4952, %v5186
      %v5285 = vadd.f32 %v4953, %v5191
      %v5286 = vadd.f32 %v4954, %v5194
      %v5287 = vadd.f32 %v4955, %v5199
      %v5288 = vadd.f32 %v4956, %v5202
      %v5289 = vadd.f32 %v4957, %v5207
      %v5290 = vadd.f32 %v4958, %v5210
      %v5291 = vadd.f32 %v4959, %v5215
      %v5292 = vadd.f32 %v4960, %v5218
      %v5293 = vadd.f32 %v4961, %v5223
      %v5294 = vadd.f32 %v4962, %v5226
      %v5295 = vadd.f32 %v4963, %v5231
      %v5296 = vadd.f32 %v4964, %v5234
      %v5297 = vadd.f32 %v4965, %v5239
      %v5298 = vadd.f32 %v4966, %v5242
      %v5299 = vadd.f32 %v4967, %v5247
      %v5300 = vadd.f32 %v4968, %v5250
      %v5301 = vadd.f32 %v4969, %v5255
      %v5302 = vadd.f32 %v4970, %v5258
      %v5303 = vadd.f32 %v4971, %v5263
      %v5304 = vadd.f32 %v4972, %v5266
      %v5305 = vld [vmem:[#allocation2 + $0x29] sm:$0xff]
      %v5306 = vld [vmem:[#allocation2 + $0x31] sm:$0xff]
      %v5307 = vld [vmem:[#allocation2 + $0x39] sm:$0xff]
      %v5308 = vld [vmem:[#allocation2 + $0x41] sm:$0xff]
      %v5309 = vld [vmem:[#allocation2 + $0x49] sm:$0xff]
      %v5310 = vld [vmem:[#allocation2 + $0x51] sm:$0xff]
      %v5311 = vld [vmem:[#allocation2 + $0x59] sm:$0xff]
      %v5312 = vld [vmem:[#allocation2 + $0x61] sm:$0xff]
      %v5313 = vld [vmem:[#allocation2 + $0x69] sm:$0xff]
      %v5314 = vld [vmem:[#allocation2 + $0x71] sm:$0xff]
      %v5315 = vld [vmem:[#allocation2 + $0x79] sm:$0xff]
      %v5316 = vld [vmem:[#allocation2 + $0x81] sm:$0xff]
      %v5317 = vld [vmem:[#allocation2 + $0x89] sm:$0xff]
      %v5318 = vld [vmem:[#allocation2 + $0x91] sm:$0xff]
      %v5319 = vld [vmem:[#allocation2 + $0x99] sm:$0xff]
      %v5320 = vld [vmem:[#allocation2 + $0xa1] sm:$0xff]
      %v5321 = vld [vmem:[#allocation2 + $0xa9] sm:$0xff]
      %v5322 = vld [vmem:[#allocation2 + $0xb1] sm:$0xff]
      %v5323 = vld [vmem:[#allocation2 + $0xb9] sm:$0xff]
      %v5324 = vld [vmem:[#allocation2 + $0xc1] sm:$0xff]
      %v5325 = vld [vmem:[#allocation2 + $0xc9] sm:$0xff]
      %v5326 = vld [vmem:[#allocation2 + $0xd1] sm:$0xff]
      %v5327 = vld [vmem:[#allocation2 + $0xd9] sm:$0xff]
      %v5328 = vld [vmem:[#allocation2 + $0xe1] sm:$0xff]
      %v5329 = vld [vmem:[#allocation2 + $0xe9] sm:$0xff]
      %v5330 = vld [vmem:[#allocation2 + $0xf1] sm:$0xff]
      %v5331 = vld [vmem:[#allocation2 + $0xf9] sm:$0xff]
      %v5332 = vld [vmem:[#allocation2 + $0x101] sm:$0xff]
      %v5333 = vld [vmem:[#allocation2 + $0x109] sm:$0xff]
      %v5334 = vld [vmem:[#allocation2 + $0x111] sm:$0xff]
      %v5335 = vld [vmem:[#allocation2 + $0x119] sm:$0xff]
      %v5336 = vld [vmem:[#allocation2 + $0x121] sm:$0xff]
      %v5337 = vld [vmem:[#allocation2 + $0x129] sm:$0xff]
      %v5338 = vld [vmem:[#allocation2 + $0x131] sm:$0xff]
      %v5339 = vld [vmem:[#allocation2 + $0x139] sm:$0xff]
      %v5340 = vld [vmem:[#allocation2 + $0x141] sm:$0xff]
      %v5341 = vpack.c.bf16 %v5306, %v5305
      %v5342 = vpack.c.bf16 %v5308, %v5307
      %v5343 = vpack.c.bf16 %v5310, %v5309
      %v5344 = vpack.c.bf16 %v5312, %v5311
      %v5345 = vpack.c.bf16 %v5314, %v5313
      %v5346 = vpack.c.bf16 %v5316, %v5315
      %v5347 = vpack.c.bf16 %v5318, %v5317
      %v5348 = vpack.c.bf16 %v5320, %v5319
      %v5349 = vpack.c.bf16 %v5322, %v5321
      %v5350 = vpack.c.bf16 %v5324, %v5323
      %v5351 = vpack.c.bf16 %v5326, %v5325
      %v5352 = vpack.c.bf16 %v5328, %v5327
      %v5353 = vpack.c.bf16 %v5330, %v5329
      %v5354 = vpack.c.bf16 %v5332, %v5331
      %v5355 = vpack.c.bf16 %v5334, %v5333
      %v5356 = vpack.c.bf16 %v5336, %v5335
      %v5357 = vpack.c.bf16 %v5338, %v5337
      %v5358 = vpack.c.bf16 %v5340, %v5339
      %s5359 = scalar_lea.vmem %s1, 960
      %v5360 = vld [vmem:[%s5359] sm:$0xf]
      %v5361 = vld [vmem:[%s5359 + $0x4] sm:$0xf]
      %v5362 = vld [vmem:[%s5359 + $0x8] sm:$0xf]
      %v5363 = vld [vmem:[%s5359 + $0xc] sm:$0xf]
      %v5364 = vld [vmem:[%s5359 + $0x10] sm:$0xf]
      %v5365 = vld [vmem:[%s5359 + $0x14] sm:$0xf]
      %v5366 = vld [vmem:[%s5359 + $0x18] sm:$0xf]
      %v5367 = vld [vmem:[%s5359 + $0x1c] sm:$0xf]
      %v5368 = vld [vmem:[%s5359 + $0x20] sm:$0xf]
      %v5369 = vld [vmem:[%s5359 + $0x24] sm:$0xf]
      %v5370 = vld [vmem:[%s5359 + $0x28] sm:$0xf]
      %v5371 = vld [vmem:[%s5359 + $0x2c] sm:$0xf]
      %v5372 = vld [vmem:[%s5359 + $0x30] sm:$0xf]
      %v5373 = vld [vmem:[%s5359 + $0x34] sm:$0xf]
      %v5374 = vld [vmem:[%s5359 + $0x38] sm:$0xf]
      %v5375 = vld [vmem:[%s5359 + $0x3c] sm:$0xf]
      %v5392 = vunpack.c.l.b16 %v5360
      %v5393 = vunpack.c.l.b16 %v5361
      %v5394 = vunpack.c.l.b16 %v5362
      %v5395 = vunpack.c.l.b16 %v5363
      %v5396 = vunpack.c.l.b16 %v5364
      %v5397 = vunpack.c.l.b16 %v5365
      %v5398 = vunpack.c.l.b16 %v5366
      %v5399 = vunpack.c.l.b16 %v5367
      %v5400 = vunpack.c.l.b16 %v5368
      %v5401 = vunpack.c.l.b16 %v5369
      %v5402 = vunpack.c.l.b16 %v5370
      %v5403 = vunpack.c.l.b16 %v5371
      %v5404 = vunpack.c.l.b16 %v5372
      %v5405 = vunpack.c.l.b16 %v5373
      %v5406 = vunpack.c.l.b16 %v5374
      %v5407 = vunpack.c.l.b16 %v5375
      %v5408 = vpack.c.b16 %v5393, %v5392
      %v5409 = vpack.c.b16 %v5395, %v5394
      %v5410 = vpack.c.b16 %v5397, %v5396
      %v5411 = vpack.c.b16 %v5399, %v5398
      %v5412 = vpack.c.b16 %v5401, %v5400
      %v5413 = vpack.c.b16 %v5403, %v5402
      %v5414 = vpack.c.b16 %v5405, %v5404
      %v5415 = vpack.c.b16 %v5407, %v5406
      %5424 = vmatprep.subr.bf16.mxu0 0
      %5425 = vmatpush1.bf16.msra.mxu0 %v5408
      %5426 = vmatprep.subr.bf16.mxu0 0
      %5427 = vmatpush1.bf16.msra.mxu0 %v5409
      %5428 = vmatprep.subr.bf16.mxu0 0
      %5429 = vmatpush1.bf16.msra.mxu0 %v5410
      %5430 = vmatprep.subr.bf16.mxu0 0
      %5431 = vmatpush1.bf16.msra.mxu0 %v5411
      %5432 = vmatprep.subr.bf16.mxu0 0
      %5433 = vmatpush1.bf16.msra.mxu0 %v5412
      %5434 = vmatprep.subr.bf16.mxu0 0
      %5435 = vmatpush1.bf16.msra.mxu0 %v5413
      %5436 = vmatprep.subr.bf16.mxu0 0
      %5437 = vmatpush1.bf16.msra.mxu0 %v5414
      %5438 = vmatprep.subr.bf16.mxu0 0
      %5439 = vmatpush1.bf16.msra.mxu0 %v5415
      %5440 = vmatprep.subr.bf16.mxu0 0
      %5441 = vmatpush1.bf16.msra.mxu0 0
      %5442 = vmatprep.subr.bf16.mxu0 0
      %5443 = vmatpush1.bf16.msra.mxu0 0
      %5444 = vmatprep.subr.bf16.mxu0 0
      %5445 = vmatpush1.bf16.msra.mxu0 0
      %5446 = vmatprep.subr.bf16.mxu0 0
      %5447 = vmatpush1.bf16.msra.mxu0 0
      %5448 = vmatprep.subr.bf16.mxu0 0
      %5449 = vmatpush1.bf16.msra.mxu0 0
      %5450 = vmatprep.subr.bf16.mxu0 0
      %5451 = vmatpush1.bf16.msra.mxu0 0
      %5452 = vmatprep.subr.bf16.mxu0 0
      %5453 = vmatpush1.bf16.msra.mxu0 0
      %5454 = vmatprep.subr.bf16.mxu0 0
      %5455 = vmatpush1.bf16.msra.mxu0 0
      %5456 = vmatprep.mubr.bf16.mxu0 0
      %5457 = vmatmul.mubr.bf16.gmra.mrb[0].mxu0 %v5341
      %v5458 = vpop.f32.mrb[0].mxu0
      %v5459 = vadd.f32 0.0, %v5458
      %v5460 = vpop.f32.mrb[0].mxu0
      %v5461 = vpop.f32.mrb[0].mxu0
      %v5462 = vadd.f32 0.0, %v5461
      %v5463 = vpop.f32.mrb[0].mxu0
      %5464 = vmatprep.mubr.bf16.mxu0 0
      %5465 = vmatmul.mubr.bf16.gmra.mrb[0].mxu0 %v5342
      %v5466 = vpop.f32.mrb[0].mxu0
      %v5467 = vadd.f32 0.0, %v5466
      %v5468 = vpop.f32.mrb[0].mxu0
      %v5469 = vpop.f32.mrb[0].mxu0
      %v5470 = vadd.f32 0.0, %v5469
      %v5471 = vpop.f32.mrb[0].mxu0
      %5472 = vmatprep.mubr.bf16.mxu0 0
      %5473 = vmatmul.mubr.bf16.gmra.mrb[0].mxu0 %v5343
      %v5474 = vpop.f32.mrb[0].mxu0
      %v5475 = vadd.f32 0.0, %v5474
      %v5476 = vpop.f32.mrb[0].mxu0
      %v5477 = vpop.f32.mrb[0].mxu0
      %v5478 = vadd.f32 0.0, %v5477
      %v5479 = vpop.f32.mrb[0].mxu0
      %5480 = vmatprep.mubr.bf16.mxu0 0
      %5481 = vmatmul.mubr.bf16.gmra.mrb[0].mxu0 %v5344
      %v5482 = vpop.f32.mrb[0].mxu0
      %v5483 = vadd.f32 0.0, %v5482
      %v5484 = vpop.f32.mrb[0].mxu0
      %v5485 = vpop.f32.mrb[0].mxu0
      %v5486 = vadd.f32 0.0, %v5485
      %v5487 = vpop.f32.mrb[0].mxu0
      %5488 = vmatprep.mubr.bf16.mxu0 0
      %5489 = vmatmul.mubr.bf16.gmra.mrb[0].mxu0 %v5345
      %v5490 = vpop.f32.mrb[0].mxu0
      %v5491 = vadd.f32 0.0, %v5490
      %v5492 = vpop.f32.mrb[0].mxu0
      %v5493 = vpop.f32.mrb[0].mxu0
      %v5494 = vadd.f32 0.0, %v5493
      %v5495 = vpop.f32.mrb[0].mxu0
      %5496 = vmatprep.mubr.bf16.mxu0 0
      %5497 = vmatmul.mubr.bf16.gmra.mrb[0].mxu0 %v5346
      %v5498 = vpop.f32.mrb[0].mxu0
      %v5499 = vadd.f32 0.0, %v5498
      %v5500 = vpop.f32.mrb[0].mxu0
      %v5501 = vpop.f32.mrb[0].mxu0
      %v5502 = vadd.f32 0.0, %v5501
      %v5503 = vpop.f32.mrb[0].mxu0
      %5504 = vmatprep.mubr.bf16.mxu0 0
      %5505 = vmatmul.mubr.bf16.gmra.mrb[0].mxu0 %v5347
      %v5506 = vpop.f32.mrb[0].mxu0
      %v5507 = vadd.f32 0.0, %v5506
      %v5508 = vpop.f32.mrb[0].mxu0
      %v5509 = vpop.f32.mrb[0].mxu0
      %v5510 = vadd.f32 0.0, %v5509
      %v5511 = vpop.f32.mrb[0].mxu0
      %5512 = vmatprep.mubr.bf16.mxu0 0
      %5513 = vmatmul.mubr.bf16.gmra.mrb[0].mxu0 %v5348
      %v5514 = vpop.f32.mrb[0].mxu0
      %v5515 = vadd.f32 0.0, %v5514
      %v5516 = vpop.f32.mrb[0].mxu0
      %v5517 = vpop.f32.mrb[0].mxu0
      %v5518 = vadd.f32 0.0, %v5517
      %v5519 = vpop.f32.mrb[0].mxu0
      %5520 = vmatprep.mubr.bf16.mxu0 0
      %5521 = vmatmul.mubr.bf16.gmra.mrb[0].mxu0 %v5349
      %v5522 = vpop.f32.mrb[0].mxu0
      %v5523 = vadd.f32 0.0, %v5522
      %v5524 = vpop.f32.mrb[0].mxu0
      %v5525 = vpop.f32.mrb[0].mxu0
      %v5526 = vadd.f32 0.0, %v5525
      %v5527 = vpop.f32.mrb[0].mxu0
      %5528 = vmatprep.mubr.bf16.mxu0 0
      %5529 = vmatmul.mubr.bf16.gmra.mrb[0].mxu0 %v5350
      %v5530 = vpop.f32.mrb[0].mxu0
      %v5531 = vadd.f32 0.0, %v5530
      %v5532 = vpop.f32.mrb[0].mxu0
      %v5533 = vpop.f32.mrb[0].mxu0
      %v5534 = vadd.f32 0.0, %v5533
      %v5535 = vpop.f32.mrb[0].mxu0
      %5536 = vmatprep.mubr.bf16.mxu0 0
      %5537 = vmatmul.mubr.bf16.gmra.mrb[0].mxu0 %v5351
      %v5538 = vpop.f32.mrb[0].mxu0
      %v5539 = vadd.f32 0.0, %v5538
      %v5540 = vpop.f32.mrb[0].mxu0
      %v5541 = vpop.f32.mrb[0].mxu0
      %v5542 = vadd.f32 0.0, %v5541
      %v5543 = vpop.f32.mrb[0].mxu0
      %5544 = vmatprep.mubr.bf16.mxu0 0
      %5545 = vmatmul.mubr.bf16.gmra.mrb[0].mxu0 %v5352
      %v5546 = vpop.f32.mrb[0].mxu0
      %v5547 = vadd.f32 0.0, %v5546
      %v5548 = vpop.f32.mrb[0].mxu0
      %v5549 = vpop.f32.mrb[0].mxu0
      %v5550 = vadd.f32 0.0, %v5549
      %v5551 = vpop.f32.mrb[0].mxu0
      %5552 = vmatprep.mubr.bf16.mxu0 0
      %5553 = vmatmul.mubr.bf16.gmra.mrb[0].mxu0 %v5353
      %v5554 = vpop.f32.mrb[0].mxu0
      %v5555 = vadd.f32 0.0, %v5554
      %v5556 = vpop.f32.mrb[0].mxu0
      %v5557 = vpop.f32.mrb[0].mxu0
      %v5558 = vadd.f32 0.0, %v5557
      %v5559 = vpop.f32.mrb[0].mxu0
      %5560 = vmatprep.mubr.bf16.mxu0 0
      %5561 = vmatmul.mubr.bf16.gmra.mrb[0].mxu0 %v5354
      %v5562 = vpop.f32.mrb[0].mxu0
      %v5563 = vadd.f32 0.0, %v5562
      %v5564 = vpop.f32.mrb[0].mxu0
      %v5565 = vpop.f32.mrb[0].mxu0
      %v5566 = vadd.f32 0.0, %v5565
      %v5567 = vpop.f32.mrb[0].mxu0
      %5568 = vmatprep.mubr.bf16.mxu0 0
      %5569 = vmatmul.mubr.bf16.gmra.mrb[0].mxu0 %v5355
      %v5570 = vpop.f32.mrb[0].mxu0
      %v5571 = vadd.f32 0.0, %v5570
      %v5572 = vpop.f32.mrb[0].mxu0
      %v5573 = vpop.f32.mrb[0].mxu0
      %v5574 = vadd.f32 0.0, %v5573
      %v5575 = vpop.f32.mrb[0].mxu0
      %5576 = vmatprep.mubr.bf16.mxu0 0
      %5577 = vmatmul.mubr.bf16.gmra.mrb[0].mxu0 %v5356
      %v5578 = vpop.f32.mrb[0].mxu0
      %v5579 = vadd.f32 0.0, %v5578
      %v5580 = vpop.f32.mrb[0].mxu0
      %v5581 = vpop.f32.mrb[0].mxu0
      %v5582 = vadd.f32 0.0, %v5581
      %v5583 = vpop.f32.mrb[0].mxu0
      %5584 = vmatprep.mubr.bf16.mxu0 0
      %5585 = vmatmul.mubr.bf16.gmra.mrb[0].mxu0 %v5357
      %v5586 = vpop.f32.mrb[0].mxu0
      %v5587 = vadd.f32 0.0, %v5586
      %v5588 = vpop.f32.mrb[0].mxu0
      %v5589 = vpop.f32.mrb[0].mxu0
      %v5590 = vadd.f32 0.0, %v5589
      %v5591 = vpop.f32.mrb[0].mxu0
      %5592 = vmatprep.mubr.bf16.mxu0 0
      %5593 = vmatmul.mubr.bf16.gmra.mrb[0].mxu0 %v5358
      %v5594 = vpop.f32.mrb[0].mxu0
      %v5595 = vadd.f32 0.0, %v5594
      %v5596 = vpop.f32.mrb[0].mxu0
      %v5597 = vpop.f32.mrb[0].mxu0
      %v5598 = vadd.f32 0.0, %v5597
      %v5599 = vpop.f32.mrb[0].mxu0
      %5600 = vdwg.mxu0
      %v5601 = vadd.f32 %v5269, %v5459
      %v5602 = vadd.f32 %v5270, %v5462
      %v5603 = vadd.f32 %v5271, %v5467
      %v5604 = vadd.f32 %v5272, %v5470
      %v5605 = vadd.f32 %v5273, %v5475
      %v5606 = vadd.f32 %v5274, %v5478
      %v5607 = vadd.f32 %v5275, %v5483
      %v5608 = vadd.f32 %v5276, %v5486
      %v5609 = vadd.f32 %v5277, %v5491
      %v5610 = vadd.f32 %v5278, %v5494
      %v5611 = vadd.f32 %v5279, %v5499
      %v5612 = vadd.f32 %v5280, %v5502
      %v5613 = vadd.f32 %v5281, %v5507
      %v5614 = vadd.f32 %v5282, %v5510
      %v5615 = vadd.f32 %v5283, %v5515
      %v5616 = vadd.f32 %v5284, %v5518
      %v5617 = vadd.f32 %v5285, %v5523
      %v5618 = vadd.f32 %v5286, %v5526
      %v5619 = vadd.f32 %v5287, %v5531
      %v5620 = vadd.f32 %v5288, %v5534
      %v5621 = vadd.f32 %v5289, %v5539
      %v5622 = vadd.f32 %v5290, %v5542
      %v5623 = vadd.f32 %v5291, %v5547
      %v5624 = vadd.f32 %v5292, %v5550
      %v5625 = vadd.f32 %v5293, %v5555
      %v5626 = vadd.f32 %v5294, %v5558
      %v5627 = vadd.f32 %v5295, %v5563
      %v5628 = vadd.f32 %v5296, %v5566
      %v5629 = vadd.f32 %v5297, %v5571
      %v5630 = vadd.f32 %v5298, %v5574
      %v5631 = vadd.f32 %v5299, %v5579
      %v5632 = vadd.f32 %v5300, %v5582
      %v5633 = vadd.f32 %v5301, %v5587
      %v5634 = vadd.f32 %v5302, %v5590
      %v5635 = vadd.f32 %v5303, %v5595
      %v5636 = vadd.f32 %v5304, %v5598
      %v5637 = vld [vmem:[#allocation2 + $0x2a] sm:$0xff]
      %v5638 = vld [vmem:[#allocation2 + $0x32] sm:$0xff]
      %v5639 = vld [vmem:[#allocation2 + $0x3a] sm:$0xff]
      %v5640 = vld [vmem:[#allocation2 + $0x42] sm:$0xff]
      %v5641 = vld [vmem:[#allocation2 + $0x4a] sm:$0xff]
      %v5642 = vld [vmem:[#allocation2 + $0x52] sm:$0xff]
      %v5643 = vld [vmem:[#allocation2 + $0x5a] sm:$0xff]
      %v5644 = vld [vmem:[#allocation2 + $0x62] sm:$0xff]
      %v5645 = vld [vmem:[#allocation2 + $0x6a] sm:$0xff]
      %v5646 = vld [vmem:[#allocation2 + $0x72] sm:$0xff]
      %v5647 = vld [vmem:[#allocation2 + $0x7a] sm:$0xff]
      %v5648 = vld [vmem:[#allocation2 + $0x82] sm:$0xff]
      %v5649 = vld [vmem:[#allocation2 + $0x8a] sm:$0xff]
      %v5650 = vld [vmem:[#allocation2 + $0x92] sm:$0xff]
      %v5651 = vld [vmem:[#allocation2 + $0x9a] sm:$0xff]
      %v5652 = vld [vmem:[#allocation2 + $0xa2] sm:$0xff]
      %v5653 = vld [vmem:[#allocation2 + $0xaa] sm:$0xff]
      %v5654 = vld [vmem:[#allocation2 + $0xb2] sm:$0xff]
      %v5655 = vld [vmem:[#allocation2 + $0xba] sm:$0xff]
      %v5656 = vld [vmem:[#allocation2 + $0xc2] sm:$0xff]
      %v5657 = vld [vmem:[#allocation2 + $0xca] sm:$0xff]
      %v5658 = vld [vmem:[#allocation2 + $0xd2] sm:$0xff]
      %v5659 = vld [vmem:[#allocation2 + $0xda] sm:$0xff]
      %v5660 = vld [vmem:[#allocation2 + $0xe2] sm:$0xff]
      %v5661 = vld [vmem:[#allocation2 + $0xea] sm:$0xff]
      %v5662 = vld [vmem:[#allocation2 + $0xf2] sm:$0xff]
      %v5663 = vld [vmem:[#allocation2 + $0xfa] sm:$0xff]
      %v5664 = vld [vmem:[#allocation2 + $0x102] sm:$0xff]
      %v5665 = vld [vmem:[#allocation2 + $0x10a] sm:$0xff]
      %v5666 = vld [vmem:[#allocation2 + $0x112] sm:$0xff]
      %v5667 = vld [vmem:[#allocation2 + $0x11a] sm:$0xff]
      %v5668 = vld [vmem:[#allocation2 + $0x122] sm:$0xff]
      %v5669 = vld [vmem:[#allocation2 + $0x12a] sm:$0xff]
      %v5670 = vld [vmem:[#allocation2 + $0x132] sm:$0xff]
      %v5671 = vld [vmem:[#allocation2 + $0x13a] sm:$0xff]
      %v5672 = vld [vmem:[#allocation2 + $0x142] sm:$0xff]
      %v5673 = vpack.c.bf16 %v5638, %v5637
      %v5674 = vpack.c.bf16 %v5640, %v5639
      %v5675 = vpack.c.bf16 %v5642, %v5641
      %v5676 = vpack.c.bf16 %v5644, %v5643
      %v5677 = vpack.c.bf16 %v5646, %v5645
      %v5678 = vpack.c.bf16 %v5648, %v5647
      %v5679 = vpack.c.bf16 %v5650, %v5649
      %v5680 = vpack.c.bf16 %v5652, %v5651
      %v5681 = vpack.c.bf16 %v5654, %v5653
      %v5682 = vpack.c.bf16 %v5656, %v5655
      %v5683 = vpack.c.bf16 %v5658, %v5657
      %v5684 = vpack.c.bf16 %v5660, %v5659
      %v5685 = vpack.c.bf16 %v5662, %v5661
      %v5686 = vpack.c.bf16 %v5664, %v5663
      %v5687 = vpack.c.bf16 %v5666, %v5665
      %v5688 = vpack.c.bf16 %v5668, %v5667
      %v5689 = vpack.c.bf16 %v5670, %v5669
      %v5690 = vpack.c.bf16 %v5672, %v5671
      %s5691 = scalar_lea.vmem %s1, 1024
      %v5692 = vld [vmem:[%s5691] sm:$0xf]
      %v5693 = vld [vmem:[%s5691 + $0x4] sm:$0xf]
      %v5694 = vld [vmem:[%s5691 + $0x8] sm:$0xf]
      %v5695 = vld [vmem:[%s5691 + $0xc] sm:$0xf]
      %v5696 = vld [vmem:[%s5691 + $0x10] sm:$0xf]
      %v5697 = vld [vmem:[%s5691 + $0x14] sm:$0xf]
      %v5698 = vld [vmem:[%s5691 + $0x18] sm:$0xf]
      %v5699 = vld [vmem:[%s5691 + $0x1c] sm:$0xf]
      %v5700 = vld [vmem:[%s5691 + $0x20] sm:$0xf]
      %v5701 = vld [vmem:[%s5691 + $0x24] sm:$0xf]
      %v5702 = vld [vmem:[%s5691 + $0x28] sm:$0xf]
      %v5703 = vld [vmem:[%s5691 + $0x2c] sm:$0xf]
      %v5704 = vld [vmem:[%s5691 + $0x30] sm:$0xf]
      %v5705 = vld [vmem:[%s5691 + $0x34] sm:$0xf]
      %v5706 = vld [vmem:[%s5691 + $0x38] sm:$0xf]
      %v5707 = vld [vmem:[%s5691 + $0x3c] sm:$0xf]
      %v5724 = vunpack.c.l.b16 %v5692
      %v5725 = vunpack.c.l.b16 %v5693
      %v5726 = vunpack.c.l.b16 %v5694
      %v5727 = vunpack.c.l.b16 %v5695
      %v5728 = vunpack.c.l.b16 %v5696
      %v5729 = vunpack.c.l.b16 %v5697
      %v5730 = vunpack.c.l.b16 %v5698
      %v5731 = vunpack.c.l.b16 %v5699
      %v5732 = vunpack.c.l.b16 %v5700
      %v5733 = vunpack.c.l.b16 %v5701
      %v5734 = vunpack.c.l.b16 %v5702
      %v5735 = vunpack.c.l.b16 %v5703
      %v5736 = vunpack.c.l.b16 %v5704
      %v5737 = vunpack.c.l.b16 %v5705
      %v5738 = vunpack.c.l.b16 %v5706
      %v5739 = vunpack.c.l.b16 %v5707
      %v5740 = vpack.c.b16 %v5725, %v5724
      %v5741 = vpack.c.b16 %v5727, %v5726
      %v5742 = vpack.c.b16 %v5729, %v5728
      %v5743 = vpack.c.b16 %v5731, %v5730
      %v5744 = vpack.c.b16 %v5733, %v5732
      %v5745 = vpack.c.b16 %v5735, %v5734
      %v5746 = vpack.c.b16 %v5737, %v5736
      %v5747 = vpack.c.b16 %v5739, %v5738
      %5756 = vmatprep.subr.bf16.mxu0 0
      %5757 = vmatpush1.bf16.msra.mxu0 %v5740
      %5758 = vmatprep.subr.bf16.mxu0 0
      %5759 = vmatpush1.bf16.msra.mxu0 %v5741
      %5760 = vmatprep.subr.bf16.mxu0 0
      %5761 = vmatpush1.bf16.msra.mxu0 %v5742
      %5762 = vmatprep.subr.bf16.mxu0 0
      %5763 = vmatpush1.bf16.msra.mxu0 %v5743
      %5764 = vmatprep.subr.bf16.mxu0 0
      %5765 = vmatpush1.bf16.msra.mxu0 %v5744
      %5766 = vmatprep.subr.bf16.mxu0 0
      %5767 = vmatpush1.bf16.msra.mxu0 %v5745
      %5768 = vmatprep.subr.bf16.mxu0 0
      %5769 = vmatpush1.bf16.msra.mxu0 %v5746
      %5770 = vmatprep.subr.bf16.mxu0 0
      %5771 = vmatpush1.bf16.msra.mxu0 %v5747
      %5772 = vmatprep.subr.bf16.mxu0 0
      %5773 = vmatpush1.bf16.msra.mxu0 0
      %5774 = vmatprep.subr.bf16.mxu0 0
      %5775 = vmatpush1.bf16.msra.mxu0 0
      %5776 = vmatprep.subr.bf16.mxu0 0
      %5777 = vmatpush1.bf16.msra.mxu0 0
      %5778 = vmatprep.subr.bf16.mxu0 0
      %5779 = vmatpush1.bf16.msra.mxu0 0
      %5780 = vmatprep.subr.bf16.mxu0 0
      %5781 = vmatpush1.bf16.msra.mxu0 0
      %5782 = vmatprep.subr.bf16.mxu0 0
      %5783 = vmatpush1.bf16.msra.mxu0 0
      %5784 = vmatprep.subr.bf16.mxu0 0
      %5785 = vmatpush1.bf16.msra.mxu0 0
      %5786 = vmatprep.subr.bf16.mxu0 0
      %5787 = vmatpush1.bf16.msra.mxu0 0
      %5788 = vmatprep.mubr.bf16.mxu0 0
      %5789 = vmatmul.mubr.bf16.gmra.mrb[0].mxu0 %v5673
      %v5790 = vpop.f32.mrb[0].mxu0
      %v5791 = vadd.f32 0.0, %v5790
      %v5792 = vpop.f32.mrb[0].mxu0
      %v5793 = vpop.f32.mrb[0].mxu0
      %v5794 = vadd.f32 0.0, %v5793
      %v5795 = vpop.f32.mrb[0].mxu0
      %5796 = vmatprep.mubr.bf16.mxu0 0
      %5797 = vmatmul.mubr.bf16.gmra.mrb[0].mxu0 %v5674
      %v5798 = vpop.f32.mrb[0].mxu0
      %v5799 = vadd.f32 0.0, %v5798
      %v5800 = vpop.f32.mrb[0].mxu0
      %v5801 = vpop.f32.mrb[0].mxu0
      %v5802 = vadd.f32 0.0, %v5801
      %v5803 = vpop.f32.mrb[0].mxu0
      %5804 = vmatprep.mubr.bf16.mxu0 0
      %5805 = vmatmul.mubr.bf16.gmra.mrb[0].mxu0 %v5675
      %v5806 = vpop.f32.mrb[0].mxu0
      %v5807 = vadd.f32 0.0, %v5806
      %v5808 = vpop.f32.mrb[0].mxu0
      %v5809 = vpop.f32.mrb[0].mxu0
      %v5810 = vadd.f32 0.0, %v5809
      %v5811 = vpop.f32.mrb[0].mxu0
      %5812 = vmatprep.mubr.bf16.mxu0 0
      %5813 = vmatmul.mubr.bf16.gmra.mrb[0].mxu0 %v5676
      %v5814 = vpop.f32.mrb[0].mxu0
      %v5815 = vadd.f32 0.0, %v5814
      %v5816 = vpop.f32.mrb[0].mxu0
      %v5817 = vpop.f32.mrb[0].mxu0
      %v5818 = vadd.f32 0.0, %v5817
      %v5819 = vpop.f32.mrb[0].mxu0
      %5820 = vmatprep.mubr.bf16.mxu0 0
      %5821 = vmatmul.mubr.bf16.gmra.mrb[0].mxu0 %v5677
      %v5822 = vpop.f32.mrb[0].mxu0
      %v5823 = vadd.f32 0.0, %v5822
      %v5824 = vpop.f32.mrb[0].mxu0
      %v5825 = vpop.f32.mrb[0].mxu0
      %v5826 = vadd.f32 0.0, %v5825
      %v5827 = vpop.f32.mrb[0].mxu0
      %5828 = vmatprep.mubr.bf16.mxu0 0
      %5829 = vmatmul.mubr.bf16.gmra.mrb[0].mxu0 %v5678
      %v5830 = vpop.f32.mrb[0].mxu0
      %v5831 = vadd.f32 0.0, %v5830
      %v5832 = vpop.f32.mrb[0].mxu0
      %v5833 = vpop.f32.mrb[0].mxu0
      %v5834 = vadd.f32 0.0, %v5833
      %v5835 = vpop.f32.mrb[0].mxu0
      %5836 = vmatprep.mubr.bf16.mxu0 0
      %5837 = vmatmul.mubr.bf16.gmra.mrb[0].mxu0 %v5679
      %v5838 = vpop.f32.mrb[0].mxu0
      %v5839 = vadd.f32 0.0, %v5838
      %v5840 = vpop.f32.mrb[0].mxu0
      %v5841 = vpop.f32.mrb[0].mxu0
      %v5842 = vadd.f32 0.0, %v5841
      %v5843 = vpop.f32.mrb[0].mxu0
      %5844 = vmatprep.mubr.bf16.mxu0 0
      %5845 = vmatmul.mubr.bf16.gmra.mrb[0].mxu0 %v5680
      %v5846 = vpop.f32.mrb[0].mxu0
      %v5847 = vadd.f32 0.0, %v5846
      %v5848 = vpop.f32.mrb[0].mxu0
      %v5849 = vpop.f32.mrb[0].mxu0
      %v5850 = vadd.f32 0.0, %v5849
      %v5851 = vpop.f32.mrb[0].mxu0
      %5852 = vmatprep.mubr.bf16.mxu0 0
      %5853 = vmatmul.mubr.bf16.gmra.mrb[0].mxu0 %v5681
      %v5854 = vpop.f32.mrb[0].mxu0
      %v5855 = vadd.f32 0.0, %v5854
      %v5856 = vpop.f32.mrb[0].mxu0
      %v5857 = vpop.f32.mrb[0].mxu0
      %v5858 = vadd.f32 0.0, %v5857
      %v5859 = vpop.f32.mrb[0].mxu0
      %5860 = vmatprep.mubr.bf16.mxu0 0
      %5861 = vmatmul.mubr.bf16.gmra.mrb[0].mxu0 %v5682
      %v5862 = vpop.f32.mrb[0].mxu0
      %v5863 = vadd.f32 0.0, %v5862
      %v5864 = vpop.f32.mrb[0].mxu0
      %v5865 = vpop.f32.mrb[0].mxu0
      %v5866 = vadd.f32 0.0, %v5865
      %v5867 = vpop.f32.mrb[0].mxu0
      %5868 = vmatprep.mubr.bf16.mxu0 0
      %5869 = vmatmul.mubr.bf16.gmra.mrb[0].mxu0 %v5683
      %v5870 = vpop.f32.mrb[0].mxu0
      %v5871 = vadd.f32 0.0, %v5870
      %v5872 = vpop.f32.mrb[0].mxu0
      %v5873 = vpop.f32.mrb[0].mxu0
      %v5874 = vadd.f32 0.0, %v5873
      %v5875 = vpop.f32.mrb[0].mxu0
      %5876 = vmatprep.mubr.bf16.mxu0 0
      %5877 = vmatmul.mubr.bf16.gmra.mrb[0].mxu0 %v5684
      %v5878 = vpop.f32.mrb[0].mxu0
      %v5879 = vadd.f32 0.0, %v5878
      %v5880 = vpop.f32.mrb[0].mxu0
      %v5881 = vpop.f32.mrb[0].mxu0
      %v5882 = vadd.f32 0.0, %v5881
      %v5883 = vpop.f32.mrb[0].mxu0
      %5884 = vmatprep.mubr.bf16.mxu0 0
      %5885 = vmatmul.mubr.bf16.gmra.mrb[0].mxu0 %v5685
      %v5886 = vpop.f32.mrb[0].mxu0
      %v5887 = vadd.f32 0.0, %v5886
      %v5888 = vpop.f32.mrb[0].mxu0
      %v5889 = vpop.f32.mrb[0].mxu0
      %v5890 = vadd.f32 0.0, %v5889
      %v5891 = vpop.f32.mrb[0].mxu0
      %5892 = vmatprep.mubr.bf16.mxu0 0
      %5893 = vmatmul.mubr.bf16.gmra.mrb[0].mxu0 %v5686
      %v5894 = vpop.f32.mrb[0].mxu0
      %v5895 = vadd.f32 0.0, %v5894
      %v5896 = vpop.f32.mrb[0].mxu0
      %v5897 = vpop.f32.mrb[0].mxu0
      %v5898 = vadd.f32 0.0, %v5897
      %v5899 = vpop.f32.mrb[0].mxu0
      %5900 = vmatprep.mubr.bf16.mxu0 0
      %5901 = vmatmul.mubr.bf16.gmra.mrb[0].mxu0 %v5687
      %v5902 = vpop.f32.mrb[0].mxu0
      %v5903 = vadd.f32 0.0, %v5902
      %v5904 = vpop.f32.mrb[0].mxu0
      %v5905 = vpop.f32.mrb[0].mxu0
      %v5906 = vadd.f32 0.0, %v5905
      %v5907 = vpop.f32.mrb[0].mxu0
      %5908 = vmatprep.mubr.bf16.mxu0 0
      %5909 = vmatmul.mubr.bf16.gmra.mrb[0].mxu0 %v5688
      %v5910 = vpop.f32.mrb[0].mxu0
      %v5911 = vadd.f32 0.0, %v5910
      %v5912 = vpop.f32.mrb[0].mxu0
      %v5913 = vpop.f32.mrb[0].mxu0
      %v5914 = vadd.f32 0.0, %v5913
      %v5915 = vpop.f32.mrb[0].mxu0
      %5916 = vmatprep.mubr.bf16.mxu0 0
      %5917 = vmatmul.mubr.bf16.gmra.mrb[0].mxu0 %v5689
      %v5918 = vpop.f32.mrb[0].mxu0
      %v5919 = vadd.f32 0.0, %v5918
      %v5920 = vpop.f32.mrb[0].mxu0
      %v5921 = vpop.f32.mrb[0].mxu0
      %v5922 = vadd.f32 0.0, %v5921
      %v5923 = vpop.f32.mrb[0].mxu0
      %5924 = vmatprep.mubr.bf16.mxu0 0
      %5925 = vmatmul.mubr.bf16.gmra.mrb[0].mxu0 %v5690
      %v5926 = vpop.f32.mrb[0].mxu0
      %v5927 = vadd.f32 0.0, %v5926
      %v5928 = vpop.f32.mrb[0].mxu0
      %v5929 = vpop.f32.mrb[0].mxu0
      %v5930 = vadd.f32 0.0, %v5929
      %v5931 = vpop.f32.mrb[0].mxu0
      %5932 = vdwg.mxu0
      %v5933 = vadd.f32 %v5601, %v5791
      %v5934 = vadd.f32 %v5602, %v5794
      %v5935 = vadd.f32 %v5603, %v5799
      %v5936 = vadd.f32 %v5604, %v5802
      %v5937 = vadd.f32 %v5605, %v5807
      %v5938 = vadd.f32 %v5606, %v5810
      %v5939 = vadd.f32 %v5607, %v5815
      %v5940 = vadd.f32 %v5608, %v5818
      %v5941 = vadd.f32 %v5609, %v5823
      %v5942 = vadd.f32 %v5610, %v5826
      %v5943 = vadd.f32 %v5611, %v5831
      %v5944 = vadd.f32 %v5612, %v5834
      %v5945 = vadd.f32 %v5613, %v5839
      %v5946 = vadd.f32 %v5614, %v5842
      %v5947 = vadd.f32 %v5615, %v5847
      %v5948 = vadd.f32 %v5616, %v5850
      %v5949 = vadd.f32 %v5617, %v5855
      %v5950 = vadd.f32 %v5618, %v5858
      %v5951 = vadd.f32 %v5619, %v5863
      %v5952 = vadd.f32 %v5620, %v5866
      %v5953 = vadd.f32 %v5621, %v5871
      %v5954 = vadd.f32 %v5622, %v5874
      %v5955 = vadd.f32 %v5623, %v5879
      %v5956 = vadd.f32 %v5624, %v5882
      %v5957 = vadd.f32 %v5625, %v5887
      %v5958 = vadd.f32 %v5626, %v5890
      %v5959 = vadd.f32 %v5627, %v5895
      %v5960 = vadd.f32 %v5628, %v5898
      %v5961 = vadd.f32 %v5629, %v5903
      %v5962 = vadd.f32 %v5630, %v5906
      %v5963 = vadd.f32 %v5631, %v5911
      %v5964 = vadd.f32 %v5632, %v5914
      %v5965 = vadd.f32 %v5633, %v5919
      %v5966 = vadd.f32 %v5634, %v5922
      %v5967 = vadd.f32 %v5635, %v5927
      %v5968 = vadd.f32 %v5636, %v5930
      %v5969 = vld [vmem:[#allocation2 + $0x2b] sm:$0xff]
      %v5970 = vld [vmem:[#allocation2 + $0x33] sm:$0xff]
      %v5971 = vld [vmem:[#allocation2 + $0x3b] sm:$0xff]
      %v5972 = vld [vmem:[#allocation2 + $0x43] sm:$0xff]
      %v5973 = vld [vmem:[#allocation2 + $0x4b] sm:$0xff]
      %v5974 = vld [vmem:[#allocation2 + $0x53] sm:$0xff]
      %v5975 = vld [vmem:[#allocation2 + $0x5b] sm:$0xff]
      %v5976 = vld [vmem:[#allocation2 + $0x63] sm:$0xff]
      %v5977 = vld [vmem:[#allocation2 + $0x6b] sm:$0xff]
      %v5978 = vld [vmem:[#allocation2 + $0x73] sm:$0xff]
      %v5979 = vld [vmem:[#allocation2 + $0x7b] sm:$0xff]
      %v5980 = vld [vmem:[#allocation2 + $0x83] sm:$0xff]
      %v5981 = vld [vmem:[#allocation2 + $0x8b] sm:$0xff]
      %v5982 = vld [vmem:[#allocation2 + $0x93] sm:$0xff]
      %v5983 = vld [vmem:[#allocation2 + $0x9b] sm:$0xff]
      %v5984 = vld [vmem:[#allocation2 + $0xa3] sm:$0xff]
      %v5985 = vld [vmem:[#allocation2 + $0xab] sm:$0xff]
      %v5986 = vld [vmem:[#allocation2 + $0xb3] sm:$0xff]
      %v5987 = vld [vmem:[#allocation2 + $0xbb] sm:$0xff]
      %v5988 = vld [vmem:[#allocation2 + $0xc3] sm:$0xff]
      %v5989 = vld [vmem:[#allocation2 + $0xcb] sm:$0xff]
      %v5990 = vld [vmem:[#allocation2 + $0xd3] sm:$0xff]
      %v5991 = vld [vmem:[#allocation2 + $0xdb] sm:$0xff]
      %v5992 = vld [vmem:[#allocation2 + $0xe3] sm:$0xff]
      %v5993 = vld [vmem:[#allocation2 + $0xeb] sm:$0xff]
      %v5994 = vld [vmem:[#allocation2 + $0xf3] sm:$0xff]
      %v5995 = vld [vmem:[#allocation2 + $0xfb] sm:$0xff]
      %v5996 = vld [vmem:[#allocation2 + $0x103] sm:$0xff]
      %v5997 = vld [vmem:[#allocation2 + $0x10b] sm:$0xff]
      %v5998 = vld [vmem:[#allocation2 + $0x113] sm:$0xff]
      %v5999 = vld [vmem:[#allocation2 + $0x11b] sm:$0xff]
      %v6000 = vld [vmem:[#allocation2 + $0x123] sm:$0xff]
      %v6001 = vld [vmem:[#allocation2 + $0x12b] sm:$0xff]
      %v6002 = vld [vmem:[#allocation2 + $0x133] sm:$0xff]
      %v6003 = vld [vmem:[#allocation2 + $0x13b] sm:$0xff]
      %v6004 = vld [vmem:[#allocation2 + $0x143] sm:$0xff]
      %v6005 = vpack.c.bf16 %v5970, %v5969
      %v6006 = vpack.c.bf16 %v5972, %v5971
      %v6007 = vpack.c.bf16 %v5974, %v5973
      %v6008 = vpack.c.bf16 %v5976, %v5975
      %v6009 = vpack.c.bf16 %v5978, %v5977
      %v6010 = vpack.c.bf16 %v5980, %v5979
      %v6011 = vpack.c.bf16 %v5982, %v5981
      %v6012 = vpack.c.bf16 %v5984, %v5983
      %v6013 = vpack.c.bf16 %v5986, %v5985
      %v6014 = vpack.c.bf16 %v5988, %v5987
      %v6015 = vpack.c.bf16 %v5990, %v5989
      %v6016 = vpack.c.bf16 %v5992, %v5991
      %v6017 = vpack.c.bf16 %v5994, %v5993
      %v6018 = vpack.c.bf16 %v5996, %v5995
      %v6019 = vpack.c.bf16 %v5998, %v5997
      %v6020 = vpack.c.bf16 %v6000, %v5999
      %v6021 = vpack.c.bf16 %v6002, %v6001
      %v6022 = vpack.c.bf16 %v6004, %v6003
      %s6023 = scalar_lea.vmem %s1, 1088
      %v6024 = vld [vmem:[%s6023] sm:$0xf]
      %v6025 = vld [vmem:[%s6023 + $0x4] sm:$0xf]
      %v6026 = vld [vmem:[%s6023 + $0x8] sm:$0xf]
      %v6027 = vld [vmem:[%s6023 + $0xc] sm:$0xf]
      %v6028 = vld [vmem:[%s6023 + $0x10] sm:$0xf]
      %v6029 = vld [vmem:[%s6023 + $0x14] sm:$0xf]
      %v6030 = vld [vmem:[%s6023 + $0x18] sm:$0xf]
      %v6031 = vld [vmem:[%s6023 + $0x1c] sm:$0xf]
      %v6032 = vld [vmem:[%s6023 + $0x20] sm:$0xf]
      %v6033 = vld [vmem:[%s6023 + $0x24] sm:$0xf]
      %v6034 = vld [vmem:[%s6023 + $0x28] sm:$0xf]
      %v6035 = vld [vmem:[%s6023 + $0x2c] sm:$0xf]
      %v6036 = vld [vmem:[%s6023 + $0x30] sm:$0xf]
      %v6037 = vld [vmem:[%s6023 + $0x34] sm:$0xf]
      %v6038 = vld [vmem:[%s6023 + $0x38] sm:$0xf]
      %v6039 = vld [vmem:[%s6023 + $0x3c] sm:$0xf]
      %v6056 = vunpack.c.l.b16 %v6024
      %v6057 = vunpack.c.l.b16 %v6025
      %v6058 = vunpack.c.l.b16 %v6026
      %v6059 = vunpack.c.l.b16 %v6027
      %v6060 = vunpack.c.l.b16 %v6028
      %v6061 = vunpack.c.l.b16 %v6029
      %v6062 = vunpack.c.l.b16 %v6030
      %v6063 = vunpack.c.l.b16 %v6031
      %v6064 = vunpack.c.l.b16 %v6032
      %v6065 = vunpack.c.l.b16 %v6033
      %v6066 = vunpack.c.l.b16 %v6034
      %v6067 = vunpack.c.l.b16 %v6035
      %v6068 = vunpack.c.l.b16 %v6036
      %v6069 = vunpack.c.l.b16 %v6037
      %v6070 = vunpack.c.l.b16 %v6038
      %v6071 = vunpack.c.l.b16 %v6039
      %v6072 = vpack.c.b16 %v6057, %v6056
      %v6073 = vpack.c.b16 %v6059, %v6058
      %v6074 = vpack.c.b16 %v6061, %v6060
      %v6075 = vpack.c.b16 %v6063, %v6062
      %v6076 = vpack.c.b16 %v6065, %v6064
      %v6077 = vpack.c.b16 %v6067, %v6066
      %v6078 = vpack.c.b16 %v6069, %v6068
      %v6079 = vpack.c.b16 %v6071, %v6070
      %6088 = vmatprep.subr.bf16.mxu0 0
      %6089 = vmatpush1.bf16.msra.mxu0 %v6072
      %6090 = vmatprep.subr.bf16.mxu0 0
      %6091 = vmatpush1.bf16.msra.mxu0 %v6073
      %6092 = vmatprep.subr.bf16.mxu0 0
      %6093 = vmatpush1.bf16.msra.mxu0 %v6074
      %6094 = vmatprep.subr.bf16.mxu0 0
      %6095 = vmatpush1.bf16.msra.mxu0 %v6075
      %6096 = vmatprep.subr.bf16.mxu0 0
      %6097 = vmatpush1.bf16.msra.mxu0 %v6076
      %6098 = vmatprep.subr.bf16.mxu0 0
      %6099 = vmatpush1.bf16.msra.mxu0 %v6077
      %6100 = vmatprep.subr.bf16.mxu0 0
      %6101 = vmatpush1.bf16.msra.mxu0 %v6078
      %6102 = vmatprep.subr.bf16.mxu0 0
      %6103 = vmatpush1.bf16.msra.mxu0 %v6079
      %6104 = vmatprep.subr.bf16.mxu0 0
      %6105 = vmatpush1.bf16.msra.mxu0 0
      %6106 = vmatprep.subr.bf16.mxu0 0
      %6107 = vmatpush1.bf16.msra.mxu0 0
      %6108 = vmatprep.subr.bf16.mxu0 0
      %6109 = vmatpush1.bf16.msra.mxu0 0
      %6110 = vmatprep.subr.bf16.mxu0 0
      %6111 = vmatpush1.bf16.msra.mxu0 0
      %6112 = vmatprep.subr.bf16.mxu0 0
      %6113 = vmatpush1.bf16.msra.mxu0 0
      %6114 = vmatprep.subr.bf16.mxu0 0
      %6115 = vmatpush1.bf16.msra.mxu0 0
      %6116 = vmatprep.subr.bf16.mxu0 0
      %6117 = vmatpush1.bf16.msra.mxu0 0
      %6118 = vmatprep.subr.bf16.mxu0 0
      %6119 = vmatpush1.bf16.msra.mxu0 0
      %6120 = vmatprep.mubr.bf16.mxu0 0
      %6121 = vmatmul.mubr.bf16.gmra.mrb[0].mxu0 %v6005
      %v6122 = vpop.f32.mrb[0].mxu0
      %v6123 = vadd.f32 0.0, %v6122
      %v6124 = vpop.f32.mrb[0].mxu0
      %v6125 = vpop.f32.mrb[0].mxu0
      %v6126 = vadd.f32 0.0, %v6125
      %v6127 = vpop.f32.mrb[0].mxu0
      %6128 = vmatprep.mubr.bf16.mxu0 0
      %6129 = vmatmul.mubr.bf16.gmra.mrb[0].mxu0 %v6006
      %v6130 = vpop.f32.mrb[0].mxu0
      %v6131 = vadd.f32 0.0, %v6130
      %v6132 = vpop.f32.mrb[0].mxu0
      %v6133 = vpop.f32.mrb[0].mxu0
      %v6134 = vadd.f32 0.0, %v6133
      %v6135 = vpop.f32.mrb[0].mxu0
      %6136 = vmatprep.mubr.bf16.mxu0 0
      %6137 = vmatmul.mubr.bf16.gmra.mrb[0].mxu0 %v6007
      %v6138 = vpop.f32.mrb[0].mxu0
      %v6139 = vadd.f32 0.0, %v6138
      %v6140 = vpop.f32.mrb[0].mxu0
      %v6141 = vpop.f32.mrb[0].mxu0
      %v6142 = vadd.f32 0.0, %v6141
      %v6143 = vpop.f32.mrb[0].mxu0
      %6144 = vmatprep.mubr.bf16.mxu0 0
      %6145 = vmatmul.mubr.bf16.gmra.mrb[0].mxu0 %v6008
      %v6146 = vpop.f32.mrb[0].mxu0
      %v6147 = vadd.f32 0.0, %v6146
      %v6148 = vpop.f32.mrb[0].mxu0
      %v6149 = vpop.f32.mrb[0].mxu0
      %v6150 = vadd.f32 0.0, %v6149
      %v6151 = vpop.f32.mrb[0].mxu0
      %6152 = vmatprep.mubr.bf16.mxu0 0
      %6153 = vmatmul.mubr.bf16.gmra.mrb[0].mxu0 %v6009
      %v6154 = vpop.f32.mrb[0].mxu0
      %v6155 = vadd.f32 0.0, %v6154
      %v6156 = vpop.f32.mrb[0].mxu0
      %v6157 = vpop.f32.mrb[0].mxu0
      %v6158 = vadd.f32 0.0, %v6157
      %v6159 = vpop.f32.mrb[0].mxu0
      %6160 = vmatprep.mubr.bf16.mxu0 0
      %6161 = vmatmul.mubr.bf16.gmra.mrb[0].mxu0 %v6010
      %v6162 = vpop.f32.mrb[0].mxu0
      %v6163 = vadd.f32 0.0, %v6162
      %v6164 = vpop.f32.mrb[0].mxu0
      %v6165 = vpop.f32.mrb[0].mxu0
      %v6166 = vadd.f32 0.0, %v6165
      %v6167 = vpop.f32.mrb[0].mxu0
      %6168 = vmatprep.mubr.bf16.mxu0 0
      %6169 = vmatmul.mubr.bf16.gmra.mrb[0].mxu0 %v6011
      %v6170 = vpop.f32.mrb[0].mxu0
      %v6171 = vadd.f32 0.0, %v6170
      %v6172 = vpop.f32.mrb[0].mxu0
      %v6173 = vpop.f32.mrb[0].mxu0
      %v6174 = vadd.f32 0.0, %v6173
      %v6175 = vpop.f32.mrb[0].mxu0
      %6176 = vmatprep.mubr.bf16.mxu0 0
      %6177 = vmatmul.mubr.bf16.gmra.mrb[0].mxu0 %v6012
      %v6178 = vpop.f32.mrb[0].mxu0
      %v6179 = vadd.f32 0.0, %v6178
      %v6180 = vpop.f32.mrb[0].mxu0
      %v6181 = vpop.f32.mrb[0].mxu0
      %v6182 = vadd.f32 0.0, %v6181
      %v6183 = vpop.f32.mrb[0].mxu0
      %6184 = vmatprep.mubr.bf16.mxu0 0
      %6185 = vmatmul.mubr.bf16.gmra.mrb[0].mxu0 %v6013
      %v6186 = vpop.f32.mrb[0].mxu0
      %v6187 = vadd.f32 0.0, %v6186
      %v6188 = vpop.f32.mrb[0].mxu0
      %v6189 = vpop.f32.mrb[0].mxu0
      %v6190 = vadd.f32 0.0, %v6189
      %v6191 = vpop.f32.mrb[0].mxu0
      %6192 = vmatprep.mubr.bf16.mxu0 0
      %6193 = vmatmul.mubr.bf16.gmra.mrb[0].mxu0 %v6014
      %v6194 = vpop.f32.mrb[0].mxu0
      %v6195 = vadd.f32 0.0, %v6194
      %v6196 = vpop.f32.mrb[0].mxu0
      %v6197 = vpop.f32.mrb[0].mxu0
      %v6198 = vadd.f32 0.0, %v6197
      %v6199 = vpop.f32.mrb[0].mxu0
      %6200 = vmatprep.mubr.bf16.mxu0 0
      %6201 = vmatmul.mubr.bf16.gmra.mrb[0].mxu0 %v6015
      %v6202 = vpop.f32.mrb[0].mxu0
      %v6203 = vadd.f32 0.0, %v6202
      %v6204 = vpop.f32.mrb[0].mxu0
      %v6205 = vpop.f32.mrb[0].mxu0
      %v6206 = vadd.f32 0.0, %v6205
      %v6207 = vpop.f32.mrb[0].mxu0
      %6208 = vmatprep.mubr.bf16.mxu0 0
      %6209 = vmatmul.mubr.bf16.gmra.mrb[0].mxu0 %v6016
      %v6210 = vpop.f32.mrb[0].mxu0
      %v6211 = vadd.f32 0.0, %v6210
      %v6212 = vpop.f32.mrb[0].mxu0
      %v6213 = vpop.f32.mrb[0].mxu0
      %v6214 = vadd.f32 0.0, %v6213
      %v6215 = vpop.f32.mrb[0].mxu0
      %6216 = vmatprep.mubr.bf16.mxu0 0
      %6217 = vmatmul.mubr.bf16.gmra.mrb[0].mxu0 %v6017
      %v6218 = vpop.f32.mrb[0].mxu0
      %v6219 = vadd.f32 0.0, %v6218
      %v6220 = vpop.f32.mrb[0].mxu0
      %v6221 = vpop.f32.mrb[0].mxu0
      %v6222 = vadd.f32 0.0, %v6221
      %v6223 = vpop.f32.mrb[0].mxu0
      %6224 = vmatprep.mubr.bf16.mxu0 0
      %6225 = vmatmul.mubr.bf16.gmra.mrb[0].mxu0 %v6018
      %v6226 = vpop.f32.mrb[0].mxu0
      %v6227 = vadd.f32 0.0, %v6226
      %v6228 = vpop.f32.mrb[0].mxu0
      %v6229 = vpop.f32.mrb[0].mxu0
      %v6230 = vadd.f32 0.0, %v6229
      %v6231 = vpop.f32.mrb[0].mxu0
      %6232 = vmatprep.mubr.bf16.mxu0 0
      %6233 = vmatmul.mubr.bf16.gmra.mrb[0].mxu0 %v6019
      %v6234 = vpop.f32.mrb[0].mxu0
      %v6235 = vadd.f32 0.0, %v6234
      %v6236 = vpop.f32.mrb[0].mxu0
      %v6237 = vpop.f32.mrb[0].mxu0
      %v6238 = vadd.f32 0.0, %v6237
      %v6239 = vpop.f32.mrb[0].mxu0
      %6240 = vmatprep.mubr.bf16.mxu0 0
      %6241 = vmatmul.mubr.bf16.gmra.mrb[0].mxu0 %v6020
      %v6242 = vpop.f32.mrb[0].mxu0
      %v6243 = vadd.f32 0.0, %v6242
      %v6244 = vpop.f32.mrb[0].mxu0
      %v6245 = vpop.f32.mrb[0].mxu0
      %v6246 = vadd.f32 0.0, %v6245
      %v6247 = vpop.f32.mrb[0].mxu0
      %6248 = vmatprep.mubr.bf16.mxu0 0
      %6249 = vmatmul.mubr.bf16.gmra.mrb[0].mxu0 %v6021
      %v6250 = vpop.f32.mrb[0].mxu0
      %v6251 = vadd.f32 0.0, %v6250
      %v6252 = vpop.f32.mrb[0].mxu0
      %v6253 = vpop.f32.mrb[0].mxu0
      %v6254 = vadd.f32 0.0, %v6253
      %v6255 = vpop.f32.mrb[0].mxu0
      %6256 = vmatprep.mubr.bf16.mxu0 0
      %6257 = vmatmul.mubr.bf16.gmra.mrb[0].mxu0 %v6022
      %v6258 = vpop.f32.mrb[0].mxu0
      %v6259 = vadd.f32 0.0, %v6258
      %v6260 = vpop.f32.mrb[0].mxu0
      %v6261 = vpop.f32.mrb[0].mxu0
      %v6262 = vadd.f32 0.0, %v6261
      %v6263 = vpop.f32.mrb[0].mxu0
      %6264 = vdwg.mxu0
      %v6265 = vadd.f32 %v5933, %v6123
      %v6266 = vadd.f32 %v5934, %v6126
      %v6267 = vadd.f32 %v5935, %v6131
      %v6268 = vadd.f32 %v5936, %v6134
      %v6269 = vadd.f32 %v5937, %v6139
      %v6270 = vadd.f32 %v5938, %v6142
      %v6271 = vadd.f32 %v5939, %v6147
      %v6272 = vadd.f32 %v5940, %v6150
      %v6273 = vadd.f32 %v5941, %v6155
      %v6274 = vadd.f32 %v5942, %v6158
      %v6275 = vadd.f32 %v5943, %v6163
      %v6276 = vadd.f32 %v5944, %v6166
      %v6277 = vadd.f32 %v5945, %v6171
      %v6278 = vadd.f32 %v5946, %v6174
      %v6279 = vadd.f32 %v5947, %v6179
      %v6280 = vadd.f32 %v5948, %v6182
      %v6281 = vadd.f32 %v5949, %v6187
      %v6282 = vadd.f32 %v5950, %v6190
      %v6283 = vadd.f32 %v5951, %v6195
      %v6284 = vadd.f32 %v5952, %v6198
      %v6285 = vadd.f32 %v5953, %v6203
      %v6286 = vadd.f32 %v5954, %v6206
      %v6287 = vadd.f32 %v5955, %v6211
      %v6288 = vadd.f32 %v5956, %v6214
      %v6289 = vadd.f32 %v5957, %v6219
      %v6290 = vadd.f32 %v5958, %v6222
      %v6291 = vadd.f32 %v5959, %v6227
      %v6292 = vadd.f32 %v5960, %v6230
      %v6293 = vadd.f32 %v5961, %v6235
      %v6294 = vadd.f32 %v5962, %v6238
      %v6295 = vadd.f32 %v5963, %v6243
      %v6296 = vadd.f32 %v5964, %v6246
      %v6297 = vadd.f32 %v5965, %v6251
      %v6298 = vadd.f32 %v5966, %v6254
      %v6299 = vadd.f32 %v5967, %v6259
      %v6300 = vadd.f32 %v5968, %v6262
      %s6301 = scalar_lea.vmem %s2, 1
      %v6302 = vld [vmem:[%s6301] sm:$0x1]
      %v6304 = vlaneseq
      %v6305 = vshrl.u32 %v6304, 7
      %v6306 = vsub.s32 0, %v6305
      %v6307 = vrot.slane %v6302, %v6306
      %v6309 = vadd.f32 %v6265, %v6307
      %v6310 = vadd.f32 %v6266, %v6307
      %v6311 = vadd.f32 %v6267, %v6307
      %v6312 = vadd.f32 %v6268, %v6307
      %v6313 = vadd.f32 %v6269, %v6307
      %v6314 = vadd.f32 %v6270, %v6307
      %v6315 = vadd.f32 %v6271, %v6307
      %v6316 = vadd.f32 %v6272, %v6307
      %v6317 = vadd.f32 %v6273, %v6307
      %v6318 = vadd.f32 %v6274, %v6307
      %v6319 = vadd.f32 %v6275, %v6307
      %v6320 = vadd.f32 %v6276, %v6307
      %v6321 = vadd.f32 %v6277, %v6307
      %v6322 = vadd.f32 %v6278, %v6307
      %v6323 = vadd.f32 %v6279, %v6307
      %v6324 = vadd.f32 %v6280, %v6307
      %v6325 = vadd.f32 %v6281, %v6307
      %v6326 = vadd.f32 %v6282, %v6307
      %v6327 = vadd.f32 %v6283, %v6307
      %v6328 = vadd.f32 %v6284, %v6307
      %v6329 = vadd.f32 %v6285, %v6307
      %v6330 = vadd.f32 %v6286, %v6307
      %v6331 = vadd.f32 %v6287, %v6307
      %v6332 = vadd.f32 %v6288, %v6307
      %v6333 = vadd.f32 %v6289, %v6307
      %v6334 = vadd.f32 %v6290, %v6307
      %v6335 = vadd.f32 %v6291, %v6307
      %v6336 = vadd.f32 %v6292, %v6307
      %v6337 = vadd.f32 %v6293, %v6307
      %v6338 = vadd.f32 %v6294, %v6307
      %v6339 = vadd.f32 %v6295, %v6307
      %v6340 = vadd.f32 %v6296, %v6307
      %v6341 = vadd.f32 %v6297, %v6307
      %v6342 = vadd.f32 %v6298, %v6307
      %v6343 = vadd.f32 %v6299, %v6307
      %v6344 = vadd.f32 %v6300, %v6307
      %v6345 = vmax.f32 %v6309, 0.0
      %v6346 = vmax.f32 %v6310, 0.0
      %v6347 = vmax.f32 %v6311, 0.0
      %v6348 = vmax.f32 %v6312, 0.0
      %v6349 = vmax.f32 %v6313, 0.0
      %v6350 = vmax.f32 %v6314, 0.0
      %v6351 = vmax.f32 %v6315, 0.0
      %v6352 = vmax.f32 %v6316, 0.0
      %v6353 = vmax.f32 %v6317, 0.0
      %v6354 = vmax.f32 %v6318, 0.0
      %v6355 = vmax.f32 %v6319, 0.0
      %v6356 = vmax.f32 %v6320, 0.0
      %v6357 = vmax.f32 %v6321, 0.0
      %v6358 = vmax.f32 %v6322, 0.0
      %v6359 = vmax.f32 %v6323, 0.0
      %v6360 = vmax.f32 %v6324, 0.0
      %v6361 = vmax.f32 %v6325, 0.0
      %v6362 = vmax.f32 %v6326, 0.0
      %v6363 = vmax.f32 %v6327, 0.0
      %v6364 = vmax.f32 %v6328, 0.0
      %v6365 = vmax.f32 %v6329, 0.0
      %v6366 = vmax.f32 %v6330, 0.0
      %v6367 = vmax.f32 %v6331, 0.0
      %v6368 = vmax.f32 %v6332, 0.0
      %v6369 = vmax.f32 %v6333, 0.0
      %v6370 = vmax.f32 %v6334, 0.0
      %v6371 = vmax.f32 %v6335, 0.0
      %v6372 = vmax.f32 %v6336, 0.0
      %v6373 = vmax.f32 %v6337, 0.0
      %v6374 = vmax.f32 %v6338, 0.0
      %v6375 = vmax.f32 %v6339, 0.0
      %v6376 = vmax.f32 %v6340, 0.0
      %v6377 = vmax.f32 %v6341, 0.0
      %v6378 = vmax.f32 %v6342, 0.0
      %v6379 = vmax.f32 %v6343, 0.0
      %v6380 = vmax.f32 %v6344, 0.0
      %v6381 = vmul.f32 %v6345, %v199
      %v6382 = vmul.f32 %v6346, %v200
      %v6383 = vmul.f32 %v6347, %v201
      %v6384 = vmul.f32 %v6348, %v202
      %v6385 = vmul.f32 %v6349, %v203
      %v6386 = vmul.f32 %v6350, %v204
      %v6387 = vmul.f32 %v6351, %v205
      %v6388 = vmul.f32 %v6352, %v206
      %v6389 = vmul.f32 %v6353, %v207
      %v6390 = vmul.f32 %v6354, %v208
      %v6391 = vmul.f32 %v6355, %v209
      %v6392 = vmul.f32 %v6356, %v210
      %v6393 = vmul.f32 %v6357, %v211
      %v6394 = vmul.f32 %v6358, %v212
      %v6395 = vmul.f32 %v6359, %v213
      %v6396 = vmul.f32 %v6360, %v214
      %v6397 = vmul.f32 %v6361, %v215
      %v6398 = vmul.f32 %v6362, %v216
      %v6399 = vmul.f32 %v6363, %v217
      %v6400 = vmul.f32 %v6364, %v218
      %v6401 = vmul.f32 %v6365, %v219
      %v6402 = vmul.f32 %v6366, %v220
      %v6403 = vmul.f32 %v6367, %v221
      %v6404 = vmul.f32 %v6368, %v222
      %v6405 = vmul.f32 %v6369, %v223
      %v6406 = vmul.f32 %v6370, %v224
      %v6407 = vmul.f32 %v6371, %v225
      %v6408 = vmul.f32 %v6372, %v226
      %v6409 = vmul.f32 %v6373, %v227
      %v6410 = vmul.f32 %v6374, %v228
      %v6411 = vmul.f32 %v6375, %v229
      %v6412 = vmul.f32 %v6376, %v230
      %v6413 = vmul.f32 %v6377, %v231
      %v6414 = vmul.f32 %v6378, %v232
      %v6415 = vmul.f32 %v6379, %v233
      %v6416 = vmul.f32 %v6380, %v234
      %6417 = vst [vmem:[#allocation3 + $0x18] sm:$0xff] %v6381
      %6418 = vst [vmem:[#allocation3 + $0x20] sm:$0xff] %v6382
      %6419 = vst [vmem:[#allocation3 + $0x28] sm:$0xff] %v6383
      %6420 = vst [vmem:[#allocation3 + $0x30] sm:$0xff] %v6384
      %6421 = vst [vmem:[#allocation3 + $0x38] sm:$0xff] %v6385
      %6422 = vst [vmem:[#allocation3 + $0x40] sm:$0xff] %v6386
      %6423 = vst [vmem:[#allocation3 + $0x48] sm:$0xff] %v6387
      %6424 = vst [vmem:[#allocation3 + $0x50] sm:$0xff] %v6388
      %6425 = vst [vmem:[#allocation3 + $0x58] sm:$0xff] %v6389
      %6426 = vst [vmem:[#allocation3 + $0x60] sm:$0xff] %v6390
      %6427 = vst [vmem:[#allocation3 + $0x68] sm:$0xff] %v6391
      %6428 = vst [vmem:[#allocation3 + $0x70] sm:$0xff] %v6392
      %6429 = vst [vmem:[#allocation3 + $0x78] sm:$0xff] %v6393
      %6430 = vst [vmem:[#allocation3 + $0x80] sm:$0xff] %v6394
      %6431 = vst [vmem:[#allocation3 + $0x88] sm:$0xff] %v6395
      %6432 = vst [vmem:[#allocation3 + $0x90] sm:$0xff] %v6396
      %6433 = vst [vmem:[#allocation3 + $0x98] sm:$0xff] %v6397
      %6434 = vst [vmem:[#allocation3 + $0xa0] sm:$0xff] %v6398
      %6435 = vst [vmem:[#allocation3 + $0xa8] sm:$0xff] %v6399
      %6436 = vst [vmem:[#allocation3 + $0xb0] sm:$0xff] %v6400
      %6437 = vst [vmem:[#allocation3 + $0xb8] sm:$0xff] %v6401
      %6438 = vst [vmem:[#allocation3 + $0xc0] sm:$0xff] %v6402
      %6439 = vst [vmem:[#allocation3 + $0xc8] sm:$0xff] %v6403
      %6440 = vst [vmem:[#allocation3 + $0xd0] sm:$0xff] %v6404
      %6441 = vst [vmem:[#allocation3 + $0xd8] sm:$0xff] %v6405
      %6442 = vst [vmem:[#allocation3 + $0xe0] sm:$0xff] %v6406
      %6443 = vst [vmem:[#allocation3 + $0xe8] sm:$0xff] %v6407
      %6444 = vst [vmem:[#allocation3 + $0xf0] sm:$0xff] %v6408
      %6445 = vst [vmem:[#allocation3 + $0xf8] sm:$0xff] %v6409
      %6446 = vst [vmem:[#allocation3 + $0x100] sm:$0xff] %v6410
      %6447 = vst [vmem:[#allocation3 + $0x108] sm:$0xff] %v6411
      %6448 = vst [vmem:[#allocation3 + $0x110] sm:$0xff] %v6412
      %6449 = vst [vmem:[#allocation3 + $0x118] sm:$0xff] %v6413
      %6450 = vst [vmem:[#allocation3 + $0x120] sm:$0xff] %v6414
      %6451 = vst [vmem:[#allocation3 + $0x128] sm:$0xff] %v6415
      %6452 = vst [vmem:[#allocation3 + $0x130] sm:$0xff] %v6416
      %v6453 = vld [vmem:[#allocation3 + $0x5] sm:$0xff]
      %v6454 = vld [vmem:[#allocation3 + $0xd] sm:$0xff]
      %v6455 = vld [vmem:[#allocation3 + $0x15] sm:$0xff]
      %v6456 = vld [vmem:[#allocation3 + $0x1d] sm:$0xff]
      %v6457 = vld [vmem:[#allocation3 + $0x25] sm:$0xff]
      %v6458 = vld [vmem:[#allocation3 + $0x2d] sm:$0xff]
      %v6459 = vld [vmem:[#allocation3 + $0x35] sm:$0xff]
      %v6460 = vld [vmem:[#allocation3 + $0x3d] sm:$0xff]
      %v6461 = vld [vmem:[#allocation3 + $0x45] sm:$0xff]
      %v6462 = vld [vmem:[#allocation3 + $0x4d] sm:$0xff]
      %v6463 = vld [vmem:[#allocation3 + $0x55] sm:$0xff]
      %v6464 = vld [vmem:[#allocation3 + $0x5d] sm:$0xff]
      %v6465 = vld [vmem:[#allocation3 + $0x65] sm:$0xff]
      %v6466 = vld [vmem:[#allocation3 + $0x6d] sm:$0xff]
      %v6467 = vld [vmem:[#allocation3 + $0x75] sm:$0xff]
      %v6468 = vld [vmem:[#allocation3 + $0x7d] sm:$0xff]
      %v6469 = vld [vmem:[#allocation3 + $0x85] sm:$0xff]
      %v6470 = vld [vmem:[#allocation3 + $0x8d] sm:$0xff]
      %v6471 = vld [vmem:[#allocation3 + $0x95] sm:$0xff]
      %v6472 = vld [vmem:[#allocation3 + $0x9d] sm:$0xff]
      %v6473 = vld [vmem:[#allocation3 + $0xa5] sm:$0xff]
      %v6474 = vld [vmem:[#allocation3 + $0xad] sm:$0xff]
      %v6475 = vld [vmem:[#allocation3 + $0xb5] sm:$0xff]
      %v6476 = vld [vmem:[#allocation3 + $0xbd] sm:$0xff]
      %v6477 = vld [vmem:[#allocation3 + $0xc5] sm:$0xff]
      %v6478 = vld [vmem:[#allocation3 + $0xcd] sm:$0xff]
      %v6479 = vld [vmem:[#allocation3 + $0xd5] sm:$0xff]
      %v6480 = vld [vmem:[#allocation3 + $0xdd] sm:$0xff]
      %v6481 = vld [vmem:[#allocation3 + $0xe5] sm:$0xff]
      %v6482 = vld [vmem:[#allocation3 + $0xed] sm:$0xff]
      %v6483 = vld [vmem:[#allocation3 + $0xf5] sm:$0xff]
      %v6484 = vld [vmem:[#allocation3 + $0xfd] sm:$0xff]
      %v6485 = vld [vmem:[#allocation3 + $0x105] sm:$0xff]
      %v6486 = vld [vmem:[#allocation3 + $0x10d] sm:$0xff]
      %v6487 = vld [vmem:[#allocation3 + $0x115] sm:$0xff]
      %v6488 = vld [vmem:[#allocation3 + $0x11d] sm:$0xff]
      %v6489 = vpack.c.bf16 %v6454, %v6453
      %v6490 = vpack.c.bf16 %v6456, %v6455
      %v6491 = vpack.c.bf16 %v6458, %v6457
      %v6492 = vpack.c.bf16 %v6460, %v6459
      %v6493 = vpack.c.bf16 %v6462, %v6461
      %v6494 = vpack.c.bf16 %v6464, %v6463
      %v6495 = vpack.c.bf16 %v6466, %v6465
      %v6496 = vpack.c.bf16 %v6468, %v6467
      %v6497 = vpack.c.bf16 %v6470, %v6469
      %v6498 = vpack.c.bf16 %v6472, %v6471
      %v6499 = vpack.c.bf16 %v6474, %v6473
      %v6500 = vpack.c.bf16 %v6476, %v6475
      %v6501 = vpack.c.bf16 %v6478, %v6477
      %v6502 = vpack.c.bf16 %v6480, %v6479
      %v6503 = vpack.c.bf16 %v6482, %v6481
      %v6504 = vpack.c.bf16 %v6484, %v6483
      %v6505 = vpack.c.bf16 %v6486, %v6485
      %v6506 = vpack.c.bf16 %v6488, %v6487
      %s6507 = scalar_lea.vmem %s1, 1152
      %v6508 = vld [vmem:[%s6507] sm:$0xf]
      %v6509 = vld [vmem:[%s6507 + $0x4] sm:$0xf]
      %v6510 = vld [vmem:[%s6507 + $0x8] sm:$0xf]
      %v6511 = vld [vmem:[%s6507 + $0xc] sm:$0xf]
      %v6512 = vld [vmem:[%s6507 + $0x10] sm:$0xf]
      %v6513 = vld [vmem:[%s6507 + $0x14] sm:$0xf]
      %v6514 = vld [vmem:[%s6507 + $0x18] sm:$0xf]
      %v6515 = vld [vmem:[%s6507 + $0x1c] sm:$0xf]
      %v6516 = vld [vmem:[%s6507 + $0x20] sm:$0xf]
      %v6517 = vld [vmem:[%s6507 + $0x24] sm:$0xf]
      %v6518 = vld [vmem:[%s6507 + $0x28] sm:$0xf]
      %v6519 = vld [vmem:[%s6507 + $0x2c] sm:$0xf]
      %v6520 = vld [vmem:[%s6507 + $0x30] sm:$0xf]
      %v6521 = vld [vmem:[%s6507 + $0x34] sm:$0xf]
      %v6522 = vld [vmem:[%s6507 + $0x38] sm:$0xf]
      %v6523 = vld [vmem:[%s6507 + $0x3c] sm:$0xf]
      %v6524 = vld [vmem:[#allocation3 + $0x6] sm:$0xff]
      %v6525 = vld [vmem:[#allocation3 + $0xe] sm:$0xff]
      %v6526 = vld [vmem:[#allocation3 + $0x16] sm:$0xff]
      %v6527 = vld [vmem:[#allocation3 + $0x1e] sm:$0xff]
      %v6528 = vld [vmem:[#allocation3 + $0x26] sm:$0xff]
      %v6529 = vld [vmem:[#allocation3 + $0x2e] sm:$0xff]
      %v6530 = vld [vmem:[#allocation3 + $0x36] sm:$0xff]
      %v6531 = vld [vmem:[#allocation3 + $0x3e] sm:$0xff]
      %v6532 = vld [vmem:[#allocation3 + $0x46] sm:$0xff]
      %v6533 = vld [vmem:[#allocation3 + $0x4e] sm:$0xff]
      %v6534 = vld [vmem:[#allocation3 + $0x56] sm:$0xff]
      %v6535 = vld [vmem:[#allocation3 + $0x5e] sm:$0xff]
      %v6536 = vld [vmem:[#allocation3 + $0x66] sm:$0xff]
      %v6537 = vld [vmem:[#allocation3 + $0x6e] sm:$0xff]
      %v6538 = vld [vmem:[#allocation3 + $0x76] sm:$0xff]
      %v6539 = vld [vmem:[#allocation3 + $0x7e] sm:$0xff]
      %v6540 = vld [vmem:[#allocation3 + $0x86] sm:$0xff]
      %v6541 = vld [vmem:[#allocation3 + $0x8e] sm:$0xff]
      %v6542 = vld [vmem:[#allocation3 + $0x96] sm:$0xff]
      %v6543 = vld [vmem:[#allocation3 + $0x9e] sm:$0xff]
      %v6544 = vld [vmem:[#allocation3 + $0xa6] sm:$0xff]
      %v6545 = vld [vmem:[#allocation3 + $0xae] sm:$0xff]
      %v6546 = vld [vmem:[#allocation3 + $0xb6] sm:$0xff]
      %v6547 = vld [vmem:[#allocation3 + $0xbe] sm:$0xff]
      %v6548 = vld [vmem:[#allocation3 + $0xc6] sm:$0xff]
      %v6549 = vld [vmem:[#allocation3 + $0xce] sm:$0xff]
      %v6550 = vld [vmem:[#allocation3 + $0xd6] sm:$0xff]
      %v6551 = vld [vmem:[#allocation3 + $0xde] sm:$0xff]
      %v6552 = vld [vmem:[#allocation3 + $0xe6] sm:$0xff]
      %v6553 = vld [vmem:[#allocation3 + $0xee] sm:$0xff]
      %v6554 = vld [vmem:[#allocation3 + $0xf6] sm:$0xff]
      %v6555 = vld [vmem:[#allocation3 + $0xfe] sm:$0xff]
      %v6556 = vld [vmem:[#allocation3 + $0x106] sm:$0xff]
      %v6557 = vld [vmem:[#allocation3 + $0x10e] sm:$0xff]
      %v6558 = vld [vmem:[#allocation3 + $0x116] sm:$0xff]
      %v6559 = vld [vmem:[#allocation3 + $0x11e] sm:$0xff]
      %v6560 = vpack.c.bf16 %v6525, %v6524
      %v6561 = vpack.c.bf16 %v6527, %v6526
      %v6562 = vpack.c.bf16 %v6529, %v6528
      %v6563 = vpack.c.bf16 %v6531, %v6530
      %v6564 = vpack.c.bf16 %v6533, %v6532
      %v6565 = vpack.c.bf16 %v6535, %v6534
      %v6566 = vpack.c.bf16 %v6537, %v6536
      %v6567 = vpack.c.bf16 %v6539, %v6538
      %v6568 = vpack.c.bf16 %v6541, %v6540
      %v6569 = vpack.c.bf16 %v6543, %v6542
      %v6570 = vpack.c.bf16 %v6545, %v6544
      %v6571 = vpack.c.bf16 %v6547, %v6546
      %v6572 = vpack.c.bf16 %v6549, %v6548
      %v6573 = vpack.c.bf16 %v6551, %v6550
      %v6574 = vpack.c.bf16 %v6553, %v6552
      %v6575 = vpack.c.bf16 %v6555, %v6554
      %v6576 = vpack.c.bf16 %v6557, %v6556
      %v6577 = vpack.c.bf16 %v6559, %v6558
      %s6578 = scalar_lea.vmem %s1, 1216
      %v6579 = vld [vmem:[%s6578] sm:$0xf]
      %v6580 = vld [vmem:[%s6578 + $0x4] sm:$0xf]
      %v6581 = vld [vmem:[%s6578 + $0x8] sm:$0xf]
      %v6582 = vld [vmem:[%s6578 + $0xc] sm:$0xf]
      %v6583 = vld [vmem:[%s6578 + $0x10] sm:$0xf]
      %v6584 = vld [vmem:[%s6578 + $0x14] sm:$0xf]
      %v6585 = vld [vmem:[%s6578 + $0x18] sm:$0xf]
      %v6586 = vld [vmem:[%s6578 + $0x1c] sm:$0xf]
      %v6587 = vld [vmem:[%s6578 + $0x20] sm:$0xf]
      %v6588 = vld [vmem:[%s6578 + $0x24] sm:$0xf]
      %v6589 = vld [vmem:[%s6578 + $0x28] sm:$0xf]
      %v6590 = vld [vmem:[%s6578 + $0x2c] sm:$0xf]
      %v6591 = vld [vmem:[%s6578 + $0x30] sm:$0xf]
      %v6592 = vld [vmem:[%s6578 + $0x34] sm:$0xf]
      %v6593 = vld [vmem:[%s6578 + $0x38] sm:$0xf]
      %v6594 = vld [vmem:[%s6578 + $0x3c] sm:$0xf]
      %v6611 = vunpack.c.l.b16 %v6579
      %v6612 = vunpack.c.l.b16 %v6580
      %v6613 = vunpack.c.l.b16 %v6581
      %v6614 = vunpack.c.l.b16 %v6582
      %v6615 = vunpack.c.l.b16 %v6583
      %v6616 = vunpack.c.l.b16 %v6584
      %v6617 = vunpack.c.l.b16 %v6585
      %v6618 = vunpack.c.l.b16 %v6586
      %v6619 = vunpack.c.l.b16 %v6587
      %v6620 = vunpack.c.l.b16 %v6588
      %v6621 = vunpack.c.l.b16 %v6589
      %v6622 = vunpack.c.l.b16 %v6590
      %v6623 = vunpack.c.l.b16 %v6591
      %v6624 = vunpack.c.l.b16 %v6592
      %v6625 = vunpack.c.l.b16 %v6593
      %v6626 = vunpack.c.l.b16 %v6594
      %v6627 = vpack.c.b16 %v6612, %v6611
      %v6628 = vpack.c.b16 %v6614, %v6613
      %v6629 = vpack.c.b16 %v6616, %v6615
      %v6630 = vpack.c.b16 %v6618, %v6617
      %v6631 = vpack.c.b16 %v6620, %v6619
      %v6632 = vpack.c.b16 %v6622, %v6621
      %v6633 = vpack.c.b16 %v6624, %v6623
      %v6634 = vpack.c.b16 %v6626, %v6625
      %6643 = vmatprep.subr.bf16.mxu0 0
      %6644 = vmatpush1.bf16.msra.mxu0 %v6627
      %6645 = vmatprep.subr.bf16.mxu0 0
      %6646 = vmatpush1.bf16.msra.mxu0 %v6628
      %6647 = vmatprep.subr.bf16.mxu0 0
      %6648 = vmatpush1.bf16.msra.mxu0 %v6629
      %6649 = vmatprep.subr.bf16.mxu0 0
      %6650 = vmatpush1.bf16.msra.mxu0 %v6630
      %6651 = vmatprep.subr.bf16.mxu0 0
      %6652 = vmatpush1.bf16.msra.mxu0 %v6631
      %6653 = vmatprep.subr.bf16.mxu0 0
      %6654 = vmatpush1.bf16.msra.mxu0 %v6632
      %6655 = vmatprep.subr.bf16.mxu0 0
      %6656 = vmatpush1.bf16.msra.mxu0 %v6633
      %6657 = vmatprep.subr.bf16.mxu0 0
      %6658 = vmatpush1.bf16.msra.mxu0 %v6634
      %6659 = vmatprep.subr.bf16.mxu0 0
      %6660 = vmatpush1.bf16.msra.mxu0 0
      %6661 = vmatprep.subr.bf16.mxu0 0
      %6662 = vmatpush1.bf16.msra.mxu0 0
      %6663 = vmatprep.subr.bf16.mxu0 0
      %6664 = vmatpush1.bf16.msra.mxu0 0
      %6665 = vmatprep.subr.bf16.mxu0 0
      %6666 = vmatpush1.bf16.msra.mxu0 0
      %6667 = vmatprep.subr.bf16.mxu0 0
      %6668 = vmatpush1.bf16.msra.mxu0 0
      %6669 = vmatprep.subr.bf16.mxu0 0
      %6670 = vmatpush1.bf16.msra.mxu0 0
      %6671 = vmatprep.subr.bf16.mxu0 0
      %6672 = vmatpush1.bf16.msra.mxu0 0
      %6673 = vmatprep.subr.bf16.mxu0 0
      %6674 = vmatpush1.bf16.msra.mxu0 0
      %6675 = vmatprep.mubr.bf16.mxu0 0
      %6676 = vmatmul.mubr.bf16.gmra.mrb[0].mxu0 %v6560
      %v6677 = vpop.f32.mrb[0].mxu0
      %v6678 = vadd.f32 0.0, %v6677
      %v6679 = vpop.f32.mrb[0].mxu0
      %v6680 = vpop.f32.mrb[0].mxu0
      %v6681 = vadd.f32 0.0, %v6680
      %v6682 = vpop.f32.mrb[0].mxu0
      %6683 = vmatprep.mubr.bf16.mxu0 0
      %6684 = vmatmul.mubr.bf16.gmra.mrb[0].mxu0 %v6561
      %v6685 = vpop.f32.mrb[0].mxu0
      %v6686 = vadd.f32 0.0, %v6685
      %v6687 = vpop.f32.mrb[0].mxu0
      %v6688 = vpop.f32.mrb[0].mxu0
      %v6689 = vadd.f32 0.0, %v6688
      %v6690 = vpop.f32.mrb[0].mxu0
      %6691 = vmatprep.mubr.bf16.mxu0 0
      %6692 = vmatmul.mubr.bf16.gmra.mrb[0].mxu0 %v6562
      %v6693 = vpop.f32.mrb[0].mxu0
      %v6694 = vadd.f32 0.0, %v6693
      %v6695 = vpop.f32.mrb[0].mxu0
      %v6696 = vpop.f32.mrb[0].mxu0
      %v6697 = vadd.f32 0.0, %v6696
      %v6698 = vpop.f32.mrb[0].mxu0
      %6699 = vmatprep.mubr.bf16.mxu0 0
      %6700 = vmatmul.mubr.bf16.gmra.mrb[0].mxu0 %v6563
      %v6701 = vpop.f32.mrb[0].mxu0
      %v6702 = vadd.f32 0.0, %v6701
      %v6703 = vpop.f32.mrb[0].mxu0
      %v6704 = vpop.f32.mrb[0].mxu0
      %v6705 = vadd.f32 0.0, %v6704
      %v6706 = vpop.f32.mrb[0].mxu0
      %6707 = vmatprep.mubr.bf16.mxu0 0
      %6708 = vmatmul.mubr.bf16.gmra.mrb[0].mxu0 %v6564
      %v6709 = vpop.f32.mrb[0].mxu0
      %v6710 = vadd.f32 0.0, %v6709
      %v6711 = vpop.f32.mrb[0].mxu0
      %v6712 = vpop.f32.mrb[0].mxu0
      %v6713 = vadd.f32 0.0, %v6712
      %v6714 = vpop.f32.mrb[0].mxu0
      %6715 = vmatprep.mubr.bf16.mxu0 0
      %6716 = vmatmul.mubr.bf16.gmra.mrb[0].mxu0 %v6565
      %v6717 = vpop.f32.mrb[0].mxu0
      %v6718 = vadd.f32 0.0, %v6717
      %v6719 = vpop.f32.mrb[0].mxu0
      %v6720 = vpop.f32.mrb[0].mxu0
      %v6721 = vadd.f32 0.0, %v6720
      %v6722 = vpop.f32.mrb[0].mxu0
      %6723 = vmatprep.mubr.bf16.mxu0 0
      %6724 = vmatmul.mubr.bf16.gmra.mrb[0].mxu0 %v6566
      %v6725 = vpop.f32.mrb[0].mxu0
      %v6726 = vadd.f32 0.0, %v6725
      %v6727 = vpop.f32.mrb[0].mxu0
      %v6728 = vpop.f32.mrb[0].mxu0
      %v6729 = vadd.f32 0.0, %v6728
      %v6730 = vpop.f32.mrb[0].mxu0
      %6731 = vmatprep.mubr.bf16.mxu0 0
      %6732 = vmatmul.mubr.bf16.gmra.mrb[0].mxu0 %v6567
      %v6733 = vpop.f32.mrb[0].mxu0
      %v6734 = vadd.f32 0.0, %v6733
      %v6735 = vpop.f32.mrb[0].mxu0
      %v6736 = vpop.f32.mrb[0].mxu0
      %v6737 = vadd.f32 0.0, %v6736
      %v6738 = vpop.f32.mrb[0].mxu0
      %6739 = vmatprep.mubr.bf16.mxu0 0
      %6740 = vmatmul.mubr.bf16.gmra.mrb[0].mxu0 %v6568
      %v6741 = vpop.f32.mrb[0].mxu0
      %v6742 = vadd.f32 0.0, %v6741
      %v6743 = vpop.f32.mrb[0].mxu0
      %v6744 = vpop.f32.mrb[0].mxu0
      %v6745 = vadd.f32 0.0, %v6744
      %v6746 = vpop.f32.mrb[0].mxu0
      %6747 = vmatprep.mubr.bf16.mxu0 0
      %6748 = vmatmul.mubr.bf16.gmra.mrb[0].mxu0 %v6569
      %v6749 = vpop.f32.mrb[0].mxu0
      %v6750 = vadd.f32 0.0, %v6749
      %v6751 = vpop.f32.mrb[0].mxu0
      %v6752 = vpop.f32.mrb[0].mxu0
      %v6753 = vadd.f32 0.0, %v6752
      %v6754 = vpop.f32.mrb[0].mxu0
      %6755 = vmatprep.mubr.bf16.mxu0 0
      %6756 = vmatmul.mubr.bf16.gmra.mrb[0].mxu0 %v6570
      %v6757 = vpop.f32.mrb[0].mxu0
      %v6758 = vadd.f32 0.0, %v6757
      %v6759 = vpop.f32.mrb[0].mxu0
      %v6760 = vpop.f32.mrb[0].mxu0
      %v6761 = vadd.f32 0.0, %v6760
      %v6762 = vpop.f32.mrb[0].mxu0
      %6763 = vmatprep.mubr.bf16.mxu0 0
      %6764 = vmatmul.mubr.bf16.gmra.mrb[0].mxu0 %v6571
      %v6765 = vpop.f32.mrb[0].mxu0
      %v6766 = vadd.f32 0.0, %v6765
      %v6767 = vpop.f32.mrb[0].mxu0
      %v6768 = vpop.f32.mrb[0].mxu0
      %v6769 = vadd.f32 0.0, %v6768
      %v6770 = vpop.f32.mrb[0].mxu0
      %6771 = vmatprep.mubr.bf16.mxu0 0
      %6772 = vmatmul.mubr.bf16.gmra.mrb[0].mxu0 %v6572
      %v6773 = vpop.f32.mrb[0].mxu0
      %v6774 = vadd.f32 0.0, %v6773
      %v6775 = vpop.f32.mrb[0].mxu0
      %v6776 = vpop.f32.mrb[0].mxu0
      %v6777 = vadd.f32 0.0, %v6776
      %v6778 = vpop.f32.mrb[0].mxu0
      %6779 = vmatprep.mubr.bf16.mxu0 0
      %6780 = vmatmul.mubr.bf16.gmra.mrb[0].mxu0 %v6573
      %v6781 = vpop.f32.mrb[0].mxu0
      %v6782 = vadd.f32 0.0, %v6781
      %v6783 = vpop.f32.mrb[0].mxu0
      %v6784 = vpop.f32.mrb[0].mxu0
      %v6785 = vadd.f32 0.0, %v6784
      %v6786 = vpop.f32.mrb[0].mxu0
      %6787 = vmatprep.mubr.bf16.mxu0 0
      %6788 = vmatmul.mubr.bf16.gmra.mrb[0].mxu0 %v6574
      %v6789 = vpop.f32.mrb[0].mxu0
      %v6790 = vadd.f32 0.0, %v6789
      %v6791 = vpop.f32.mrb[0].mxu0
      %v6792 = vpop.f32.mrb[0].mxu0
      %v6793 = vadd.f32 0.0, %v6792
      %v6794 = vpop.f32.mrb[0].mxu0
      %6795 = vmatprep.mubr.bf16.mxu0 0
      %6796 = vmatmul.mubr.bf16.gmra.mrb[0].mxu0 %v6575
      %v6797 = vpop.f32.mrb[0].mxu0
      %v6798 = vadd.f32 0.0, %v6797
      %v6799 = vpop.f32.mrb[0].mxu0
      %v6800 = vpop.f32.mrb[0].mxu0
      %v6801 = vadd.f32 0.0, %v6800
      %v6802 = vpop.f32.mrb[0].mxu0
      %6803 = vmatprep.mubr.bf16.mxu0 0
      %6804 = vmatmul.mubr.bf16.gmra.mrb[0].mxu0 %v6576
      %v6805 = vpop.f32.mrb[0].mxu0
      %v6806 = vadd.f32 0.0, %v6805
      %v6807 = vpop.f32.mrb[0].mxu0
      %v6808 = vpop.f32.mrb[0].mxu0
      %v6809 = vadd.f32 0.0, %v6808
      %v6810 = vpop.f32.mrb[0].mxu0
      %6811 = vmatprep.mubr.bf16.mxu0 0
      %6812 = vmatmul.mubr.bf16.gmra.mrb[0].mxu0 %v6577
      %v6813 = vpop.f32.mrb[0].mxu0
      %v6814 = vadd.f32 0.0, %v6813
      %v6815 = vpop.f32.mrb[0].mxu0
      %v6816 = vpop.f32.mrb[0].mxu0
      %v6817 = vadd.f32 0.0, %v6816
      %v6818 = vpop.f32.mrb[0].mxu0
      %6819 = vdwg.mxu0
      %v6836 = vunpack.c.l.b16 %v6508
      %v6837 = vunpack.c.l.b16 %v6509
      %v6838 = vunpack.c.l.b16 %v6510
      %v6839 = vunpack.c.l.b16 %v6511
      %v6840 = vunpack.c.l.b16 %v6512
      %v6841 = vunpack.c.l.b16 %v6513
      %v6842 = vunpack.c.l.b16 %v6514
      %v6843 = vunpack.c.l.b16 %v6515
      %v6844 = vunpack.c.l.b16 %v6516
      %v6845 = vunpack.c.l.b16 %v6517
      %v6846 = vunpack.c.l.b16 %v6518
      %v6847 = vunpack.c.l.b16 %v6519
      %v6848 = vunpack.c.l.b16 %v6520
      %v6849 = vunpack.c.l.b16 %v6521
      %v6850 = vunpack.c.l.b16 %v6522
      %v6851 = vunpack.c.l.b16 %v6523
      %v6852 = vpack.c.b16 %v6837, %v6836
      %v6853 = vpack.c.b16 %v6839, %v6838
      %v6854 = vpack.c.b16 %v6841, %v6840
      %v6855 = vpack.c.b16 %v6843, %v6842
      %v6856 = vpack.c.b16 %v6845, %v6844
      %v6857 = vpack.c.b16 %v6847, %v6846
      %v6858 = vpack.c.b16 %v6849, %v6848
      %v6859 = vpack.c.b16 %v6851, %v6850
      %6868 = vmatprep.subr.bf16.mxu0 0
      %6869 = vmatpush1.bf16.msra.mxu0 %v6852
      %6870 = vmatprep.subr.bf16.mxu0 0
      %6871 = vmatpush1.bf16.msra.mxu0 %v6853
      %6872 = vmatprep.subr.bf16.mxu0 0
      %6873 = vmatpush1.bf16.msra.mxu0 %v6854
      %6874 = vmatprep.subr.bf16.mxu0 0
      %6875 = vmatpush1.bf16.msra.mxu0 %v6855
      %6876 = vmatprep.subr.bf16.mxu0 0
      %6877 = vmatpush1.bf16.msra.mxu0 %v6856
      %6878 = vmatprep.subr.bf16.mxu0 0
      %6879 = vmatpush1.bf16.msra.mxu0 %v6857
      %6880 = vmatprep.subr.bf16.mxu0 0
      %6881 = vmatpush1.bf16.msra.mxu0 %v6858
      %6882 = vmatprep.subr.bf16.mxu0 0
      %6883 = vmatpush1.bf16.msra.mxu0 %v6859
      %6884 = vmatprep.subr.bf16.mxu0 0
      %6885 = vmatpush1.bf16.msra.mxu0 0
      %6886 = vmatprep.subr.bf16.mxu0 0
      %6887 = vmatpush1.bf16.msra.mxu0 0
      %6888 = vmatprep.subr.bf16.mxu0 0
      %6889 = vmatpush1.bf16.msra.mxu0 0
      %6890 = vmatprep.subr.bf16.mxu0 0
      %6891 = vmatpush1.bf16.msra.mxu0 0
      %6892 = vmatprep.subr.bf16.mxu0 0
      %6893 = vmatpush1.bf16.msra.mxu0 0
      %6894 = vmatprep.subr.bf16.mxu0 0
      %6895 = vmatpush1.bf16.msra.mxu0 0
      %6896 = vmatprep.subr.bf16.mxu0 0
      %6897 = vmatpush1.bf16.msra.mxu0 0
      %6898 = vmatprep.subr.bf16.mxu0 0
      %6899 = vmatpush1.bf16.msra.mxu0 0
      %6900 = vmatprep.mubr.bf16.mxu0 0
      %6901 = vmatmul.mubr.bf16.gmra.mrb[0].mxu0 %v6489
      %v6902 = vpop.f32.mrb[0].mxu0
      %v6903 = vadd.f32 %v6678, %v6902
      %v6904 = vpop.f32.mrb[0].mxu0
      %v6905 = vpop.f32.mrb[0].mxu0
      %v6906 = vadd.f32 %v6681, %v6905
      %v6907 = vpop.f32.mrb[0].mxu0
      %6908 = vmatprep.mubr.bf16.mxu0 0
      %6909 = vmatmul.mubr.bf16.gmra.mrb[0].mxu0 %v6490
      %v6910 = vpop.f32.mrb[0].mxu0
      %v6911 = vadd.f32 %v6686, %v6910
      %v6912 = vpop.f32.mrb[0].mxu0
      %v6913 = vpop.f32.mrb[0].mxu0
      %v6914 = vadd.f32 %v6689, %v6913
      %v6915 = vpop.f32.mrb[0].mxu0
      %6916 = vmatprep.mubr.bf16.mxu0 0
      %6917 = vmatmul.mubr.bf16.gmra.mrb[0].mxu0 %v6491
      %v6918 = vpop.f32.mrb[0].mxu0
      %v6919 = vadd.f32 %v6694, %v6918
      %v6920 = vpop.f32.mrb[0].mxu0
      %v6921 = vpop.f32.mrb[0].mxu0
      %v6922 = vadd.f32 %v6697, %v6921
      %v6923 = vpop.f32.mrb[0].mxu0
      %6924 = vmatprep.mubr.bf16.mxu0 0
      %6925 = vmatmul.mubr.bf16.gmra.mrb[0].mxu0 %v6492
      %v6926 = vpop.f32.mrb[0].mxu0
      %v6927 = vadd.f32 %v6702, %v6926
      %v6928 = vpop.f32.mrb[0].mxu0
      %v6929 = vpop.f32.mrb[0].mxu0
      %v6930 = vadd.f32 %v6705, %v6929
      %v6931 = vpop.f32.mrb[0].mxu0
      %6932 = vmatprep.mubr.bf16.mxu0 0
      %6933 = vmatmul.mubr.bf16.gmra.mrb[0].mxu0 %v6493
      %v6934 = vpop.f32.mrb[0].mxu0
      %v6935 = vadd.f32 %v6710, %v6934
      %v6936 = vpop.f32.mrb[0].mxu0
      %v6937 = vpop.f32.mrb[0].mxu0
      %v6938 = vadd.f32 %v6713, %v6937
      %v6939 = vpop.f32.mrb[0].mxu0
      %6940 = vmatprep.mubr.bf16.mxu0 0
      %6941 = vmatmul.mubr.bf16.gmra.mrb[0].mxu0 %v6494
      %v6942 = vpop.f32.mrb[0].mxu0
      %v6943 = vadd.f32 %v6718, %v6942
      %v6944 = vpop.f32.mrb[0].mxu0
      %v6945 = vpop.f32.mrb[0].mxu0
      %v6946 = vadd.f32 %v6721, %v6945
      %v6947 = vpop.f32.mrb[0].mxu0
      %6948 = vmatprep.mubr.bf16.mxu0 0
      %6949 = vmatmul.mubr.bf16.gmra.mrb[0].mxu0 %v6495
      %v6950 = vpop.f32.mrb[0].mxu0
      %v6951 = vadd.f32 %v6726, %v6950
      %v6952 = vpop.f32.mrb[0].mxu0
      %v6953 = vpop.f32.mrb[0].mxu0
      %v6954 = vadd.f32 %v6729, %v6953
      %v6955 = vpop.f32.mrb[0].mxu0
      %6956 = vmatprep.mubr.bf16.mxu0 0
      %6957 = vmatmul.mubr.bf16.gmra.mrb[0].mxu0 %v6496
      %v6958 = vpop.f32.mrb[0].mxu0
      %v6959 = vadd.f32 %v6734, %v6958
      %v6960 = vpop.f32.mrb[0].mxu0
      %v6961 = vpop.f32.mrb[0].mxu0
      %v6962 = vadd.f32 %v6737, %v6961
      %v6963 = vpop.f32.mrb[0].mxu0
      %6964 = vmatprep.mubr.bf16.mxu0 0
      %6965 = vmatmul.mubr.bf16.gmra.mrb[0].mxu0 %v6497
      %v6966 = vpop.f32.mrb[0].mxu0
      %v6967 = vadd.f32 %v6742, %v6966
      %v6968 = vpop.f32.mrb[0].mxu0
      %v6969 = vpop.f32.mrb[0].mxu0
      %v6970 = vadd.f32 %v6745, %v6969
      %v6971 = vpop.f32.mrb[0].mxu0
      %6972 = vmatprep.mubr.bf16.mxu0 0
      %6973 = vmatmul.mubr.bf16.gmra.mrb[0].mxu0 %v6498
      %v6974 = vpop.f32.mrb[0].mxu0
      %v6975 = vadd.f32 %v6750, %v6974
      %v6976 = vpop.f32.mrb[0].mxu0
      %v6977 = vpop.f32.mrb[0].mxu0
      %v6978 = vadd.f32 %v6753, %v6977
      %v6979 = vpop.f32.mrb[0].mxu0
      %6980 = vmatprep.mubr.bf16.mxu0 0
      %6981 = vmatmul.mubr.bf16.gmra.mrb[0].mxu0 %v6499
      %v6982 = vpop.f32.mrb[0].mxu0
      %v6983 = vadd.f32 %v6758, %v6982
      %v6984 = vpop.f32.mrb[0].mxu0
      %v6985 = vpop.f32.mrb[0].mxu0
      %v6986 = vadd.f32 %v6761, %v6985
      %v6987 = vpop.f32.mrb[0].mxu0
      %6988 = vmatprep.mubr.bf16.mxu0 0
      %6989 = vmatmul.mubr.bf16.gmra.mrb[0].mxu0 %v6500
      %v6990 = vpop.f32.mrb[0].mxu0
      %v6991 = vadd.f32 %v6766, %v6990
      %v6992 = vpop.f32.mrb[0].mxu0
      %v6993 = vpop.f32.mrb[0].mxu0
      %v6994 = vadd.f32 %v6769, %v6993
      %v6995 = vpop.f32.mrb[0].mxu0
      %6996 = vmatprep.mubr.bf16.mxu0 0
      %6997 = vmatmul.mubr.bf16.gmra.mrb[0].mxu0 %v6501
      %v6998 = vpop.f32.mrb[0].mxu0
      %v6999 = vadd.f32 %v6774, %v6998
      %v7000 = vpop.f32.mrb[0].mxu0
      %v7001 = vpop.f32.mrb[0].mxu0
      %v7002 = vadd.f32 %v6777, %v7001
      %v7003 = vpop.f32.mrb[0].mxu0
      %7004 = vmatprep.mubr.bf16.mxu0 0
      %7005 = vmatmul.mubr.bf16.gmra.mrb[0].mxu0 %v6502
      %v7006 = vpop.f32.mrb[0].mxu0
      %v7007 = vadd.f32 %v6782, %v7006
      %v7008 = vpop.f32.mrb[0].mxu0
      %v7009 = vpop.f32.mrb[0].mxu0
      %v7010 = vadd.f32 %v6785, %v7009
      %v7011 = vpop.f32.mrb[0].mxu0
      %7012 = vmatprep.mubr.bf16.mxu0 0
      %7013 = vmatmul.mubr.bf16.gmra.mrb[0].mxu0 %v6503
      %v7014 = vpop.f32.mrb[0].mxu0
      %v7015 = vadd.f32 %v6790, %v7014
      %v7016 = vpop.f32.mrb[0].mxu0
      %v7017 = vpop.f32.mrb[0].mxu0
      %v7018 = vadd.f32 %v6793, %v7017
      %v7019 = vpop.f32.mrb[0].mxu0
      %7020 = vmatprep.mubr.bf16.mxu0 0
      %7021 = vmatmul.mubr.bf16.gmra.mrb[0].mxu0 %v6504
      %v7022 = vpop.f32.mrb[0].mxu0
      %v7023 = vadd.f32 %v6798, %v7022
      %v7024 = vpop.f32.mrb[0].mxu0
      %v7025 = vpop.f32.mrb[0].mxu0
      %v7026 = vadd.f32 %v6801, %v7025
      %v7027 = vpop.f32.mrb[0].mxu0
      %7028 = vmatprep.mubr.bf16.mxu0 0
      %7029 = vmatmul.mubr.bf16.gmra.mrb[0].mxu0 %v6505
      %v7030 = vpop.f32.mrb[0].mxu0
      %v7031 = vadd.f32 %v6806, %v7030
      %v7032 = vpop.f32.mrb[0].mxu0
      %v7033 = vpop.f32.mrb[0].mxu0
      %v7034 = vadd.f32 %v6809, %v7033
      %v7035 = vpop.f32.mrb[0].mxu0
      %7036 = vmatprep.mubr.bf16.mxu0 0
      %7037 = vmatmul.mubr.bf16.gmra.mrb[0].mxu0 %v6506
      %v7038 = vpop.f32.mrb[0].mxu0
      %v7039 = vadd.f32 %v6814, %v7038
      %v7040 = vpop.f32.mrb[0].mxu0
      %v7041 = vpop.f32.mrb[0].mxu0
      %v7042 = vadd.f32 %v6817, %v7041
      %v7043 = vpop.f32.mrb[0].mxu0
      %7044 = vdwg.mxu0
      %v7045 = vld [vmem:[#allocation3 + $0x7] sm:$0xff]
      %v7046 = vld [vmem:[#allocation3 + $0xf] sm:$0xff]
      %v7047 = vld [vmem:[#allocation3 + $0x17] sm:$0xff]
      %v7048 = vld [vmem:[#allocation3 + $0x1f] sm:$0xff]
      %v7049 = vld [vmem:[#allocation3 + $0x27] sm:$0xff]
      %v7050 = vld [vmem:[#allocation3 + $0x2f] sm:$0xff]
      %v7051 = vld [vmem:[#allocation3 + $0x37] sm:$0xff]
      %v7052 = vld [vmem:[#allocation3 + $0x3f] sm:$0xff]
      %v7053 = vld [vmem:[#allocation3 + $0x47] sm:$0xff]
      %v7054 = vld [vmem:[#allocation3 + $0x4f] sm:$0xff]
      %v7055 = vld [vmem:[#allocation3 + $0x57] sm:$0xff]
      %v7056 = vld [vmem:[#allocation3 + $0x5f] sm:$0xff]
      %v7057 = vld [vmem:[#allocation3 + $0x67] sm:$0xff]
      %v7058 = vld [vmem:[#allocation3 + $0x6f] sm:$0xff]
      %v7059 = vld [vmem:[#allocation3 + $0x77] sm:$0xff]
      %v7060 = vld [vmem:[#allocation3 + $0x7f] sm:$0xff]
      %v7061 = vld [vmem:[#allocation3 + $0x87] sm:$0xff]
      %v7062 = vld [vmem:[#allocation3 + $0x8f] sm:$0xff]
      %v7063 = vld [vmem:[#allocation3 + $0x97] sm:$0xff]
      %v7064 = vld [vmem:[#allocation3 + $0x9f] sm:$0xff]
      %v7065 = vld [vmem:[#allocation3 + $0xa7] sm:$0xff]
      %v7066 = vld [vmem:[#allocation3 + $0xaf] sm:$0xff]
      %v7067 = vld [vmem:[#allocation3 + $0xb7] sm:$0xff]
      %v7068 = vld [vmem:[#allocation3 + $0xbf] sm:$0xff]
      %v7069 = vld [vmem:[#allocation3 + $0xc7] sm:$0xff]
      %v7070 = vld [vmem:[#allocation3 + $0xcf] sm:$0xff]
      %v7071 = vld [vmem:[#allocation3 + $0xd7] sm:$0xff]
      %v7072 = vld [vmem:[#allocation3 + $0xdf] sm:$0xff]
      %v7073 = vld [vmem:[#allocation3 + $0xe7] sm:$0xff]
      %v7074 = vld [vmem:[#allocation3 + $0xef] sm:$0xff]
      %v7075 = vld [vmem:[#allocation3 + $0xf7] sm:$0xff]
      %v7076 = vld [vmem:[#allocation3 + $0xff] sm:$0xff]
      %v7077 = vld [vmem:[#allocation3 + $0x107] sm:$0xff]
      %v7078 = vld [vmem:[#allocation3 + $0x10f] sm:$0xff]
      %v7079 = vld [vmem:[#allocation3 + $0x117] sm:$0xff]
      %v7080 = vld [vmem:[#allocation3 + $0x11f] sm:$0xff]
      %v7081 = vpack.c.bf16 %v7046, %v7045
      %v7082 = vpack.c.bf16 %v7048, %v7047
      %v7083 = vpack.c.bf16 %v7050, %v7049
      %v7084 = vpack.c.bf16 %v7052, %v7051
      %v7085 = vpack.c.bf16 %v7054, %v7053
      %v7086 = vpack.c.bf16 %v7056, %v7055
      %v7087 = vpack.c.bf16 %v7058, %v7057
      %v7088 = vpack.c.bf16 %v7060, %v7059
      %v7089 = vpack.c.bf16 %v7062, %v7061
      %v7090 = vpack.c.bf16 %v7064, %v7063
      %v7091 = vpack.c.bf16 %v7066, %v7065
      %v7092 = vpack.c.bf16 %v7068, %v7067
      %v7093 = vpack.c.bf16 %v7070, %v7069
      %v7094 = vpack.c.bf16 %v7072, %v7071
      %v7095 = vpack.c.bf16 %v7074, %v7073
      %v7096 = vpack.c.bf16 %v7076, %v7075
      %v7097 = vpack.c.bf16 %v7078, %v7077
      %v7098 = vpack.c.bf16 %v7080, %v7079
      %s7099 = scalar_lea.vmem %s1, 1280
      %v7100 = vld [vmem:[%s7099] sm:$0xf]
      %v7101 = vld [vmem:[%s7099 + $0x4] sm:$0xf]
      %v7102 = vld [vmem:[%s7099 + $0x8] sm:$0xf]
      %v7103 = vld [vmem:[%s7099 + $0xc] sm:$0xf]
      %v7104 = vld [vmem:[%s7099 + $0x10] sm:$0xf]
      %v7105 = vld [vmem:[%s7099 + $0x14] sm:$0xf]
      %v7106 = vld [vmem:[%s7099 + $0x18] sm:$0xf]
      %v7107 = vld [vmem:[%s7099 + $0x1c] sm:$0xf]
      %v7108 = vld [vmem:[%s7099 + $0x20] sm:$0xf]
      %v7109 = vld [vmem:[%s7099 + $0x24] sm:$0xf]
      %v7110 = vld [vmem:[%s7099 + $0x28] sm:$0xf]
      %v7111 = vld [vmem:[%s7099 + $0x2c] sm:$0xf]
      %v7112 = vld [vmem:[%s7099 + $0x30] sm:$0xf]
      %v7113 = vld [vmem:[%s7099 + $0x34] sm:$0xf]
      %v7114 = vld [vmem:[%s7099 + $0x38] sm:$0xf]
      %v7115 = vld [vmem:[%s7099 + $0x3c] sm:$0xf]
      %v7132 = vunpack.c.l.b16 %v7100
      %v7133 = vunpack.c.l.b16 %v7101
      %v7134 = vunpack.c.l.b16 %v7102
      %v7135 = vunpack.c.l.b16 %v7103
      %v7136 = vunpack.c.l.b16 %v7104
      %v7137 = vunpack.c.l.b16 %v7105
      %v7138 = vunpack.c.l.b16 %v7106
      %v7139 = vunpack.c.l.b16 %v7107
      %v7140 = vunpack.c.l.b16 %v7108
      %v7141 = vunpack.c.l.b16 %v7109
      %v7142 = vunpack.c.l.b16 %v7110
      %v7143 = vunpack.c.l.b16 %v7111
      %v7144 = vunpack.c.l.b16 %v7112
      %v7145 = vunpack.c.l.b16 %v7113
      %v7146 = vunpack.c.l.b16 %v7114
      %v7147 = vunpack.c.l.b16 %v7115
      %v7148 = vpack.c.b16 %v7133, %v7132
      %v7149 = vpack.c.b16 %v7135, %v7134
      %v7150 = vpack.c.b16 %v7137, %v7136
      %v7151 = vpack.c.b16 %v7139, %v7138
      %v7152 = vpack.c.b16 %v7141, %v7140
      %v7153 = vpack.c.b16 %v7143, %v7142
      %v7154 = vpack.c.b16 %v7145, %v7144
      %v7155 = vpack.c.b16 %v7147, %v7146
      %7164 = vmatprep.subr.bf16.mxu0 0
      %7165 = vmatpush1.bf16.msra.mxu0 %v7148
      %7166 = vmatprep.subr.bf16.mxu0 0
      %7167 = vmatpush1.bf16.msra.mxu0 %v7149
      %7168 = vmatprep.subr.bf16.mxu0 0
      %7169 = vmatpush1.bf16.msra.mxu0 %v7150
      %7170 = vmatprep.subr.bf16.mxu0 0
      %7171 = vmatpush1.bf16.msra.mxu0 %v7151
      %7172 = vmatprep.subr.bf16.mxu0 0
      %7173 = vmatpush1.bf16.msra.mxu0 %v7152
      %7174 = vmatprep.subr.bf16.mxu0 0
      %7175 = vmatpush1.bf16.msra.mxu0 %v7153
      %7176 = vmatprep.subr.bf16.mxu0 0
      %7177 = vmatpush1.bf16.msra.mxu0 %v7154
      %7178 = vmatprep.subr.bf16.mxu0 0
      %7179 = vmatpush1.bf16.msra.mxu0 %v7155
      %7180 = vmatprep.subr.bf16.mxu0 0
      %7181 = vmatpush1.bf16.msra.mxu0 0
      %7182 = vmatprep.subr.bf16.mxu0 0
      %7183 = vmatpush1.bf16.msra.mxu0 0
      %7184 = vmatprep.subr.bf16.mxu0 0
      %7185 = vmatpush1.bf16.msra.mxu0 0
      %7186 = vmatprep.subr.bf16.mxu0 0
      %7187 = vmatpush1.bf16.msra.mxu0 0
      %7188 = vmatprep.subr.bf16.mxu0 0
      %7189 = vmatpush1.bf16.msra.mxu0 0
      %7190 = vmatprep.subr.bf16.mxu0 0
      %7191 = vmatpush1.bf16.msra.mxu0 0
      %7192 = vmatprep.subr.bf16.mxu0 0
      %7193 = vmatpush1.bf16.msra.mxu0 0
      %7194 = vmatprep.subr.bf16.mxu0 0
      %7195 = vmatpush1.bf16.msra.mxu0 0
      %7196 = vmatprep.mubr.bf16.mxu0 0
      %7197 = vmatmul.mubr.bf16.gmra.mrb[0].mxu0 %v7081
      %v7198 = vpop.f32.mrb[0].mxu0
      %v7199 = vadd.f32 0.0, %v7198
      %v7200 = vpop.f32.mrb[0].mxu0
      %v7201 = vpop.f32.mrb[0].mxu0
      %v7202 = vadd.f32 0.0, %v7201
      %v7203 = vpop.f32.mrb[0].mxu0
      %7204 = vmatprep.mubr.bf16.mxu0 0
      %7205 = vmatmul.mubr.bf16.gmra.mrb[0].mxu0 %v7082
      %v7206 = vpop.f32.mrb[0].mxu0
      %v7207 = vadd.f32 0.0, %v7206
      %v7208 = vpop.f32.mrb[0].mxu0
      %v7209 = vpop.f32.mrb[0].mxu0
      %v7210 = vadd.f32 0.0, %v7209
      %v7211 = vpop.f32.mrb[0].mxu0
      %7212 = vmatprep.mubr.bf16.mxu0 0
      %7213 = vmatmul.mubr.bf16.gmra.mrb[0].mxu0 %v7083
      %v7214 = vpop.f32.mrb[0].mxu0
      %v7215 = vadd.f32 0.0, %v7214
      %v7216 = vpop.f32.mrb[0].mxu0
      %v7217 = vpop.f32.mrb[0].mxu0
      %v7218 = vadd.f32 0.0, %v7217
      %v7219 = vpop.f32.mrb[0].mxu0
      %7220 = vmatprep.mubr.bf16.mxu0 0
      %7221 = vmatmul.mubr.bf16.gmra.mrb[0].mxu0 %v7084
      %v7222 = vpop.f32.mrb[0].mxu0
      %v7223 = vadd.f32 0.0, %v7222
      %v7224 = vpop.f32.mrb[0].mxu0
      %v7225 = vpop.f32.mrb[0].mxu0
      %v7226 = vadd.f32 0.0, %v7225
      %v7227 = vpop.f32.mrb[0].mxu0
      %7228 = vmatprep.mubr.bf16.mxu0 0
      %7229 = vmatmul.mubr.bf16.gmra.mrb[0].mxu0 %v7085
      %v7230 = vpop.f32.mrb[0].mxu0
      %v7231 = vadd.f32 0.0, %v7230
      %v7232 = vpop.f32.mrb[0].mxu0
      %v7233 = vpop.f32.mrb[0].mxu0
      %v7234 = vadd.f32 0.0, %v7233
      %v7235 = vpop.f32.mrb[0].mxu0
      %7236 = vmatprep.mubr.bf16.mxu0 0
      %7237 = vmatmul.mubr.bf16.gmra.mrb[0].mxu0 %v7086
      %v7238 = vpop.f32.mrb[0].mxu0
      %v7239 = vadd.f32 0.0, %v7238
      %v7240 = vpop.f32.mrb[0].mxu0
      %v7241 = vpop.f32.mrb[0].mxu0
      %v7242 = vadd.f32 0.0, %v7241
      %v7243 = vpop.f32.mrb[0].mxu0
      %7244 = vmatprep.mubr.bf16.mxu0 0
      %7245 = vmatmul.mubr.bf16.gmra.mrb[0].mxu0 %v7087
      %v7246 = vpop.f32.mrb[0].mxu0
      %v7247 = vadd.f32 0.0, %v7246
      %v7248 = vpop.f32.mrb[0].mxu0
      %v7249 = vpop.f32.mrb[0].mxu0
      %v7250 = vadd.f32 0.0, %v7249
      %v7251 = vpop.f32.mrb[0].mxu0
      %7252 = vmatprep.mubr.bf16.mxu0 0
      %7253 = vmatmul.mubr.bf16.gmra.mrb[0].mxu0 %v7088
      %v7254 = vpop.f32.mrb[0].mxu0
      %v7255 = vadd.f32 0.0, %v7254
      %v7256 = vpop.f32.mrb[0].mxu0
      %v7257 = vpop.f32.mrb[0].mxu0
      %v7258 = vadd.f32 0.0, %v7257
      %v7259 = vpop.f32.mrb[0].mxu0
      %7260 = vmatprep.mubr.bf16.mxu0 0
      %7261 = vmatmul.mubr.bf16.gmra.mrb[0].mxu0 %v7089
      %v7262 = vpop.f32.mrb[0].mxu0
      %v7263 = vadd.f32 0.0, %v7262
      %v7264 = vpop.f32.mrb[0].mxu0
      %v7265 = vpop.f32.mrb[0].mxu0
      %v7266 = vadd.f32 0.0, %v7265
      %v7267 = vpop.f32.mrb[0].mxu0
      %7268 = vmatprep.mubr.bf16.mxu0 0
      %7269 = vmatmul.mubr.bf16.gmra.mrb[0].mxu0 %v7090
      %v7270 = vpop.f32.mrb[0].mxu0
      %v7271 = vadd.f32 0.0, %v7270
      %v7272 = vpop.f32.mrb[0].mxu0
      %v7273 = vpop.f32.mrb[0].mxu0
      %v7274 = vadd.f32 0.0, %v7273
      %v7275 = vpop.f32.mrb[0].mxu0
      %7276 = vmatprep.mubr.bf16.mxu0 0
      %7277 = vmatmul.mubr.bf16.gmra.mrb[0].mxu0 %v7091
      %v7278 = vpop.f32.mrb[0].mxu0
      %v7279 = vadd.f32 0.0, %v7278
      %v7280 = vpop.f32.mrb[0].mxu0
      %v7281 = vpop.f32.mrb[0].mxu0
      %v7282 = vadd.f32 0.0, %v7281
      %v7283 = vpop.f32.mrb[0].mxu0
      %7284 = vmatprep.mubr.bf16.mxu0 0
      %7285 = vmatmul.mubr.bf16.gmra.mrb[0].mxu0 %v7092
      %v7286 = vpop.f32.mrb[0].mxu0
      %v7287 = vadd.f32 0.0, %v7286
      %v7288 = vpop.f32.mrb[0].mxu0
      %v7289 = vpop.f32.mrb[0].mxu0
      %v7290 = vadd.f32 0.0, %v7289
      %v7291 = vpop.f32.mrb[0].mxu0
      %7292 = vmatprep.mubr.bf16.mxu0 0
      %7293 = vmatmul.mubr.bf16.gmra.mrb[0].mxu0 %v7093
      %v7294 = vpop.f32.mrb[0].mxu0
      %v7295 = vadd.f32 0.0, %v7294
      %v7296 = vpop.f32.mrb[0].mxu0
      %v7297 = vpop.f32.mrb[0].mxu0
      %v7298 = vadd.f32 0.0, %v7297
      %v7299 = vpop.f32.mrb[0].mxu0
      %7300 = vmatprep.mubr.bf16.mxu0 0
      %7301 = vmatmul.mubr.bf16.gmra.mrb[0].mxu0 %v7094
      %v7302 = vpop.f32.mrb[0].mxu0
      %v7303 = vadd.f32 0.0, %v7302
      %v7304 = vpop.f32.mrb[0].mxu0
      %v7305 = vpop.f32.mrb[0].mxu0
      %v7306 = vadd.f32 0.0, %v7305
      %v7307 = vpop.f32.mrb[0].mxu0
      %7308 = vmatprep.mubr.bf16.mxu0 0
      %7309 = vmatmul.mubr.bf16.gmra.mrb[0].mxu0 %v7095
      %v7310 = vpop.f32.mrb[0].mxu0
      %v7311 = vadd.f32 0.0, %v7310
      %v7312 = vpop.f32.mrb[0].mxu0
      %v7313 = vpop.f32.mrb[0].mxu0
      %v7314 = vadd.f32 0.0, %v7313
      %v7315 = vpop.f32.mrb[0].mxu0
      %7316 = vmatprep.mubr.bf16.mxu0 0
      %7317 = vmatmul.mubr.bf16.gmra.mrb[0].mxu0 %v7096
      %v7318 = vpop.f32.mrb[0].mxu0
      %v7319 = vadd.f32 0.0, %v7318
      %v7320 = vpop.f32.mrb[0].mxu0
      %v7321 = vpop.f32.mrb[0].mxu0
      %v7322 = vadd.f32 0.0, %v7321
      %v7323 = vpop.f32.mrb[0].mxu0
      %7324 = vmatprep.mubr.bf16.mxu0 0
      %7325 = vmatmul.mubr.bf16.gmra.mrb[0].mxu0 %v7097
      %v7326 = vpop.f32.mrb[0].mxu0
      %v7327 = vadd.f32 0.0, %v7326
      %v7328 = vpop.f32.mrb[0].mxu0
      %v7329 = vpop.f32.mrb[0].mxu0
      %v7330 = vadd.f32 0.0, %v7329
      %v7331 = vpop.f32.mrb[0].mxu0
      %7332 = vmatprep.mubr.bf16.mxu0 0
      %7333 = vmatmul.mubr.bf16.gmra.mrb[0].mxu0 %v7098
      %v7334 = vpop.f32.mrb[0].mxu0
      %v7335 = vadd.f32 0.0, %v7334
      %v7336 = vpop.f32.mrb[0].mxu0
      %v7337 = vpop.f32.mrb[0].mxu0
      %v7338 = vadd.f32 0.0, %v7337
      %v7339 = vpop.f32.mrb[0].mxu0
      %7340 = vdwg.mxu0
      %v7341 = vadd.f32 %v6903, %v7199
      %v7342 = vadd.f32 %v6906, %v7202
      %v7343 = vadd.f32 %v6911, %v7207
      %v7344 = vadd.f32 %v6914, %v7210
      %v7345 = vadd.f32 %v6919, %v7215
      %v7346 = vadd.f32 %v6922, %v7218
      %v7347 = vadd.f32 %v6927, %v7223
      %v7348 = vadd.f32 %v6930, %v7226
      %v7349 = vadd.f32 %v6935, %v7231
      %v7350 = vadd.f32 %v6938, %v7234
      %v7351 = vadd.f32 %v6943, %v7239
      %v7352 = vadd.f32 %v6946, %v7242
      %v7353 = vadd.f32 %v6951, %v7247
      %v7354 = vadd.f32 %v6954, %v7250
      %v7355 = vadd.f32 %v6959, %v7255
      %v7356 = vadd.f32 %v6962, %v7258
      %v7357 = vadd.f32 %v6967, %v7263
      %v7358 = vadd.f32 %v6970, %v7266
      %v7359 = vadd.f32 %v6975, %v7271
      %v7360 = vadd.f32 %v6978, %v7274
      %v7361 = vadd.f32 %v6983, %v7279
      %v7362 = vadd.f32 %v6986, %v7282
      %v7363 = vadd.f32 %v6991, %v7287
      %v7364 = vadd.f32 %v6994, %v7290
      %v7365 = vadd.f32 %v6999, %v7295
      %v7366 = vadd.f32 %v7002, %v7298
      %v7367 = vadd.f32 %v7007, %v7303
      %v7368 = vadd.f32 %v7010, %v7306
      %v7369 = vadd.f32 %v7015, %v7311
      %v7370 = vadd.f32 %v7018, %v7314
      %v7371 = vadd.f32 %v7023, %v7319
      %v7372 = vadd.f32 %v7026, %v7322
      %v7373 = vadd.f32 %v7031, %v7327
      %v7374 = vadd.f32 %v7034, %v7330
      %v7375 = vadd.f32 %v7039, %v7335
      %v7376 = vadd.f32 %v7042, %v7338
      %v7377 = vld [vmem:[#allocation3 + $0x17] sm:$0xff]
      %v7378 = vld [vmem:[#allocation3 + $0x1f] sm:$0xff]
      %v7379 = vld [vmem:[#allocation3 + $0x27] sm:$0xff]
      %v7380 = vld [vmem:[#allocation3 + $0x2f] sm:$0xff]
      %v7381 = vld [vmem:[#allocation3 + $0x37] sm:$0xff]
      %v7382 = vld [vmem:[#allocation3 + $0x3f] sm:$0xff]
      %v7383 = vld [vmem:[#allocation3 + $0x47] sm:$0xff]
      %v7384 = vld [vmem:[#allocation3 + $0x4f] sm:$0xff]
      %v7385 = vld [vmem:[#allocation3 + $0x57] sm:$0xff]
      %v7386 = vld [vmem:[#allocation3 + $0x5f] sm:$0xff]
      %v7387 = vld [vmem:[#allocation3 + $0x67] sm:$0xff]
      %v7388 = vld [vmem:[#allocation3 + $0x6f] sm:$0xff]
      %v7389 = vld [vmem:[#allocation3 + $0x77] sm:$0xff]
      %v7390 = vld [vmem:[#allocation3 + $0x7f] sm:$0xff]
      %v7391 = vld [vmem:[#allocation3 + $0x87] sm:$0xff]
      %v7392 = vld [vmem:[#allocation3 + $0x8f] sm:$0xff]
      %v7393 = vld [vmem:[#allocation3 + $0x97] sm:$0xff]
      %v7394 = vld [vmem:[#allocation3 + $0x9f] sm:$0xff]
      %v7395 = vld [vmem:[#allocation3 + $0xa7] sm:$0xff]
      %v7396 = vld [vmem:[#allocation3 + $0xaf] sm:$0xff]
      %v7397 = vld [vmem:[#allocation3 + $0xb7] sm:$0xff]
      %v7398 = vld [vmem:[#allocation3 + $0xbf] sm:$0xff]
      %v7399 = vld [vmem:[#allocation3 + $0xc7] sm:$0xff]
      %v7400 = vld [vmem:[#allocation3 + $0xcf] sm:$0xff]
      %v7401 = vld [vmem:[#allocation3 + $0xd7] sm:$0xff]
      %v7402 = vld [vmem:[#allocation3 + $0xdf] sm:$0xff]
      %v7403 = vld [vmem:[#allocation3 + $0xe7] sm:$0xff]
      %v7404 = vld [vmem:[#allocation3 + $0xef] sm:$0xff]
      %v7405 = vld [vmem:[#allocation3 + $0xf7] sm:$0xff]
      %v7406 = vld [vmem:[#allocation3 + $0xff] sm:$0xff]
      %v7407 = vld [vmem:[#allocation3 + $0x107] sm:$0xff]
      %v7408 = vld [vmem:[#allocation3 + $0x10f] sm:$0xff]
      %v7409 = vld [vmem:[#allocation3 + $0x117] sm:$0xff]
      %v7410 = vld [vmem:[#allocation3 + $0x11f] sm:$0xff]
      %v7411 = vld [vmem:[#allocation3 + $0x127] sm:$0xff]
      %v7412 = vld [vmem:[#allocation3 + $0x12f] sm:$0xff]
      %v7413 = vpack.c.bf16 %v7378, %v7377
      %v7414 = vpack.c.bf16 %v7380, %v7379
      %v7415 = vpack.c.bf16 %v7382, %v7381
      %v7416 = vpack.c.bf16 %v7384, %v7383
      %v7417 = vpack.c.bf16 %v7386, %v7385
      %v7418 = vpack.c.bf16 %v7388, %v7387
      %v7419 = vpack.c.bf16 %v7390, %v7389
      %v7420 = vpack.c.bf16 %v7392, %v7391
      %v7421 = vpack.c.bf16 %v7394, %v7393
      %v7422 = vpack.c.bf16 %v7396, %v7395
      %v7423 = vpack.c.bf16 %v7398, %v7397
      %v7424 = vpack.c.bf16 %v7400, %v7399
      %v7425 = vpack.c.bf16 %v7402, %v7401
      %v7426 = vpack.c.bf16 %v7404, %v7403
      %v7427 = vpack.c.bf16 %v7406, %v7405
      %v7428 = vpack.c.bf16 %v7408, %v7407
      %v7429 = vpack.c.bf16 %v7410, %v7409
      %v7430 = vpack.c.bf16 %v7412, %v7411
      %s7431 = scalar_lea.vmem %s1, 1344
      %v7432 = vld [vmem:[%s7431] sm:$0xf]
      %v7433 = vld [vmem:[%s7431 + $0x4] sm:$0xf]
      %v7434 = vld [vmem:[%s7431 + $0x8] sm:$0xf]
      %v7435 = vld [vmem:[%s7431 + $0xc] sm:$0xf]
      %v7436 = vld [vmem:[%s7431 + $0x10] sm:$0xf]
      %v7437 = vld [vmem:[%s7431 + $0x14] sm:$0xf]
      %v7438 = vld [vmem:[%s7431 + $0x18] sm:$0xf]
      %v7439 = vld [vmem:[%s7431 + $0x1c] sm:$0xf]
      %v7440 = vld [vmem:[%s7431 + $0x20] sm:$0xf]
      %v7441 = vld [vmem:[%s7431 + $0x24] sm:$0xf]
      %v7442 = vld [vmem:[%s7431 + $0x28] sm:$0xf]
      %v7443 = vld [vmem:[%s7431 + $0x2c] sm:$0xf]
      %v7444 = vld [vmem:[%s7431 + $0x30] sm:$0xf]
      %v7445 = vld [vmem:[%s7431 + $0x34] sm:$0xf]
      %v7446 = vld [vmem:[%s7431 + $0x38] sm:$0xf]
      %v7447 = vld [vmem:[%s7431 + $0x3c] sm:$0xf]
      %v7464 = vunpack.c.l.b16 %v7432
      %v7465 = vunpack.c.l.b16 %v7433
      %v7466 = vunpack.c.l.b16 %v7434
      %v7467 = vunpack.c.l.b16 %v7435
      %v7468 = vunpack.c.l.b16 %v7436
      %v7469 = vunpack.c.l.b16 %v7437
      %v7470 = vunpack.c.l.b16 %v7438
      %v7471 = vunpack.c.l.b16 %v7439
      %v7472 = vunpack.c.l.b16 %v7440
      %v7473 = vunpack.c.l.b16 %v7441
      %v7474 = vunpack.c.l.b16 %v7442
      %v7475 = vunpack.c.l.b16 %v7443
      %v7476 = vunpack.c.l.b16 %v7444
      %v7477 = vunpack.c.l.b16 %v7445
      %v7478 = vunpack.c.l.b16 %v7446
      %v7479 = vunpack.c.l.b16 %v7447
      %v7480 = vpack.c.b16 %v7465, %v7464
      %v7481 = vpack.c.b16 %v7467, %v7466
      %v7482 = vpack.c.b16 %v7469, %v7468
      %v7483 = vpack.c.b16 %v7471, %v7470
      %v7484 = vpack.c.b16 %v7473, %v7472
      %v7485 = vpack.c.b16 %v7475, %v7474
      %v7486 = vpack.c.b16 %v7477, %v7476
      %v7487 = vpack.c.b16 %v7479, %v7478
      %7496 = vmatprep.subr.bf16.mxu0 0
      %7497 = vmatpush1.bf16.msra.mxu0 %v7480
      %7498 = vmatprep.subr.bf16.mxu0 0
      %7499 = vmatpush1.bf16.msra.mxu0 %v7481
      %7500 = vmatprep.subr.bf16.mxu0 0
      %7501 = vmatpush1.bf16.msra.mxu0 %v7482
      %7502 = vmatprep.subr.bf16.mxu0 0
      %7503 = vmatpush1.bf16.msra.mxu0 %v7483
      %7504 = vmatprep.subr.bf16.mxu0 0
      %7505 = vmatpush1.bf16.msra.mxu0 %v7484
      %7506 = vmatprep.subr.bf16.mxu0 0
      %7507 = vmatpush1.bf16.msra.mxu0 %v7485
      %7508 = vmatprep.subr.bf16.mxu0 0
      %7509 = vmatpush1.bf16.msra.mxu0 %v7486
      %7510 = vmatprep.subr.bf16.mxu0 0
      %7511 = vmatpush1.bf16.msra.mxu0 %v7487
      %7512 = vmatprep.subr.bf16.mxu0 0
      %7513 = vmatpush1.bf16.msra.mxu0 0
      %7514 = vmatprep.subr.bf16.mxu0 0
      %7515 = vmatpush1.bf16.msra.mxu0 0
      %7516 = vmatprep.subr.bf16.mxu0 0
      %7517 = vmatpush1.bf16.msra.mxu0 0
      %7518 = vmatprep.subr.bf16.mxu0 0
      %7519 = vmatpush1.bf16.msra.mxu0 0
      %7520 = vmatprep.subr.bf16.mxu0 0
      %7521 = vmatpush1.bf16.msra.mxu0 0
      %7522 = vmatprep.subr.bf16.mxu0 0
      %7523 = vmatpush1.bf16.msra.mxu0 0
      %7524 = vmatprep.subr.bf16.mxu0 0
      %7525 = vmatpush1.bf16.msra.mxu0 0
      %7526 = vmatprep.subr.bf16.mxu0 0
      %7527 = vmatpush1.bf16.msra.mxu0 0
      %7528 = vmatprep.mubr.bf16.mxu0 0
      %7529 = vmatmul.mubr.bf16.gmra.mrb[0].mxu0 %v7413
      %v7530 = vpop.f32.mrb[0].mxu0
      %v7531 = vadd.f32 0.0, %v7530
      %v7532 = vpop.f32.mrb[0].mxu0
      %v7533 = vpop.f32.mrb[0].mxu0
      %v7534 = vadd.f32 0.0, %v7533
      %v7535 = vpop.f32.mrb[0].mxu0
      %7536 = vmatprep.mubr.bf16.mxu0 0
      %7537 = vmatmul.mubr.bf16.gmra.mrb[0].mxu0 %v7414
      %v7538 = vpop.f32.mrb[0].mxu0
      %v7539 = vadd.f32 0.0, %v7538
      %v7540 = vpop.f32.mrb[0].mxu0
      %v7541 = vpop.f32.mrb[0].mxu0
      %v7542 = vadd.f32 0.0, %v7541
      %v7543 = vpop.f32.mrb[0].mxu0
      %7544 = vmatprep.mubr.bf16.mxu0 0
      %7545 = vmatmul.mubr.bf16.gmra.mrb[0].mxu0 %v7415
      %v7546 = vpop.f32.mrb[0].mxu0
      %v7547 = vadd.f32 0.0, %v7546
      %v7548 = vpop.f32.mrb[0].mxu0
      %v7549 = vpop.f32.mrb[0].mxu0
      %v7550 = vadd.f32 0.0, %v7549
      %v7551 = vpop.f32.mrb[0].mxu0
      %7552 = vmatprep.mubr.bf16.mxu0 0
      %7553 = vmatmul.mubr.bf16.gmra.mrb[0].mxu0 %v7416
      %v7554 = vpop.f32.mrb[0].mxu0
      %v7555 = vadd.f32 0.0, %v7554
      %v7556 = vpop.f32.mrb[0].mxu0
      %v7557 = vpop.f32.mrb[0].mxu0
      %v7558 = vadd.f32 0.0, %v7557
      %v7559 = vpop.f32.mrb[0].mxu0
      %7560 = vmatprep.mubr.bf16.mxu0 0
      %7561 = vmatmul.mubr.bf16.gmra.mrb[0].mxu0 %v7417
      %v7562 = vpop.f32.mrb[0].mxu0
      %v7563 = vadd.f32 0.0, %v7562
      %v7564 = vpop.f32.mrb[0].mxu0
      %v7565 = vpop.f32.mrb[0].mxu0
      %v7566 = vadd.f32 0.0, %v7565
      %v7567 = vpop.f32.mrb[0].mxu0
      %7568 = vmatprep.mubr.bf16.mxu0 0
      %7569 = vmatmul.mubr.bf16.gmra.mrb[0].mxu0 %v7418
      %v7570 = vpop.f32.mrb[0].mxu0
      %v7571 = vadd.f32 0.0, %v7570
      %v7572 = vpop.f32.mrb[0].mxu0
      %v7573 = vpop.f32.mrb[0].mxu0
      %v7574 = vadd.f32 0.0, %v7573
      %v7575 = vpop.f32.mrb[0].mxu0
      %7576 = vmatprep.mubr.bf16.mxu0 0
      %7577 = vmatmul.mubr.bf16.gmra.mrb[0].mxu0 %v7419
      %v7578 = vpop.f32.mrb[0].mxu0
      %v7579 = vadd.f32 0.0, %v7578
      %v7580 = vpop.f32.mrb[0].mxu0
      %v7581 = vpop.f32.mrb[0].mxu0
      %v7582 = vadd.f32 0.0, %v7581
      %v7583 = vpop.f32.mrb[0].mxu0
      %7584 = vmatprep.mubr.bf16.mxu0 0
      %7585 = vmatmul.mubr.bf16.gmra.mrb[0].mxu0 %v7420
      %v7586 = vpop.f32.mrb[0].mxu0
      %v7587 = vadd.f32 0.0, %v7586
      %v7588 = vpop.f32.mrb[0].mxu0
      %v7589 = vpop.f32.mrb[0].mxu0
      %v7590 = vadd.f32 0.0, %v7589
      %v7591 = vpop.f32.mrb[0].mxu0
      %7592 = vmatprep.mubr.bf16.mxu0 0
      %7593 = vmatmul.mubr.bf16.gmra.mrb[0].mxu0 %v7421
      %v7594 = vpop.f32.mrb[0].mxu0
      %v7595 = vadd.f32 0.0, %v7594
      %v7596 = vpop.f32.mrb[0].mxu0
      %v7597 = vpop.f32.mrb[0].mxu0
      %v7598 = vadd.f32 0.0, %v7597
      %v7599 = vpop.f32.mrb[0].mxu0
      %7600 = vmatprep.mubr.bf16.mxu0 0
      %7601 = vmatmul.mubr.bf16.gmra.mrb[0].mxu0 %v7422
      %v7602 = vpop.f32.mrb[0].mxu0
      %v7603 = vadd.f32 0.0, %v7602
      %v7604 = vpop.f32.mrb[0].mxu0
      %v7605 = vpop.f32.mrb[0].mxu0
      %v7606 = vadd.f32 0.0, %v7605
      %v7607 = vpop.f32.mrb[0].mxu0
      %7608 = vmatprep.mubr.bf16.mxu0 0
      %7609 = vmatmul.mubr.bf16.gmra.mrb[0].mxu0 %v7423
      %v7610 = vpop.f32.mrb[0].mxu0
      %v7611 = vadd.f32 0.0, %v7610
      %v7612 = vpop.f32.mrb[0].mxu0
      %v7613 = vpop.f32.mrb[0].mxu0
      %v7614 = vadd.f32 0.0, %v7613
      %v7615 = vpop.f32.mrb[0].mxu0
      %7616 = vmatprep.mubr.bf16.mxu0 0
      %7617 = vmatmul.mubr.bf16.gmra.mrb[0].mxu0 %v7424
      %v7618 = vpop.f32.mrb[0].mxu0
      %v7619 = vadd.f32 0.0, %v7618
      %v7620 = vpop.f32.mrb[0].mxu0
      %v7621 = vpop.f32.mrb[0].mxu0
      %v7622 = vadd.f32 0.0, %v7621
      %v7623 = vpop.f32.mrb[0].mxu0
      %7624 = vmatprep.mubr.bf16.mxu0 0
      %7625 = vmatmul.mubr.bf16.gmra.mrb[0].mxu0 %v7425
      %v7626 = vpop.f32.mrb[0].mxu0
      %v7627 = vadd.f32 0.0, %v7626
      %v7628 = vpop.f32.mrb[0].mxu0
      %v7629 = vpop.f32.mrb[0].mxu0
      %v7630 = vadd.f32 0.0, %v7629
      %v7631 = vpop.f32.mrb[0].mxu0
      %7632 = vmatprep.mubr.bf16.mxu0 0
      %7633 = vmatmul.mubr.bf16.gmra.mrb[0].mxu0 %v7426
      %v7634 = vpop.f32.mrb[0].mxu0
      %v7635 = vadd.f32 0.0, %v7634
      %v7636 = vpop.f32.mrb[0].mxu0
      %v7637 = vpop.f32.mrb[0].mxu0
      %v7638 = vadd.f32 0.0, %v7637
      %v7639 = vpop.f32.mrb[0].mxu0
      %7640 = vmatprep.mubr.bf16.mxu0 0
      %7641 = vmatmul.mubr.bf16.gmra.mrb[0].mxu0 %v7427
      %v7642 = vpop.f32.mrb[0].mxu0
      %v7643 = vadd.f32 0.0, %v7642
      %v7644 = vpop.f32.mrb[0].mxu0
      %v7645 = vpop.f32.mrb[0].mxu0
      %v7646 = vadd.f32 0.0, %v7645
      %v7647 = vpop.f32.mrb[0].mxu0
      %7648 = vmatprep.mubr.bf16.mxu0 0
      %7649 = vmatmul.mubr.bf16.gmra.mrb[0].mxu0 %v7428
      %v7650 = vpop.f32.mrb[0].mxu0
      %v7651 = vadd.f32 0.0, %v7650
      %v7652 = vpop.f32.mrb[0].mxu0
      %v7653 = vpop.f32.mrb[0].mxu0
      %v7654 = vadd.f32 0.0, %v7653
      %v7655 = vpop.f32.mrb[0].mxu0
      %7656 = vmatprep.mubr.bf16.mxu0 0
      %7657 = vmatmul.mubr.bf16.gmra.mrb[0].mxu0 %v7429
      %v7658 = vpop.f32.mrb[0].mxu0
      %v7659 = vadd.f32 0.0, %v7658
      %v7660 = vpop.f32.mrb[0].mxu0
      %v7661 = vpop.f32.mrb[0].mxu0
      %v7662 = vadd.f32 0.0, %v7661
      %v7663 = vpop.f32.mrb[0].mxu0
      %7664 = vmatprep.mubr.bf16.mxu0 0
      %7665 = vmatmul.mubr.bf16.gmra.mrb[0].mxu0 %v7430
      %v7666 = vpop.f32.mrb[0].mxu0
      %v7667 = vadd.f32 0.0, %v7666
      %v7668 = vpop.f32.mrb[0].mxu0
      %v7669 = vpop.f32.mrb[0].mxu0
      %v7670 = vadd.f32 0.0, %v7669
      %v7671 = vpop.f32.mrb[0].mxu0
      %7672 = vdwg.mxu0
      %v7673 = vadd.f32 %v7341, %v7531
      %v7674 = vadd.f32 %v7342, %v7534
      %v7675 = vadd.f32 %v7343, %v7539
      %v7676 = vadd.f32 %v7344, %v7542
      %v7677 = vadd.f32 %v7345, %v7547
      %v7678 = vadd.f32 %v7346, %v7550
      %v7679 = vadd.f32 %v7347, %v7555
      %v7680 = vadd.f32 %v7348, %v7558
      %v7681 = vadd.f32 %v7349, %v7563
      %v7682 = vadd.f32 %v7350, %v7566
      %v7683 = vadd.f32 %v7351, %v7571
      %v7684 = vadd.f32 %v7352, %v7574
      %v7685 = vadd.f32 %v7353, %v7579
      %v7686 = vadd.f32 %v7354, %v7582
      %v7687 = vadd.f32 %v7355, %v7587
      %v7688 = vadd.f32 %v7356, %v7590
      %v7689 = vadd.f32 %v7357, %v7595
      %v7690 = vadd.f32 %v7358, %v7598
      %v7691 = vadd.f32 %v7359, %v7603
      %v7692 = vadd.f32 %v7360, %v7606
      %v7693 = vadd.f32 %v7361, %v7611
      %v7694 = vadd.f32 %v7362, %v7614
      %v7695 = vadd.f32 %v7363, %v7619
      %v7696 = vadd.f32 %v7364, %v7622
      %v7697 = vadd.f32 %v7365, %v7627
      %v7698 = vadd.f32 %v7366, %v7630
      %v7699 = vadd.f32 %v7367, %v7635
      %v7700 = vadd.f32 %v7368, %v7638
      %v7701 = vadd.f32 %v7369, %v7643
      %v7702 = vadd.f32 %v7370, %v7646
      %v7703 = vadd.f32 %v7371, %v7651
      %v7704 = vadd.f32 %v7372, %v7654
      %v7705 = vadd.f32 %v7373, %v7659
      %v7706 = vadd.f32 %v7374, %v7662
      %v7707 = vadd.f32 %v7375, %v7667
      %v7708 = vadd.f32 %v7376, %v7670
      %v7709 = vld [vmem:[#allocation3 + $0x18] sm:$0xff]
      %v7710 = vld [vmem:[#allocation3 + $0x20] sm:$0xff]
      %v7711 = vld [vmem:[#allocation3 + $0x28] sm:$0xff]
      %v7712 = vld [vmem:[#allocation3 + $0x30] sm:$0xff]
      %v7713 = vld [vmem:[#allocation3 + $0x38] sm:$0xff]
      %v7714 = vld [vmem:[#allocation3 + $0x40] sm:$0xff]
      %v7715 = vld [vmem:[#allocation3 + $0x48] sm:$0xff]
      %v7716 = vld [vmem:[#allocation3 + $0x50] sm:$0xff]
      %v7717 = vld [vmem:[#allocation3 + $0x58] sm:$0xff]
      %v7718 = vld [vmem:[#allocation3 + $0x60] sm:$0xff]
      %v7719 = vld [vmem:[#allocation3 + $0x68] sm:$0xff]
      %v7720 = vld [vmem:[#allocation3 + $0x70] sm:$0xff]
      %v7721 = vld [vmem:[#allocation3 + $0x78] sm:$0xff]
      %v7722 = vld [vmem:[#allocation3 + $0x80] sm:$0xff]
      %v7723 = vld [vmem:[#allocation3 + $0x88] sm:$0xff]
      %v7724 = vld [vmem:[#allocation3 + $0x90] sm:$0xff]
      %v7725 = vld [vmem:[#allocation3 + $0x98] sm:$0xff]
      %v7726 = vld [vmem:[#allocation3 + $0xa0] sm:$0xff]
      %v7727 = vld [vmem:[#allocation3 + $0xa8] sm:$0xff]
      %v7728 = vld [vmem:[#allocation3 + $0xb0] sm:$0xff]
      %v7729 = vld [vmem:[#allocation3 + $0xb8] sm:$0xff]
      %v7730 = vld [vmem:[#allocation3 + $0xc0] sm:$0xff]
      %v7731 = vld [vmem:[#allocation3 + $0xc8] sm:$0xff]
      %v7732 = vld [vmem:[#allocation3 + $0xd0] sm:$0xff]
      %v7733 = vld [vmem:[#allocation3 + $0xd8] sm:$0xff]
      %v7734 = vld [vmem:[#allocation3 + $0xe0] sm:$0xff]
      %v7735 = vld [vmem:[#allocation3 + $0xe8] sm:$0xff]
      %v7736 = vld [vmem:[#allocation3 + $0xf0] sm:$0xff]
      %v7737 = vld [vmem:[#allocation3 + $0xf8] sm:$0xff]
      %v7738 = vld [vmem:[#allocation3 + $0x100] sm:$0xff]
      %v7739 = vld [vmem:[#allocation3 + $0x108] sm:$0xff]
      %v7740 = vld [vmem:[#allocation3 + $0x110] sm:$0xff]
      %v7741 = vld [vmem:[#allocation3 + $0x118] sm:$0xff]
      %v7742 = vld [vmem:[#allocation3 + $0x120] sm:$0xff]
      %v7743 = vld [vmem:[#allocation3 + $0x128] sm:$0xff]
      %v7744 = vld [vmem:[#allocation3 + $0x130] sm:$0xff]
      %v7745 = vpack.c.bf16 %v7710, %v7709
      %v7746 = vpack.c.bf16 %v7712, %v7711
      %v7747 = vpack.c.bf16 %v7714, %v7713
      %v7748 = vpack.c.bf16 %v7716, %v7715
      %v7749 = vpack.c.bf16 %v7718, %v7717
      %v7750 = vpack.c.bf16 %v7720, %v7719
      %v7751 = vpack.c.bf16 %v7722, %v7721
      %v7752 = vpack.c.bf16 %v7724, %v7723
      %v7753 = vpack.c.bf16 %v7726, %v7725
      %v7754 = vpack.c.bf16 %v7728, %v7727
      %v7755 = vpack.c.bf16 %v7730, %v7729
      %v7756 = vpack.c.bf16 %v7732, %v7731
      %v7757 = vpack.c.bf16 %v7734, %v7733
      %v7758 = vpack.c.bf16 %v7736, %v7735
      %v7759 = vpack.c.bf16 %v7738, %v7737
      %v7760 = vpack.c.bf16 %v7740, %v7739
      %v7761 = vpack.c.bf16 %v7742, %v7741
      %v7762 = vpack.c.bf16 %v7744, %v7743
      %s7763 = scalar_lea.vmem %s1, 1408
      %v7764 = vld [vmem:[%s7763] sm:$0xf]
      %v7765 = vld [vmem:[%s7763 + $0x4] sm:$0xf]
      %v7766 = vld [vmem:[%s7763 + $0x8] sm:$0xf]
      %v7767 = vld [vmem:[%s7763 + $0xc] sm:$0xf]
      %v7768 = vld [vmem:[%s7763 + $0x10] sm:$0xf]
      %v7769 = vld [vmem:[%s7763 + $0x14] sm:$0xf]
      %v7770 = vld [vmem:[%s7763 + $0x18] sm:$0xf]
      %v7771 = vld [vmem:[%s7763 + $0x1c] sm:$0xf]
      %v7772 = vld [vmem:[%s7763 + $0x20] sm:$0xf]
      %v7773 = vld [vmem:[%s7763 + $0x24] sm:$0xf]
      %v7774 = vld [vmem:[%s7763 + $0x28] sm:$0xf]
      %v7775 = vld [vmem:[%s7763 + $0x2c] sm:$0xf]
      %v7776 = vld [vmem:[%s7763 + $0x30] sm:$0xf]
      %v7777 = vld [vmem:[%s7763 + $0x34] sm:$0xf]
      %v7778 = vld [vmem:[%s7763 + $0x38] sm:$0xf]
      %v7779 = vld [vmem:[%s7763 + $0x3c] sm:$0xf]
      %v7796 = vunpack.c.l.b16 %v7764
      %v7797 = vunpack.c.l.b16 %v7765
      %v7798 = vunpack.c.l.b16 %v7766
      %v7799 = vunpack.c.l.b16 %v7767
      %v7800 = vunpack.c.l.b16 %v7768
      %v7801 = vunpack.c.l.b16 %v7769
      %v7802 = vunpack.c.l.b16 %v7770
      %v7803 = vunpack.c.l.b16 %v7771
      %v7804 = vunpack.c.l.b16 %v7772
      %v7805 = vunpack.c.l.b16 %v7773
      %v7806 = vunpack.c.l.b16 %v7774
      %v7807 = vunpack.c.l.b16 %v7775
      %v7808 = vunpack.c.l.b16 %v7776
      %v7809 = vunpack.c.l.b16 %v7777
      %v7810 = vunpack.c.l.b16 %v7778
      %v7811 = vunpack.c.l.b16 %v7779
      %v7812 = vpack.c.b16 %v7797, %v7796
      %v7813 = vpack.c.b16 %v7799, %v7798
      %v7814 = vpack.c.b16 %v7801, %v7800
      %v7815 = vpack.c.b16 %v7803, %v7802
      %v7816 = vpack.c.b16 %v7805, %v7804
      %v7817 = vpack.c.b16 %v7807, %v7806
      %v7818 = vpack.c.b16 %v7809, %v7808
      %v7819 = vpack.c.b16 %v7811, %v7810
      %7828 = vmatprep.subr.bf16.mxu0 0
      %7829 = vmatpush1.bf16.msra.mxu0 %v7812
      %7830 = vmatprep.subr.bf16.mxu0 0
      %7831 = vmatpush1.bf16.msra.mxu0 %v7813
      %7832 = vmatprep.subr.bf16.mxu0 0
      %7833 = vmatpush1.bf16.msra.mxu0 %v7814
      %7834 = vmatprep.subr.bf16.mxu0 0
      %7835 = vmatpush1.bf16.msra.mxu0 %v7815
      %7836 = vmatprep.subr.bf16.mxu0 0
      %7837 = vmatpush1.bf16.msra.mxu0 %v7816
      %7838 = vmatprep.subr.bf16.mxu0 0
      %7839 = vmatpush1.bf16.msra.mxu0 %v7817
      %7840 = vmatprep.subr.bf16.mxu0 0
      %7841 = vmatpush1.bf16.msra.mxu0 %v7818
      %7842 = vmatprep.subr.bf16.mxu0 0
      %7843 = vmatpush1.bf16.msra.mxu0 %v7819
      %7844 = vmatprep.subr.bf16.mxu0 0
      %7845 = vmatpush1.bf16.msra.mxu0 0
      %7846 = vmatprep.subr.bf16.mxu0 0
      %7847 = vmatpush1.bf16.msra.mxu0 0
      %7848 = vmatprep.subr.bf16.mxu0 0
      %7849 = vmatpush1.bf16.msra.mxu0 0
      %7850 = vmatprep.subr.bf16.mxu0 0
      %7851 = vmatpush1.bf16.msra.mxu0 0
      %7852 = vmatprep.subr.bf16.mxu0 0
      %7853 = vmatpush1.bf16.msra.mxu0 0
      %7854 = vmatprep.subr.bf16.mxu0 0
      %7855 = vmatpush1.bf16.msra.mxu0 0
      %7856 = vmatprep.subr.bf16.mxu0 0
      %7857 = vmatpush1.bf16.msra.mxu0 0
      %7858 = vmatprep.subr.bf16.mxu0 0
      %7859 = vmatpush1.bf16.msra.mxu0 0
      %7860 = vmatprep.mubr.bf16.mxu0 0
      %7861 = vmatmul.mubr.bf16.gmra.mrb[0].mxu0 %v7745
      %v7862 = vpop.f32.mrb[0].mxu0
      %v7863 = vadd.f32 0.0, %v7862
      %v7864 = vpop.f32.mrb[0].mxu0
      %v7865 = vpop.f32.mrb[0].mxu0
      %v7866 = vadd.f32 0.0, %v7865
      %v7867 = vpop.f32.mrb[0].mxu0
      %7868 = vmatprep.mubr.bf16.mxu0 0
      %7869 = vmatmul.mubr.bf16.gmra.mrb[0].mxu0 %v7746
      %v7870 = vpop.f32.mrb[0].mxu0
      %v7871 = vadd.f32 0.0, %v7870
      %v7872 = vpop.f32.mrb[0].mxu0
      %v7873 = vpop.f32.mrb[0].mxu0
      %v7874 = vadd.f32 0.0, %v7873
      %v7875 = vpop.f32.mrb[0].mxu0
      %7876 = vmatprep.mubr.bf16.mxu0 0
      %7877 = vmatmul.mubr.bf16.gmra.mrb[0].mxu0 %v7747
      %v7878 = vpop.f32.mrb[0].mxu0
      %v7879 = vadd.f32 0.0, %v7878
      %v7880 = vpop.f32.mrb[0].mxu0
      %v7881 = vpop.f32.mrb[0].mxu0
      %v7882 = vadd.f32 0.0, %v7881
      %v7883 = vpop.f32.mrb[0].mxu0
      %7884 = vmatprep.mubr.bf16.mxu0 0
      %7885 = vmatmul.mubr.bf16.gmra.mrb[0].mxu0 %v7748
      %v7886 = vpop.f32.mrb[0].mxu0
      %v7887 = vadd.f32 0.0, %v7886
      %v7888 = vpop.f32.mrb[0].mxu0
      %v7889 = vpop.f32.mrb[0].mxu0
      %v7890 = vadd.f32 0.0, %v7889
      %v7891 = vpop.f32.mrb[0].mxu0
      %7892 = vmatprep.mubr.bf16.mxu0 0
      %7893 = vmatmul.mubr.bf16.gmra.mrb[0].mxu0 %v7749
      %v7894 = vpop.f32.mrb[0].mxu0
      %v7895 = vadd.f32 0.0, %v7894
      %v7896 = vpop.f32.mrb[0].mxu0
      %v7897 = vpop.f32.mrb[0].mxu0
      %v7898 = vadd.f32 0.0, %v7897
      %v7899 = vpop.f32.mrb[0].mxu0
      %7900 = vmatprep.mubr.bf16.mxu0 0
      %7901 = vmatmul.mubr.bf16.gmra.mrb[0].mxu0 %v7750
      %v7902 = vpop.f32.mrb[0].mxu0
      %v7903 = vadd.f32 0.0, %v7902
      %v7904 = vpop.f32.mrb[0].mxu0
      %v7905 = vpop.f32.mrb[0].mxu0
      %v7906 = vadd.f32 0.0, %v7905
      %v7907 = vpop.f32.mrb[0].mxu0
      %7908 = vmatprep.mubr.bf16.mxu0 0
      %7909 = vmatmul.mubr.bf16.gmra.mrb[0].mxu0 %v7751
      %v7910 = vpop.f32.mrb[0].mxu0
      %v7911 = vadd.f32 0.0, %v7910
      %v7912 = vpop.f32.mrb[0].mxu0
      %v7913 = vpop.f32.mrb[0].mxu0
      %v7914 = vadd.f32 0.0, %v7913
      %v7915 = vpop.f32.mrb[0].mxu0
      %7916 = vmatprep.mubr.bf16.mxu0 0
      %7917 = vmatmul.mubr.bf16.gmra.mrb[0].mxu0 %v7752
      %v7918 = vpop.f32.mrb[0].mxu0
      %v7919 = vadd.f32 0.0, %v7918
      %v7920 = vpop.f32.mrb[0].mxu0
      %v7921 = vpop.f32.mrb[0].mxu0
      %v7922 = vadd.f32 0.0, %v7921
      %v7923 = vpop.f32.mrb[0].mxu0
      %7924 = vmatprep.mubr.bf16.mxu0 0
      %7925 = vmatmul.mubr.bf16.gmra.mrb[0].mxu0 %v7753
      %v7926 = vpop.f32.mrb[0].mxu0
      %v7927 = vadd.f32 0.0, %v7926
      %v7928 = vpop.f32.mrb[0].mxu0
      %v7929 = vpop.f32.mrb[0].mxu0
      %v7930 = vadd.f32 0.0, %v7929
      %v7931 = vpop.f32.mrb[0].mxu0
      %7932 = vmatprep.mubr.bf16.mxu0 0
      %7933 = vmatmul.mubr.bf16.gmra.mrb[0].mxu0 %v7754
      %v7934 = vpop.f32.mrb[0].mxu0
      %v7935 = vadd.f32 0.0, %v7934
      %v7936 = vpop.f32.mrb[0].mxu0
      %v7937 = vpop.f32.mrb[0].mxu0
      %v7938 = vadd.f32 0.0, %v7937
      %v7939 = vpop.f32.mrb[0].mxu0
      %7940 = vmatprep.mubr.bf16.mxu0 0
      %7941 = vmatmul.mubr.bf16.gmra.mrb[0].mxu0 %v7755
      %v7942 = vpop.f32.mrb[0].mxu0
      %v7943 = vadd.f32 0.0, %v7942
      %v7944 = vpop.f32.mrb[0].mxu0
      %v7945 = vpop.f32.mrb[0].mxu0
      %v7946 = vadd.f32 0.0, %v7945
      %v7947 = vpop.f32.mrb[0].mxu0
      %7948 = vmatprep.mubr.bf16.mxu0 0
      %7949 = vmatmul.mubr.bf16.gmra.mrb[0].mxu0 %v7756
      %v7950 = vpop.f32.mrb[0].mxu0
      %v7951 = vadd.f32 0.0, %v7950
      %v7952 = vpop.f32.mrb[0].mxu0
      %v7953 = vpop.f32.mrb[0].mxu0
      %v7954 = vadd.f32 0.0, %v7953
      %v7955 = vpop.f32.mrb[0].mxu0
      %7956 = vmatprep.mubr.bf16.mxu0 0
      %7957 = vmatmul.mubr.bf16.gmra.mrb[0].mxu0 %v7757
      %v7958 = vpop.f32.mrb[0].mxu0
      %v7959 = vadd.f32 0.0, %v7958
      %v7960 = vpop.f32.mrb[0].mxu0
      %v7961 = vpop.f32.mrb[0].mxu0
      %v7962 = vadd.f32 0.0, %v7961
      %v7963 = vpop.f32.mrb[0].mxu0
      %7964 = vmatprep.mubr.bf16.mxu0 0
      %7965 = vmatmul.mubr.bf16.gmra.mrb[0].mxu0 %v7758
      %v7966 = vpop.f32.mrb[0].mxu0
      %v7967 = vadd.f32 0.0, %v7966
      %v7968 = vpop.f32.mrb[0].mxu0
      %v7969 = vpop.f32.mrb[0].mxu0
      %v7970 = vadd.f32 0.0, %v7969
      %v7971 = vpop.f32.mrb[0].mxu0
      %7972 = vmatprep.mubr.bf16.mxu0 0
      %7973 = vmatmul.mubr.bf16.gmra.mrb[0].mxu0 %v7759
      %v7974 = vpop.f32.mrb[0].mxu0
      %v7975 = vadd.f32 0.0, %v7974
      %v7976 = vpop.f32.mrb[0].mxu0
      %v7977 = vpop.f32.mrb[0].mxu0
      %v7978 = vadd.f32 0.0, %v7977
      %v7979 = vpop.f32.mrb[0].mxu0
      %7980 = vmatprep.mubr.bf16.mxu0 0
      %7981 = vmatmul.mubr.bf16.gmra.mrb[0].mxu0 %v7760
      %v7982 = vpop.f32.mrb[0].mxu0
      %v7983 = vadd.f32 0.0, %v7982
      %v7984 = vpop.f32.mrb[0].mxu0
      %v7985 = vpop.f32.mrb[0].mxu0
      %v7986 = vadd.f32 0.0, %v7985
      %v7987 = vpop.f32.mrb[0].mxu0
      %7988 = vmatprep.mubr.bf16.mxu0 0
      %7989 = vmatmul.mubr.bf16.gmra.mrb[0].mxu0 %v7761
      %v7990 = vpop.f32.mrb[0].mxu0
      %v7991 = vadd.f32 0.0, %v7990
      %v7992 = vpop.f32.mrb[0].mxu0
      %v7993 = vpop.f32.mrb[0].mxu0
      %v7994 = vadd.f32 0.0, %v7993
      %v7995 = vpop.f32.mrb[0].mxu0
      %7996 = vmatprep.mubr.bf16.mxu0 0
      %7997 = vmatmul.mubr.bf16.gmra.mrb[0].mxu0 %v7762
      %v7998 = vpop.f32.mrb[0].mxu0
      %v7999 = vadd.f32 0.0, %v7998
      %v8000 = vpop.f32.mrb[0].mxu0
      %v8001 = vpop.f32.mrb[0].mxu0
      %v8002 = vadd.f32 0.0, %v8001
      %v8003 = vpop.f32.mrb[0].mxu0
      %8004 = vdwg.mxu0
      %v8005 = vadd.f32 %v7673, %v7863
      %v8006 = vadd.f32 %v7674, %v7866
      %v8007 = vadd.f32 %v7675, %v7871
      %v8008 = vadd.f32 %v7676, %v7874
      %v8009 = vadd.f32 %v7677, %v7879
      %v8010 = vadd.f32 %v7678, %v7882
      %v8011 = vadd.f32 %v7679, %v7887
      %v8012 = vadd.f32 %v7680, %v7890
      %v8013 = vadd.f32 %v7681, %v7895
      %v8014 = vadd.f32 %v7682, %v7898
      %v8015 = vadd.f32 %v7683, %v7903
      %v8016 = vadd.f32 %v7684, %v7906
      %v8017 = vadd.f32 %v7685, %v7911
      %v8018 = vadd.f32 %v7686, %v7914
      %v8019 = vadd.f32 %v7687, %v7919
      %v8020 = vadd.f32 %v7688, %v7922
      %v8021 = vadd.f32 %v7689, %v7927
      %v8022 = vadd.f32 %v7690, %v7930
      %v8023 = vadd.f32 %v7691, %v7935
      %v8024 = vadd.f32 %v7692, %v7938
      %v8025 = vadd.f32 %v7693, %v7943
      %v8026 = vadd.f32 %v7694, %v7946
      %v8027 = vadd.f32 %v7695, %v7951
      %v8028 = vadd.f32 %v7696, %v7954
      %v8029 = vadd.f32 %v7697, %v7959
      %v8030 = vadd.f32 %v7698, %v7962
      %v8031 = vadd.f32 %v7699, %v7967
      %v8032 = vadd.f32 %v7700, %v7970
      %v8033 = vadd.f32 %v7701, %v7975
      %v8034 = vadd.f32 %v7702, %v7978
      %v8035 = vadd.f32 %v7703, %v7983
      %v8036 = vadd.f32 %v7704, %v7986
      %v8037 = vadd.f32 %v7705, %v7991
      %v8038 = vadd.f32 %v7706, %v7994
      %v8039 = vadd.f32 %v7707, %v7999
      %v8040 = vadd.f32 %v7708, %v8002
      %v8041 = vld [vmem:[#allocation3 + $0x19] sm:$0xff]
      %v8042 = vld [vmem:[#allocation3 + $0x21] sm:$0xff]
      %v8043 = vld [vmem:[#allocation3 + $0x29] sm:$0xff]
      %v8044 = vld [vmem:[#allocation3 + $0x31] sm:$0xff]
      %v8045 = vld [vmem:[#allocation3 + $0x39] sm:$0xff]
      %v8046 = vld [vmem:[#allocation3 + $0x41] sm:$0xff]
      %v8047 = vld [vmem:[#allocation3 + $0x49] sm:$0xff]
      %v8048 = vld [vmem:[#allocation3 + $0x51] sm:$0xff]
      %v8049 = vld [vmem:[#allocation3 + $0x59] sm:$0xff]
      %v8050 = vld [vmem:[#allocation3 + $0x61] sm:$0xff]
      %v8051 = vld [vmem:[#allocation3 + $0x69] sm:$0xff]
      %v8052 = vld [vmem:[#allocation3 + $0x71] sm:$0xff]
      %v8053 = vld [vmem:[#allocation3 + $0x79] sm:$0xff]
      %v8054 = vld [vmem:[#allocation3 + $0x81] sm:$0xff]
      %v8055 = vld [vmem:[#allocation3 + $0x89] sm:$0xff]
      %v8056 = vld [vmem:[#allocation3 + $0x91] sm:$0xff]
      %v8057 = vld [vmem:[#allocation3 + $0x99] sm:$0xff]
      %v8058 = vld [vmem:[#allocation3 + $0xa1] sm:$0xff]
      %v8059 = vld [vmem:[#allocation3 + $0xa9] sm:$0xff]
      %v8060 = vld [vmem:[#allocation3 + $0xb1] sm:$0xff]
      %v8061 = vld [vmem:[#allocation3 + $0xb9] sm:$0xff]
      %v8062 = vld [vmem:[#allocation3 + $0xc1] sm:$0xff]
      %v8063 = vld [vmem:[#allocation3 + $0xc9] sm:$0xff]
      %v8064 = vld [vmem:[#allocation3 + $0xd1] sm:$0xff]
      %v8065 = vld [vmem:[#allocation3 + $0xd9] sm:$0xff]
      %v8066 = vld [vmem:[#allocation3 + $0xe1] sm:$0xff]
      %v8067 = vld [vmem:[#allocation3 + $0xe9] sm:$0xff]
      %v8068 = vld [vmem:[#allocation3 + $0xf1] sm:$0xff]
      %v8069 = vld [vmem:[#allocation3 + $0xf9] sm:$0xff]
      %v8070 = vld [vmem:[#allocation3 + $0x101] sm:$0xff]
      %v8071 = vld [vmem:[#allocation3 + $0x109] sm:$0xff]
      %v8072 = vld [vmem:[#allocation3 + $0x111] sm:$0xff]
      %v8073 = vld [vmem:[#allocation3 + $0x119] sm:$0xff]
      %v8074 = vld [vmem:[#allocation3 + $0x121] sm:$0xff]
      %v8075 = vld [vmem:[#allocation3 + $0x129] sm:$0xff]
      %v8076 = vld [vmem:[#allocation3 + $0x131] sm:$0xff]
      %v8077 = vpack.c.bf16 %v8042, %v8041
      %v8078 = vpack.c.bf16 %v8044, %v8043
      %v8079 = vpack.c.bf16 %v8046, %v8045
      %v8080 = vpack.c.bf16 %v8048, %v8047
      %v8081 = vpack.c.bf16 %v8050, %v8049
      %v8082 = vpack.c.bf16 %v8052, %v8051
      %v8083 = vpack.c.bf16 %v8054, %v8053
      %v8084 = vpack.c.bf16 %v8056, %v8055
      %v8085 = vpack.c.bf16 %v8058, %v8057
      %v8086 = vpack.c.bf16 %v8060, %v8059
      %v8087 = vpack.c.bf16 %v8062, %v8061
      %v8088 = vpack.c.bf16 %v8064, %v8063
      %v8089 = vpack.c.bf16 %v8066, %v8065
      %v8090 = vpack.c.bf16 %v8068, %v8067
      %v8091 = vpack.c.bf16 %v8070, %v8069
      %v8092 = vpack.c.bf16 %v8072, %v8071
      %v8093 = vpack.c.bf16 %v8074, %v8073
      %v8094 = vpack.c.bf16 %v8076, %v8075
      %s8095 = scalar_lea.vmem %s1, 1472
      %v8096 = vld [vmem:[%s8095] sm:$0xf]
      %v8097 = vld [vmem:[%s8095 + $0x4] sm:$0xf]
      %v8098 = vld [vmem:[%s8095 + $0x8] sm:$0xf]
      %v8099 = vld [vmem:[%s8095 + $0xc] sm:$0xf]
      %v8100 = vld [vmem:[%s8095 + $0x10] sm:$0xf]
      %v8101 = vld [vmem:[%s8095 + $0x14] sm:$0xf]
      %v8102 = vld [vmem:[%s8095 + $0x18] sm:$0xf]
      %v8103 = vld [vmem:[%s8095 + $0x1c] sm:$0xf]
      %v8104 = vld [vmem:[%s8095 + $0x20] sm:$0xf]
      %v8105 = vld [vmem:[%s8095 + $0x24] sm:$0xf]
      %v8106 = vld [vmem:[%s8095 + $0x28] sm:$0xf]
      %v8107 = vld [vmem:[%s8095 + $0x2c] sm:$0xf]
      %v8108 = vld [vmem:[%s8095 + $0x30] sm:$0xf]
      %v8109 = vld [vmem:[%s8095 + $0x34] sm:$0xf]
      %v8110 = vld [vmem:[%s8095 + $0x38] sm:$0xf]
      %v8111 = vld [vmem:[%s8095 + $0x3c] sm:$0xf]
      %v8128 = vunpack.c.l.b16 %v8096
      %v8129 = vunpack.c.l.b16 %v8097
      %v8130 = vunpack.c.l.b16 %v8098
      %v8131 = vunpack.c.l.b16 %v8099
      %v8132 = vunpack.c.l.b16 %v8100
      %v8133 = vunpack.c.l.b16 %v8101
      %v8134 = vunpack.c.l.b16 %v8102
      %v8135 = vunpack.c.l.b16 %v8103
      %v8136 = vunpack.c.l.b16 %v8104
      %v8137 = vunpack.c.l.b16 %v8105
      %v8138 = vunpack.c.l.b16 %v8106
      %v8139 = vunpack.c.l.b16 %v8107
      %v8140 = vunpack.c.l.b16 %v8108
      %v8141 = vunpack.c.l.b16 %v8109
      %v8142 = vunpack.c.l.b16 %v8110
      %v8143 = vunpack.c.l.b16 %v8111
      %v8144 = vpack.c.b16 %v8129, %v8128
      %v8145 = vpack.c.b16 %v8131, %v8130
      %v8146 = vpack.c.b16 %v8133, %v8132
      %v8147 = vpack.c.b16 %v8135, %v8134
      %v8148 = vpack.c.b16 %v8137, %v8136
      %v8149 = vpack.c.b16 %v8139, %v8138
      %v8150 = vpack.c.b16 %v8141, %v8140
      %v8151 = vpack.c.b16 %v8143, %v8142
      %8160 = vmatprep.subr.bf16.mxu0 0
      %8161 = vmatpush1.bf16.msra.mxu0 %v8144
      %8162 = vmatprep.subr.bf16.mxu0 0
      %8163 = vmatpush1.bf16.msra.mxu0 %v8145
      %8164 = vmatprep.subr.bf16.mxu0 0
      %8165 = vmatpush1.bf16.msra.mxu0 %v8146
      %8166 = vmatprep.subr.bf16.mxu0 0
      %8167 = vmatpush1.bf16.msra.mxu0 %v8147
      %8168 = vmatprep.subr.bf16.mxu0 0
      %8169 = vmatpush1.bf16.msra.mxu0 %v8148
      %8170 = vmatprep.subr.bf16.mxu0 0
      %8171 = vmatpush1.bf16.msra.mxu0 %v8149
      %8172 = vmatprep.subr.bf16.mxu0 0
      %8173 = vmatpush1.bf16.msra.mxu0 %v8150
      %8174 = vmatprep.subr.bf16.mxu0 0
      %8175 = vmatpush1.bf16.msra.mxu0 %v8151
      %8176 = vmatprep.subr.bf16.mxu0 0
      %8177 = vmatpush1.bf16.msra.mxu0 0
      %8178 = vmatprep.subr.bf16.mxu0 0
      %8179 = vmatpush1.bf16.msra.mxu0 0
      %8180 = vmatprep.subr.bf16.mxu0 0
      %8181 = vmatpush1.bf16.msra.mxu0 0
      %8182 = vmatprep.subr.bf16.mxu0 0
      %8183 = vmatpush1.bf16.msra.mxu0 0
      %8184 = vmatprep.subr.bf16.mxu0 0
      %8185 = vmatpush1.bf16.msra.mxu0 0
      %8186 = vmatprep.subr.bf16.mxu0 0
      %8187 = vmatpush1.bf16.msra.mxu0 0
      %8188 = vmatprep.subr.bf16.mxu0 0
      %8189 = vmatpush1.bf16.msra.mxu0 0
      %8190 = vmatprep.subr.bf16.mxu0 0
      %8191 = vmatpush1.bf16.msra.mxu0 0
      %8192 = vmatprep.mubr.bf16.mxu0 0
      %8193 = vmatmul.mubr.bf16.gmra.mrb[0].mxu0 %v8077
      %v8194 = vpop.f32.mrb[0].mxu0
      %v8195 = vadd.f32 0.0, %v8194
      %v8196 = vpop.f32.mrb[0].mxu0
      %v8197 = vpop.f32.mrb[0].mxu0
      %v8198 = vadd.f32 0.0, %v8197
      %v8199 = vpop.f32.mrb[0].mxu0
      %8200 = vmatprep.mubr.bf16.mxu0 0
      %8201 = vmatmul.mubr.bf16.gmra.mrb[0].mxu0 %v8078
      %v8202 = vpop.f32.mrb[0].mxu0
      %v8203 = vadd.f32 0.0, %v8202
      %v8204 = vpop.f32.mrb[0].mxu0
      %v8205 = vpop.f32.mrb[0].mxu0
      %v8206 = vadd.f32 0.0, %v8205
      %v8207 = vpop.f32.mrb[0].mxu0
      %8208 = vmatprep.mubr.bf16.mxu0 0
      %8209 = vmatmul.mubr.bf16.gmra.mrb[0].mxu0 %v8079
      %v8210 = vpop.f32.mrb[0].mxu0
      %v8211 = vadd.f32 0.0, %v8210
      %v8212 = vpop.f32.mrb[0].mxu0
      %v8213 = vpop.f32.mrb[0].mxu0
      %v8214 = vadd.f32 0.0, %v8213
      %v8215 = vpop.f32.mrb[0].mxu0
      %8216 = vmatprep.mubr.bf16.mxu0 0
      %8217 = vmatmul.mubr.bf16.gmra.mrb[0].mxu0 %v8080
      %v8218 = vpop.f32.mrb[0].mxu0
      %v8219 = vadd.f32 0.0, %v8218
      %v8220 = vpop.f32.mrb[0].mxu0
      %v8221 = vpop.f32.mrb[0].mxu0
      %v8222 = vadd.f32 0.0, %v8221
      %v8223 = vpop.f32.mrb[0].mxu0
      %8224 = vmatprep.mubr.bf16.mxu0 0
      %8225 = vmatmul.mubr.bf16.gmra.mrb[0].mxu0 %v8081
      %v8226 = vpop.f32.mrb[0].mxu0
      %v8227 = vadd.f32 0.0, %v8226
      %v8228 = vpop.f32.mrb[0].mxu0
      %v8229 = vpop.f32.mrb[0].mxu0
      %v8230 = vadd.f32 0.0, %v8229
      %v8231 = vpop.f32.mrb[0].mxu0
      %8232 = vmatprep.mubr.bf16.mxu0 0
      %8233 = vmatmul.mubr.bf16.gmra.mrb[0].mxu0 %v8082
      %v8234 = vpop.f32.mrb[0].mxu0
      %v8235 = vadd.f32 0.0, %v8234
      %v8236 = vpop.f32.mrb[0].mxu0
      %v8237 = vpop.f32.mrb[0].mxu0
      %v8238 = vadd.f32 0.0, %v8237
      %v8239 = vpop.f32.mrb[0].mxu0
      %8240 = vmatprep.mubr.bf16.mxu0 0
      %8241 = vmatmul.mubr.bf16.gmra.mrb[0].mxu0 %v8083
      %v8242 = vpop.f32.mrb[0].mxu0
      %v8243 = vadd.f32 0.0, %v8242
      %v8244 = vpop.f32.mrb[0].mxu0
      %v8245 = vpop.f32.mrb[0].mxu0
      %v8246 = vadd.f32 0.0, %v8245
      %v8247 = vpop.f32.mrb[0].mxu0
      %8248 = vmatprep.mubr.bf16.mxu0 0
      %8249 = vmatmul.mubr.bf16.gmra.mrb[0].mxu0 %v8084
      %v8250 = vpop.f32.mrb[0].mxu0
      %v8251 = vadd.f32 0.0, %v8250
      %v8252 = vpop.f32.mrb[0].mxu0
      %v8253 = vpop.f32.mrb[0].mxu0
      %v8254 = vadd.f32 0.0, %v8253
      %v8255 = vpop.f32.mrb[0].mxu0
      %8256 = vmatprep.mubr.bf16.mxu0 0
      %8257 = vmatmul.mubr.bf16.gmra.mrb[0].mxu0 %v8085
      %v8258 = vpop.f32.mrb[0].mxu0
      %v8259 = vadd.f32 0.0, %v8258
      %v8260 = vpop.f32.mrb[0].mxu0
      %v8261 = vpop.f32.mrb[0].mxu0
      %v8262 = vadd.f32 0.0, %v8261
      %v8263 = vpop.f32.mrb[0].mxu0
      %8264 = vmatprep.mubr.bf16.mxu0 0
      %8265 = vmatmul.mubr.bf16.gmra.mrb[0].mxu0 %v8086
      %v8266 = vpop.f32.mrb[0].mxu0
      %v8267 = vadd.f32 0.0, %v8266
      %v8268 = vpop.f32.mrb[0].mxu0
      %v8269 = vpop.f32.mrb[0].mxu0
      %v8270 = vadd.f32 0.0, %v8269
      %v8271 = vpop.f32.mrb[0].mxu0
      %8272 = vmatprep.mubr.bf16.mxu0 0
      %8273 = vmatmul.mubr.bf16.gmra.mrb[0].mxu0 %v8087
      %v8274 = vpop.f32.mrb[0].mxu0
      %v8275 = vadd.f32 0.0, %v8274
      %v8276 = vpop.f32.mrb[0].mxu0
      %v8277 = vpop.f32.mrb[0].mxu0
      %v8278 = vadd.f32 0.0, %v8277
      %v8279 = vpop.f32.mrb[0].mxu0
      %8280 = vmatprep.mubr.bf16.mxu0 0
      %8281 = vmatmul.mubr.bf16.gmra.mrb[0].mxu0 %v8088
      %v8282 = vpop.f32.mrb[0].mxu0
      %v8283 = vadd.f32 0.0, %v8282
      %v8284 = vpop.f32.mrb[0].mxu0
      %v8285 = vpop.f32.mrb[0].mxu0
      %v8286 = vadd.f32 0.0, %v8285
      %v8287 = vpop.f32.mrb[0].mxu0
      %8288 = vmatprep.mubr.bf16.mxu0 0
      %8289 = vmatmul.mubr.bf16.gmra.mrb[0].mxu0 %v8089
      %v8290 = vpop.f32.mrb[0].mxu0
      %v8291 = vadd.f32 0.0, %v8290
      %v8292 = vpop.f32.mrb[0].mxu0
      %v8293 = vpop.f32.mrb[0].mxu0
      %v8294 = vadd.f32 0.0, %v8293
      %v8295 = vpop.f32.mrb[0].mxu0
      %8296 = vmatprep.mubr.bf16.mxu0 0
      %8297 = vmatmul.mubr.bf16.gmra.mrb[0].mxu0 %v8090
      %v8298 = vpop.f32.mrb[0].mxu0
      %v8299 = vadd.f32 0.0, %v8298
      %v8300 = vpop.f32.mrb[0].mxu0
      %v8301 = vpop.f32.mrb[0].mxu0
      %v8302 = vadd.f32 0.0, %v8301
      %v8303 = vpop.f32.mrb[0].mxu0
      %8304 = vmatprep.mubr.bf16.mxu0 0
      %8305 = vmatmul.mubr.bf16.gmra.mrb[0].mxu0 %v8091
      %v8306 = vpop.f32.mrb[0].mxu0
      %v8307 = vadd.f32 0.0, %v8306
      %v8308 = vpop.f32.mrb[0].mxu0
      %v8309 = vpop.f32.mrb[0].mxu0
      %v8310 = vadd.f32 0.0, %v8309
      %v8311 = vpop.f32.mrb[0].mxu0
      %8312 = vmatprep.mubr.bf16.mxu0 0
      %8313 = vmatmul.mubr.bf16.gmra.mrb[0].mxu0 %v8092
      %v8314 = vpop.f32.mrb[0].mxu0
      %v8315 = vadd.f32 0.0, %v8314
      %v8316 = vpop.f32.mrb[0].mxu0
      %v8317 = vpop.f32.mrb[0].mxu0
      %v8318 = vadd.f32 0.0, %v8317
      %v8319 = vpop.f32.mrb[0].mxu0
      %8320 = vmatprep.mubr.bf16.mxu0 0
      %8321 = vmatmul.mubr.bf16.gmra.mrb[0].mxu0 %v8093
      %v8322 = vpop.f32.mrb[0].mxu0
      %v8323 = vadd.f32 0.0, %v8322
      %v8324 = vpop.f32.mrb[0].mxu0
      %v8325 = vpop.f32.mrb[0].mxu0
      %v8326 = vadd.f32 0.0, %v8325
      %v8327 = vpop.f32.mrb[0].mxu0
      %8328 = vmatprep.mubr.bf16.mxu0 0
      %8329 = vmatmul.mubr.bf16.gmra.mrb[0].mxu0 %v8094
      %v8330 = vpop.f32.mrb[0].mxu0
      %v8331 = vadd.f32 0.0, %v8330
      %v8332 = vpop.f32.mrb[0].mxu0
      %v8333 = vpop.f32.mrb[0].mxu0
      %v8334 = vadd.f32 0.0, %v8333
      %v8335 = vpop.f32.mrb[0].mxu0
      %8336 = vdwg.mxu0
      %v8337 = vadd.f32 %v8005, %v8195
      %v8338 = vadd.f32 %v8006, %v8198
      %v8339 = vadd.f32 %v8007, %v8203
      %v8340 = vadd.f32 %v8008, %v8206
      %v8341 = vadd.f32 %v8009, %v8211
      %v8342 = vadd.f32 %v8010, %v8214
      %v8343 = vadd.f32 %v8011, %v8219
      %v8344 = vadd.f32 %v8012, %v8222
      %v8345 = vadd.f32 %v8013, %v8227
      %v8346 = vadd.f32 %v8014, %v8230
      %v8347 = vadd.f32 %v8015, %v8235
      %v8348 = vadd.f32 %v8016, %v8238
      %v8349 = vadd.f32 %v8017, %v8243
      %v8350 = vadd.f32 %v8018, %v8246
      %v8351 = vadd.f32 %v8019, %v8251
      %v8352 = vadd.f32 %v8020, %v8254
      %v8353 = vadd.f32 %v8021, %v8259
      %v8354 = vadd.f32 %v8022, %v8262
      %v8355 = vadd.f32 %v8023, %v8267
      %v8356 = vadd.f32 %v8024, %v8270
      %v8357 = vadd.f32 %v8025, %v8275
      %v8358 = vadd.f32 %v8026, %v8278
      %v8359 = vadd.f32 %v8027, %v8283
      %v8360 = vadd.f32 %v8028, %v8286
      %v8361 = vadd.f32 %v8029, %v8291
      %v8362 = vadd.f32 %v8030, %v8294
      %v8363 = vadd.f32 %v8031, %v8299
      %v8364 = vadd.f32 %v8032, %v8302
      %v8365 = vadd.f32 %v8033, %v8307
      %v8366 = vadd.f32 %v8034, %v8310
      %v8367 = vadd.f32 %v8035, %v8315
      %v8368 = vadd.f32 %v8036, %v8318
      %v8369 = vadd.f32 %v8037, %v8323
      %v8370 = vadd.f32 %v8038, %v8326
      %v8371 = vadd.f32 %v8039, %v8331
      %v8372 = vadd.f32 %v8040, %v8334
      %v8373 = vld [vmem:[#allocation3 + $0x29] sm:$0xff]
      %v8374 = vld [vmem:[#allocation3 + $0x31] sm:$0xff]
      %v8375 = vld [vmem:[#allocation3 + $0x39] sm:$0xff]
      %v8376 = vld [vmem:[#allocation3 + $0x41] sm:$0xff]
      %v8377 = vld [vmem:[#allocation3 + $0x49] sm:$0xff]
      %v8378 = vld [vmem:[#allocation3 + $0x51] sm:$0xff]
      %v8379 = vld [vmem:[#allocation3 + $0x59] sm:$0xff]
      %v8380 = vld [vmem:[#allocation3 + $0x61] sm:$0xff]
      %v8381 = vld [vmem:[#allocation3 + $0x69] sm:$0xff]
      %v8382 = vld [vmem:[#allocation3 + $0x71] sm:$0xff]
      %v8383 = vld [vmem:[#allocation3 + $0x79] sm:$0xff]
      %v8384 = vld [vmem:[#allocation3 + $0x81] sm:$0xff]
      %v8385 = vld [vmem:[#allocation3 + $0x89] sm:$0xff]
      %v8386 = vld [vmem:[#allocation3 + $0x91] sm:$0xff]
      %v8387 = vld [vmem:[#allocation3 + $0x99] sm:$0xff]
      %v8388 = vld [vmem:[#allocation3 + $0xa1] sm:$0xff]
      %v8389 = vld [vmem:[#allocation3 + $0xa9] sm:$0xff]
      %v8390 = vld [vmem:[#allocation3 + $0xb1] sm:$0xff]
      %v8391 = vld [vmem:[#allocation3 + $0xb9] sm:$0xff]
      %v8392 = vld [vmem:[#allocation3 + $0xc1] sm:$0xff]
      %v8393 = vld [vmem:[#allocation3 + $0xc9] sm:$0xff]
      %v8394 = vld [vmem:[#allocation3 + $0xd1] sm:$0xff]
      %v8395 = vld [vmem:[#allocation3 + $0xd9] sm:$0xff]
      %v8396 = vld [vmem:[#allocation3 + $0xe1] sm:$0xff]
      %v8397 = vld [vmem:[#allocation3 + $0xe9] sm:$0xff]
      %v8398 = vld [vmem:[#allocation3 + $0xf1] sm:$0xff]
      %v8399 = vld [vmem:[#allocation3 + $0xf9] sm:$0xff]
      %v8400 = vld [vmem:[#allocation3 + $0x101] sm:$0xff]
      %v8401 = vld [vmem:[#allocation3 + $0x109] sm:$0xff]
      %v8402 = vld [vmem:[#allocation3 + $0x111] sm:$0xff]
      %v8403 = vld [vmem:[#allocation3 + $0x119] sm:$0xff]
      %v8404 = vld [vmem:[#allocation3 + $0x121] sm:$0xff]
      %v8405 = vld [vmem:[#allocation3 + $0x129] sm:$0xff]
      %v8406 = vld [vmem:[#allocation3 + $0x131] sm:$0xff]
      %v8407 = vld [vmem:[#allocation3 + $0x139] sm:$0xff]
      %v8408 = vld [vmem:[#allocation3 + $0x141] sm:$0xff]
      %v8409 = vpack.c.bf16 %v8374, %v8373
      %v8410 = vpack.c.bf16 %v8376, %v8375
      %v8411 = vpack.c.bf16 %v8378, %v8377
      %v8412 = vpack.c.bf16 %v8380, %v8379
      %v8413 = vpack.c.bf16 %v8382, %v8381
      %v8414 = vpack.c.bf16 %v8384, %v8383
      %v8415 = vpack.c.bf16 %v8386, %v8385
      %v8416 = vpack.c.bf16 %v8388, %v8387
      %v8417 = vpack.c.bf16 %v8390, %v8389
      %v8418 = vpack.c.bf16 %v8392, %v8391
      %v8419 = vpack.c.bf16 %v8394, %v8393
      %v8420 = vpack.c.bf16 %v8396, %v8395
      %v8421 = vpack.c.bf16 %v8398, %v8397
      %v8422 = vpack.c.bf16 %v8400, %v8399
      %v8423 = vpack.c.bf16 %v8402, %v8401
      %v8424 = vpack.c.bf16 %v8404, %v8403
      %v8425 = vpack.c.bf16 %v8406, %v8405
      %v8426 = vpack.c.bf16 %v8408, %v8407
      %s8427 = scalar_lea.vmem %s1, 1536
      %v8428 = vld [vmem:[%s8427] sm:$0xf]
      %v8429 = vld [vmem:[%s8427 + $0x4] sm:$0xf]
      %v8430 = vld [vmem:[%s8427 + $0x8] sm:$0xf]
      %v8431 = vld [vmem:[%s8427 + $0xc] sm:$0xf]
      %v8432 = vld [vmem:[%s8427 + $0x10] sm:$0xf]
      %v8433 = vld [vmem:[%s8427 + $0x14] sm:$0xf]
      %v8434 = vld [vmem:[%s8427 + $0x18] sm:$0xf]
      %v8435 = vld [vmem:[%s8427 + $0x1c] sm:$0xf]
      %v8436 = vld [vmem:[%s8427 + $0x20] sm:$0xf]
      %v8437 = vld [vmem:[%s8427 + $0x24] sm:$0xf]
      %v8438 = vld [vmem:[%s8427 + $0x28] sm:$0xf]
      %v8439 = vld [vmem:[%s8427 + $0x2c] sm:$0xf]
      %v8440 = vld [vmem:[%s8427 + $0x30] sm:$0xf]
      %v8441 = vld [vmem:[%s8427 + $0x34] sm:$0xf]
      %v8442 = vld [vmem:[%s8427 + $0x38] sm:$0xf]
      %v8443 = vld [vmem:[%s8427 + $0x3c] sm:$0xf]
      %v8460 = vunpack.c.l.b16 %v8428
      %v8461 = vunpack.c.l.b16 %v8429
      %v8462 = vunpack.c.l.b16 %v8430
      %v8463 = vunpack.c.l.b16 %v8431
      %v8464 = vunpack.c.l.b16 %v8432
      %v8465 = vunpack.c.l.b16 %v8433
      %v8466 = vunpack.c.l.b16 %v8434
      %v8467 = vunpack.c.l.b16 %v8435
      %v8468 = vunpack.c.l.b16 %v8436
      %v8469 = vunpack.c.l.b16 %v8437
      %v8470 = vunpack.c.l.b16 %v8438
      %v8471 = vunpack.c.l.b16 %v8439
      %v8472 = vunpack.c.l.b16 %v8440
      %v8473 = vunpack.c.l.b16 %v8441
      %v8474 = vunpack.c.l.b16 %v8442
      %v8475 = vunpack.c.l.b16 %v8443
      %v8476 = vpack.c.b16 %v8461, %v8460
      %v8477 = vpack.c.b16 %v8463, %v8462
      %v8478 = vpack.c.b16 %v8465, %v8464
      %v8479 = vpack.c.b16 %v8467, %v8466
      %v8480 = vpack.c.b16 %v8469, %v8468
      %v8481 = vpack.c.b16 %v8471, %v8470
      %v8482 = vpack.c.b16 %v8473, %v8472
      %v8483 = vpack.c.b16 %v8475, %v8474
      %8492 = vmatprep.subr.bf16.mxu0 0
      %8493 = vmatpush1.bf16.msra.mxu0 %v8476
      %8494 = vmatprep.subr.bf16.mxu0 0
      %8495 = vmatpush1.bf16.msra.mxu0 %v8477
      %8496 = vmatprep.subr.bf16.mxu0 0
      %8497 = vmatpush1.bf16.msra.mxu0 %v8478
      %8498 = vmatprep.subr.bf16.mxu0 0
      %8499 = vmatpush1.bf16.msra.mxu0 %v8479
      %8500 = vmatprep.subr.bf16.mxu0 0
      %8501 = vmatpush1.bf16.msra.mxu0 %v8480
      %8502 = vmatprep.subr.bf16.mxu0 0
      %8503 = vmatpush1.bf16.msra.mxu0 %v8481
      %8504 = vmatprep.subr.bf16.mxu0 0
      %8505 = vmatpush1.bf16.msra.mxu0 %v8482
      %8506 = vmatprep.subr.bf16.mxu0 0
      %8507 = vmatpush1.bf16.msra.mxu0 %v8483
      %8508 = vmatprep.subr.bf16.mxu0 0
      %8509 = vmatpush1.bf16.msra.mxu0 0
      %8510 = vmatprep.subr.bf16.mxu0 0
      %8511 = vmatpush1.bf16.msra.mxu0 0
      %8512 = vmatprep.subr.bf16.mxu0 0
      %8513 = vmatpush1.bf16.msra.mxu0 0
      %8514 = vmatprep.subr.bf16.mxu0 0
      %8515 = vmatpush1.bf16.msra.mxu0 0
      %8516 = vmatprep.subr.bf16.mxu0 0
      %8517 = vmatpush1.bf16.msra.mxu0 0
      %8518 = vmatprep.subr.bf16.mxu0 0
      %8519 = vmatpush1.bf16.msra.mxu0 0
      %8520 = vmatprep.subr.bf16.mxu0 0
      %8521 = vmatpush1.bf16.msra.mxu0 0
      %8522 = vmatprep.subr.bf16.mxu0 0
      %8523 = vmatpush1.bf16.msra.mxu0 0
      %8524 = vmatprep.mubr.bf16.mxu0 0
      %8525 = vmatmul.mubr.bf16.gmra.mrb[0].mxu0 %v8409
      %v8526 = vpop.f32.mrb[0].mxu0
      %v8527 = vadd.f32 0.0, %v8526
      %v8528 = vpop.f32.mrb[0].mxu0
      %v8529 = vpop.f32.mrb[0].mxu0
      %v8530 = vadd.f32 0.0, %v8529
      %v8531 = vpop.f32.mrb[0].mxu0
      %8532 = vmatprep.mubr.bf16.mxu0 0
      %8533 = vmatmul.mubr.bf16.gmra.mrb[0].mxu0 %v8410
      %v8534 = vpop.f32.mrb[0].mxu0
      %v8535 = vadd.f32 0.0, %v8534
      %v8536 = vpop.f32.mrb[0].mxu0
      %v8537 = vpop.f32.mrb[0].mxu0
      %v8538 = vadd.f32 0.0, %v8537
      %v8539 = vpop.f32.mrb[0].mxu0
      %8540 = vmatprep.mubr.bf16.mxu0 0
      %8541 = vmatmul.mubr.bf16.gmra.mrb[0].mxu0 %v8411
      %v8542 = vpop.f32.mrb[0].mxu0
      %v8543 = vadd.f32 0.0, %v8542
      %v8544 = vpop.f32.mrb[0].mxu0
      %v8545 = vpop.f32.mrb[0].mxu0
      %v8546 = vadd.f32 0.0, %v8545
      %v8547 = vpop.f32.mrb[0].mxu0
      %8548 = vmatprep.mubr.bf16.mxu0 0
      %8549 = vmatmul.mubr.bf16.gmra.mrb[0].mxu0 %v8412
      %v8550 = vpop.f32.mrb[0].mxu0
      %v8551 = vadd.f32 0.0, %v8550
      %v8552 = vpop.f32.mrb[0].mxu0
      %v8553 = vpop.f32.mrb[0].mxu0
      %v8554 = vadd.f32 0.0, %v8553
      %v8555 = vpop.f32.mrb[0].mxu0
      %8556 = vmatprep.mubr.bf16.mxu0 0
      %8557 = vmatmul.mubr.bf16.gmra.mrb[0].mxu0 %v8413
      %v8558 = vpop.f32.mrb[0].mxu0
      %v8559 = vadd.f32 0.0, %v8558
      %v8560 = vpop.f32.mrb[0].mxu0
      %v8561 = vpop.f32.mrb[0].mxu0
      %v8562 = vadd.f32 0.0, %v8561
      %v8563 = vpop.f32.mrb[0].mxu0
      %8564 = vmatprep.mubr.bf16.mxu0 0
      %8565 = vmatmul.mubr.bf16.gmra.mrb[0].mxu0 %v8414
      %v8566 = vpop.f32.mrb[0].mxu0
      %v8567 = vadd.f32 0.0, %v8566
      %v8568 = vpop.f32.mrb[0].mxu0
      %v8569 = vpop.f32.mrb[0].mxu0
      %v8570 = vadd.f32 0.0, %v8569
      %v8571 = vpop.f32.mrb[0].mxu0
      %8572 = vmatprep.mubr.bf16.mxu0 0
      %8573 = vmatmul.mubr.bf16.gmra.mrb[0].mxu0 %v8415
      %v8574 = vpop.f32.mrb[0].mxu0
      %v8575 = vadd.f32 0.0, %v8574
      %v8576 = vpop.f32.mrb[0].mxu0
      %v8577 = vpop.f32.mrb[0].mxu0
      %v8578 = vadd.f32 0.0, %v8577
      %v8579 = vpop.f32.mrb[0].mxu0
      %8580 = vmatprep.mubr.bf16.mxu0 0
      %8581 = vmatmul.mubr.bf16.gmra.mrb[0].mxu0 %v8416
      %v8582 = vpop.f32.mrb[0].mxu0
      %v8583 = vadd.f32 0.0, %v8582
      %v8584 = vpop.f32.mrb[0].mxu0
      %v8585 = vpop.f32.mrb[0].mxu0
      %v8586 = vadd.f32 0.0, %v8585
      %v8587 = vpop.f32.mrb[0].mxu0
      %8588 = vmatprep.mubr.bf16.mxu0 0
      %8589 = vmatmul.mubr.bf16.gmra.mrb[0].mxu0 %v8417
      %v8590 = vpop.f32.mrb[0].mxu0
      %v8591 = vadd.f32 0.0, %v8590
      %v8592 = vpop.f32.mrb[0].mxu0
      %v8593 = vpop.f32.mrb[0].mxu0
      %v8594 = vadd.f32 0.0, %v8593
      %v8595 = vpop.f32.mrb[0].mxu0
      %8596 = vmatprep.mubr.bf16.mxu0 0
      %8597 = vmatmul.mubr.bf16.gmra.mrb[0].mxu0 %v8418
      %v8598 = vpop.f32.mrb[0].mxu0
      %v8599 = vadd.f32 0.0, %v8598
      %v8600 = vpop.f32.mrb[0].mxu0
      %v8601 = vpop.f32.mrb[0].mxu0
      %v8602 = vadd.f32 0.0, %v8601
      %v8603 = vpop.f32.mrb[0].mxu0
      %8604 = vmatprep.mubr.bf16.mxu0 0
      %8605 = vmatmul.mubr.bf16.gmra.mrb[0].mxu0 %v8419
      %v8606 = vpop.f32.mrb[0].mxu0
      %v8607 = vadd.f32 0.0, %v8606
      %v8608 = vpop.f32.mrb[0].mxu0
      %v8609 = vpop.f32.mrb[0].mxu0
      %v8610 = vadd.f32 0.0, %v8609
      %v8611 = vpop.f32.mrb[0].mxu0
      %8612 = vmatprep.mubr.bf16.mxu0 0
      %8613 = vmatmul.mubr.bf16.gmra.mrb[0].mxu0 %v8420
      %v8614 = vpop.f32.mrb[0].mxu0
      %v8615 = vadd.f32 0.0, %v8614
      %v8616 = vpop.f32.mrb[0].mxu0
      %v8617 = vpop.f32.mrb[0].mxu0
      %v8618 = vadd.f32 0.0, %v8617
      %v8619 = vpop.f32.mrb[0].mxu0
      %8620 = vmatprep.mubr.bf16.mxu0 0
      %8621 = vmatmul.mubr.bf16.gmra.mrb[0].mxu0 %v8421
      %v8622 = vpop.f32.mrb[0].mxu0
      %v8623 = vadd.f32 0.0, %v8622
      %v8624 = vpop.f32.mrb[0].mxu0
      %v8625 = vpop.f32.mrb[0].mxu0
      %v8626 = vadd.f32 0.0, %v8625
      %v8627 = vpop.f32.mrb[0].mxu0
      %8628 = vmatprep.mubr.bf16.mxu0 0
      %8629 = vmatmul.mubr.bf16.gmra.mrb[0].mxu0 %v8422
      %v8630 = vpop.f32.mrb[0].mxu0
      %v8631 = vadd.f32 0.0, %v8630
      %v8632 = vpop.f32.mrb[0].mxu0
      %v8633 = vpop.f32.mrb[0].mxu0
      %v8634 = vadd.f32 0.0, %v8633
      %v8635 = vpop.f32.mrb[0].mxu0
      %8636 = vmatprep.mubr.bf16.mxu0 0
      %8637 = vmatmul.mubr.bf16.gmra.mrb[0].mxu0 %v8423
      %v8638 = vpop.f32.mrb[0].mxu0
      %v8639 = vadd.f32 0.0, %v8638
      %v8640 = vpop.f32.mrb[0].mxu0
      %v8641 = vpop.f32.mrb[0].mxu0
      %v8642 = vadd.f32 0.0, %v8641
      %v8643 = vpop.f32.mrb[0].mxu0
      %8644 = vmatprep.mubr.bf16.mxu0 0
      %8645 = vmatmul.mubr.bf16.gmra.mrb[0].mxu0 %v8424
      %v8646 = vpop.f32.mrb[0].mxu0
      %v8647 = vadd.f32 0.0, %v8646
      %v8648 = vpop.f32.mrb[0].mxu0
      %v8649 = vpop.f32.mrb[0].mxu0
      %v8650 = vadd.f32 0.0, %v8649
      %v8651 = vpop.f32.mrb[0].mxu0
      %8652 = vmatprep.mubr.bf16.mxu0 0
      %8653 = vmatmul.mubr.bf16.gmra.mrb[0].mxu0 %v8425
      %v8654 = vpop.f32.mrb[0].mxu0
      %v8655 = vadd.f32 0.0, %v8654
      %v8656 = vpop.f32.mrb[0].mxu0
      %v8657 = vpop.f32.mrb[0].mxu0
      %v8658 = vadd.f32 0.0, %v8657
      %v8659 = vpop.f32.mrb[0].mxu0
      %8660 = vmatprep.mubr.bf16.mxu0 0
      %8661 = vmatmul.mubr.bf16.gmra.mrb[0].mxu0 %v8426
      %v8662 = vpop.f32.mrb[0].mxu0
      %v8663 = vadd.f32 0.0, %v8662
      %v8664 = vpop.f32.mrb[0].mxu0
      %v8665 = vpop.f32.mrb[0].mxu0
      %v8666 = vadd.f32 0.0, %v8665
      %v8667 = vpop.f32.mrb[0].mxu0
      %8668 = vdwg.mxu0
      %v8669 = vadd.f32 %v8337, %v8527
      %v8670 = vadd.f32 %v8338, %v8530
      %v8671 = vadd.f32 %v8339, %v8535
      %v8672 = vadd.f32 %v8340, %v8538
      %v8673 = vadd.f32 %v8341, %v8543
      %v8674 = vadd.f32 %v8342, %v8546
      %v8675 = vadd.f32 %v8343, %v8551
      %v8676 = vadd.f32 %v8344, %v8554
      %v8677 = vadd.f32 %v8345, %v8559
      %v8678 = vadd.f32 %v8346, %v8562
      %v8679 = vadd.f32 %v8347, %v8567
      %v8680 = vadd.f32 %v8348, %v8570
      %v8681 = vadd.f32 %v8349, %v8575
      %v8682 = vadd.f32 %v8350, %v8578
      %v8683 = vadd.f32 %v8351, %v8583
      %v8684 = vadd.f32 %v8352, %v8586
      %v8685 = vadd.f32 %v8353, %v8591
      %v8686 = vadd.f32 %v8354, %v8594
      %v8687 = vadd.f32 %v8355, %v8599
      %v8688 = vadd.f32 %v8356, %v8602
      %v8689 = vadd.f32 %v8357, %v8607
      %v8690 = vadd.f32 %v8358, %v8610
      %v8691 = vadd.f32 %v8359, %v8615
      %v8692 = vadd.f32 %v8360, %v8618
      %v8693 = vadd.f32 %v8361, %v8623
      %v8694 = vadd.f32 %v8362, %v8626
      %v8695 = vadd.f32 %v8363, %v8631
      %v8696 = vadd.f32 %v8364, %v8634
      %v8697 = vadd.f32 %v8365, %v8639
      %v8698 = vadd.f32 %v8366, %v8642
      %v8699 = vadd.f32 %v8367, %v8647
      %v8700 = vadd.f32 %v8368, %v8650
      %v8701 = vadd.f32 %v8369, %v8655
      %v8702 = vadd.f32 %v8370, %v8658
      %v8703 = vadd.f32 %v8371, %v8663
      %v8704 = vadd.f32 %v8372, %v8666
      %v8705 = vld [vmem:[#allocation3 + $0x2a] sm:$0xff]
      %v8706 = vld [vmem:[#allocation3 + $0x32] sm:$0xff]
      %v8707 = vld [vmem:[#allocation3 + $0x3a] sm:$0xff]
      %v8708 = vld [vmem:[#allocation3 + $0x42] sm:$0xff]
      %v8709 = vld [vmem:[#allocation3 + $0x4a] sm:$0xff]
      %v8710 = vld [vmem:[#allocation3 + $0x52] sm:$0xff]
      %v8711 = vld [vmem:[#allocation3 + $0x5a] sm:$0xff]
      %v8712 = vld [vmem:[#allocation3 + $0x62] sm:$0xff]
      %v8713 = vld [vmem:[#allocation3 + $0x6a] sm:$0xff]
      %v8714 = vld [vmem:[#allocation3 + $0x72] sm:$0xff]
      %v8715 = vld [vmem:[#allocation3 + $0x7a] sm:$0xff]
      %v8716 = vld [vmem:[#allocation3 + $0x82] sm:$0xff]
      %v8717 = vld [vmem:[#allocation3 + $0x8a] sm:$0xff]
      %v8718 = vld [vmem:[#allocation3 + $0x92] sm:$0xff]
      %v8719 = vld [vmem:[#allocation3 + $0x9a] sm:$0xff]
      %v8720 = vld [vmem:[#allocation3 + $0xa2] sm:$0xff]
      %v8721 = vld [vmem:[#allocation3 + $0xaa] sm:$0xff]
      %v8722 = vld [vmem:[#allocation3 + $0xb2] sm:$0xff]
      %v8723 = vld [vmem:[#allocation3 + $0xba] sm:$0xff]
      %v8724 = vld [vmem:[#allocation3 + $0xc2] sm:$0xff]
      %v8725 = vld [vmem:[#allocation3 + $0xca] sm:$0xff]
      %v8726 = vld [vmem:[#allocation3 + $0xd2] sm:$0xff]
      %v8727 = vld [vmem:[#allocation3 + $0xda] sm:$0xff]
      %v8728 = vld [vmem:[#allocation3 + $0xe2] sm:$0xff]
      %v8729 = vld [vmem:[#allocation3 + $0xea] sm:$0xff]
      %v8730 = vld [vmem:[#allocation3 + $0xf2] sm:$0xff]
      %v8731 = vld [vmem:[#allocation3 + $0xfa] sm:$0xff]
      %v8732 = vld [vmem:[#allocation3 + $0x102] sm:$0xff]
      %v8733 = vld [vmem:[#allocation3 + $0x10a] sm:$0xff]
      %v8734 = vld [vmem:[#allocation3 + $0x112] sm:$0xff]
      %v8735 = vld [vmem:[#allocation3 + $0x11a] sm:$0xff]
      %v8736 = vld [vmem:[#allocation3 + $0x122] sm:$0xff]
      %v8737 = vld [vmem:[#allocation3 + $0x12a] sm:$0xff]
      %v8738 = vld [vmem:[#allocation3 + $0x132] sm:$0xff]
      %v8739 = vld [vmem:[#allocation3 + $0x13a] sm:$0xff]
      %v8740 = vld [vmem:[#allocation3 + $0x142] sm:$0xff]
      %v8741 = vpack.c.bf16 %v8706, %v8705
      %v8742 = vpack.c.bf16 %v8708, %v8707
      %v8743 = vpack.c.bf16 %v8710, %v8709
      %v8744 = vpack.c.bf16 %v8712, %v8711
      %v8745 = vpack.c.bf16 %v8714, %v8713
      %v8746 = vpack.c.bf16 %v8716, %v8715
      %v8747 = vpack.c.bf16 %v8718, %v8717
      %v8748 = vpack.c.bf16 %v8720, %v8719
      %v8749 = vpack.c.bf16 %v8722, %v8721
      %v8750 = vpack.c.bf16 %v8724, %v8723
      %v8751 = vpack.c.bf16 %v8726, %v8725
      %v8752 = vpack.c.bf16 %v8728, %v8727
      %v8753 = vpack.c.bf16 %v8730, %v8729
      %v8754 = vpack.c.bf16 %v8732, %v8731
      %v8755 = vpack.c.bf16 %v8734, %v8733
      %v8756 = vpack.c.bf16 %v8736, %v8735
      %v8757 = vpack.c.bf16 %v8738, %v8737
      %v8758 = vpack.c.bf16 %v8740, %v8739
      %s8759 = scalar_lea.vmem %s1, 1600
      %v8760 = vld [vmem:[%s8759] sm:$0xf]
      %v8761 = vld [vmem:[%s8759 + $0x4] sm:$0xf]
      %v8762 = vld [vmem:[%s8759 + $0x8] sm:$0xf]
      %v8763 = vld [vmem:[%s8759 + $0xc] sm:$0xf]
      %v8764 = vld [vmem:[%s8759 + $0x10] sm:$0xf]
      %v8765 = vld [vmem:[%s8759 + $0x14] sm:$0xf]
      %v8766 = vld [vmem:[%s8759 + $0x18] sm:$0xf]
      %v8767 = vld [vmem:[%s8759 + $0x1c] sm:$0xf]
      %v8768 = vld [vmem:[%s8759 + $0x20] sm:$0xf]
      %v8769 = vld [vmem:[%s8759 + $0x24] sm:$0xf]
      %v8770 = vld [vmem:[%s8759 + $0x28] sm:$0xf]
      %v8771 = vld [vmem:[%s8759 + $0x2c] sm:$0xf]
      %v8772 = vld [vmem:[%s8759 + $0x30] sm:$0xf]
      %v8773 = vld [vmem:[%s8759 + $0x34] sm:$0xf]
      %v8774 = vld [vmem:[%s8759 + $0x38] sm:$0xf]
      %v8775 = vld [vmem:[%s8759 + $0x3c] sm:$0xf]
      %v8792 = vunpack.c.l.b16 %v8760
      %v8793 = vunpack.c.l.b16 %v8761
      %v8794 = vunpack.c.l.b16 %v8762
      %v8795 = vunpack.c.l.b16 %v8763
      %v8796 = vunpack.c.l.b16 %v8764
      %v8797 = vunpack.c.l.b16 %v8765
      %v8798 = vunpack.c.l.b16 %v8766
      %v8799 = vunpack.c.l.b16 %v8767
      %v8800 = vunpack.c.l.b16 %v8768
      %v8801 = vunpack.c.l.b16 %v8769
      %v8802 = vunpack.c.l.b16 %v8770
      %v8803 = vunpack.c.l.b16 %v8771
      %v8804 = vunpack.c.l.b16 %v8772
      %v8805 = vunpack.c.l.b16 %v8773
      %v8806 = vunpack.c.l.b16 %v8774
      %v8807 = vunpack.c.l.b16 %v8775
      %v8808 = vpack.c.b16 %v8793, %v8792
      %v8809 = vpack.c.b16 %v8795, %v8794
      %v8810 = vpack.c.b16 %v8797, %v8796
      %v8811 = vpack.c.b16 %v8799, %v8798
      %v8812 = vpack.c.b16 %v8801, %v8800
      %v8813 = vpack.c.b16 %v8803, %v8802
      %v8814 = vpack.c.b16 %v8805, %v8804
      %v8815 = vpack.c.b16 %v8807, %v8806
      %8824 = vmatprep.subr.bf16.mxu0 0
      %8825 = vmatpush1.bf16.msra.mxu0 %v8808
      %8826 = vmatprep.subr.bf16.mxu0 0
      %8827 = vmatpush1.bf16.msra.mxu0 %v8809
      %8828 = vmatprep.subr.bf16.mxu0 0
      %8829 = vmatpush1.bf16.msra.mxu0 %v8810
      %8830 = vmatprep.subr.bf16.mxu0 0
      %8831 = vmatpush1.bf16.msra.mxu0 %v8811
      %8832 = vmatprep.subr.bf16.mxu0 0
      %8833 = vmatpush1.bf16.msra.mxu0 %v8812
      %8834 = vmatprep.subr.bf16.mxu0 0
      %8835 = vmatpush1.bf16.msra.mxu0 %v8813
      %8836 = vmatprep.subr.bf16.mxu0 0
      %8837 = vmatpush1.bf16.msra.mxu0 %v8814
      %8838 = vmatprep.subr.bf16.mxu0 0
      %8839 = vmatpush1.bf16.msra.mxu0 %v8815
      %8840 = vmatprep.subr.bf16.mxu0 0
      %8841 = vmatpush1.bf16.msra.mxu0 0
      %8842 = vmatprep.subr.bf16.mxu0 0
      %8843 = vmatpush1.bf16.msra.mxu0 0
      %8844 = vmatprep.subr.bf16.mxu0 0
      %8845 = vmatpush1.bf16.msra.mxu0 0
      %8846 = vmatprep.subr.bf16.mxu0 0
      %8847 = vmatpush1.bf16.msra.mxu0 0
      %8848 = vmatprep.subr.bf16.mxu0 0
      %8849 = vmatpush1.bf16.msra.mxu0 0
      %8850 = vmatprep.subr.bf16.mxu0 0
      %8851 = vmatpush1.bf16.msra.mxu0 0
      %8852 = vmatprep.subr.bf16.mxu0 0
      %8853 = vmatpush1.bf16.msra.mxu0 0
      %8854 = vmatprep.subr.bf16.mxu0 0
      %8855 = vmatpush1.bf16.msra.mxu0 0
      %8856 = vmatprep.mubr.bf16.mxu0 0
      %8857 = vmatmul.mubr.bf16.gmra.mrb[0].mxu0 %v8741
      %v8858 = vpop.f32.mrb[0].mxu0
      %v8859 = vadd.f32 0.0, %v8858
      %v8860 = vpop.f32.mrb[0].mxu0
      %v8861 = vpop.f32.mrb[0].mxu0
      %v8862 = vadd.f32 0.0, %v8861
      %v8863 = vpop.f32.mrb[0].mxu0
      %8864 = vmatprep.mubr.bf16.mxu0 0
      %8865 = vmatmul.mubr.bf16.gmra.mrb[0].mxu0 %v8742
      %v8866 = vpop.f32.mrb[0].mxu0
      %v8867 = vadd.f32 0.0, %v8866
      %v8868 = vpop.f32.mrb[0].mxu0
      %v8869 = vpop.f32.mrb[0].mxu0
      %v8870 = vadd.f32 0.0, %v8869
      %v8871 = vpop.f32.mrb[0].mxu0
      %8872 = vmatprep.mubr.bf16.mxu0 0
      %8873 = vmatmul.mubr.bf16.gmra.mrb[0].mxu0 %v8743
      %v8874 = vpop.f32.mrb[0].mxu0
      %v8875 = vadd.f32 0.0, %v8874
      %v8876 = vpop.f32.mrb[0].mxu0
      %v8877 = vpop.f32.mrb[0].mxu0
      %v8878 = vadd.f32 0.0, %v8877
      %v8879 = vpop.f32.mrb[0].mxu0
      %8880 = vmatprep.mubr.bf16.mxu0 0
      %8881 = vmatmul.mubr.bf16.gmra.mrb[0].mxu0 %v8744
      %v8882 = vpop.f32.mrb[0].mxu0
      %v8883 = vadd.f32 0.0, %v8882
      %v8884 = vpop.f32.mrb[0].mxu0
      %v8885 = vpop.f32.mrb[0].mxu0
      %v8886 = vadd.f32 0.0, %v8885
      %v8887 = vpop.f32.mrb[0].mxu0
      %8888 = vmatprep.mubr.bf16.mxu0 0
      %8889 = vmatmul.mubr.bf16.gmra.mrb[0].mxu0 %v8745
      %v8890 = vpop.f32.mrb[0].mxu0
      %v8891 = vadd.f32 0.0, %v8890
      %v8892 = vpop.f32.mrb[0].mxu0
      %v8893 = vpop.f32.mrb[0].mxu0
      %v8894 = vadd.f32 0.0, %v8893
      %v8895 = vpop.f32.mrb[0].mxu0
      %8896 = vmatprep.mubr.bf16.mxu0 0
      %8897 = vmatmul.mubr.bf16.gmra.mrb[0].mxu0 %v8746
      %v8898 = vpop.f32.mrb[0].mxu0
      %v8899 = vadd.f32 0.0, %v8898
      %v8900 = vpop.f32.mrb[0].mxu0
      %v8901 = vpop.f32.mrb[0].mxu0
      %v8902 = vadd.f32 0.0, %v8901
      %v8903 = vpop.f32.mrb[0].mxu0
      %8904 = vmatprep.mubr.bf16.mxu0 0
      %8905 = vmatmul.mubr.bf16.gmra.mrb[0].mxu0 %v8747
      %v8906 = vpop.f32.mrb[0].mxu0
      %v8907 = vadd.f32 0.0, %v8906
      %v8908 = vpop.f32.mrb[0].mxu0
      %v8909 = vpop.f32.mrb[0].mxu0
      %v8910 = vadd.f32 0.0, %v8909
      %v8911 = vpop.f32.mrb[0].mxu0
      %8912 = vmatprep.mubr.bf16.mxu0 0
      %8913 = vmatmul.mubr.bf16.gmra.mrb[0].mxu0 %v8748
      %v8914 = vpop.f32.mrb[0].mxu0
      %v8915 = vadd.f32 0.0, %v8914
      %v8916 = vpop.f32.mrb[0].mxu0
      %v8917 = vpop.f32.mrb[0].mxu0
      %v8918 = vadd.f32 0.0, %v8917
      %v8919 = vpop.f32.mrb[0].mxu0
      %8920 = vmatprep.mubr.bf16.mxu0 0
      %8921 = vmatmul.mubr.bf16.gmra.mrb[0].mxu0 %v8749
      %v8922 = vpop.f32.mrb[0].mxu0
      %v8923 = vadd.f32 0.0, %v8922
      %v8924 = vpop.f32.mrb[0].mxu0
      %v8925 = vpop.f32.mrb[0].mxu0
      %v8926 = vadd.f32 0.0, %v8925
      %v8927 = vpop.f32.mrb[0].mxu0
      %8928 = vmatprep.mubr.bf16.mxu0 0
      %8929 = vmatmul.mubr.bf16.gmra.mrb[0].mxu0 %v8750
      %v8930 = vpop.f32.mrb[0].mxu0
      %v8931 = vadd.f32 0.0, %v8930
      %v8932 = vpop.f32.mrb[0].mxu0
      %v8933 = vpop.f32.mrb[0].mxu0
      %v8934 = vadd.f32 0.0, %v8933
      %v8935 = vpop.f32.mrb[0].mxu0
      %8936 = vmatprep.mubr.bf16.mxu0 0
      %8937 = vmatmul.mubr.bf16.gmra.mrb[0].mxu0 %v8751
      %v8938 = vpop.f32.mrb[0].mxu0
      %v8939 = vadd.f32 0.0, %v8938
      %v8940 = vpop.f32.mrb[0].mxu0
      %v8941 = vpop.f32.mrb[0].mxu0
      %v8942 = vadd.f32 0.0, %v8941
      %v8943 = vpop.f32.mrb[0].mxu0
      %8944 = vmatprep.mubr.bf16.mxu0 0
      %8945 = vmatmul.mubr.bf16.gmra.mrb[0].mxu0 %v8752
      %v8946 = vpop.f32.mrb[0].mxu0
      %v8947 = vadd.f32 0.0, %v8946
      %v8948 = vpop.f32.mrb[0].mxu0
      %v8949 = vpop.f32.mrb[0].mxu0
      %v8950 = vadd.f32 0.0, %v8949
      %v8951 = vpop.f32.mrb[0].mxu0
      %8952 = vmatprep.mubr.bf16.mxu0 0
      %8953 = vmatmul.mubr.bf16.gmra.mrb[0].mxu0 %v8753
      %v8954 = vpop.f32.mrb[0].mxu0
      %v8955 = vadd.f32 0.0, %v8954
      %v8956 = vpop.f32.mrb[0].mxu0
      %v8957 = vpop.f32.mrb[0].mxu0
      %v8958 = vadd.f32 0.0, %v8957
      %v8959 = vpop.f32.mrb[0].mxu0
      %8960 = vmatprep.mubr.bf16.mxu0 0
      %8961 = vmatmul.mubr.bf16.gmra.mrb[0].mxu0 %v8754
      %v8962 = vpop.f32.mrb[0].mxu0
      %v8963 = vadd.f32 0.0, %v8962
      %v8964 = vpop.f32.mrb[0].mxu0
      %v8965 = vpop.f32.mrb[0].mxu0
      %v8966 = vadd.f32 0.0, %v8965
      %v8967 = vpop.f32.mrb[0].mxu0
      %8968 = vmatprep.mubr.bf16.mxu0 0
      %8969 = vmatmul.mubr.bf16.gmra.mrb[0].mxu0 %v8755
      %v8970 = vpop.f32.mrb[0].mxu0
      %v8971 = vadd.f32 0.0, %v8970
      %v8972 = vpop.f32.mrb[0].mxu0
      %v8973 = vpop.f32.mrb[0].mxu0
      %v8974 = vadd.f32 0.0, %v8973
      %v8975 = vpop.f32.mrb[0].mxu0
      %8976 = vmatprep.mubr.bf16.mxu0 0
      %8977 = vmatmul.mubr.bf16.gmra.mrb[0].mxu0 %v8756
      %v8978 = vpop.f32.mrb[0].mxu0
      %v8979 = vadd.f32 0.0, %v8978
      %v8980 = vpop.f32.mrb[0].mxu0
      %v8981 = vpop.f32.mrb[0].mxu0
      %v8982 = vadd.f32 0.0, %v8981
      %v8983 = vpop.f32.mrb[0].mxu0
      %8984 = vmatprep.mubr.bf16.mxu0 0
      %8985 = vmatmul.mubr.bf16.gmra.mrb[0].mxu0 %v8757
      %v8986 = vpop.f32.mrb[0].mxu0
      %v8987 = vadd.f32 0.0, %v8986
      %v8988 = vpop.f32.mrb[0].mxu0
      %v8989 = vpop.f32.mrb[0].mxu0
      %v8990 = vadd.f32 0.0, %v8989
      %v8991 = vpop.f32.mrb[0].mxu0
      %8992 = vmatprep.mubr.bf16.mxu0 0
      %8993 = vmatmul.mubr.bf16.gmra.mrb[0].mxu0 %v8758
      %v8994 = vpop.f32.mrb[0].mxu0
      %v8995 = vadd.f32 0.0, %v8994
      %v8996 = vpop.f32.mrb[0].mxu0
      %v8997 = vpop.f32.mrb[0].mxu0
      %v8998 = vadd.f32 0.0, %v8997
      %v8999 = vpop.f32.mrb[0].mxu0
      %9000 = vdwg.mxu0
      %v9001 = vadd.f32 %v8669, %v8859
      %v9002 = vadd.f32 %v8670, %v8862
      %v9003 = vadd.f32 %v8671, %v8867
      %v9004 = vadd.f32 %v8672, %v8870
      %v9005 = vadd.f32 %v8673, %v8875
      %v9006 = vadd.f32 %v8674, %v8878
      %v9007 = vadd.f32 %v8675, %v8883
      %v9008 = vadd.f32 %v8676, %v8886
      %v9009 = vadd.f32 %v8677, %v8891
      %v9010 = vadd.f32 %v8678, %v8894
      %v9011 = vadd.f32 %v8679, %v8899
      %v9012 = vadd.f32 %v8680, %v8902
      %v9013 = vadd.f32 %v8681, %v8907
      %v9014 = vadd.f32 %v8682, %v8910
      %v9015 = vadd.f32 %v8683, %v8915
      %v9016 = vadd.f32 %v8684, %v8918
      %v9017 = vadd.f32 %v8685, %v8923
      %v9018 = vadd.f32 %v8686, %v8926
      %v9019 = vadd.f32 %v8687, %v8931
      %v9020 = vadd.f32 %v8688, %v8934
      %v9021 = vadd.f32 %v8689, %v8939
      %v9022 = vadd.f32 %v8690, %v8942
      %v9023 = vadd.f32 %v8691, %v8947
      %v9024 = vadd.f32 %v8692, %v8950
      %v9025 = vadd.f32 %v8693, %v8955
      %v9026 = vadd.f32 %v8694, %v8958
      %v9027 = vadd.f32 %v8695, %v8963
      %v9028 = vadd.f32 %v8696, %v8966
      %v9029 = vadd.f32 %v8697, %v8971
      %v9030 = vadd.f32 %v8698, %v8974
      %v9031 = vadd.f32 %v8699, %v8979
      %v9032 = vadd.f32 %v8700, %v8982
      %v9033 = vadd.f32 %v8701, %v8987
      %v9034 = vadd.f32 %v8702, %v8990
      %v9035 = vadd.f32 %v8703, %v8995
      %v9036 = vadd.f32 %v8704, %v8998
      %v9037 = vld [vmem:[#allocation3 + $0x2b] sm:$0xff]
      %v9038 = vld [vmem:[#allocation3 + $0x33] sm:$0xff]
      %v9039 = vld [vmem:[#allocation3 + $0x3b] sm:$0xff]
      %v9040 = vld [vmem:[#allocation3 + $0x43] sm:$0xff]
      %v9041 = vld [vmem:[#allocation3 + $0x4b] sm:$0xff]
      %v9042 = vld [vmem:[#allocation3 + $0x53] sm:$0xff]
      %v9043 = vld [vmem:[#allocation3 + $0x5b] sm:$0xff]
      %v9044 = vld [vmem:[#allocation3 + $0x63] sm:$0xff]
      %v9045 = vld [vmem:[#allocation3 + $0x6b] sm:$0xff]
      %v9046 = vld [vmem:[#allocation3 + $0x73] sm:$0xff]
      %v9047 = vld [vmem:[#allocation3 + $0x7b] sm:$0xff]
      %v9048 = vld [vmem:[#allocation3 + $0x83] sm:$0xff]
      %v9049 = vld [vmem:[#allocation3 + $0x8b] sm:$0xff]
      %v9050 = vld [vmem:[#allocation3 + $0x93] sm:$0xff]
      %v9051 = vld [vmem:[#allocation3 + $0x9b] sm:$0xff]
      %v9052 = vld [vmem:[#allocation3 + $0xa3] sm:$0xff]
      %v9053 = vld [vmem:[#allocation3 + $0xab] sm:$0xff]
      %v9054 = vld [vmem:[#allocation3 + $0xb3] sm:$0xff]
      %v9055 = vld [vmem:[#allocation3 + $0xbb] sm:$0xff]
      %v9056 = vld [vmem:[#allocation3 + $0xc3] sm:$0xff]
      %v9057 = vld [vmem:[#allocation3 + $0xcb] sm:$0xff]
      %v9058 = vld [vmem:[#allocation3 + $0xd3] sm:$0xff]
      %v9059 = vld [vmem:[#allocation3 + $0xdb] sm:$0xff]
      %v9060 = vld [vmem:[#allocation3 + $0xe3] sm:$0xff]
      %v9061 = vld [vmem:[#allocation3 + $0xeb] sm:$0xff]
      %v9062 = vld [vmem:[#allocation3 + $0xf3] sm:$0xff]
      %v9063 = vld [vmem:[#allocation3 + $0xfb] sm:$0xff]
      %v9064 = vld [vmem:[#allocation3 + $0x103] sm:$0xff]
      %v9065 = vld [vmem:[#allocation3 + $0x10b] sm:$0xff]
      %v9066 = vld [vmem:[#allocation3 + $0x113] sm:$0xff]
      %v9067 = vld [vmem:[#allocation3 + $0x11b] sm:$0xff]
      %v9068 = vld [vmem:[#allocation3 + $0x123] sm:$0xff]
      %v9069 = vld [vmem:[#allocation3 + $0x12b] sm:$0xff]
      %v9070 = vld [vmem:[#allocation3 + $0x133] sm:$0xff]
      %v9071 = vld [vmem:[#allocation3 + $0x13b] sm:$0xff]
      %v9072 = vld [vmem:[#allocation3 + $0x143] sm:$0xff]
      %v9073 = vpack.c.bf16 %v9038, %v9037
      %v9074 = vpack.c.bf16 %v9040, %v9039
      %v9075 = vpack.c.bf16 %v9042, %v9041
      %v9076 = vpack.c.bf16 %v9044, %v9043
      %v9077 = vpack.c.bf16 %v9046, %v9045
      %v9078 = vpack.c.bf16 %v9048, %v9047
      %v9079 = vpack.c.bf16 %v9050, %v9049
      %v9080 = vpack.c.bf16 %v9052, %v9051
      %v9081 = vpack.c.bf16 %v9054, %v9053
      %v9082 = vpack.c.bf16 %v9056, %v9055
      %v9083 = vpack.c.bf16 %v9058, %v9057
      %v9084 = vpack.c.bf16 %v9060, %v9059
      %v9085 = vpack.c.bf16 %v9062, %v9061
      %v9086 = vpack.c.bf16 %v9064, %v9063
      %v9087 = vpack.c.bf16 %v9066, %v9065
      %v9088 = vpack.c.bf16 %v9068, %v9067
      %v9089 = vpack.c.bf16 %v9070, %v9069
      %v9090 = vpack.c.bf16 %v9072, %v9071
      %s9091 = scalar_lea.vmem %s1, 1664
      %v9092 = vld [vmem:[%s9091] sm:$0xf]
      %v9093 = vld [vmem:[%s9091 + $0x4] sm:$0xf]
      %v9094 = vld [vmem:[%s9091 + $0x8] sm:$0xf]
      %v9095 = vld [vmem:[%s9091 + $0xc] sm:$0xf]
      %v9096 = vld [vmem:[%s9091 + $0x10] sm:$0xf]
      %v9097 = vld [vmem:[%s9091 + $0x14] sm:$0xf]
      %v9098 = vld [vmem:[%s9091 + $0x18] sm:$0xf]
      %v9099 = vld [vmem:[%s9091 + $0x1c] sm:$0xf]
      %v9100 = vld [vmem:[%s9091 + $0x20] sm:$0xf]
      %v9101 = vld [vmem:[%s9091 + $0x24] sm:$0xf]
      %v9102 = vld [vmem:[%s9091 + $0x28] sm:$0xf]
      %v9103 = vld [vmem:[%s9091 + $0x2c] sm:$0xf]
      %v9104 = vld [vmem:[%s9091 + $0x30] sm:$0xf]
      %v9105 = vld [vmem:[%s9091 + $0x34] sm:$0xf]
      %v9106 = vld [vmem:[%s9091 + $0x38] sm:$0xf]
      %v9107 = vld [vmem:[%s9091 + $0x3c] sm:$0xf]
      %v9124 = vunpack.c.l.b16 %v9092
      %v9125 = vunpack.c.l.b16 %v9093
      %v9126 = vunpack.c.l.b16 %v9094
      %v9127 = vunpack.c.l.b16 %v9095
      %v9128 = vunpack.c.l.b16 %v9096
      %v9129 = vunpack.c.l.b16 %v9097
      %v9130 = vunpack.c.l.b16 %v9098
      %v9131 = vunpack.c.l.b16 %v9099
      %v9132 = vunpack.c.l.b16 %v9100
      %v9133 = vunpack.c.l.b16 %v9101
      %v9134 = vunpack.c.l.b16 %v9102
      %v9135 = vunpack.c.l.b16 %v9103
      %v9136 = vunpack.c.l.b16 %v9104
      %v9137 = vunpack.c.l.b16 %v9105
      %v9138 = vunpack.c.l.b16 %v9106
      %v9139 = vunpack.c.l.b16 %v9107
      %v9140 = vpack.c.b16 %v9125, %v9124
      %v9141 = vpack.c.b16 %v9127, %v9126
      %v9142 = vpack.c.b16 %v9129, %v9128
      %v9143 = vpack.c.b16 %v9131, %v9130
      %v9144 = vpack.c.b16 %v9133, %v9132
      %v9145 = vpack.c.b16 %v9135, %v9134
      %v9146 = vpack.c.b16 %v9137, %v9136
      %v9147 = vpack.c.b16 %v9139, %v9138
      %9156 = vmatprep.subr.bf16.mxu0 0
      %9157 = vmatpush1.bf16.msra.mxu0 %v9140
      %9158 = vmatprep.subr.bf16.mxu0 0
      %9159 = vmatpush1.bf16.msra.mxu0 %v9141
      %9160 = vmatprep.subr.bf16.mxu0 0
      %9161 = vmatpush1.bf16.msra.mxu0 %v9142
      %9162 = vmatprep.subr.bf16.mxu0 0
      %9163 = vmatpush1.bf16.msra.mxu0 %v9143
      %9164 = vmatprep.subr.bf16.mxu0 0
      %9165 = vmatpush1.bf16.msra.mxu0 %v9144
      %9166 = vmatprep.subr.bf16.mxu0 0
      %9167 = vmatpush1.bf16.msra.mxu0 %v9145
      %9168 = vmatprep.subr.bf16.mxu0 0
      %9169 = vmatpush1.bf16.msra.mxu0 %v9146
      %9170 = vmatprep.subr.bf16.mxu0 0
      %9171 = vmatpush1.bf16.msra.mxu0 %v9147
      %9172 = vmatprep.subr.bf16.mxu0 0
      %9173 = vmatpush1.bf16.msra.mxu0 0
      %9174 = vmatprep.subr.bf16.mxu0 0
      %9175 = vmatpush1.bf16.msra.mxu0 0
      %9176 = vmatprep.subr.bf16.mxu0 0
      %9177 = vmatpush1.bf16.msra.mxu0 0
      %9178 = vmatprep.subr.bf16.mxu0 0
      %9179 = vmatpush1.bf16.msra.mxu0 0
      %9180 = vmatprep.subr.bf16.mxu0 0
      %9181 = vmatpush1.bf16.msra.mxu0 0
      %9182 = vmatprep.subr.bf16.mxu0 0
      %9183 = vmatpush1.bf16.msra.mxu0 0
      %9184 = vmatprep.subr.bf16.mxu0 0
      %9185 = vmatpush1.bf16.msra.mxu0 0
      %9186 = vmatprep.subr.bf16.mxu0 0
      %9187 = vmatpush1.bf16.msra.mxu0 0
      %9188 = vmatprep.mubr.bf16.mxu0 0
      %9189 = vmatmul.mubr.bf16.gmra.mrb[0].mxu0 %v9073
      %v9190 = vpop.f32.mrb[0].mxu0
      %v9191 = vadd.f32 0.0, %v9190
      %v9192 = vpop.f32.mrb[0].mxu0
      %v9193 = vpop.f32.mrb[0].mxu0
      %v9194 = vadd.f32 0.0, %v9193
      %v9195 = vpop.f32.mrb[0].mxu0
      %9196 = vmatprep.mubr.bf16.mxu0 0
      %9197 = vmatmul.mubr.bf16.gmra.mrb[0].mxu0 %v9074
      %v9198 = vpop.f32.mrb[0].mxu0
      %v9199 = vadd.f32 0.0, %v9198
      %v9200 = vpop.f32.mrb[0].mxu0
      %v9201 = vpop.f32.mrb[0].mxu0
      %v9202 = vadd.f32 0.0, %v9201
      %v9203 = vpop.f32.mrb[0].mxu0
      %9204 = vmatprep.mubr.bf16.mxu0 0
      %9205 = vmatmul.mubr.bf16.gmra.mrb[0].mxu0 %v9075
      %v9206 = vpop.f32.mrb[0].mxu0
      %v9207 = vadd.f32 0.0, %v9206
      %v9208 = vpop.f32.mrb[0].mxu0
      %v9209 = vpop.f32.mrb[0].mxu0
      %v9210 = vadd.f32 0.0, %v9209
      %v9211 = vpop.f32.mrb[0].mxu0
      %9212 = vmatprep.mubr.bf16.mxu0 0
      %9213 = vmatmul.mubr.bf16.gmra.mrb[0].mxu0 %v9076
      %v9214 = vpop.f32.mrb[0].mxu0
      %v9215 = vadd.f32 0.0, %v9214
      %v9216 = vpop.f32.mrb[0].mxu0
      %v9217 = vpop.f32.mrb[0].mxu0
      %v9218 = vadd.f32 0.0, %v9217
      %v9219 = vpop.f32.mrb[0].mxu0
      %9220 = vmatprep.mubr.bf16.mxu0 0
      %9221 = vmatmul.mubr.bf16.gmra.mrb[0].mxu0 %v9077
      %v9222 = vpop.f32.mrb[0].mxu0
      %v9223 = vadd.f32 0.0, %v9222
      %v9224 = vpop.f32.mrb[0].mxu0
      %v9225 = vpop.f32.mrb[0].mxu0
      %v9226 = vadd.f32 0.0, %v9225
      %v9227 = vpop.f32.mrb[0].mxu0
      %9228 = vmatprep.mubr.bf16.mxu0 0
      %9229 = vmatmul.mubr.bf16.gmra.mrb[0].mxu0 %v9078
      %v9230 = vpop.f32.mrb[0].mxu0
      %v9231 = vadd.f32 0.0, %v9230
      %v9232 = vpop.f32.mrb[0].mxu0
      %v9233 = vpop.f32.mrb[0].mxu0
      %v9234 = vadd.f32 0.0, %v9233
      %v9235 = vpop.f32.mrb[0].mxu0
      %9236 = vmatprep.mubr.bf16.mxu0 0
      %9237 = vmatmul.mubr.bf16.gmra.mrb[0].mxu0 %v9079
      %v9238 = vpop.f32.mrb[0].mxu0
      %v9239 = vadd.f32 0.0, %v9238
      %v9240 = vpop.f32.mrb[0].mxu0
      %v9241 = vpop.f32.mrb[0].mxu0
      %v9242 = vadd.f32 0.0, %v9241
      %v9243 = vpop.f32.mrb[0].mxu0
      %9244 = vmatprep.mubr.bf16.mxu0 0
      %9245 = vmatmul.mubr.bf16.gmra.mrb[0].mxu0 %v9080
      %v9246 = vpop.f32.mrb[0].mxu0
      %v9247 = vadd.f32 0.0, %v9246
      %v9248 = vpop.f32.mrb[0].mxu0
      %v9249 = vpop.f32.mrb[0].mxu0
      %v9250 = vadd.f32 0.0, %v9249
      %v9251 = vpop.f32.mrb[0].mxu0
      %9252 = vmatprep.mubr.bf16.mxu0 0
      %9253 = vmatmul.mubr.bf16.gmra.mrb[0].mxu0 %v9081
      %v9254 = vpop.f32.mrb[0].mxu0
      %v9255 = vadd.f32 0.0, %v9254
      %v9256 = vpop.f32.mrb[0].mxu0
      %v9257 = vpop.f32.mrb[0].mxu0
      %v9258 = vadd.f32 0.0, %v9257
      %v9259 = vpop.f32.mrb[0].mxu0
      %9260 = vmatprep.mubr.bf16.mxu0 0
      %9261 = vmatmul.mubr.bf16.gmra.mrb[0].mxu0 %v9082
      %v9262 = vpop.f32.mrb[0].mxu0
      %v9263 = vadd.f32 0.0, %v9262
      %v9264 = vpop.f32.mrb[0].mxu0
      %v9265 = vpop.f32.mrb[0].mxu0
      %v9266 = vadd.f32 0.0, %v9265
      %v9267 = vpop.f32.mrb[0].mxu0
      %9268 = vmatprep.mubr.bf16.mxu0 0
      %9269 = vmatmul.mubr.bf16.gmra.mrb[0].mxu0 %v9083
      %v9270 = vpop.f32.mrb[0].mxu0
      %v9271 = vadd.f32 0.0, %v9270
      %v9272 = vpop.f32.mrb[0].mxu0
      %v9273 = vpop.f32.mrb[0].mxu0
      %v9274 = vadd.f32 0.0, %v9273
      %v9275 = vpop.f32.mrb[0].mxu0
      %9276 = vmatprep.mubr.bf16.mxu0 0
      %9277 = vmatmul.mubr.bf16.gmra.mrb[0].mxu0 %v9084
      %v9278 = vpop.f32.mrb[0].mxu0
      %v9279 = vadd.f32 0.0, %v9278
      %v9280 = vpop.f32.mrb[0].mxu0
      %v9281 = vpop.f32.mrb[0].mxu0
      %v9282 = vadd.f32 0.0, %v9281
      %v9283 = vpop.f32.mrb[0].mxu0
      %9284 = vmatprep.mubr.bf16.mxu0 0
      %9285 = vmatmul.mubr.bf16.gmra.mrb[0].mxu0 %v9085
      %v9286 = vpop.f32.mrb[0].mxu0
      %v9287 = vadd.f32 0.0, %v9286
      %v9288 = vpop.f32.mrb[0].mxu0
      %v9289 = vpop.f32.mrb[0].mxu0
      %v9290 = vadd.f32 0.0, %v9289
      %v9291 = vpop.f32.mrb[0].mxu0
      %9292 = vmatprep.mubr.bf16.mxu0 0
      %9293 = vmatmul.mubr.bf16.gmra.mrb[0].mxu0 %v9086
      %v9294 = vpop.f32.mrb[0].mxu0
      %v9295 = vadd.f32 0.0, %v9294
      %v9296 = vpop.f32.mrb[0].mxu0
      %v9297 = vpop.f32.mrb[0].mxu0
      %v9298 = vadd.f32 0.0, %v9297
      %v9299 = vpop.f32.mrb[0].mxu0
      %9300 = vmatprep.mubr.bf16.mxu0 0
      %9301 = vmatmul.mubr.bf16.gmra.mrb[0].mxu0 %v9087
      %v9302 = vpop.f32.mrb[0].mxu0
      %v9303 = vadd.f32 0.0, %v9302
      %v9304 = vpop.f32.mrb[0].mxu0
      %v9305 = vpop.f32.mrb[0].mxu0
      %v9306 = vadd.f32 0.0, %v9305
      %v9307 = vpop.f32.mrb[0].mxu0
      %9308 = vmatprep.mubr.bf16.mxu0 0
      %9309 = vmatmul.mubr.bf16.gmra.mrb[0].mxu0 %v9088
      %v9310 = vpop.f32.mrb[0].mxu0
      %v9311 = vadd.f32 0.0, %v9310
      %v9312 = vpop.f32.mrb[0].mxu0
      %v9313 = vpop.f32.mrb[0].mxu0
      %v9314 = vadd.f32 0.0, %v9313
      %v9315 = vpop.f32.mrb[0].mxu0
      %9316 = vmatprep.mubr.bf16.mxu0 0
      %9317 = vmatmul.mubr.bf16.gmra.mrb[0].mxu0 %v9089
      %v9318 = vpop.f32.mrb[0].mxu0
      %v9319 = vadd.f32 0.0, %v9318
      %v9320 = vpop.f32.mrb[0].mxu0
      %v9321 = vpop.f32.mrb[0].mxu0
      %v9322 = vadd.f32 0.0, %v9321
      %v9323 = vpop.f32.mrb[0].mxu0
      %9324 = vmatprep.mubr.bf16.mxu0 0
      %9325 = vmatmul.mubr.bf16.gmra.mrb[0].mxu0 %v9090
      %v9326 = vpop.f32.mrb[0].mxu0
      %v9327 = vadd.f32 0.0, %v9326
      %v9328 = vpop.f32.mrb[0].mxu0
      %v9329 = vpop.f32.mrb[0].mxu0
      %v9330 = vadd.f32 0.0, %v9329
      %v9331 = vpop.f32.mrb[0].mxu0
      %9332 = vdwg.mxu0
      %v9333 = vadd.f32 %v9001, %v9191
      %v9334 = vadd.f32 %v9002, %v9194
      %v9335 = vadd.f32 %v9003, %v9199
      %v9336 = vadd.f32 %v9004, %v9202
      %v9337 = vadd.f32 %v9005, %v9207
      %v9338 = vadd.f32 %v9006, %v9210
      %v9339 = vadd.f32 %v9007, %v9215
      %v9340 = vadd.f32 %v9008, %v9218
      %v9341 = vadd.f32 %v9009, %v9223
      %v9342 = vadd.f32 %v9010, %v9226
      %v9343 = vadd.f32 %v9011, %v9231
      %v9344 = vadd.f32 %v9012, %v9234
      %v9345 = vadd.f32 %v9013, %v9239
      %v9346 = vadd.f32 %v9014, %v9242
      %v9347 = vadd.f32 %v9015, %v9247
      %v9348 = vadd.f32 %v9016, %v9250
      %v9349 = vadd.f32 %v9017, %v9255
      %v9350 = vadd.f32 %v9018, %v9258
      %v9351 = vadd.f32 %v9019, %v9263
      %v9352 = vadd.f32 %v9020, %v9266
      %v9353 = vadd.f32 %v9021, %v9271
      %v9354 = vadd.f32 %v9022, %v9274
      %v9355 = vadd.f32 %v9023, %v9279
      %v9356 = vadd.f32 %v9024, %v9282
      %v9357 = vadd.f32 %v9025, %v9287
      %v9358 = vadd.f32 %v9026, %v9290
      %v9359 = vadd.f32 %v9027, %v9295
      %v9360 = vadd.f32 %v9028, %v9298
      %v9361 = vadd.f32 %v9029, %v9303
      %v9362 = vadd.f32 %v9030, %v9306
      %v9363 = vadd.f32 %v9031, %v9311
      %v9364 = vadd.f32 %v9032, %v9314
      %v9365 = vadd.f32 %v9033, %v9319
      %v9366 = vadd.f32 %v9034, %v9322
      %v9367 = vadd.f32 %v9035, %v9327
      %v9368 = vadd.f32 %v9036, %v9330
      %s9369 = scalar_lea.vmem %s2, 2
      %v9370 = vld [vmem:[%s9369] sm:$0x1]
      %v9372 = vlaneseq
      %v9373 = vshrl.u32 %v9372, 7
      %v9374 = vsub.s32 0, %v9373
      %v9375 = vrot.slane %v9370, %v9374
      %v9377 = vadd.f32 %v9333, %v9375
      %v9378 = vadd.f32 %v9334, %v9375
      %v9379 = vadd.f32 %v9335, %v9375
      %v9380 = vadd.f32 %v9336, %v9375
      %v9381 = vadd.f32 %v9337, %v9375
      %v9382 = vadd.f32 %v9338, %v9375
      %v9383 = vadd.f32 %v9339, %v9375
      %v9384 = vadd.f32 %v9340, %v9375
      %v9385 = vadd.f32 %v9341, %v9375
      %v9386 = vadd.f32 %v9342, %v9375
      %v9387 = vadd.f32 %v9343, %v9375
      %v9388 = vadd.f32 %v9344, %v9375
      %v9389 = vadd.f32 %v9345, %v9375
      %v9390 = vadd.f32 %v9346, %v9375
      %v9391 = vadd.f32 %v9347, %v9375
      %v9392 = vadd.f32 %v9348, %v9375
      %v9393 = vadd.f32 %v9349, %v9375
      %v9394 = vadd.f32 %v9350, %v9375
      %v9395 = vadd.f32 %v9351, %v9375
      %v9396 = vadd.f32 %v9352, %v9375
      %v9397 = vadd.f32 %v9353, %v9375
      %v9398 = vadd.f32 %v9354, %v9375
      %v9399 = vadd.f32 %v9355, %v9375
      %v9400 = vadd.f32 %v9356, %v9375
      %v9401 = vadd.f32 %v9357, %v9375
      %v9402 = vadd.f32 %v9358, %v9375
      %v9403 = vadd.f32 %v9359, %v9375
      %v9404 = vadd.f32 %v9360, %v9375
      %v9405 = vadd.f32 %v9361, %v9375
      %v9406 = vadd.f32 %v9362, %v9375
      %v9407 = vadd.f32 %v9363, %v9375
      %v9408 = vadd.f32 %v9364, %v9375
      %v9409 = vadd.f32 %v9365, %v9375
      %v9410 = vadd.f32 %v9366, %v9375
      %v9411 = vadd.f32 %v9367, %v9375
      %v9412 = vadd.f32 %v9368, %v9375
      %9413 = vst [vmem:[%s197] sm:$0xff] %v9377
      %9414 = vst [vmem:[%s197 + $0x8] sm:$0xff] %v9378
      %9415 = vst [vmem:[%s197 + $0x10] sm:$0xff] %v9379
      %9416 = vst [vmem:[%s197 + $0x18] sm:$0xff] %v9380
      %9417 = vst [vmem:[%s197 + $0x20] sm:$0xff] %v9381
      %9418 = vst [vmem:[%s197 + $0x28] sm:$0xff] %v9382
      %9419 = vst [vmem:[%s197 + $0x30] sm:$0xff] %v9383
      %9420 = vst [vmem:[%s197 + $0x38] sm:$0xff] %v9384
      %9421 = vst [vmem:[%s197 + $0x40] sm:$0xff] %v9385
      %9422 = vst [vmem:[%s197 + $0x48] sm:$0xff] %v9386
      %9423 = vst [vmem:[%s197 + $0x50] sm:$0xff] %v9387
      %9424 = vst [vmem:[%s197 + $0x58] sm:$0xff] %v9388
      %9425 = vst [vmem:[%s197 + $0x60] sm:$0xff] %v9389
      %9426 = vst [vmem:[%s197 + $0x68] sm:$0xff] %v9390
      %9427 = vst [vmem:[%s197 + $0x70] sm:$0xff] %v9391
      %9428 = vst [vmem:[%s197 + $0x78] sm:$0xff] %v9392
      %9429 = vst [vmem:[%s197 + $0x80] sm:$0xff] %v9393
      %9430 = vst [vmem:[%s197 + $0x88] sm:$0xff] %v9394
      %9431 = vst [vmem:[%s197 + $0x90] sm:$0xff] %v9395
      %9432 = vst [vmem:[%s197 + $0x98] sm:$0xff] %v9396
      %9433 = vst [vmem:[%s197 + $0xa0] sm:$0xff] %v9397
      %9434 = vst [vmem:[%s197 + $0xa8] sm:$0xff] %v9398
      %9435 = vst [vmem:[%s197 + $0xb0] sm:$0xff] %v9399
      %9436 = vst [vmem:[%s197 + $0xb8] sm:$0xff] %v9400
      %9437 = vst [vmem:[%s197 + $0xc0] sm:$0xff] %v9401
      %9438 = vst [vmem:[%s197 + $0xc8] sm:$0xff] %v9402
      %9439 = vst [vmem:[%s197 + $0xd0] sm:$0xff] %v9403
      %9440 = vst [vmem:[%s197 + $0xd8] sm:$0xff] %v9404
      %9441 = vst [vmem:[%s197 + $0xe0] sm:$0xff] %v9405
      %9442 = vst [vmem:[%s197 + $0xe8] sm:$0xff] %v9406
      %9443 = vst [vmem:[%s197 + $0xf0] sm:$0xff] %v9407
      %9444 = vst [vmem:[%s197 + $0xf8] sm:$0xff] %v9408
      %9445 = vst [vmem:[%s197 + $0x100] sm:$0xff] %v9409
      %9446 = vst [vmem:[%s197 + $0x108] sm:$0xff] %v9410
      %9447 = vst [vmem:[%s197 + $0x110] sm:$0xff] %v9411
      %9448 = vst [vmem:[%s197 + $0x118] sm:$0xff] %v9412
      %p9449 = scmp.lt.s32.totalorder %s15, 1
      %s9450 = scalar_select %p9449, %s15, 1
      %s9451 = smul.addr %s9450, 36
      %s9452 = smul.addr %s9451, 8
      %s9453 = scalar_lea.vmem %s4, %s9452
      // Predicated region
      $region37: #{_lambda_.1} parent=35 // pred_check
        %p9454 = pneg %p122
      $region38: #{_lambda_.1} parent=35 // pred_check_branch
        %9456 = sbr.rel (%p9454) target = $region40
      $region39: #{_lambda_.1} parent=35 // pred_region
        _
      $region40: #{_lambda_.1} parent=35 // pred_fallthru
        _
    $region36: #{_lambda_.1} parent=5 // pred_fallthru
      _
    %p9457 = scmp.le.s32.totalorder 2, %s10
    // Predicated region
    $region41: #{_lambda_.1} parent=5 // pred_check
      %p9458 = pneg %p9457
    $region42: #{_lambda_.1} parent=5 // pred_check_branch
      %9460 = sbr.rel (%p9458) target = $region44
    $region43: #{_lambda_.1} parent=5 // pred_region
      %s9461 = ssub.s32 %s10, 2
      // Predicated region
      $region45: #{_lambda_.1} parent=43 // pred_check
        %p9462 = pneg %p128
      $region46: #{_lambda_.1} parent=43 // pred_check_branch
        %9464 = sbr.rel (%p9462) target = $region48
      $region47: #{_lambda_.1} parent=43 // pred_region
        %p9465 = scmp.lt.s32.totalorder %s16, 1
        %s9466 = scalar_select %p9465, %s16, 1
        %s9467 = smul.addr %s9466, 36
        %s9468 = smul.addr %s9467, 8
        %s9469 = scalar_lea.vmem %s4, %s9468
      $region48: #{_lambda_.1} parent=43 // pred_fallthru
        _
    $region44: #{_lambda_.1} parent=5 // pred_fallthru
      _
  $region6: #{_lambda_.1} parent=0 // loop_footer
    %s14 = sadd.s32 1, %s10
  $region7: #{_lambda_.1} parent=0 // loop_footer_branch
    %9 = sbr.rel target = $region3
  $region8: #{_lambda_.1} parent=0 // loop_exit
    _

</llo_original>
